<compile_context>
chip_gen: v7x
topology: tpu7x:2x2x1
jax: 0.10.0
libtpu: 0.0.40
codegen_flags: <defaults>
</compile_context>

<pallas_src>
import numpy as np

import jax
import jax.numpy as jnp
from jax.experimental import pallas as pl
from jax.experimental.pallas import tpu as pltpu  # noqa: F401  (TPU backend)

NEG_SLOPE = 0.01  # nn.LeakyReLU() default negative slope


# ---------------------------------------------------------------------------
# One-time host-side weight repacking (padding + strides + batch folded in).
# ---------------------------------------------------------------------------
def _make_conv_mats(w_oihw, b, wo, n_batch, out_row_order):
    """Prepack a stride-2 / pad-1 3x3 conv for the M-stacked kernel.

    Returns:
      selb[dh] : (N*Ho, N*H)      0/1 block-diagonal batched row gather over
                                  the UNPADDED input rows; taps that fall in
                                  the pad are all-zero rows.
      big[dh]  : (W*Cin, Wo*Cout) folds W-taps + W-stride-2 + channel
                                  contraction over the UNPADDED width; pad
                                  taps are zero rows.
      bias     : (1, Wo*Cout)

    out_row_order:
      "nh" -> output row = n*Ho + ho   (feeds the next conv layer)
      "hn" -> output row = ho*N + n    (last layer: h-major so the final
                                        Linear takes static per-h row slices)
    """
    w = np.asarray(w_oihw, np.float32)          # (Cout, Cin, 3, 3)
    bias = np.asarray(b, np.float32)
    cout, cin, kh, kw = w.shape
    assert kh == 3 and kw == 3
    ho = wo
    h_in = w_in = 2 * wo                        # unpadded input spatial extent

    selb = np.zeros((3, n_batch * ho, n_batch * h_in), np.float32)
    for dh in range(3):
        for n in range(n_batch):
            for r in range(ho):
                src = 2 * r + dh - 1            # pad=1 folded: may be OOB
                if 0 <= src < h_in:
                    out_row = n * ho + r if out_row_order == "nh" else r * n_batch + n
                    selb[dh, out_row, n * h_in + src] = 1.0

    big = np.zeros((3, w_in * cin, wo * cout), np.float32)
    for dh in range(3):
        for o in range(wo):
            for dw in range(3):
                src = 2 * o + dw - 1            # pad=1 folded: may be OOB
                if 0 <= src < w_in:
                    big[dh,
                        src * cin:(src + 1) * cin,
                        o * cout:(o + 1) * cout] = w[:, :, dh, dw].T   # (Cin, Cout)

    btile = np.tile(bias, wo).reshape(1, wo * cout)
    return (jnp.asarray(selb, jnp.bfloat16),
            jnp.asarray(big, jnp.bfloat16),
            jnp.asarray(btile, jnp.float32))


def _make_linear_mats(mu_w, mu_b, sigma_w, sigma_b):
    """Fuse mu/sigma Linears; fold the NCHW flatten permutation + transpose.

    Kernel features after conv4 are two (N,128) row blocks (h=0, h=1) with
    columns w*64 + c.  torch.flatten uses k = c*4 + h*2 + w.
    wl: (2, 128, 512) bf16 with wl[h, w*64+c, j'] = W[j, c*4+h*2+w]
    (j' < 256 -> mu, j' >= 256 -> sigma); bl: (1, 512) f32.
    """
    def reorder(wm):
        w = np.asarray(wm, np.float32)                    # (256, 256) [out, in]
        assert w.shape == (256, 256)
        wt = w.T.reshape(64, 2, 2, 256)                   # (c, h, w, j)
        return wt.transpose(1, 2, 0, 3).reshape(2, 128, 256)   # (h, w*64+c, j)

    wl = np.concatenate([reorder(mu_w), reorder(sigma_w)], axis=-1)   # (2,128,512)
    bl = np.concatenate([np.asarray(mu_b, np.float32),
                         np.asarray(sigma_b, np.float32)]).reshape(1, 512)
    return jnp.asarray(wl, jnp.bfloat16), jnp.asarray(bl, jnp.float32)


def prepare_params(params, batch_size):
    """One-time repack of PyTorch-layout params for a fixed batch size."""
    prep = {}
    cfg = [("conv1_w", "conv1_b", 16, "nh"),
           ("conv2_w", "conv2_b", 8, "nh"),
           ("conv3_w", "conv3_b", 4, "nh"),
           ("conv4_w", "conv4_b", 2, "hn")]
    for idx, (wk, bk, wo, order) in enumerate(cfg, start=1):
        s, w, b = _make_conv_mats(params[wk], params[bk], wo, batch_size, order)
        prep[f"s{idx}"], prep[f"w{idx}"], prep[f"b{idx}"] = s, w, b
    prep["wl"], prep["bl"] = _make_linear_mats(
        params["mu_w"], params["mu_b"], params["sigma_w"], params["sigma_b"])
    return prep


# ---------------------------------------------------------------------------
# The single fused Pallas kernel (whole batch, M-stacked)
# ---------------------------------------------------------------------------
def _encoder_kernel(x_ref,
                    s1, w1, b1, s2, w2, b2, s3, w3, b3, s4, w4, b4,
                    wl, bl,
                    out_ref):
    n = out_ref.shape[0]
    layers = ((s1, w1, b1), (s2, w2, b2), (s3, w3, b3), (s4, w4, b4))

    # Activation layout: rows = n*H + h (last layer: h*N + n), cols = w*Cin+c.
    a = x_ref[...]                                           # (N*32, 32) bf16

    for s_ref, w_ref, b_ref in layers:
        acc = None
        for dh in range(3):
            # Batched H-stride-2 row gather as an exact 0/1 matmul (MXU).
            rows = jnp.dot(s_ref[dh], a,
                           preferred_element_type=jnp.float32)
            rows = rows.astype(jnp.bfloat16)                 # exact (0/1 gather)
            part = jnp.dot(rows, w_ref[dh],
                           preferred_element_type=jnp.float32)
            acc = part if acc is None else acc + part        # (N*Ho, Wo*Cout)
        y = acc + b_ref[...]                                 # f32 epilogue
        a = jnp.where(y > 0, y, NEG_SLOPE * y).astype(jnp.bfloat16)

    # a: (2N, 128), h-major rows.  Fused, batched mu|sigma Linear.
    f_h0 = a[0:n, :]                                         # (N, 128) bf16
    f_h1 = a[n:2 * n, :]                                     # (N, 128) bf16
    out_ref[...] = (jnp.dot(f_h0, wl[0], preferred_element_type=jnp.float32)
                    + jnp.dot(f_h1, wl[1], preferred_element_type=jnp.float32)
                    + bl[...])                               # (N, 512) f32


def encoder_forward(prep, x_nchw):
    n, c, h, w = x_nchw.shape
    assert c == 1 and h == 32 and w == 32, "Encoder(z_size=256) implies 1x32x32"
    assert prep["s1"].shape[1] == 16 * n, "prep was built for a different batch size"
    x2 = x_nchw.reshape(n * h, w).astype(jnp.bfloat16)       # (N*32, 32)
    z = pl.pallas_call(
        _encoder_kernel,
        out_shape=jax.ShapeDtypeStruct((n, 512), jnp.float32),
    )(x2,
      prep["s1"], prep["w1"], prep["b1"],
      prep["s2"], prep["w2"], prep["b2"],
      prep["s3"], prep["w3"], prep["b3"],
      prep["s4"], prep["w4"], prep["b4"],
      prep["wl"], prep["bl"])
    return z[:, :256], z[:, 256:]                            # mu, sigma


# ---------------------------------------------------------------------------
# Pure-JAX reference (for correctness check)
# ---------------------------------------------------------------------------
def encoder_forward_ref(params, x_nchw):
    def conv(x, w, b):
        y = jax.lax.conv_general_dilated(
            x, w, window_strides=(2, 2), padding=((1, 1), (1, 1)),
            dimension_numbers=("NCHW", "OIHW", "NCHW"))
        y = y + b.reshape(1, -1, 1, 1)
        return jnp.where(y > 0, y, NEG_SLOPE * y)

    x = conv(x_nchw, params["conv1_w"], params["conv1_b"])
    x = conv(x, params["conv2_w"], params["conv2_b"])
    x = conv(x, params["conv3_w"], params["conv3_b"])
    x = conv(x, params["conv4_w"], params["conv4_b"])
    feat = x.reshape(x.shape[0], -1)
    mu = feat @ params["mu_w"].T + params["mu_b"]
    sigma = feat @ params["sigma_w"].T + params["sigma_b"]
    return mu, sigma


# ---------------------------------------------------------------------------
# Deterministic parameter init (synthetic; shapes from Encoder.__init__)
# ---------------------------------------------------------------------------
def init_params(key, z_size=256):
    ks = jax.random.split(key, 12)
    scale = 0.05

    def w(k, shape):
        return scale * jax.random.normal(k, shape, dtype=jnp.float32)

    return {
        "conv1_w": w(ks[0], (32, 1, 3, 3)),   "conv1_b": w(ks[1], (32,)),
        "conv2_w": w(ks[2], (64, 32, 3, 3)),  "conv2_b": w(ks[3], (64,)),
        "conv3_w": w(ks[4], (64, 64, 3, 3)),  "conv3_b": w(ks[5], (64,)),
        "conv4_w": w(ks[6], (64, 64, 3, 3)),  "conv4_b": w(ks[7], (64,)),
        "mu_w": w(ks[8], (z_size, z_size)),   "mu_b": w(ks[9], (z_size,)),
        "sigma_w": w(ks[10], (z_size, z_size)), "sigma_b": w(ks[11], (z_size,)),
    }


if __name__ == "__main__":
    key = jax.random.PRNGKey(0)
    k_param, k_x = jax.random.split(key)
    params = init_params(k_param, z_size=256)

    N = 2
    prep = prepare_params(params, batch_size=N)   # one-time host-side repack

    # Linear(z_size=256) after 4 stride-2 convs with 64 channels implies a
    # 32x32 single-channel input: 64 * (32/16) * (32/16) = 256.
    x = jax.random.normal(k_x, (N, 1, 32, 32), dtype=jnp.float32)

    fwd = jax.jit(encoder_forward)
    mu, sigma = fwd(prep, x)
    jax.block_until_ready((mu, sigma))

    mu_ref, sigma_ref = jax.jit(encoder_forward_ref)(params, x)
    assert mu.shape == (N, 256) and sigma.shape == (N, 256)
    # bf16 MXU inputs -> slightly relaxed tolerance vs the pure-f32 reference.
    assert jnp.allclose(mu, mu_ref, atol=2e-3, rtol=2e-2), \
        float(jnp.max(jnp.abs(mu - mu_ref)))
    assert jnp.allclose(sigma, sigma_ref, atol=2e-3, rtol=2e-2), \
        float(jnp.max(jnp.abs(sigma - sigma_ref)))

    print("KERNEL_OK")
</pallas_src>

<mosaic_0001>
module attributes {stable_mosaic.version = 11 : i64} {
  func.func @_encoder_kernel(%arg0: memref<64x32xbf16, #tpu.memory_space<vmem>>, %arg1: memref<3x32x64xbf16, #tpu.memory_space<vmem>>, %arg2: memref<3x32x512xbf16, #tpu.memory_space<vmem>>, %arg3: memref<1x512xf32, #tpu.memory_space<vmem>>, %arg4: memref<3x16x32xbf16, #tpu.memory_space<vmem>>, %arg5: memref<3x512x512xbf16, #tpu.memory_space<vmem>>, %arg6: memref<1x512xf32, #tpu.memory_space<vmem>>, %arg7: memref<3x8x16xbf16, #tpu.memory_space<vmem>>, %arg8: memref<3x512x256xbf16, #tpu.memory_space<vmem>>, %arg9: memref<1x256xf32, #tpu.memory_space<vmem>>, %arg10: memref<3x4x8xbf16, #tpu.memory_space<vmem>>, %arg11: memref<3x256x128xbf16, #tpu.memory_space<vmem>>, %arg12: memref<1x128xf32, #tpu.memory_space<vmem>>, %arg13: memref<2x128x512xbf16, #tpu.memory_space<vmem>>, %arg14: memref<1x512xf32, #tpu.memory_space<vmem>>, %arg15: memref<2x512xf32, #tpu.memory_space<vmem>>) attributes {dimension_semantics = [], scalar_prefetch = 0 : i64, scratch_operands = 0 : i64, tpu.core_type = #tpu.core_type<tc>} {
    %c0 = arith.constant 0 : index
    %c0_0 = arith.constant 0 : index
    %0 = vector.load %arg0[%c0, %c0_0] : memref<64x32xbf16, #tpu.memory_space<vmem>>, vector<64x32xbf16>
    %c0_1 = arith.constant 0 : index
    %c0_2 = arith.constant 0 : index
    %c0_3 = arith.constant 0 : index
    %1 = vector.load %arg1[%c0_1, %c0_2, %c0_3] : memref<3x32x64xbf16, #tpu.memory_space<vmem>>, vector<1x32x64xbf16>
    %2 = vector.shape_cast %1 : vector<1x32x64xbf16> to vector<32x64xbf16>
    %cst = arith.constant dense<0.000000e+00> : vector<32x32xf32>
    %3 = tpu.matmul %2, %0, %cst {dimension_numbers = #tpu.dot_dimension_numbers<[1], [0], [0], [1], [0, 0, 1, 1], [], []>} : vector<32x64xbf16>, vector<64x32xbf16>, vector<32x32xf32> -> vector<32x32xf32>
    %4 = arith.truncf %3 : vector<32x32xf32> to vector<32x32xbf16>
    %c0_4 = arith.constant 0 : index
    %c0_5 = arith.constant 0 : index
    %c0_6 = arith.constant 0 : index
    %5 = vector.load %arg2[%c0_4, %c0_5, %c0_6] : memref<3x32x512xbf16, #tpu.memory_space<vmem>>, vector<1x32x512xbf16>
    %6 = vector.shape_cast %5 : vector<1x32x512xbf16> to vector<32x512xbf16>
    %cst_7 = arith.constant dense<0.000000e+00> : vector<32x512xf32>
    %7 = tpu.matmul %4, %6, %cst_7 {dimension_numbers = #tpu.dot_dimension_numbers<[1], [0], [0], [1], [0, 0, 1, 1], [], []>} : vector<32x32xbf16>, vector<32x512xbf16>, vector<32x512xf32> -> vector<32x512xf32>
    %c1 = arith.constant 1 : index
    %c0_8 = arith.constant 0 : index
    %c0_9 = arith.constant 0 : index
    %8 = vector.load %arg1[%c1, %c0_8, %c0_9] : memref<3x32x64xbf16, #tpu.memory_space<vmem>>, vector<1x32x64xbf16>
    %9 = vector.shape_cast %8 : vector<1x32x64xbf16> to vector<32x64xbf16>
    %cst_10 = arith.constant dense<0.000000e+00> : vector<32x32xf32>
    %10 = tpu.matmul %9, %0, %cst_10 {dimension_numbers = #tpu.dot_dimension_numbers<[1], [0], [0], [1], [0, 0, 1, 1], [], []>} : vector<32x64xbf16>, vector<64x32xbf16>, vector<32x32xf32> -> vector<32x32xf32>
    %11 = arith.truncf %10 : vector<32x32xf32> to vector<32x32xbf16>
    %c1_11 = arith.constant 1 : index
    %c0_12 = arith.constant 0 : index
    %c0_13 = arith.constant 0 : index
    %12 = vector.load %arg2[%c1_11, %c0_12, %c0_13] : memref<3x32x512xbf16, #tpu.memory_space<vmem>>, vector<1x32x512xbf16>
    %13 = vector.shape_cast %12 : vector<1x32x512xbf16> to vector<32x512xbf16>
    %cst_14 = arith.constant dense<0.000000e+00> : vector<32x512xf32>
    %14 = tpu.matmul %11, %13, %cst_14 {dimension_numbers = #tpu.dot_dimension_numbers<[1], [0], [0], [1], [0, 0, 1, 1], [], []>} : vector<32x32xbf16>, vector<32x512xbf16>, vector<32x512xf32> -> vector<32x512xf32>
    %15 = arith.addf %7, %14 : vector<32x512xf32>
    %c2 = arith.constant 2 : index
    %c0_15 = arith.constant 0 : index
    %c0_16 = arith.constant 0 : index
    %16 = vector.load %arg1[%c2, %c0_15, %c0_16] : memref<3x32x64xbf16, #tpu.memory_space<vmem>>, vector<1x32x64xbf16>
    %17 = vector.shape_cast %16 : vector<1x32x64xbf16> to vector<32x64xbf16>
    %cst_17 = arith.constant dense<0.000000e+00> : vector<32x32xf32>
    %18 = tpu.matmul %17, %0, %cst_17 {dimension_numbers = #tpu.dot_dimension_numbers<[1], [0], [0], [1], [0, 0, 1, 1], [], []>} : vector<32x64xbf16>, vector<64x32xbf16>, vector<32x32xf32> -> vector<32x32xf32>
    %19 = arith.truncf %18 : vector<32x32xf32> to vector<32x32xbf16>
    %c2_18 = arith.constant 2 : index
    %c0_19 = arith.constant 0 : index
    %c0_20 = arith.constant 0 : index
    %20 = vector.load %arg2[%c2_18, %c0_19, %c0_20] : memref<3x32x512xbf16, #tpu.memory_space<vmem>>, vector<1x32x512xbf16>
    %21 = vector.shape_cast %20 : vector<1x32x512xbf16> to vector<32x512xbf16>
    %cst_21 = arith.constant dense<0.000000e+00> : vector<32x512xf32>
    %22 = tpu.matmul %19, %21, %cst_21 {dimension_numbers = #tpu.dot_dimension_numbers<[1], [0], [0], [1], [0, 0, 1, 1], [], []>} : vector<32x32xbf16>, vector<32x512xbf16>, vector<32x512xf32> -> vector<32x512xf32>
    %23 = arith.addf %15, %22 : vector<32x512xf32>
    %c0_22 = arith.constant 0 : index
    %c0_23 = arith.constant 0 : index
    %24 = vector.load %arg3[%c0_22, %c0_23] : memref<1x512xf32, #tpu.memory_space<vmem>>, vector<1x512xf32>
    %25 = vector.broadcast %24 : vector<1x512xf32> to vector<32x512xf32>
    %26 = arith.addf %23, %25 : vector<32x512xf32>
    %cst_24 = arith.constant 0.000000e+00 : f32
    %27 = vector.broadcast %cst_24 : f32 to vector<32x512xf32>
    %28 = arith.cmpf ogt, %26, %27 : vector<32x512xf32>
    %cst_25 = arith.constant 0.00999999977 : f32
    %29 = vector.broadcast %cst_25 : f32 to vector<32x512xf32>
    %30 = arith.mulf %29, %26 : vector<32x512xf32>
    %31 = arith.select %28, %26, %30 : vector<32x512xi1>, vector<32x512xf32>
    %32 = arith.truncf %31 : vector<32x512xf32> to vector<32x512xbf16>
    %c0_26 = arith.constant 0 : index
    %c0_27 = arith.constant 0 : index
    %c0_28 = arith.constant 0 : index
    %33 = vector.load %arg4[%c0_26, %c0_27, %c0_28] : memref<3x16x32xbf16, #tpu.memory_space<vmem>>, vector<1x16x32xbf16>
    %34 = vector.shape_cast %33 : vector<1x16x32xbf16> to vector<16x32xbf16>
    %cst_29 = arith.constant dense<0.000000e+00> : vector<16x512xf32>
    %35 = tpu.matmul %34, %32, %cst_29 {dimension_numbers = #tpu.dot_dimension_numbers<[1], [0], [0], [1], [0, 0, 1, 1], [], []>} : vector<16x32xbf16>, vector<32x512xbf16>, vector<16x512xf32> -> vector<16x512xf32>
    %36 = arith.truncf %35 : vector<16x512xf32> to vector<16x512xbf16>
    %c0_30 = arith.constant 0 : index
    %c0_31 = arith.constant 0 : index
    %c0_32 = arith.constant 0 : index
    %37 = vector.load %arg5[%c0_30, %c0_31, %c0_32] : memref<3x512x512xbf16, #tpu.memory_space<vmem>>, vector<1x512x512xbf16>
    %38 = vector.shape_cast %37 : vector<1x512x512xbf16> to vector<512x512xbf16>
    %cst_33 = arith.constant dense<0.000000e+00> : vector<16x512xf32>
    %39 = tpu.matmul %36, %38, %cst_33 {dimension_numbers = #tpu.dot_dimension_numbers<[1], [0], [0], [1], [0, 0, 1, 1], [], []>} : vector<16x512xbf16>, vector<512x512xbf16>, vector<16x512xf32> -> vector<16x512xf32>
    %c1_34 = arith.constant 1 : index
    %c0_35 = arith.constant 0 : index
    %c0_36 = arith.constant 0 : index
    %40 = vector.load %arg4[%c1_34, %c0_35, %c0_36] : memref<3x16x32xbf16, #tpu.memory_space<vmem>>, vector<1x16x32xbf16>
    %41 = vector.shape_cast %40 : vector<1x16x32xbf16> to vector<16x32xbf16>
    %cst_37 = arith.constant dense<0.000000e+00> : vector<16x512xf32>
    %42 = tpu.matmul %41, %32, %cst_37 {dimension_numbers = #tpu.dot_dimension_numbers<[1], [0], [0], [1], [0, 0, 1, 1], [], []>} : vector<16x32xbf16>, vector<32x512xbf16>, vector<16x512xf32> -> vector<16x512xf32>
    %43 = arith.truncf %42 : vector<16x512xf32> to vector<16x512xbf16>
    %c1_38 = arith.constant 1 : index
    %c0_39 = arith.constant 0 : index
    %c0_40 = arith.constant 0 : index
    %44 = vector.load %arg5[%c1_38, %c0_39, %c0_40] : memref<3x512x512xbf16, #tpu.memory_space<vmem>>, vector<1x512x512xbf16>
    %45 = vector.shape_cast %44 : vector<1x512x512xbf16> to vector<512x512xbf16>
    %cst_41 = arith.constant dense<0.000000e+00> : vector<16x512xf32>
    %46 = tpu.matmul %43, %45, %cst_41 {dimension_numbers = #tpu.dot_dimension_numbers<[1], [0], [0], [1], [0, 0, 1, 1], [], []>} : vector<16x512xbf16>, vector<512x512xbf16>, vector<16x512xf32> -> vector<16x512xf32>
    %47 = arith.addf %39, %46 : vector<16x512xf32>
    %c2_42 = arith.constant 2 : index
    %c0_43 = arith.constant 0 : index
    %c0_44 = arith.constant 0 : index
    %48 = vector.load %arg4[%c2_42, %c0_43, %c0_44] : memref<3x16x32xbf16, #tpu.memory_space<vmem>>, vector<1x16x32xbf16>
    %49 = vector.shape_cast %48 : vector<1x16x32xbf16> to vector<16x32xbf16>
    %cst_45 = arith.constant dense<0.000000e+00> : vector<16x512xf32>
    %50 = tpu.matmul %49, %32, %cst_45 {dimension_numbers = #tpu.dot_dimension_numbers<[1], [0], [0], [1], [0, 0, 1, 1], [], []>} : vector<16x32xbf16>, vector<32x512xbf16>, vector<16x512xf32> -> vector<16x512xf32>
    %51 = arith.truncf %50 : vector<16x512xf32> to vector<16x512xbf16>
    %c2_46 = arith.constant 2 : index
    %c0_47 = arith.constant 0 : index
    %c0_48 = arith.constant 0 : index
    %52 = vector.load %arg5[%c2_46, %c0_47, %c0_48] : memref<3x512x512xbf16, #tpu.memory_space<vmem>>, vector<1x512x512xbf16>
    %53 = vector.shape_cast %52 : vector<1x512x512xbf16> to vector<512x512xbf16>
    %cst_49 = arith.constant dense<0.000000e+00> : vector<16x512xf32>
    %54 = tpu.matmul %51, %53, %cst_49 {dimension_numbers = #tpu.dot_dimension_numbers<[1], [0], [0], [1], [0, 0, 1, 1], [], []>} : vector<16x512xbf16>, vector<512x512xbf16>, vector<16x512xf32> -> vector<16x512xf32>
    %55 = arith.addf %47, %54 : vector<16x512xf32>
    %c0_50 = arith.constant 0 : index
    %c0_51 = arith.constant 0 : index
    %56 = vector.load %arg6[%c0_50, %c0_51] : memref<1x512xf32, #tpu.memory_space<vmem>>, vector<1x512xf32>
    %57 = vector.broadcast %56 : vector<1x512xf32> to vector<16x512xf32>
    %58 = arith.addf %55, %57 : vector<16x512xf32>
    %cst_52 = arith.constant 0.000000e+00 : f32
    %59 = vector.broadcast %cst_52 : f32 to vector<16x512xf32>
    %60 = arith.cmpf ogt, %58, %59 : vector<16x512xf32>
    %cst_53 = arith.constant 0.00999999977 : f32
    %61 = vector.broadcast %cst_53 : f32 to vector<16x512xf32>
    %62 = arith.mulf %61, %58 : vector<16x512xf32>
    %63 = arith.select %60, %58, %62 : vector<16x512xi1>, vector<16x512xf32>
    %64 = arith.truncf %63 : vector<16x512xf32> to vector<16x512xbf16>
    %c0_54 = arith.constant 0 : index
    %c0_55 = arith.constant 0 : index
    %c0_56 = arith.constant 0 : index
    %65 = vector.load %arg7[%c0_54, %c0_55, %c0_56] : memref<3x8x16xbf16, #tpu.memory_space<vmem>>, vector<1x8x16xbf16>
    %66 = vector.shape_cast %65 : vector<1x8x16xbf16> to vector<8x16xbf16>
    %cst_57 = arith.constant dense<0.000000e+00> : vector<8x512xf32>
    %67 = tpu.matmul %66, %64, %cst_57 {dimension_numbers = #tpu.dot_dimension_numbers<[1], [0], [0], [1], [0, 0, 1, 1], [], []>} : vector<8x16xbf16>, vector<16x512xbf16>, vector<8x512xf32> -> vector<8x512xf32>
    %68 = arith.truncf %67 : vector<8x512xf32> to vector<8x512xbf16>
    %c0_58 = arith.constant 0 : index
    %c0_59 = arith.constant 0 : index
    %c0_60 = arith.constant 0 : index
    %69 = vector.load %arg8[%c0_58, %c0_59, %c0_60] : memref<3x512x256xbf16, #tpu.memory_space<vmem>>, vector<1x512x256xbf16>
    %70 = vector.shape_cast %69 : vector<1x512x256xbf16> to vector<512x256xbf16>
    %cst_61 = arith.constant dense<0.000000e+00> : vector<8x256xf32>
    %71 = tpu.matmul %68, %70, %cst_61 {dimension_numbers = #tpu.dot_dimension_numbers<[1], [0], [0], [1], [0, 0, 1, 1], [], []>} : vector<8x512xbf16>, vector<512x256xbf16>, vector<8x256xf32> -> vector<8x256xf32>
    %c1_62 = arith.constant 1 : index
    %c0_63 = arith.constant 0 : index
    %c0_64 = arith.constant 0 : index
    %72 = vector.load %arg7[%c1_62, %c0_63, %c0_64] : memref<3x8x16xbf16, #tpu.memory_space<vmem>>, vector<1x8x16xbf16>
    %73 = vector.shape_cast %72 : vector<1x8x16xbf16> to vector<8x16xbf16>
    %cst_65 = arith.constant dense<0.000000e+00> : vector<8x512xf32>
    %74 = tpu.matmul %73, %64, %cst_65 {dimension_numbers = #tpu.dot_dimension_numbers<[1], [0], [0], [1], [0, 0, 1, 1], [], []>} : vector<8x16xbf16>, vector<16x512xbf16>, vector<8x512xf32> -> vector<8x512xf32>
    %75 = arith.truncf %74 : vector<8x512xf32> to vector<8x512xbf16>
    %c1_66 = arith.constant 1 : index
    %c0_67 = arith.constant 0 : index
    %c0_68 = arith.constant 0 : index
    %76 = vector.load %arg8[%c1_66, %c0_67, %c0_68] : memref<3x512x256xbf16, #tpu.memory_space<vmem>>, vector<1x512x256xbf16>
    %77 = vector.shape_cast %76 : vector<1x512x256xbf16> to vector<512x256xbf16>
    %cst_69 = arith.constant dense<0.000000e+00> : vector<8x256xf32>
    %78 = tpu.matmul %75, %77, %cst_69 {dimension_numbers = #tpu.dot_dimension_numbers<[1], [0], [0], [1], [0, 0, 1, 1], [], []>} : vector<8x512xbf16>, vector<512x256xbf16>, vector<8x256xf32> -> vector<8x256xf32>
    %79 = arith.addf %71, %78 : vector<8x256xf32>
    %c2_70 = arith.constant 2 : index
    %c0_71 = arith.constant 0 : index
    %c0_72 = arith.constant 0 : index
    %80 = vector.load %arg7[%c2_70, %c0_71, %c0_72] : memref<3x8x16xbf16, #tpu.memory_space<vmem>>, vector<1x8x16xbf16>
    %81 = vector.shape_cast %80 : vector<1x8x16xbf16> to vector<8x16xbf16>
    %cst_73 = arith.constant dense<0.000000e+00> : vector<8x512xf32>
    %82 = tpu.matmul %81, %64, %cst_73 {dimension_numbers = #tpu.dot_dimension_numbers<[1], [0], [0], [1], [0, 0, 1, 1], [], []>} : vector<8x16xbf16>, vector<16x512xbf16>, vector<8x512xf32> -> vector<8x512xf32>
    %83 = arith.truncf %82 : vector<8x512xf32> to vector<8x512xbf16>
    %c2_74 = arith.constant 2 : index
    %c0_75 = arith.constant 0 : index
    %c0_76 = arith.constant 0 : index
    %84 = vector.load %arg8[%c2_74, %c0_75, %c0_76] : memref<3x512x256xbf16, #tpu.memory_space<vmem>>, vector<1x512x256xbf16>
    %85 = vector.shape_cast %84 : vector<1x512x256xbf16> to vector<512x256xbf16>
    %cst_77 = arith.constant dense<0.000000e+00> : vector<8x256xf32>
    %86 = tpu.matmul %83, %85, %cst_77 {dimension_numbers = #tpu.dot_dimension_numbers<[1], [0], [0], [1], [0, 0, 1, 1], [], []>} : vector<8x512xbf16>, vector<512x256xbf16>, vector<8x256xf32> -> vector<8x256xf32>
    %87 = arith.addf %79, %86 : vector<8x256xf32>
    %c0_78 = arith.constant 0 : index
    %c0_79 = arith.constant 0 : index
    %88 = vector.load %arg9[%c0_78, %c0_79] : memref<1x256xf32, #tpu.memory_space<vmem>>, vector<1x256xf32>
    %89 = vector.broadcast %88 : vector<1x256xf32> to vector<8x256xf32>
    %90 = arith.addf %87, %89 : vector<8x256xf32>
    %cst_80 = arith.constant 0.000000e+00 : f32
    %91 = vector.broadcast %cst_80 : f32 to vector<8x256xf32>
    %92 = arith.cmpf ogt, %90, %91 : vector<8x256xf32>
    %cst_81 = arith.constant 0.00999999977 : f32
    %93 = vector.broadcast %cst_81 : f32 to vector<8x256xf32>
    %94 = arith.mulf %93, %90 : vector<8x256xf32>
    %95 = arith.select %92, %90, %94 : vector<8x256xi1>, vector<8x256xf32>
    %96 = arith.truncf %95 : vector<8x256xf32> to vector<8x256xbf16>
    %c0_82 = arith.constant 0 : index
    %c0_83 = arith.constant 0 : index
    %c0_84 = arith.constant 0 : index
    %97 = vector.load %arg10[%c0_82, %c0_83, %c0_84] : memref<3x4x8xbf16, #tpu.memory_space<vmem>>, vector<1x4x8xbf16>
    %98 = vector.shape_cast %97 : vector<1x4x8xbf16> to vector<4x8xbf16>
    %cst_85 = arith.constant dense<0.000000e+00> : vector<4x256xf32>
    %99 = tpu.matmul %98, %96, %cst_85 {dimension_numbers = #tpu.dot_dimension_numbers<[1], [0], [0], [1], [0, 0, 1, 1], [], []>} : vector<4x8xbf16>, vector<8x256xbf16>, vector<4x256xf32> -> vector<4x256xf32>
    %100 = arith.truncf %99 : vector<4x256xf32> to vector<4x256xbf16>
    %c0_86 = arith.constant 0 : index
    %c0_87 = arith.constant 0 : index
    %c0_88 = arith.constant 0 : index
    %101 = vector.load %arg11[%c0_86, %c0_87, %c0_88] : memref<3x256x128xbf16, #tpu.memory_space<vmem>>, vector<1x256x128xbf16>
    %102 = vector.shape_cast %101 : vector<1x256x128xbf16> to vector<256x128xbf16>
    %cst_89 = arith.constant dense<0.000000e+00> : vector<4x128xf32>
    %103 = tpu.matmul %100, %102, %cst_89 {dimension_numbers = #tpu.dot_dimension_numbers<[1], [0], [0], [1], [0, 0, 1, 1], [], []>} : vector<4x256xbf16>, vector<256x128xbf16>, vector<4x128xf32> -> vector<4x128xf32>
    %c1_90 = arith.constant 1 : index
    %c0_91 = arith.constant 0 : index
    %c0_92 = arith.constant 0 : index
    %104 = vector.load %arg10[%c1_90, %c0_91, %c0_92] : memref<3x4x8xbf16, #tpu.memory_space<vmem>>, vector<1x4x8xbf16>
    %105 = vector.shape_cast %104 : vector<1x4x8xbf16> to vector<4x8xbf16>
    %cst_93 = arith.constant dense<0.000000e+00> : vector<4x256xf32>
    %106 = tpu.matmul %105, %96, %cst_93 {dimension_numbers = #tpu.dot_dimension_numbers<[1], [0], [0], [1], [0, 0, 1, 1], [], []>} : vector<4x8xbf16>, vector<8x256xbf16>, vector<4x256xf32> -> vector<4x256xf32>
    %107 = arith.truncf %106 : vector<4x256xf32> to vector<4x256xbf16>
    %c1_94 = arith.constant 1 : index
    %c0_95 = arith.constant 0 : index
    %c0_96 = arith.constant 0 : index
    %108 = vector.load %arg11[%c1_94, %c0_95, %c0_96] : memref<3x256x128xbf16, #tpu.memory_space<vmem>>, vector<1x256x128xbf16>
    %109 = vector.shape_cast %108 : vector<1x256x128xbf16> to vector<256x128xbf16>
    %cst_97 = arith.constant dense<0.000000e+00> : vector<4x128xf32>
    %110 = tpu.matmul %107, %109, %cst_97 {dimension_numbers = #tpu.dot_dimension_numbers<[1], [0], [0], [1], [0, 0, 1, 1], [], []>} : vector<4x256xbf16>, vector<256x128xbf16>, vector<4x128xf32> -> vector<4x128xf32>
    %111 = arith.addf %103, %110 : vector<4x128xf32>
    %c2_98 = arith.constant 2 : index
    %c0_99 = arith.constant 0 : index
    %c0_100 = arith.constant 0 : index
    %112 = vector.load %arg10[%c2_98, %c0_99, %c0_100] : memref<3x4x8xbf16, #tpu.memory_space<vmem>>, vector<1x4x8xbf16>
    %113 = vector.shape_cast %112 : vector<1x4x8xbf16> to vector<4x8xbf16>
    %cst_101 = arith.constant dense<0.000000e+00> : vector<4x256xf32>
    %114 = tpu.matmul %113, %96, %cst_101 {dimension_numbers = #tpu.dot_dimension_numbers<[1], [0], [0], [1], [0, 0, 1, 1], [], []>} : vector<4x8xbf16>, vector<8x256xbf16>, vector<4x256xf32> -> vector<4x256xf32>
    %115 = arith.truncf %114 : vector<4x256xf32> to vector<4x256xbf16>
    %c2_102 = arith.constant 2 : index
    %c0_103 = arith.constant 0 : index
    %c0_104 = arith.constant 0 : index
    %116 = vector.load %arg11[%c2_102, %c0_103, %c0_104] : memref<3x256x128xbf16, #tpu.memory_space<vmem>>, vector<1x256x128xbf16>
    %117 = vector.shape_cast %116 : vector<1x256x128xbf16> to vector<256x128xbf16>
    %cst_105 = arith.constant dense<0.000000e+00> : vector<4x128xf32>
    %118 = tpu.matmul %115, %117, %cst_105 {dimension_numbers = #tpu.dot_dimension_numbers<[1], [0], [0], [1], [0, 0, 1, 1], [], []>} : vector<4x256xbf16>, vector<256x128xbf16>, vector<4x128xf32> -> vector<4x128xf32>
    %119 = arith.addf %111, %118 : vector<4x128xf32>
    %c0_106 = arith.constant 0 : index
    %c0_107 = arith.constant 0 : index
    %120 = vector.load %arg12[%c0_106, %c0_107] : memref<1x128xf32, #tpu.memory_space<vmem>>, vector<1x128xf32>
    %121 = vector.broadcast %120 : vector<1x128xf32> to vector<4x128xf32>
    %122 = arith.addf %119, %121 : vector<4x128xf32>
    %cst_108 = arith.constant 0.000000e+00 : f32
    %123 = vector.broadcast %cst_108 : f32 to vector<4x128xf32>
    %124 = arith.cmpf ogt, %122, %123 : vector<4x128xf32>
    %cst_109 = arith.constant 0.00999999977 : f32
    %125 = vector.broadcast %cst_109 : f32 to vector<4x128xf32>
    %126 = arith.mulf %125, %122 : vector<4x128xf32>
    %127 = arith.select %124, %122, %126 : vector<4x128xi1>, vector<4x128xf32>
    %128 = arith.truncf %127 : vector<4x128xf32> to vector<4x128xbf16>
    %129 = vector.extract_strided_slice %128 {offsets = [0, 0], sizes = [2, 128], strides = [1, 1]} : vector<4x128xbf16> to vector<2x128xbf16>
    %130 = vector.extract_strided_slice %128 {offsets = [2, 0], sizes = [2, 128], strides = [1, 1]} : vector<4x128xbf16> to vector<2x128xbf16>
    %c0_110 = arith.constant 0 : index
    %c0_111 = arith.constant 0 : index
    %c0_112 = arith.constant 0 : index
    %131 = vector.load %arg13[%c0_110, %c0_111, %c0_112] : memref<2x128x512xbf16, #tpu.memory_space<vmem>>, vector<1x128x512xbf16>
    %132 = vector.shape_cast %131 : vector<1x128x512xbf16> to vector<128x512xbf16>
    %cst_113 = arith.constant dense<0.000000e+00> : vector<2x512xf32>
    %133 = tpu.matmul %129, %132, %cst_113 {dimension_numbers = #tpu.dot_dimension_numbers<[1], [0], [0], [1], [0, 0, 1, 1], [], []>} : vector<2x128xbf16>, vector<128x512xbf16>, vector<2x512xf32> -> vector<2x512xf32>
    %c1_114 = arith.constant 1 : index
    %c0_115 = arith.constant 0 : index
    %c0_116 = arith.constant 0 : index
    %134 = vector.load %arg13[%c1_114, %c0_115, %c0_116] : memref<2x128x512xbf16, #tpu.memory_space<vmem>>, vector<1x128x512xbf16>
    %135 = vector.shape_cast %134 : vector<1x128x512xbf16> to vector<128x512xbf16>
    %cst_117 = arith.constant dense<0.000000e+00> : vector<2x512xf32>
    %136 = tpu.matmul %130, %135, %cst_117 {dimension_numbers = #tpu.dot_dimension_numbers<[1], [0], [0], [1], [0, 0, 1, 1], [], []>} : vector<2x128xbf16>, vector<128x512xbf16>, vector<2x512xf32> -> vector<2x512xf32>
    %137 = arith.addf %133, %136 : vector<2x512xf32>
    %c0_118 = arith.constant 0 : index
    %c0_119 = arith.constant 0 : index
    %138 = vector.load %arg14[%c0_118, %c0_119] : memref<1x512xf32, #tpu.memory_space<vmem>>, vector<1x512xf32>
    %139 = vector.broadcast %138 : vector<1x512xf32> to vector<2x512xf32>
    %140 = arith.addf %137, %139 : vector<2x512xf32>
    %c0_120 = arith.constant 0 : index
    %c0_121 = arith.constant 0 : index
    %141 = vector.load %arg15[%c0_120, %c0_121] : memref<2x512xf32, #tpu.memory_space<vmem>>, vector<2x512xf32>
    tpu.vector_store %arg15[%c0_120, %c0_121], %140 {strides = array<i32>} : memref<2x512xf32, #tpu.memory_space<vmem>>, vector<2x512xf32>,
    return
  }
}

</mosaic_0001>

<llo_original>
// kernel: encoder_forward.1
$region0: #{encoder_forward.1}
  #allocation0 [shape = 'u32[]', space=smem, size = 0x4, offset = 0x4, fixed_abs, tag = 'smem constant byte address 0x4 - core index']
  #allocation1 [shape = 'u32[144,128]{1,0:T(1,128)}', space=vmem, size = 0x12000, scoped, tag = 'internal scratch']
  %s0 = inlined_call_operand.vmem [shape: bf16[64,32], index: 0, kind: input, shape index: {}]
  %s1 = inlined_call_operand.hbm [shape: bf16[3,32,64], index: 1, kind: input, shape index: {}]
  %s2 = inlined_call_operand.hbm [shape: bf16[3,32,512], index: 2, kind: input, shape index: {}]
  %s3 = inlined_call_operand.hbm [shape: f32[1,512], index: 3, kind: input, shape index: {}]
  %s4 = inlined_call_operand.hbm [shape: bf16[3,16,32], index: 4, kind: input, shape index: {}]
  %s5 = inlined_call_operand.hbm [shape: bf16[3,512,512], index: 5, kind: input, shape index: {}]
  %s6 = inlined_call_operand.hbm [shape: f32[1,512], index: 6, kind: input, shape index: {}]
  %s7 = inlined_call_operand.hbm [shape: bf16[3,8,16], index: 7, kind: input, shape index: {}]
  %s8 = inlined_call_operand.hbm [shape: bf16[3,512,256], index: 8, kind: input, shape index: {}]
  %s9 = inlined_call_operand.hbm [shape: f32[1,256], index: 9, kind: input, shape index: {}]
  %s10 = inlined_call_operand.hbm [shape: bf16[3,4,8], index: 10, kind: input, shape index: {}]
  %s11 = inlined_call_operand.hbm [shape: bf16[3,256,128], index: 11, kind: input, shape index: {}]
  %s12 = inlined_call_operand.hbm [shape: f32[1,128], index: 12, kind: input, shape index: {}]
  %s13 = inlined_call_operand.hbm [shape: bf16[2,128,512], index: 13, kind: input, shape index: {}]
  %s14 = inlined_call_operand.hbm [shape: f32[1,512], index: 14, kind: input, shape index: {}]
  %s15 = inlined_call_operand.vmem [shape: f32[2,512], index: 15, kind: output, shape index: {}]
  %s16 = sld [smem:[#allocation0]]
  $region126: #{encoder_forward.1} parent=0
    _
  %s18 = ssub.s32 1, %s16
  %s19 = scalar_select 0, %s18, %s16
  $region1: #{encoder_forward.1} parent=0
    #allocation2 [shape = 'u8[24576]{0}', space=vmem, size = 0x6000, scoped, tag = 'input window, operand 1, single buffered']
    #allocation3 [shape = 's32[1]{0}', space=sflag, size = 0x4, scoped, tag = 'scoped memory for encoder_forward.1']
    #allocation4 [shape = 'u8[98304]{0}', space=vmem, size = 0x18000, scoped, tag = 'input window, operand 2, single buffered']
    #allocation5 [shape = 's32[1]{0}', space=sflag, size = 0x4, scoped, tag = 'scoped memory for encoder_forward.1']
    #allocation6 [shape = 'u8[2048]{0}', space=vmem, size = 0x800, scoped, tag = 'input window, operand 3, single buffered']
    #allocation7 [shape = 'u8[12288]{0}', space=vmem, size = 0x3000, scoped, tag = 'input window, operand 4, single buffered']
    #allocation8 [shape = 's32[1]{0}', space=sflag, size = 0x4, scoped, tag = 'scoped memory for encoder_forward.1']
    #allocation9 [shape = 'u8[1572864]{0}', space=vmem, size = 0x180000, scoped, tag = 'input window, operand 5, single buffered']
    #allocation10 [shape = 'u8[2048]{0}', space=vmem, size = 0x800, scoped, tag = 'input window, operand 6, single buffered']
    #allocation11 [shape = 's32[1]{0}', space=sflag, size = 0x4, scoped, tag = 'scoped memory for encoder_forward.1']
    #allocation12 [shape = 'u8[6144]{0}', space=vmem, size = 0x1800, scoped, tag = 'input window, operand 7, single buffered']
    #allocation13 [shape = 'u8[786432]{0}', space=vmem, size = 0xc0000, scoped, tag = 'input window, operand 8, single buffered']
    #allocation14 [shape = 's32[1]{0}', space=sflag, size = 0x4, scoped, tag = 'scoped memory for encoder_forward.1']
    #allocation15 [shape = 'u8[1024]{0}', space=vmem, size = 0x400, scoped, tag = 'input window, operand 9, single buffered']
    #allocation16 [shape = 'u8[3072]{0}', space=vmem, size = 0xc00, scoped, tag = 'input window, operand 10, single buffered']
    #allocation17 [shape = 's32[1]{0}', space=sflag, size = 0x4, scoped, tag = 'scoped memory for encoder_forward.1']
    #allocation18 [shape = 'u8[196608]{0}', space=vmem, size = 0x30000, scoped, tag = 'input window, operand 11, single buffered']
    #allocation19 [shape = 'u8[512]{0}', space=vmem, size = 0x400, scoped, tag = 'input window, operand 12, single buffered']
    #allocation20 [shape = 's32[1]{0}', space=sflag, size = 0x4, scoped, tag = 'scoped memory for encoder_forward.1']
    #allocation21 [shape = 'u8[262144]{0}', space=vmem, size = 0x40000, scoped, tag = 'input window, operand 13, single buffered']
    #allocation22 [shape = 'u8[2048]{0}', space=vmem, size = 0x800, scoped, tag = 'input window, operand 14, single buffered']
    #allocation23 [shape = 's32[1]{0}', space=sflag, size = 0x4, scoped, tag = 'scoped memory for encoder_forward.1']
    %20 = vsyncpa [#allocation3], 0
    %21 = vsyncpa [#allocation5], 0
    %22 = vsyncpa [#allocation8], 0
    %23 = vsyncpa [#allocation11], 0
    %24 = vsyncpa [#allocation14], 0
    %25 = vsyncpa [#allocation17], 0
    %26 = vsyncpa [#allocation20], 0
    %27 = vsyncpa [#allocation23], 0
    // Predicated region
    $region2: #{encoder_forward.1} parent=1 // pred_check
      _
    $region3: #{encoder_forward.1} parent=1 // pred_check_branch
      %29 = sbr.rel (0) target = $region5
    $region4: #{encoder_forward.1} parent=1 // pred_region
      _
    $region5: #{encoder_forward.1} parent=1 // pred_fallthru
      _
    // Predicated region
    $region6: #{encoder_forward.1} parent=1 // pred_check
      _
    $region7: #{encoder_forward.1} parent=1 // pred_check_branch
      %31 = sbr.rel (0) target = $region9
    $region8: #{encoder_forward.1} parent=1 // pred_region
      %s33 = ssub.s32 768, 768
      %34 = vsyncadd [#allocation3], %s33
      %s35 = sshll.u32 [#allocation2], 4
      %s36 = int_to_ptr.vmem [resolvable:$true] %s35
      %41 = dma.hbm_to_vmem [thread:$0]  %s1, 768, %s36, [#allocation3], 64, 64, 4
    $region9: #{encoder_forward.1} parent=1 // pred_fallthru
      _
    // Predicated region
    $region10: #{encoder_forward.1} parent=1 // pred_check
      _
    $region11: #{encoder_forward.1} parent=1 // pred_check_branch
      %43 = sbr.rel (0) target = $region13
    $region12: #{encoder_forward.1} parent=1 // pred_region
      %s45 = ssub.s32 3072, 3072
      %46 = vsyncadd [#allocation5], %s45
      %s47 = sshll.u32 [#allocation4], 4
      %s48 = int_to_ptr.vmem [resolvable:$true] %s47
      %53 = dma.hbm_to_vmem [thread:$0]  %s2, 3072, %s48, [#allocation5], 256, 256, 16
    $region13: #{encoder_forward.1} parent=1 // pred_fallthru
      _
    // Predicated region
    $region14: #{encoder_forward.1} parent=1 // pred_check
      _
    $region15: #{encoder_forward.1} parent=1 // pred_check_branch
      %55 = sbr.rel (0) target = $region17
    $region16: #{encoder_forward.1} parent=1 // pred_region
      %s57 = ssub.s32 64, 64
      %58 = vsyncadd [#allocation5], %s57
      %s60 = sshll.u32 [#allocation6], 4
      %s61 = int_to_ptr.vmem [resolvable:$true] %s60
      %63 = dma.hbm_to_vmem [thread:$0]  %s3, 64, %s61, [#allocation5]
    $region17: #{encoder_forward.1} parent=1 // pred_fallthru
      _
    // Predicated region
    $region18: #{encoder_forward.1} parent=1 // pred_check
      _
    $region19: #{encoder_forward.1} parent=1 // pred_check_branch
      %65 = sbr.rel (0) target = $region21
    $region20: #{encoder_forward.1} parent=1 // pred_region
      %s67 = ssub.s32 384, 384
      %68 = vsyncadd [#allocation8], %s67
      %s69 = sshll.u32 [#allocation7], 4
      %s70 = int_to_ptr.vmem [resolvable:$true] %s69
      %75 = dma.hbm_to_vmem [thread:$0]  %s4, 384, %s70, [#allocation8], 64, 64, 4
    $region21: #{encoder_forward.1} parent=1 // pred_fallthru
      _
    // Predicated region
    $region22: #{encoder_forward.1} parent=1 // pred_check
      _
    $region23: #{encoder_forward.1} parent=1 // pred_check_branch
      %77 = sbr.rel (0) target = $region25
    $region24: #{encoder_forward.1} parent=1 // pred_region
      %s79 = ssub.s32 49152, 49152
      %80 = vsyncadd [#allocation8], %s79
      %s81 = sshll.u32 [#allocation9], 4
      %s82 = int_to_ptr.vmem [resolvable:$true] %s81
      %87 = dma.hbm_to_vmem [thread:$0]  %s5, 49152, %s82, [#allocation8], 256, 256, 16
    $region25: #{encoder_forward.1} parent=1 // pred_fallthru
      _
    // Predicated region
    $region26: #{encoder_forward.1} parent=1 // pred_check
      _
    $region27: #{encoder_forward.1} parent=1 // pred_check_branch
      %89 = sbr.rel (0) target = $region29
    $region28: #{encoder_forward.1} parent=1 // pred_region
      %s91 = ssub.s32 64, 64
      %92 = vsyncadd [#allocation11], %s91
      %s94 = sshll.u32 [#allocation10], 4
      %s95 = int_to_ptr.vmem [resolvable:$true] %s94
      %97 = dma.hbm_to_vmem [thread:$0]  %s6, 64, %s95, [#allocation11]
    $region29: #{encoder_forward.1} parent=1 // pred_fallthru
      _
    // Predicated region
    $region30: #{encoder_forward.1} parent=1 // pred_check
      _
    $region31: #{encoder_forward.1} parent=1 // pred_check_branch
      %99 = sbr.rel (0) target = $region33
    $region32: #{encoder_forward.1} parent=1 // pred_region
      %s101 = ssub.s32 192, 192
      %102 = vsyncadd [#allocation11], %s101
      %s103 = sshll.u32 [#allocation12], 4
      %s104 = int_to_ptr.vmem [resolvable:$true] %s103
      %109 = dma.hbm_to_vmem [thread:$0]  %s7, 192, %s104, [#allocation11], 64, 64, 4
    $region33: #{encoder_forward.1} parent=1 // pred_fallthru
      _
    // Predicated region
    $region34: #{encoder_forward.1} parent=1 // pred_check
      _
    $region35: #{encoder_forward.1} parent=1 // pred_check_branch
      %111 = sbr.rel (0) target = $region37
    $region36: #{encoder_forward.1} parent=1 // pred_region
      %s113 = ssub.s32 24576, 24576
      %114 = vsyncadd [#allocation14], %s113
      %s115 = sshll.u32 [#allocation13], 4
      %s116 = int_to_ptr.vmem [resolvable:$true] %s115
      %121 = dma.hbm_to_vmem [thread:$0]  %s8, 24576, %s116, [#allocation14], 128, 128, 8
    $region37: #{encoder_forward.1} parent=1 // pred_fallthru
      _
    // Predicated region
    $region38: #{encoder_forward.1} parent=1 // pred_check
      _
    $region39: #{encoder_forward.1} parent=1 // pred_check_branch
      %123 = sbr.rel (0) target = $region41
    $region40: #{encoder_forward.1} parent=1 // pred_region
      %s125 = ssub.s32 32, 32
      %126 = vsyncadd [#allocation14], %s125
      %s128 = sshll.u32 [#allocation15], 4
      %s129 = int_to_ptr.vmem [resolvable:$true] %s128
      %131 = dma.hbm_to_vmem [thread:$0]  %s9, 32, %s129, [#allocation14]
    $region41: #{encoder_forward.1} parent=1 // pred_fallthru
      _
    // Predicated region
    $region42: #{encoder_forward.1} parent=1 // pred_check
      _
    $region43: #{encoder_forward.1} parent=1 // pred_check_branch
      %133 = sbr.rel (0) target = $region45
    $region44: #{encoder_forward.1} parent=1 // pred_region
      %s135 = ssub.s32 96, 96
      %136 = vsyncadd [#allocation17], %s135
      %s137 = sshll.u32 [#allocation16], 4
      %s138 = int_to_ptr.vmem [resolvable:$true] %s137
      %143 = dma.hbm_to_vmem [thread:$0]  %s10, 96, %s138, [#allocation17], 32, 32, 2
    $region45: #{encoder_forward.1} parent=1 // pred_fallthru
      _
    // Predicated region
    $region46: #{encoder_forward.1} parent=1 // pred_check
      _
    $region47: #{encoder_forward.1} parent=1 // pred_check_branch
      %145 = sbr.rel (0) target = $region49
    $region48: #{encoder_forward.1} parent=1 // pred_region
      %s147 = ssub.s32 6144, 6144
      %148 = vsyncadd [#allocation17], %s147
      %s149 = sshll.u32 [#allocation18], 4
      %s150 = int_to_ptr.vmem [resolvable:$true] %s149
      %155 = dma.hbm_to_vmem [thread:$0]  %s11, 6144, %s150, [#allocation17], 64, 64, 4
    $region49: #{encoder_forward.1} parent=1 // pred_fallthru
      _
    // Predicated region
    $region50: #{encoder_forward.1} parent=1 // pred_check
      _
    $region51: #{encoder_forward.1} parent=1 // pred_check_branch
      %157 = sbr.rel (0) target = $region53
    $region52: #{encoder_forward.1} parent=1 // pred_region
      %s159 = ssub.s32 16, 16
      %160 = vsyncadd [#allocation20], %s159
      %s162 = sshll.u32 [#allocation19], 4
      %s163 = int_to_ptr.vmem [resolvable:$true] %s162
      %165 = dma.hbm_to_vmem [thread:$0]  %s12, 16, %s163, [#allocation20]
    $region53: #{encoder_forward.1} parent=1 // pred_fallthru
      _
    // Predicated region
    $region54: #{encoder_forward.1} parent=1 // pred_check
      _
    $region55: #{encoder_forward.1} parent=1 // pred_check_branch
      %167 = sbr.rel (0) target = $region57
    $region56: #{encoder_forward.1} parent=1 // pred_region
      %s169 = ssub.s32 8192, 8192
      %170 = vsyncadd [#allocation20], %s169
      %s171 = sshll.u32 [#allocation21], 4
      %s172 = int_to_ptr.vmem [resolvable:$true] %s171
      %177 = dma.hbm_to_vmem [thread:$0]  %s13, 8192, %s172, [#allocation20], 256, 256, 16
    $region57: #{encoder_forward.1} parent=1 // pred_fallthru
      _
    // Predicated region
    $region58: #{encoder_forward.1} parent=1 // pred_check
      _
    $region59: #{encoder_forward.1} parent=1 // pred_check_branch
      %179 = sbr.rel (0) target = $region61
    $region60: #{encoder_forward.1} parent=1 // pred_region
      %s181 = ssub.s32 64, 64
      %182 = vsyncadd [#allocation23], %s181
      %s184 = sshll.u32 [#allocation22], 4
      %s185 = int_to_ptr.vmem [resolvable:$true] %s184
      %187 = dma.hbm_to_vmem [thread:$0]  %s14, 64, %s185, [#allocation23]
    $region61: #{encoder_forward.1} parent=1 // pred_fallthru
      _
    // Predicated region
    $region62: #{encoder_forward.1} parent=1 // pred_check
      _
    $region63: #{encoder_forward.1} parent=1 // pred_check_branch
      %189 = sbr.rel (0) target = $region65
    $region64: #{encoder_forward.1} parent=1 // pred_region
      %190 = dma.done [#allocation3], 768
    $region65: #{encoder_forward.1} parent=1 // pred_fallthru
      _
    // Predicated region
    $region66: #{encoder_forward.1} parent=1 // pred_check
      _
    $region67: #{encoder_forward.1} parent=1 // pred_check_branch
      %192 = sbr.rel (0) target = $region69
    $region68: #{encoder_forward.1} parent=1 // pred_region
      %193 = dma.done [#allocation5], 3072
    $region69: #{encoder_forward.1} parent=1 // pred_fallthru
      _
    // Predicated region
    $region70: #{encoder_forward.1} parent=1 // pred_check
      _
    $region71: #{encoder_forward.1} parent=1 // pred_check_branch
      %195 = sbr.rel (0) target = $region73
    $region72: #{encoder_forward.1} parent=1 // pred_region
      %196 = dma.done [#allocation5], 64
    $region73: #{encoder_forward.1} parent=1 // pred_fallthru
      _
    // Predicated region
    $region74: #{encoder_forward.1} parent=1 // pred_check
      _
    $region75: #{encoder_forward.1} parent=1 // pred_check_branch
      %198 = sbr.rel (0) target = $region77
    $region76: #{encoder_forward.1} parent=1 // pred_region
      %199 = dma.done [#allocation8], 384
    $region77: #{encoder_forward.1} parent=1 // pred_fallthru
      _
    // Predicated region
    $region78: #{encoder_forward.1} parent=1 // pred_check
      _
    $region79: #{encoder_forward.1} parent=1 // pred_check_branch
      %201 = sbr.rel (0) target = $region81
    $region80: #{encoder_forward.1} parent=1 // pred_region
      %202 = dma.done [#allocation8], 49152
    $region81: #{encoder_forward.1} parent=1 // pred_fallthru
      _
    // Predicated region
    $region82: #{encoder_forward.1} parent=1 // pred_check
      _
    $region83: #{encoder_forward.1} parent=1 // pred_check_branch
      %204 = sbr.rel (0) target = $region85
    $region84: #{encoder_forward.1} parent=1 // pred_region
      %205 = dma.done [#allocation11], 64
    $region85: #{encoder_forward.1} parent=1 // pred_fallthru
      _
    // Predicated region
    $region86: #{encoder_forward.1} parent=1 // pred_check
      _
    $region87: #{encoder_forward.1} parent=1 // pred_check_branch
      %207 = sbr.rel (0) target = $region89
    $region88: #{encoder_forward.1} parent=1 // pred_region
      %208 = dma.done [#allocation11], 192
    $region89: #{encoder_forward.1} parent=1 // pred_fallthru
      _
    // Predicated region
    $region90: #{encoder_forward.1} parent=1 // pred_check
      _
    $region91: #{encoder_forward.1} parent=1 // pred_check_branch
      %210 = sbr.rel (0) target = $region93
    $region92: #{encoder_forward.1} parent=1 // pred_region
      %211 = dma.done [#allocation14], 24576
    $region93: #{encoder_forward.1} parent=1 // pred_fallthru
      _
    // Predicated region
    $region94: #{encoder_forward.1} parent=1 // pred_check
      _
    $region95: #{encoder_forward.1} parent=1 // pred_check_branch
      %213 = sbr.rel (0) target = $region97
    $region96: #{encoder_forward.1} parent=1 // pred_region
      %214 = dma.done [#allocation14], 32
    $region97: #{encoder_forward.1} parent=1 // pred_fallthru
      _
    // Predicated region
    $region98: #{encoder_forward.1} parent=1 // pred_check
      _
    $region99: #{encoder_forward.1} parent=1 // pred_check_branch
      %216 = sbr.rel (0) target = $region101
    $region100: #{encoder_forward.1} parent=1 // pred_region
      %217 = dma.done [#allocation17], 96
    $region101: #{encoder_forward.1} parent=1 // pred_fallthru
      _
    // Predicated region
    $region102: #{encoder_forward.1} parent=1 // pred_check
      _
    $region103: #{encoder_forward.1} parent=1 // pred_check_branch
      %219 = sbr.rel (0) target = $region105
    $region104: #{encoder_forward.1} parent=1 // pred_region
      %220 = dma.done [#allocation17], 6144
    $region105: #{encoder_forward.1} parent=1 // pred_fallthru
      _
    // Predicated region
    $region106: #{encoder_forward.1} parent=1 // pred_check
      _
    $region107: #{encoder_forward.1} parent=1 // pred_check_branch
      %222 = sbr.rel (0) target = $region109
    $region108: #{encoder_forward.1} parent=1 // pred_region
      %223 = dma.done [#allocation20], 16
    $region109: #{encoder_forward.1} parent=1 // pred_fallthru
      _
    // Predicated region
    $region110: #{encoder_forward.1} parent=1 // pred_check
      _
    $region111: #{encoder_forward.1} parent=1 // pred_check_branch
      %225 = sbr.rel (0) target = $region113
    $region112: #{encoder_forward.1} parent=1 // pred_region
      %226 = dma.done [#allocation20], 8192
    $region113: #{encoder_forward.1} parent=1 // pred_fallthru
      _
    // Predicated region
    $region114: #{encoder_forward.1} parent=1 // pred_check
      _
    $region115: #{encoder_forward.1} parent=1 // pred_check_branch
      %228 = sbr.rel (0) target = $region117
    $region116: #{encoder_forward.1} parent=1 // pred_region
      %229 = dma.done [#allocation23], 64
    $region117: #{encoder_forward.1} parent=1 // pred_fallthru
      _
    %v231 = vld [vmem:[%s0] sm:$0xf]
    %v232 = vld [vmem:[%s0 + $0x4] sm:$0xf]
    %v233 = vld [vmem:[%s0 + $0x8] sm:$0xf]
    %v234 = vld [vmem:[%s0 + $0xc] sm:$0xf]
    %v235 = vld [vmem:[%s0 + $0x10] sm:$0xf]
    %v236 = vld [vmem:[%s0 + $0x14] sm:$0xf]
    %v237 = vld [vmem:[%s0 + $0x18] sm:$0xf]
    %v238 = vld [vmem:[%s0 + $0x1c] sm:$0xf]
    %v239 = vld [vmem:[#allocation2] sm:$0xf]
    %v240 = vld [vmem:[#allocation2 + $0x4] sm:$0xf]
    %v241 = vld [vmem:[#allocation2 + $0x8] sm:$0xf]
    %v242 = vld [vmem:[#allocation2 + $0xc] sm:$0xf]
    %v247 = vunpack.c.l.b16 %v239
    %v248 = vunpack.c.l.b16 %v240
    %v249 = vunpack.c.l.b16 %v241
    %v250 = vunpack.c.l.b16 %v242
    %v251 = vpack.c.b16 %v248, %v247
    %v252 = vpack.c.b16 %v250, %v249
    %v261 = vunpack.c.l.b16 %v231
    %v262 = vunpack.c.l.b16 %v232
    %v263 = vunpack.c.l.b16 %v233
    %v264 = vunpack.c.l.b16 %v234
    %v265 = vunpack.c.l.b16 %v235
    %v266 = vunpack.c.l.b16 %v236
    %v267 = vunpack.c.l.b16 %v237
    %v268 = vunpack.c.l.b16 %v238
    %v269 = vpack.c.b16 %v262, %v261
    %v270 = vpack.c.b16 %v264, %v263
    %v271 = vpack.c.b16 %v266, %v265
    %v272 = vpack.c.b16 %v268, %v267
    %vm277 = vcmask 523264
    %v279 = vsel %vm277, %v251, 0
    %v282 = vsel %vm277, %v252, 0
    %284 = vmatprep.subr.bf16.mxu0 0
    %285 = vmatpush1.bf16.msra.mxu0 %v269
    %286 = vmatprep.subr.bf16.mxu0 0
    %287 = vmatpush1.bf16.msra.mxu0 %v270
    %288 = vmatprep.subr.bf16.mxu0 0
    %289 = vmatpush1.bf16.msra.mxu0 %v271
    %290 = vmatprep.subr.bf16.mxu0 0
    %291 = vmatpush1.bf16.msra.mxu0 %v272
    %292 = vmatprep.subr.bf16.mxu0 0
    %293 = vmatpush1.bf16.msra.mxu0 0
    %294 = vmatprep.subr.bf16.mxu0 0
    %295 = vmatpush1.bf16.msra.mxu0 0
    %296 = vmatprep.subr.bf16.mxu0 0
    %297 = vmatpush1.bf16.msra.mxu0 0
    %298 = vmatprep.subr.bf16.mxu0 0
    %299 = vmatpush1.bf16.msra.mxu0 0
    %300 = vmatprep.subr.bf16.mxu0 0
    %301 = vmatpush1.bf16.msra.mxu0 0
    %302 = vmatprep.subr.bf16.mxu0 0
    %303 = vmatpush1.bf16.msra.mxu0 0
    %304 = vmatprep.subr.bf16.mxu0 0
    %305 = vmatpush1.bf16.msra.mxu0 0
    %306 = vmatprep.subr.bf16.mxu0 0
    %307 = vmatpush1.bf16.msra.mxu0 0
    %308 = vmatprep.subr.bf16.mxu0 0
    %309 = vmatpush1.bf16.msra.mxu0 0
    %310 = vmatprep.subr.bf16.mxu0 0
    %311 = vmatpush1.bf16.msra.mxu0 0
    %312 = vmatprep.subr.bf16.mxu0 0
    %313 = vmatpush1.bf16.msra.mxu0 0
    %314 = vmatprep.subr.bf16.mxu0 0
    %315 = vmatpush1.bf16.msra.mxu0 0
    %316 = vmatprep.mubr.bf16.mxu0 0
    %317 = vmatmul.mubr.bf16.gmra.mrb[0].mxu0 %v279
    %v318 = vpop.f32.mrb[0].mxu0
    %v319 = vadd.f32 0.0, %v318
    %v320 = vpop.f32.mrb[0].mxu0
    %v321 = vpop.f32.mrb[0].mxu0
    %v322 = vadd.f32 0.0, %v321
    %v323 = vpop.f32.mrb[0].mxu0
    %324 = vmatprep.mubr.bf16.mxu0 0
    %325 = vmatmul.mubr.bf16.gmra.mrb[0].mxu0 %v282
    %v326 = vpop.f32.mrb[0].mxu0
    %v327 = vadd.f32 0.0, %v326
    %v328 = vpop.f32.mrb[0].mxu0
    %v329 = vpop.f32.mrb[0].mxu0
    %v330 = vadd.f32 0.0, %v329
    %v331 = vpop.f32.mrb[0].mxu0
    %332 = vdwg.mxu0
    %v333 = vpack.c.bf16 %v322, %v319
    %v334 = vpack.c.bf16 %v330, %v327
    %v335 = vld [vmem:[#allocation4] sm:$0xff]
    %v336 = vld [vmem:[#allocation4 + $0x8] sm:$0xff]
    %v337 = vld [vmem:[#allocation4 + $0x10] sm:$0xff]
    %v338 = vld [vmem:[#allocation4 + $0x18] sm:$0xff]
    %v339 = vld [vmem:[#allocation4 + $0x20] sm:$0xff]
    %v340 = vld [vmem:[#allocation4 + $0x28] sm:$0xff]
    %v341 = vld [vmem:[#allocation4 + $0x30] sm:$0xff]
    %v342 = vld [vmem:[#allocation4 + $0x38] sm:$0xff]
    %s343 = scalar_lea.vmem [#allocation2], 16
    %v344 = vld [vmem:[%s343] sm:$0xf]
    %v345 = vld [vmem:[%s343 + $0x4] sm:$0xf]
    %v346 = vld [vmem:[%s343 + $0x8] sm:$0xf]
    %v347 = vld [vmem:[%s343 + $0xc] sm:$0xf]
    %v352 = vunpack.c.l.b16 %v344
    %v353 = vunpack.c.l.b16 %v345
    %v354 = vunpack.c.l.b16 %v346
    %v355 = vunpack.c.l.b16 %v347
    %v356 = vpack.c.b16 %v353, %v352
    %v357 = vpack.c.b16 %v355, %v354
    %v359 = vsel %vm277, %v356, 0
    %v362 = vsel %vm277, %v357, 0
    %364 = vmatprep.subr.bf16.mxu0 0
    %365 = vmatpush1.bf16.msra.mxu0 %v269
    %366 = vmatprep.subr.bf16.mxu0 0
    %367 = vmatpush1.bf16.msra.mxu0 %v270
    %368 = vmatprep.subr.bf16.mxu0 0
    %369 = vmatpush1.bf16.msra.mxu0 %v271
    %370 = vmatprep.subr.bf16.mxu0 0
    %371 = vmatpush1.bf16.msra.mxu0 %v272
    %372 = vmatprep.subr.bf16.mxu0 0
    %373 = vmatpush1.bf16.msra.mxu0 0
    %374 = vmatprep.subr.bf16.mxu0 0
    %375 = vmatpush1.bf16.msra.mxu0 0
    %376 = vmatprep.subr.bf16.mxu0 0
    %377 = vmatpush1.bf16.msra.mxu0 0
    %378 = vmatprep.subr.bf16.mxu0 0
    %379 = vmatpush1.bf16.msra.mxu0 0
    %380 = vmatprep.subr.bf16.mxu0 0
    %381 = vmatpush1.bf16.msra.mxu0 0
    %382 = vmatprep.subr.bf16.mxu0 0
    %383 = vmatpush1.bf16.msra.mxu0 0
    %384 = vmatprep.subr.bf16.mxu0 0
    %385 = vmatpush1.bf16.msra.mxu0 0
    %386 = vmatprep.subr.bf16.mxu0 0
    %387 = vmatpush1.bf16.msra.mxu0 0
    %388 = vmatprep.subr.bf16.mxu0 0
    %389 = vmatpush1.bf16.msra.mxu0 0
    %390 = vmatprep.subr.bf16.mxu0 0
    %391 = vmatpush1.bf16.msra.mxu0 0
    %392 = vmatprep.subr.bf16.mxu0 0
    %393 = vmatpush1.bf16.msra.mxu0 0
    %394 = vmatprep.subr.bf16.mxu0 0
    %395 = vmatpush1.bf16.msra.mxu0 0
    %396 = vmatprep.mubr.bf16.mxu0 0
    %397 = vmatmul.mubr.bf16.gmra.mrb[0].mxu0 %v359
    %v398 = vpop.f32.mrb[0].mxu0
    %v399 = vadd.f32 0.0, %v398
    %v400 = vpop.f32.mrb[0].mxu0
    %v401 = vpop.f32.mrb[0].mxu0
    %v402 = vadd.f32 0.0, %v401
    %v403 = vpop.f32.mrb[0].mxu0
    %404 = vmatprep.mubr.bf16.mxu0 0
    %405 = vmatmul.mubr.bf16.gmra.mrb[0].mxu0 %v362
    %v406 = vpop.f32.mrb[0].mxu0
    %v407 = vadd.f32 0.0, %v406
    %v408 = vpop.f32.mrb[0].mxu0
    %v409 = vpop.f32.mrb[0].mxu0
    %v410 = vadd.f32 0.0, %v409
    %v411 = vpop.f32.mrb[0].mxu0
    %412 = vdwg.mxu0
    %v413 = vpack.c.bf16 %v402, %v399
    %v414 = vpack.c.bf16 %v410, %v407
    %s415 = scalar_lea.vmem [#allocation4], 64
    %v416 = vld [vmem:[%s415] sm:$0xff]
    %v417 = vld [vmem:[%s415 + $0x8] sm:$0xff]
    %v418 = vld [vmem:[%s415 + $0x10] sm:$0xff]
    %v419 = vld [vmem:[%s415 + $0x18] sm:$0xff]
    %v420 = vld [vmem:[%s415 + $0x20] sm:$0xff]
    %v421 = vld [vmem:[%s415 + $0x28] sm:$0xff]
    %v422 = vld [vmem:[%s415 + $0x30] sm:$0xff]
    %v423 = vld [vmem:[%s415 + $0x38] sm:$0xff]
    %v432 = vunpack.c.l.b16 %v416
    %v433 = vunpack.c.h.b16 %v416
    %v434 = vunpack.c.l.b16 %v417
    %v435 = vunpack.c.h.b16 %v417
    %v436 = vunpack.c.l.b16 %v418
    %v437 = vunpack.c.h.b16 %v418
    %v438 = vunpack.c.l.b16 %v419
    %v439 = vunpack.c.h.b16 %v419
    %v440 = vunpack.c.l.b16 %v420
    %v441 = vunpack.c.h.b16 %v420
    %v442 = vunpack.c.l.b16 %v421
    %v443 = vunpack.c.h.b16 %v421
    %v444 = vunpack.c.l.b16 %v422
    %v445 = vunpack.c.h.b16 %v422
    %v446 = vunpack.c.l.b16 %v423
    %v447 = vunpack.c.h.b16 %v423
    %v448 = vpack.c.b16 %v436, %v432
    %v449 = vpack.c.b16 %v437, %v433
    %v450 = vpack.c.b16 %v438, %v434
    %v451 = vpack.c.b16 %v439, %v435
    %v452 = vpack.c.b16 %v444, %v440
    %v453 = vpack.c.b16 %v445, %v441
    %v454 = vpack.c.b16 %v446, %v442
    %v455 = vpack.c.b16 %v447, %v443
    %vm464 = vcmask 261120
    %v466 = vsel %vm464, %v413, 0
    %v469 = vsel %vm464, %v414, 0
    %471 = vmatprep.subr.bf16.mxu0 %v449
    %472 = vmatpush1.bf16.msra.mxu0 %v448
    %473 = vmatprep.subr.bf16.mxu0 %v453
    %474 = vmatpush1.bf16.msra.mxu0 %v452
    %475 = vmatprep.subr.bf16.mxu0 0
    %476 = vmatpush1.bf16.msra.mxu0 0
    %477 = vmatprep.subr.bf16.mxu0 0
    %478 = vmatpush1.bf16.msra.mxu0 0
    %479 = vmatprep.subr.bf16.mxu0 0
    %480 = vmatpush1.bf16.msra.mxu0 0
    %481 = vmatprep.subr.bf16.mxu0 0
    %482 = vmatpush1.bf16.msra.mxu0 0
    %483 = vmatprep.subr.bf16.mxu0 0
    %484 = vmatpush1.bf16.msra.mxu0 0
    %485 = vmatprep.subr.bf16.mxu0 0
    %486 = vmatpush1.bf16.msra.mxu0 0
    %487 = vmatprep.subr.bf16.mxu0 0
    %488 = vmatpush1.bf16.msra.mxu0 0
    %489 = vmatprep.subr.bf16.mxu0 0
    %490 = vmatpush1.bf16.msra.mxu0 0
    %491 = vmatprep.subr.bf16.mxu0 0
    %492 = vmatpush1.bf16.msra.mxu0 0
    %493 = vmatprep.subr.bf16.mxu0 0
    %494 = vmatpush1.bf16.msra.mxu0 0
    %495 = vmatprep.subr.bf16.mxu0 0
    %496 = vmatpush1.bf16.msra.mxu0 0
    %497 = vmatprep.subr.bf16.mxu0 0
    %498 = vmatpush1.bf16.msra.mxu0 0
    %499 = vmatprep.subr.bf16.mxu0 0
    %500 = vmatpush1.bf16.msra.mxu0 0
    %501 = vmatprep.subr.bf16.mxu0 0
    %502 = vmatpush1.bf16.msra.mxu0 0
    %503 = vmatprep.mubr.bf16.mxu0 0
    %504 = vmatmul.mubr.bf16.gmra.mrb[0].mxu0 %v466
    %v505 = vpop.f32.mrb[0].mxu0
    %v506 = vadd.f32 0.0, %v505
    %v507 = vpop.f32.mrb[0].mxu0
    %v508 = vadd.f32 0.0, %v507
    %v509 = vpop.f32.mrb[0].mxu0
    %v510 = vadd.f32 0.0, %v509
    %v511 = vpop.f32.mrb[0].mxu0
    %v512 = vadd.f32 0.0, %v511
    %513 = vmatprep.mubr.bf16.mxu0 0
    %514 = vmatmul.mubr.bf16.gmra.mrb[0].mxu0 %v469
    %v515 = vpop.f32.mrb[0].mxu0
    %v516 = vadd.f32 0.0, %v515
    %v517 = vpop.f32.mrb[0].mxu0
    %v518 = vadd.f32 0.0, %v517
    %v519 = vpop.f32.mrb[0].mxu0
    %v520 = vadd.f32 0.0, %v519
    %v521 = vpop.f32.mrb[0].mxu0
    %v522 = vadd.f32 0.0, %v521
    %523 = vdwg.mxu0
    %524 = vmatprep.subr.bf16.mxu0 %v451
    %525 = vmatpush1.bf16.msra.mxu0 %v450
    %526 = vmatprep.subr.bf16.mxu0 %v455
    %527 = vmatpush1.bf16.msra.mxu0 %v454
    %528 = vmatprep.subr.bf16.mxu0 0
    %529 = vmatpush1.bf16.msra.mxu0 0
    %530 = vmatprep.subr.bf16.mxu0 0
    %531 = vmatpush1.bf16.msra.mxu0 0
    %532 = vmatprep.subr.bf16.mxu0 0
    %533 = vmatpush1.bf16.msra.mxu0 0
    %534 = vmatprep.subr.bf16.mxu0 0
    %535 = vmatpush1.bf16.msra.mxu0 0
    %536 = vmatprep.subr.bf16.mxu0 0
    %537 = vmatpush1.bf16.msra.mxu0 0
    %538 = vmatprep.subr.bf16.mxu0 0
    %539 = vmatpush1.bf16.msra.mxu0 0
    %540 = vmatprep.subr.bf16.mxu0 0
    %541 = vmatpush1.bf16.msra.mxu0 0
    %542 = vmatprep.subr.bf16.mxu0 0
    %543 = vmatpush1.bf16.msra.mxu0 0
    %544 = vmatprep.subr.bf16.mxu0 0
    %545 = vmatpush1.bf16.msra.mxu0 0
    %546 = vmatprep.subr.bf16.mxu0 0
    %547 = vmatpush1.bf16.msra.mxu0 0
    %548 = vmatprep.subr.bf16.mxu0 0
    %549 = vmatpush1.bf16.msra.mxu0 0
    %550 = vmatprep.subr.bf16.mxu0 0
    %551 = vmatpush1.bf16.msra.mxu0 0
    %552 = vmatprep.subr.bf16.mxu0 0
    %553 = vmatpush1.bf16.msra.mxu0 0
    %554 = vmatprep.subr.bf16.mxu0 0
    %555 = vmatpush1.bf16.msra.mxu0 0
    %556 = vmatprep.mubr.bf16.mxu0 0
    %557 = vmatmul.mubr.bf16.gmra.mrb[0].mxu0 %v466
    %v558 = vpop.f32.mrb[0].mxu0
    %v559 = vadd.f32 0.0, %v558
    %v560 = vpop.f32.mrb[0].mxu0
    %v561 = vadd.f32 0.0, %v560
    %v562 = vpop.f32.mrb[0].mxu0
    %v563 = vadd.f32 0.0, %v562
    %v564 = vpop.f32.mrb[0].mxu0
    %v565 = vadd.f32 0.0, %v564
    %566 = vmatprep.mubr.bf16.mxu0 0
    %567 = vmatmul.mubr.bf16.gmra.mrb[0].mxu0 %v469
    %v568 = vpop.f32.mrb[0].mxu0
    %v569 = vadd.f32 0.0, %v568
    %v570 = vpop.f32.mrb[0].mxu0
    %v571 = vadd.f32 0.0, %v570
    %v572 = vpop.f32.mrb[0].mxu0
    %v573 = vadd.f32 0.0, %v572
    %v574 = vpop.f32.mrb[0].mxu0
    %v575 = vadd.f32 0.0, %v574
    %576 = vdwg.mxu0
    %v585 = vunpack.c.l.b16 %v335
    %v586 = vunpack.c.h.b16 %v335
    %v587 = vunpack.c.l.b16 %v336
    %v588 = vunpack.c.h.b16 %v336
    %v589 = vunpack.c.l.b16 %v337
    %v590 = vunpack.c.h.b16 %v337
    %v591 = vunpack.c.l.b16 %v338
    %v592 = vunpack.c.h.b16 %v338
    %v593 = vunpack.c.l.b16 %v339
    %v594 = vunpack.c.h.b16 %v339
    %v595 = vunpack.c.l.b16 %v340
    %v596 = vunpack.c.h.b16 %v340
    %v597 = vunpack.c.l.b16 %v341
    %v598 = vunpack.c.h.b16 %v341
    %v599 = vunpack.c.l.b16 %v342
    %v600 = vunpack.c.h.b16 %v342
    %v601 = vpack.c.b16 %v589, %v585
    %v602 = vpack.c.b16 %v590, %v586
    %v603 = vpack.c.b16 %v591, %v587
    %v604 = vpack.c.b16 %v592, %v588
    %v605 = vpack.c.b16 %v597, %v593
    %v606 = vpack.c.b16 %v598, %v594
    %v607 = vpack.c.b16 %v599, %v595
    %v608 = vpack.c.b16 %v600, %v596
    %v618 = vsel %vm464, %v333, 0
    %v621 = vsel %vm464, %v334, 0
    %623 = vmatprep.subr.bf16.mxu0 %v602
    %624 = vmatpush1.bf16.msra.mxu0 %v601
    %625 = vmatprep.subr.bf16.mxu0 %v606
    %626 = vmatpush1.bf16.msra.mxu0 %v605
    %627 = vmatprep.subr.bf16.mxu0 0
    %628 = vmatpush1.bf16.msra.mxu0 0
    %629 = vmatprep.subr.bf16.mxu0 0
    %630 = vmatpush1.bf16.msra.mxu0 0
    %631 = vmatprep.subr.bf16.mxu0 0
    %632 = vmatpush1.bf16.msra.mxu0 0
    %633 = vmatprep.subr.bf16.mxu0 0
    %634 = vmatpush1.bf16.msra.mxu0 0
    %635 = vmatprep.subr.bf16.mxu0 0
    %636 = vmatpush1.bf16.msra.mxu0 0
    %637 = vmatprep.subr.bf16.mxu0 0
    %638 = vmatpush1.bf16.msra.mxu0 0
    %639 = vmatprep.subr.bf16.mxu0 0
    %640 = vmatpush1.bf16.msra.mxu0 0
    %641 = vmatprep.subr.bf16.mxu0 0
    %642 = vmatpush1.bf16.msra.mxu0 0
    %643 = vmatprep.subr.bf16.mxu0 0
    %644 = vmatpush1.bf16.msra.mxu0 0
    %645 = vmatprep.subr.bf16.mxu0 0
    %646 = vmatpush1.bf16.msra.mxu0 0
    %647 = vmatprep.subr.bf16.mxu0 0
    %648 = vmatpush1.bf16.msra.mxu0 0
    %649 = vmatprep.subr.bf16.mxu0 0
    %650 = vmatpush1.bf16.msra.mxu0 0
    %651 = vmatprep.subr.bf16.mxu0 0
    %652 = vmatpush1.bf16.msra.mxu0 0
    %653 = vmatprep.subr.bf16.mxu0 0
    %654 = vmatpush1.bf16.msra.mxu0 0
    %655 = vmatprep.mubr.bf16.mxu0 0
    %656 = vmatmul.mubr.bf16.gmra.mrb[0].mxu0 %v618
    %v657 = vpop.f32.mrb[0].mxu0
    %v658 = vadd.f32 %v506, %v657
    %v659 = vpop.f32.mrb[0].mxu0
    %v660 = vadd.f32 %v508, %v659
    %v661 = vpop.f32.mrb[0].mxu0
    %v662 = vadd.f32 %v510, %v661
    %v663 = vpop.f32.mrb[0].mxu0
    %v664 = vadd.f32 %v512, %v663
    %665 = vmatprep.mubr.bf16.mxu0 0
    %666 = vmatmul.mubr.bf16.gmra.mrb[0].mxu0 %v621
    %v667 = vpop.f32.mrb[0].mxu0
    %v668 = vadd.f32 %v516, %v667
    %v669 = vpop.f32.mrb[0].mxu0
    %v670 = vadd.f32 %v518, %v669
    %v671 = vpop.f32.mrb[0].mxu0
    %v672 = vadd.f32 %v520, %v671
    %v673 = vpop.f32.mrb[0].mxu0
    %v674 = vadd.f32 %v522, %v673
    %675 = vdwg.mxu0
    %676 = vmatprep.subr.bf16.mxu0 %v604
    %677 = vmatpush1.bf16.msra.mxu0 %v603
    %678 = vmatprep.subr.bf16.mxu0 %v608
    %679 = vmatpush1.bf16.msra.mxu0 %v607
    %680 = vmatprep.subr.bf16.mxu0 0
    %681 = vmatpush1.bf16.msra.mxu0 0
    %682 = vmatprep.subr.bf16.mxu0 0
    %683 = vmatpush1.bf16.msra.mxu0 0
    %684 = vmatprep.subr.bf16.mxu0 0
    %685 = vmatpush1.bf16.msra.mxu0 0
    %686 = vmatprep.subr.bf16.mxu0 0
    %687 = vmatpush1.bf16.msra.mxu0 0
    %688 = vmatprep.subr.bf16.mxu0 0
    %689 = vmatpush1.bf16.msra.mxu0 0
    %690 = vmatprep.subr.bf16.mxu0 0
    %691 = vmatpush1.bf16.msra.mxu0 0
    %692 = vmatprep.subr.bf16.mxu0 0
    %693 = vmatpush1.bf16.msra.mxu0 0
    %694 = vmatprep.subr.bf16.mxu0 0
    %695 = vmatpush1.bf16.msra.mxu0 0
    %696 = vmatprep.subr.bf16.mxu0 0
    %697 = vmatpush1.bf16.msra.mxu0 0
    %698 = vmatprep.subr.bf16.mxu0 0
    %699 = vmatpush1.bf16.msra.mxu0 0
    %700 = vmatprep.subr.bf16.mxu0 0
    %701 = vmatpush1.bf16.msra.mxu0 0
    %702 = vmatprep.subr.bf16.mxu0 0
    %703 = vmatpush1.bf16.msra.mxu0 0
    %704 = vmatprep.subr.bf16.mxu0 0
    %705 = vmatpush1.bf16.msra.mxu0 0
    %706 = vmatprep.subr.bf16.mxu0 0
    %707 = vmatpush1.bf16.msra.mxu0 0
    %708 = vmatprep.mubr.bf16.mxu0 0
    %709 = vmatmul.mubr.bf16.gmra.mrb[0].mxu0 %v618
    %v710 = vpop.f32.mrb[0].mxu0
    %v711 = vadd.f32 %v559, %v710
    %v712 = vpop.f32.mrb[0].mxu0
    %v713 = vadd.f32 %v561, %v712
    %v714 = vpop.f32.mrb[0].mxu0
    %v715 = vadd.f32 %v563, %v714
    %v716 = vpop.f32.mrb[0].mxu0
    %v717 = vadd.f32 %v565, %v716
    %718 = vmatprep.mubr.bf16.mxu0 0
    %719 = vmatmul.mubr.bf16.gmra.mrb[0].mxu0 %v621
    %v720 = vpop.f32.mrb[0].mxu0
    %v721 = vadd.f32 %v569, %v720
    %v722 = vpop.f32.mrb[0].mxu0
    %v723 = vadd.f32 %v571, %v722
    %v724 = vpop.f32.mrb[0].mxu0
    %v725 = vadd.f32 %v573, %v724
    %v726 = vpop.f32.mrb[0].mxu0
    %v727 = vadd.f32 %v575, %v726
    %728 = vdwg.mxu0
    %s729 = scalar_lea.vmem [#allocation2], 32
    %v730 = vld [vmem:[%s729] sm:$0xf]
    %v731 = vld [vmem:[%s729 + $0x4] sm:$0xf]
    %v732 = vld [vmem:[%s729 + $0x8] sm:$0xf]
    %v733 = vld [vmem:[%s729 + $0xc] sm:$0xf]
    %v738 = vunpack.c.l.b16 %v730
    %v739 = vunpack.c.l.b16 %v731
    %v740 = vunpack.c.l.b16 %v732
    %v741 = vunpack.c.l.b16 %v733
    %v742 = vpack.c.b16 %v739, %v738
    %v743 = vpack.c.b16 %v741, %v740
    %v745 = vsel %vm277, %v742, 0
    %v748 = vsel %vm277, %v743, 0
    %750 = vmatprep.subr.bf16.mxu0 0
    %751 = vmatpush1.bf16.msra.mxu0 %v269
    %752 = vmatprep.subr.bf16.mxu0 0
    %753 = vmatpush1.bf16.msra.mxu0 %v270
    %754 = vmatprep.subr.bf16.mxu0 0
    %755 = vmatpush1.bf16.msra.mxu0 %v271
    %756 = vmatprep.subr.bf16.mxu0 0
    %757 = vmatpush1.bf16.msra.mxu0 %v272
    %758 = vmatprep.subr.bf16.mxu0 0
    %759 = vmatpush1.bf16.msra.mxu0 0
    %760 = vmatprep.subr.bf16.mxu0 0
    %761 = vmatpush1.bf16.msra.mxu0 0
    %762 = vmatprep.subr.bf16.mxu0 0
    %763 = vmatpush1.bf16.msra.mxu0 0
    %764 = vmatprep.subr.bf16.mxu0 0
    %765 = vmatpush1.bf16.msra.mxu0 0
    %766 = vmatprep.subr.bf16.mxu0 0
    %767 = vmatpush1.bf16.msra.mxu0 0
    %768 = vmatprep.subr.bf16.mxu0 0
    %769 = vmatpush1.bf16.msra.mxu0 0
    %770 = vmatprep.subr.bf16.mxu0 0
    %771 = vmatpush1.bf16.msra.mxu0 0
    %772 = vmatprep.subr.bf16.mxu0 0
    %773 = vmatpush1.bf16.msra.mxu0 0
    %774 = vmatprep.subr.bf16.mxu0 0
    %775 = vmatpush1.bf16.msra.mxu0 0
    %776 = vmatprep.subr.bf16.mxu0 0
    %777 = vmatpush1.bf16.msra.mxu0 0
    %778 = vmatprep.subr.bf16.mxu0 0
    %779 = vmatpush1.bf16.msra.mxu0 0
    %780 = vmatprep.subr.bf16.mxu0 0
    %781 = vmatpush1.bf16.msra.mxu0 0
    %782 = vmatprep.mubr.bf16.mxu0 0
    %783 = vmatmul.mubr.bf16.gmra.mrb[0].mxu0 %v745
    %v784 = vpop.f32.mrb[0].mxu0
    %v785 = vadd.f32 0.0, %v784
    %v786 = vpop.f32.mrb[0].mxu0
    %v787 = vpop.f32.mrb[0].mxu0
    %v788 = vadd.f32 0.0, %v787
    %v789 = vpop.f32.mrb[0].mxu0
    %790 = vmatprep.mubr.bf16.mxu0 0
    %791 = vmatmul.mubr.bf16.gmra.mrb[0].mxu0 %v748
    %v792 = vpop.f32.mrb[0].mxu0
    %v793 = vadd.f32 0.0, %v792
    %v794 = vpop.f32.mrb[0].mxu0
    %v795 = vpop.f32.mrb[0].mxu0
    %v796 = vadd.f32 0.0, %v795
    %v797 = vpop.f32.mrb[0].mxu0
    %798 = vdwg.mxu0
    %v799 = vpack.c.bf16 %v788, %v785
    %v800 = vpack.c.bf16 %v796, %v793
    %s801 = scalar_lea.vmem [#allocation4], 128
    %v802 = vld [vmem:[%s801] sm:$0xff]
    %v803 = vld [vmem:[%s801 + $0x8] sm:$0xff]
    %v804 = vld [vmem:[%s801 + $0x10] sm:$0xff]
    %v805 = vld [vmem:[%s801 + $0x18] sm:$0xff]
    %v806 = vld [vmem:[%s801 + $0x20] sm:$0xff]
    %v807 = vld [vmem:[%s801 + $0x28] sm:$0xff]
    %v808 = vld [vmem:[%s801 + $0x30] sm:$0xff]
    %v809 = vld [vmem:[%s801 + $0x38] sm:$0xff]
    %v818 = vunpack.c.l.b16 %v802
    %v819 = vunpack.c.h.b16 %v802
    %v820 = vunpack.c.l.b16 %v803
    %v821 = vunpack.c.h.b16 %v803
    %v822 = vunpack.c.l.b16 %v804
    %v823 = vunpack.c.h.b16 %v804
    %v824 = vunpack.c.l.b16 %v805
    %v825 = vunpack.c.h.b16 %v805
    %v826 = vunpack.c.l.b16 %v806
    %v827 = vunpack.c.h.b16 %v806
    %v828 = vunpack.c.l.b16 %v807
    %v829 = vunpack.c.h.b16 %v807
    %v830 = vunpack.c.l.b16 %v808
    %v831 = vunpack.c.h.b16 %v808
    %v832 = vunpack.c.l.b16 %v809
    %v833 = vunpack.c.h.b16 %v809
    %v834 = vpack.c.b16 %v822, %v818
    %v835 = vpack.c.b16 %v823, %v819
    %v836 = vpack.c.b16 %v824, %v820
    %v837 = vpack.c.b16 %v825, %v821
    %v838 = vpack.c.b16 %v830, %v826
    %v839 = vpack.c.b16 %v831, %v827
    %v840 = vpack.c.b16 %v832, %v828
    %v841 = vpack.c.b16 %v833, %v829
    %v851 = vsel %vm464, %v799, 0
    %v854 = vsel %vm464, %v800, 0
    %856 = vmatprep.subr.bf16.mxu0 %v835
    %857 = vmatpush1.bf16.msra.mxu0 %v834
    %858 = vmatprep.subr.bf16.mxu0 %v839
    %859 = vmatpush1.bf16.msra.mxu0 %v838
    %860 = vmatprep.subr.bf16.mxu0 0
    %861 = vmatpush1.bf16.msra.mxu0 0
    %862 = vmatprep.subr.bf16.mxu0 0
    %863 = vmatpush1.bf16.msra.mxu0 0
    %864 = vmatprep.subr.bf16.mxu0 0
    %865 = vmatpush1.bf16.msra.mxu0 0
    %866 = vmatprep.subr.bf16.mxu0 0
    %867 = vmatpush1.bf16.msra.mxu0 0
    %868 = vmatprep.subr.bf16.mxu0 0
    %869 = vmatpush1.bf16.msra.mxu0 0
    %870 = vmatprep.subr.bf16.mxu0 0
    %871 = vmatpush1.bf16.msra.mxu0 0
    %872 = vmatprep.subr.bf16.mxu0 0
    %873 = vmatpush1.bf16.msra.mxu0 0
    %874 = vmatprep.subr.bf16.mxu0 0
    %875 = vmatpush1.bf16.msra.mxu0 0
    %876 = vmatprep.subr.bf16.mxu0 0
    %877 = vmatpush1.bf16.msra.mxu0 0
    %878 = vmatprep.subr.bf16.mxu0 0
    %879 = vmatpush1.bf16.msra.mxu0 0
    %880 = vmatprep.subr.bf16.mxu0 0
    %881 = vmatpush1.bf16.msra.mxu0 0
    %882 = vmatprep.subr.bf16.mxu0 0
    %883 = vmatpush1.bf16.msra.mxu0 0
    %884 = vmatprep.subr.bf16.mxu0 0
    %885 = vmatpush1.bf16.msra.mxu0 0
    %886 = vmatprep.subr.bf16.mxu0 0
    %887 = vmatpush1.bf16.msra.mxu0 0
    %888 = vmatprep.mubr.bf16.mxu0 0
    %889 = vmatmul.mubr.bf16.gmra.mrb[0].mxu0 %v851
    %v890 = vpop.f32.mrb[0].mxu0
    %v891 = vadd.f32 0.0, %v890
    %v892 = vpop.f32.mrb[0].mxu0
    %v893 = vadd.f32 0.0, %v892
    %v894 = vpop.f32.mrb[0].mxu0
    %v895 = vadd.f32 0.0, %v894
    %v896 = vpop.f32.mrb[0].mxu0
    %v897 = vadd.f32 0.0, %v896
    %898 = vmatprep.mubr.bf16.mxu0 0
    %899 = vmatmul.mubr.bf16.gmra.mrb[0].mxu0 %v854
    %v900 = vpop.f32.mrb[0].mxu0
    %v901 = vadd.f32 0.0, %v900
    %v902 = vpop.f32.mrb[0].mxu0
    %v903 = vadd.f32 0.0, %v902
    %v904 = vpop.f32.mrb[0].mxu0
    %v905 = vadd.f32 0.0, %v904
    %v906 = vpop.f32.mrb[0].mxu0
    %v907 = vadd.f32 0.0, %v906
    %908 = vdwg.mxu0
    %909 = vmatprep.subr.bf16.mxu0 %v837
    %910 = vmatpush1.bf16.msra.mxu0 %v836
    %911 = vmatprep.subr.bf16.mxu0 %v841
    %912 = vmatpush1.bf16.msra.mxu0 %v840
    %913 = vmatprep.subr.bf16.mxu0 0
    %914 = vmatpush1.bf16.msra.mxu0 0
    %915 = vmatprep.subr.bf16.mxu0 0
    %916 = vmatpush1.bf16.msra.mxu0 0
    %917 = vmatprep.subr.bf16.mxu0 0
    %918 = vmatpush1.bf16.msra.mxu0 0
    %919 = vmatprep.subr.bf16.mxu0 0
    %920 = vmatpush1.bf16.msra.mxu0 0
    %921 = vmatprep.subr.bf16.mxu0 0
    %922 = vmatpush1.bf16.msra.mxu0 0
    %923 = vmatprep.subr.bf16.mxu0 0
    %924 = vmatpush1.bf16.msra.mxu0 0
    %925 = vmatprep.subr.bf16.mxu0 0
    %926 = vmatpush1.bf16.msra.mxu0 0
    %927 = vmatprep.subr.bf16.mxu0 0
    %928 = vmatpush1.bf16.msra.mxu0 0
    %929 = vmatprep.subr.bf16.mxu0 0
    %930 = vmatpush1.bf16.msra.mxu0 0
    %931 = vmatprep.subr.bf16.mxu0 0
    %932 = vmatpush1.bf16.msra.mxu0 0
    %933 = vmatprep.subr.bf16.mxu0 0
    %934 = vmatpush1.bf16.msra.mxu0 0
    %935 = vmatprep.subr.bf16.mxu0 0
    %936 = vmatpush1.bf16.msra.mxu0 0
    %937 = vmatprep.subr.bf16.mxu0 0
    %938 = vmatpush1.bf16.msra.mxu0 0
    %939 = vmatprep.subr.bf16.mxu0 0
    %940 = vmatpush1.bf16.msra.mxu0 0
    %941 = vmatprep.mubr.bf16.mxu0 0
    %942 = vmatmul.mubr.bf16.gmra.mrb[0].mxu0 %v851
    %v943 = vpop.f32.mrb[0].mxu0
    %v944 = vadd.f32 0.0, %v943
    %v945 = vpop.f32.mrb[0].mxu0
    %v946 = vadd.f32 0.0, %v945
    %v947 = vpop.f32.mrb[0].mxu0
    %v948 = vadd.f32 0.0, %v947
    %v949 = vpop.f32.mrb[0].mxu0
    %v950 = vadd.f32 0.0, %v949
    %951 = vmatprep.mubr.bf16.mxu0 0
    %952 = vmatmul.mubr.bf16.gmra.mrb[0].mxu0 %v854
    %v953 = vpop.f32.mrb[0].mxu0
    %v954 = vadd.f32 0.0, %v953
    %v955 = vpop.f32.mrb[0].mxu0
    %v956 = vadd.f32 0.0, %v955
    %v957 = vpop.f32.mrb[0].mxu0
    %v958 = vadd.f32 0.0, %v957
    %v959 = vpop.f32.mrb[0].mxu0
    %v960 = vadd.f32 0.0, %v959
    %961 = vdwg.mxu0
    %v962 = vadd.f32 %v658, %v891
    %v963 = vadd.f32 %v660, %v893
    %v964 = vadd.f32 %v711, %v944
    %v965 = vadd.f32 %v713, %v946
    %v966 = vadd.f32 %v662, %v895
    %v967 = vadd.f32 %v664, %v897
    %v968 = vadd.f32 %v715, %v948
    %v969 = vadd.f32 %v717, %v950
    %v970 = vadd.f32 %v668, %v901
    %v971 = vadd.f32 %v670, %v903
    %v972 = vadd.f32 %v721, %v954
    %v973 = vadd.f32 %v723, %v956
    %v974 = vadd.f32 %v672, %v905
    %v975 = vadd.f32 %v674, %v907
    %v976 = vadd.f32 %v725, %v958
    %v977 = vadd.f32 %v727, %v960
    %v978 = vld [vmem:[#allocation6] sm:$0xf]
    %v980 = vlaneseq
    %v981 = vshrl.u32 %v980, 7
    %v982 = vsub.s32 0, %v981
    %v983 = vrot.slane %v978, %v982
    %v984 = vlaneseq
    %v985 = vshrl.u32 %v984, 7
    %v986 = vsub.s32 1, %v985
    %v987 = vrot.slane %v978, %v986
    %v988 = vlaneseq
    %v989 = vshrl.u32 %v988, 7
    %v990 = vsub.s32 2, %v989
    %v991 = vrot.slane %v978, %v990
    %v992 = vlaneseq
    %v993 = vshrl.u32 %v992, 7
    %v994 = vsub.s32 3, %v993
    %v995 = vrot.slane %v978, %v994
    %v1000 = vadd.f32 %v962, %v983
    %v1001 = vadd.f32 %v963, %v987
    %v1002 = vadd.f32 %v964, %v991
    %v1003 = vadd.f32 %v965, %v995
    %v1004 = vadd.f32 %v966, %v983
    %v1005 = vadd.f32 %v967, %v987
    %v1006 = vadd.f32 %v968, %v991
    %v1007 = vadd.f32 %v969, %v995
    %v1008 = vadd.f32 %v970, %v983
    %v1009 = vadd.f32 %v971, %v987
    %v1010 = vadd.f32 %v972, %v991
    %v1011 = vadd.f32 %v973, %v995
    %v1012 = vadd.f32 %v974, %v983
    %v1013 = vadd.f32 %v975, %v987
    %v1014 = vadd.f32 %v976, %v991
    %v1015 = vadd.f32 %v977, %v995
    %vm1016 = vcmp.gt.f32.partialorder %v1000, 0.0
    %vm1017 = vcmp.gt.f32.partialorder %v1001, 0.0
    %vm1018 = vcmp.gt.f32.partialorder %v1002, 0.0
    %vm1019 = vcmp.gt.f32.partialorder %v1003, 0.0
    %vm1020 = vcmp.gt.f32.partialorder %v1004, 0.0
    %vm1021 = vcmp.gt.f32.partialorder %v1005, 0.0
    %vm1022 = vcmp.gt.f32.partialorder %v1006, 0.0
    %vm1023 = vcmp.gt.f32.partialorder %v1007, 0.0
    %vm1024 = vcmp.gt.f32.partialorder %v1008, 0.0
    %vm1025 = vcmp.gt.f32.partialorder %v1009, 0.0
    %vm1026 = vcmp.gt.f32.partialorder %v1010, 0.0
    %vm1027 = vcmp.gt.f32.partialorder %v1011, 0.0
    %vm1028 = vcmp.gt.f32.partialorder %v1012, 0.0
    %vm1029 = vcmp.gt.f32.partialorder %v1013, 0.0
    %vm1030 = vcmp.gt.f32.partialorder %v1014, 0.0
    %vm1031 = vcmp.gt.f32.partialorder %v1015, 0.0
    %v1032 = vmul.f32 %v1000, 0.01
    %v1033 = vmul.f32 %v1001, 0.01
    %v1034 = vmul.f32 %v1002, 0.01
    %v1035 = vmul.f32 %v1003, 0.01
    %v1036 = vmul.f32 %v1004, 0.01
    %v1037 = vmul.f32 %v1005, 0.01
    %v1038 = vmul.f32 %v1006, 0.01
    %v1039 = vmul.f32 %v1007, 0.01
    %v1040 = vmul.f32 %v1008, 0.01
    %v1041 = vmul.f32 %v1009, 0.01
    %v1042 = vmul.f32 %v1010, 0.01
    %v1043 = vmul.f32 %v1011, 0.01
    %v1044 = vmul.f32 %v1012, 0.01
    %v1045 = vmul.f32 %v1013, 0.01
    %v1046 = vmul.f32 %v1014, 0.01
    %v1047 = vmul.f32 %v1015, 0.01
    %v1048 = vsel %vm1016, %v1000, %v1032
    %v1049 = vsel %vm1017, %v1001, %v1033
    %v1050 = vsel %vm1018, %v1002, %v1034
    %v1051 = vsel %vm1019, %v1003, %v1035
    %v1052 = vsel %vm1020, %v1004, %v1036
    %v1053 = vsel %vm1021, %v1005, %v1037
    %v1054 = vsel %vm1022, %v1006, %v1038
    %v1055 = vsel %vm1023, %v1007, %v1039
    %v1056 = vsel %vm1024, %v1008, %v1040
    %v1057 = vsel %vm1025, %v1009, %v1041
    %v1058 = vsel %vm1026, %v1010, %v1042
    %v1059 = vsel %vm1027, %v1011, %v1043
    %v1060 = vsel %vm1028, %v1012, %v1044
    %v1061 = vsel %vm1029, %v1013, %v1045
    %v1062 = vsel %vm1030, %v1014, %v1046
    %v1063 = vsel %vm1031, %v1015, %v1047
    %v1064 = vpack.c.bf16 %v1052, %v1048
    %v1065 = vpack.c.bf16 %v1053, %v1049
    %v1066 = vpack.c.bf16 %v1054, %v1050
    %v1067 = vpack.c.bf16 %v1055, %v1051
    %v1068 = vpack.c.bf16 %v1060, %v1056
    %v1069 = vpack.c.bf16 %v1061, %v1057
    %v1070 = vpack.c.bf16 %v1062, %v1058
    %v1071 = vpack.c.bf16 %v1063, %v1059
    %v1072 = vld [vmem:[#allocation7] sm:$0xf]
    %v1073 = vld [vmem:[#allocation7 + $0x4] sm:$0xf]
    %v1076 = vunpack.c.l.b16 %v1072
    %v1077 = vunpack.c.l.b16 %v1073
    %v1078 = vpack.c.b16 %v1077, %v1076
    %v1080 = vsel %vm464, %v1078, 0
    %1082 = vmatprep.subr.bf16.mxu0 %v1065
    %1083 = vmatpush1.bf16.msra.mxu0 %v1064
    %1084 = vmatprep.subr.bf16.mxu0 %v1069
    %1085 = vmatpush1.bf16.msra.mxu0 %v1068
    %1086 = vmatprep.subr.bf16.mxu0 0
    %1087 = vmatpush1.bf16.msra.mxu0 0
    %1088 = vmatprep.subr.bf16.mxu0 0
    %1089 = vmatpush1.bf16.msra.mxu0 0
    %1090 = vmatprep.subr.bf16.mxu0 0
    %1091 = vmatpush1.bf16.msra.mxu0 0
    %1092 = vmatprep.subr.bf16.mxu0 0
    %1093 = vmatpush1.bf16.msra.mxu0 0
    %1094 = vmatprep.subr.bf16.mxu0 0
    %1095 = vmatpush1.bf16.msra.mxu0 0
    %1096 = vmatprep.subr.bf16.mxu0 0
    %1097 = vmatpush1.bf16.msra.mxu0 0
    %1098 = vmatprep.subr.bf16.mxu0 0
    %1099 = vmatpush1.bf16.msra.mxu0 0
    %1100 = vmatprep.subr.bf16.mxu0 0
    %1101 = vmatpush1.bf16.msra.mxu0 0
    %1102 = vmatprep.subr.bf16.mxu0 0
    %1103 = vmatpush1.bf16.msra.mxu0 0
    %1104 = vmatprep.subr.bf16.mxu0 0
    %1105 = vmatpush1.bf16.msra.mxu0 0
    %1106 = vmatprep.subr.bf16.mxu0 0
    %1107 = vmatpush1.bf16.msra.mxu0 0
    %1108 = vmatprep.subr.bf16.mxu0 0
    %1109 = vmatpush1.bf16.msra.mxu0 0
    %1110 = vmatprep.subr.bf16.mxu0 0
    %1111 = vmatpush1.bf16.msra.mxu0 0
    %1112 = vmatprep.subr.bf16.mxu0 0
    %1113 = vmatpush1.bf16.msra.mxu0 0
    %1114 = vmatprep.mubr.bf16.mxu0 0
    %1115 = vmatmul.mubr.bf16.gmra.mrb[0].mxu0 %v1080
    %v1116 = vpop.f32.mrb[0].mxu0
    %v1117 = vadd.f32 0.0, %v1116
    %v1118 = vpop.f32.mrb[0].mxu0
    %v1119 = vadd.f32 0.0, %v1118
    %v1120 = vpop.f32.mrb[0].mxu0
    %v1121 = vadd.f32 0.0, %v1120
    %v1122 = vpop.f32.mrb[0].mxu0
    %v1123 = vadd.f32 0.0, %v1122
    %1124 = vdwg.mxu0
    %1125 = vmatprep.subr.bf16.mxu0 %v1067
    %1126 = vmatpush1.bf16.msra.mxu0 %v1066
    %1127 = vmatprep.subr.bf16.mxu0 %v1071
    %1128 = vmatpush1.bf16.msra.mxu0 %v1070
    %1129 = vmatprep.subr.bf16.mxu0 0
    %1130 = vmatpush1.bf16.msra.mxu0 0
    %1131 = vmatprep.subr.bf16.mxu0 0
    %1132 = vmatpush1.bf16.msra.mxu0 0
    %1133 = vmatprep.subr.bf16.mxu0 0
    %1134 = vmatpush1.bf16.msra.mxu0 0
    %1135 = vmatprep.subr.bf16.mxu0 0
    %1136 = vmatpush1.bf16.msra.mxu0 0
    %1137 = vmatprep.subr.bf16.mxu0 0
    %1138 = vmatpush1.bf16.msra.mxu0 0
    %1139 = vmatprep.subr.bf16.mxu0 0
    %1140 = vmatpush1.bf16.msra.mxu0 0
    %1141 = vmatprep.subr.bf16.mxu0 0
    %1142 = vmatpush1.bf16.msra.mxu0 0
    %1143 = vmatprep.subr.bf16.mxu0 0
    %1144 = vmatpush1.bf16.msra.mxu0 0
    %1145 = vmatprep.subr.bf16.mxu0 0
    %1146 = vmatpush1.bf16.msra.mxu0 0
    %1147 = vmatprep.subr.bf16.mxu0 0
    %1148 = vmatpush1.bf16.msra.mxu0 0
    %1149 = vmatprep.subr.bf16.mxu0 0
    %1150 = vmatpush1.bf16.msra.mxu0 0
    %1151 = vmatprep.subr.bf16.mxu0 0
    %1152 = vmatpush1.bf16.msra.mxu0 0
    %1153 = vmatprep.subr.bf16.mxu0 0
    %1154 = vmatpush1.bf16.msra.mxu0 0
    %1155 = vmatprep.subr.bf16.mxu0 0
    %1156 = vmatpush1.bf16.msra.mxu0 0
    %1157 = vmatprep.mubr.bf16.mxu0 0
    %1158 = vmatmul.mubr.bf16.gmra.mrb[0].mxu0 %v1080
    %v1159 = vpop.f32.mrb[0].mxu0
    %v1160 = vadd.f32 0.0, %v1159
    %v1161 = vpop.f32.mrb[0].mxu0
    %v1162 = vadd.f32 0.0, %v1161
    %v1163 = vpop.f32.mrb[0].mxu0
    %v1164 = vadd.f32 0.0, %v1163
    %v1165 = vpop.f32.mrb[0].mxu0
    %v1166 = vadd.f32 0.0, %v1165
    %1167 = vdwg.mxu0
    %v1168 = vpack.c.bf16 %v1121, %v1117
    %v1169 = vpack.c.bf16 %v1123, %v1119
    %v1170 = vpack.c.bf16 %v1164, %v1160
    %v1171 = vpack.c.bf16 %v1166, %v1162
    %v1172 = vld [vmem:[#allocation9] sm:$0xff]
    %v1173 = vld [vmem:[#allocation9 + $0x8] sm:$0xff]
    %v1174 = vld [vmem:[#allocation9 + $0x10] sm:$0xff]
    %v1175 = vld [vmem:[#allocation9 + $0x18] sm:$0xff]
    %v1176 = vld [vmem:[#allocation9 + $0x20] sm:$0xff]
    %v1177 = vld [vmem:[#allocation9 + $0x28] sm:$0xff]
    %v1178 = vld [vmem:[#allocation9 + $0x30] sm:$0xff]
    %v1179 = vld [vmem:[#allocation9 + $0x38] sm:$0xff]
    %v1180 = vld [vmem:[#allocation9 + $0x40] sm:$0xff]
    %v1181 = vld [vmem:[#allocation9 + $0x48] sm:$0xff]
    %v1182 = vld [vmem:[#allocation9 + $0x50] sm:$0xff]
    %v1183 = vld [vmem:[#allocation9 + $0x58] sm:$0xff]
    %v1184 = vld [vmem:[#allocation9 + $0x60] sm:$0xff]
    %v1185 = vld [vmem:[#allocation9 + $0x68] sm:$0xff]
    %v1186 = vld [vmem:[#allocation9 + $0x70] sm:$0xff]
    %v1187 = vld [vmem:[#allocation9 + $0x78] sm:$0xff]
    %v1188 = vld [vmem:[#allocation9 + $0x80] sm:$0xff]
    %v1189 = vld [vmem:[#allocation9 + $0x88] sm:$0xff]
    %v1190 = vld [vmem:[#allocation9 + $0x90] sm:$0xff]
    %v1191 = vld [vmem:[#allocation9 + $0x98] sm:$0xff]
    %v1192 = vld [vmem:[#allocation9 + $0xa0] sm:$0xff]
    %v1193 = vld [vmem:[#allocation9 + $0xa8] sm:$0xff]
    %v1194 = vld [vmem:[#allocation9 + $0xb0] sm:$0xff]
    %v1195 = vld [vmem:[#allocation9 + $0xb8] sm:$0xff]
    %v1196 = vld [vmem:[#allocation9 + $0xc0] sm:$0xff]
    %v1197 = vld [vmem:[#allocation9 + $0xc8] sm:$0xff]
    %v1198 = vld [vmem:[#allocation9 + $0xd0] sm:$0xff]
    %v1199 = vld [vmem:[#allocation9 + $0xd8] sm:$0xff]
    %v1200 = vld [vmem:[#allocation9 + $0xe0] sm:$0xff]
    %v1201 = vld [vmem:[#allocation9 + $0xe8] sm:$0xff]
    %v1202 = vld [vmem:[#allocation9 + $0xf0] sm:$0xff]
    %v1203 = vld [vmem:[#allocation9 + $0xf8] sm:$0xff]
    %v1204 = vld [vmem:[#allocation9 + $0x100] sm:$0xff]
    %v1205 = vld [vmem:[#allocation9 + $0x108] sm:$0xff]
    %v1206 = vld [vmem:[#allocation9 + $0x110] sm:$0xff]
    %v1207 = vld [vmem:[#allocation9 + $0x118] sm:$0xff]
    %v1208 = vld [vmem:[#allocation9 + $0x120] sm:$0xff]
    %v1209 = vld [vmem:[#allocation9 + $0x128] sm:$0xff]
    %v1210 = vld [vmem:[#allocation9 + $0x130] sm:$0xff]
    %v1211 = vld [vmem:[#allocation9 + $0x138] sm:$0xff]
    %v1212 = vld [vmem:[#allocation9 + $0x140] sm:$0xff]
    %v1213 = vld [vmem:[#allocation9 + $0x148] sm:$0xff]
    %v1214 = vld [vmem:[#allocation9 + $0x150] sm:$0xff]
    %v1215 = vld [vmem:[#allocation9 + $0x158] sm:$0xff]
    %v1216 = vld [vmem:[#allocation9 + $0x160] sm:$0xff]
    %v1217 = vld [vmem:[#allocation9 + $0x168] sm:$0xff]
    %v1218 = vld [vmem:[#allocation9 + $0x170] sm:$0xff]
    %v1219 = vld [vmem:[#allocation9 + $0x178] sm:$0xff]
    %v1220 = vld [vmem:[#allocation9 + $0x180] sm:$0xff]
    %v1221 = vld [vmem:[#allocation9 + $0x188] sm:$0xff]
    %v1222 = vld [vmem:[#allocation9 + $0x190] sm:$0xff]
    %v1223 = vld [vmem:[#allocation9 + $0x198] sm:$0xff]
    %v1224 = vld [vmem:[#allocation9 + $0x1a0] sm:$0xff]
    %v1225 = vld [vmem:[#allocation9 + $0x1a8] sm:$0xff]
    %v1226 = vld [vmem:[#allocation9 + $0x1b0] sm:$0xff]
    %v1227 = vld [vmem:[#allocation9 + $0x1b8] sm:$0xff]
    %v1228 = vld [vmem:[#allocation9 + $0x1c0] sm:$0xff]
    %v1229 = vld [vmem:[#allocation9 + $0x1c8] sm:$0xff]
    %v1230 = vld [vmem:[#allocation9 + $0x1d0] sm:$0xff]
    %v1231 = vld [vmem:[#allocation9 + $0x1d8] sm:$0xff]
    %v1232 = vld [vmem:[#allocation9 + $0x1e0] sm:$0xff]
    %v1233 = vld [vmem:[#allocation9 + $0x1e8] sm:$0xff]
    %v1234 = vld [vmem:[#allocation9 + $0x1f0] sm:$0xff]
    %v1235 = vld [vmem:[#allocation9 + $0x1f8] sm:$0xff]
    %v1236 = vld [vmem:[#allocation9 + $0x200] sm:$0xff]
    %v1237 = vld [vmem:[#allocation9 + $0x208] sm:$0xff]
    %v1238 = vld [vmem:[#allocation9 + $0x210] sm:$0xff]
    %v1239 = vld [vmem:[#allocation9 + $0x218] sm:$0xff]
    %v1240 = vld [vmem:[#allocation9 + $0x220] sm:$0xff]
    %v1241 = vld [vmem:[#allocation9 + $0x228] sm:$0xff]
    %v1242 = vld [vmem:[#allocation9 + $0x230] sm:$0xff]
    %v1243 = vld [vmem:[#allocation9 + $0x238] sm:$0xff]
    %v1244 = vld [vmem:[#allocation9 + $0x240] sm:$0xff]
    %v1245 = vld [vmem:[#allocation9 + $0x248] sm:$0xff]
    %v1246 = vld [vmem:[#allocation9 + $0x250] sm:$0xff]
    %v1247 = vld [vmem:[#allocation9 + $0x258] sm:$0xff]
    %v1248 = vld [vmem:[#allocation9 + $0x260] sm:$0xff]
    %v1249 = vld [vmem:[#allocation9 + $0x268] sm:$0xff]
    %v1250 = vld [vmem:[#allocation9 + $0x270] sm:$0xff]
    %v1251 = vld [vmem:[#allocation9 + $0x278] sm:$0xff]
    %v1252 = vld [vmem:[#allocation9 + $0x280] sm:$0xff]
    %v1253 = vld [vmem:[#allocation9 + $0x288] sm:$0xff]
    %v1254 = vld [vmem:[#allocation9 + $0x290] sm:$0xff]
    %v1255 = vld [vmem:[#allocation9 + $0x298] sm:$0xff]
    %v1256 = vld [vmem:[#allocation9 + $0x2a0] sm:$0xff]
    %v1257 = vld [vmem:[#allocation9 + $0x2a8] sm:$0xff]
    %v1258 = vld [vmem:[#allocation9 + $0x2b0] sm:$0xff]
    %v1259 = vld [vmem:[#allocation9 + $0x2b8] sm:$0xff]
    %v1260 = vld [vmem:[#allocation9 + $0x2c0] sm:$0xff]
    %v1261 = vld [vmem:[#allocation9 + $0x2c8] sm:$0xff]
    %v1262 = vld [vmem:[#allocation9 + $0x2d0] sm:$0xff]
    %v1263 = vld [vmem:[#allocation9 + $0x2d8] sm:$0xff]
    %v1264 = vld [vmem:[#allocation9 + $0x2e0] sm:$0xff]
    %v1265 = vld [vmem:[#allocation9 + $0x2e8] sm:$0xff]
    %v1266 = vld [vmem:[#allocation9 + $0x2f0] sm:$0xff]
    %v1267 = vld [vmem:[#allocation9 + $0x2f8] sm:$0xff]
    %v1268 = vld [vmem:[#allocation9 + $0x300] sm:$0xff]
    %v1269 = vld [vmem:[#allocation9 + $0x308] sm:$0xff]
    %v1270 = vld [vmem:[#allocation9 + $0x310] sm:$0xff]
    %v1271 = vld [vmem:[#allocation9 + $0x318] sm:$0xff]
    %v1272 = vld [vmem:[#allocation9 + $0x320] sm:$0xff]
    %v1273 = vld [vmem:[#allocation9 + $0x328] sm:$0xff]
    %v1274 = vld [vmem:[#allocation9 + $0x330] sm:$0xff]
    %v1275 = vld [vmem:[#allocation9 + $0x338] sm:$0xff]
    %v1276 = vld [vmem:[#allocation9 + $0x340] sm:$0xff]
    %v1277 = vld [vmem:[#allocation9 + $0x348] sm:$0xff]
    %v1278 = vld [vmem:[#allocation9 + $0x350] sm:$0xff]
    %v1279 = vld [vmem:[#allocation9 + $0x358] sm:$0xff]
    %v1280 = vld [vmem:[#allocation9 + $0x360] sm:$0xff]
    %v1281 = vld [vmem:[#allocation9 + $0x368] sm:$0xff]
    %v1282 = vld [vmem:[#allocation9 + $0x370] sm:$0xff]
    %v1283 = vld [vmem:[#allocation9 + $0x378] sm:$0xff]
    %v1284 = vld [vmem:[#allocation9 + $0x380] sm:$0xff]
    %v1285 = vld [vmem:[#allocation9 + $0x388] sm:$0xff]
    %v1286 = vld [vmem:[#allocation9 + $0x390] sm:$0xff]
    %v1287 = vld [vmem:[#allocation9 + $0x398] sm:$0xff]
    %v1288 = vld [vmem:[#allocation9 + $0x3a0] sm:$0xff]
    %v1289 = vld [vmem:[#allocation9 + $0x3a8] sm:$0xff]
    %v1290 = vld [vmem:[#allocation9 + $0x3b0] sm:$0xff]
    %v1291 = vld [vmem:[#allocation9 + $0x3b8] sm:$0xff]
    %v1292 = vld [vmem:[#allocation9 + $0x3c0] sm:$0xff]
    %v1293 = vld [vmem:[#allocation9 + $0x3c8] sm:$0xff]
    %v1294 = vld [vmem:[#allocation9 + $0x3d0] sm:$0xff]
    %v1295 = vld [vmem:[#allocation9 + $0x3d8] sm:$0xff]
    %v1296 = vld [vmem:[#allocation9 + $0x3e0] sm:$0xff]
    %v1297 = vld [vmem:[#allocation9 + $0x3e8] sm:$0xff]
    %v1298 = vld [vmem:[#allocation9 + $0x3f0] sm:$0xff]
    %v1299 = vld [vmem:[#allocation9 + $0x3f8] sm:$0xff]
    %s1300 = scalar_lea.vmem [#allocation7], 8
    %v1301 = vld [vmem:[%s1300] sm:$0xf]
    %v1302 = vld [vmem:[%s1300 + $0x4] sm:$0xf]
    %v1305 = vunpack.c.l.b16 %v1301
    %v1306 = vunpack.c.l.b16 %v1302
    %v1307 = vpack.c.b16 %v1306, %v1305
    %v1309 = vsel %vm464, %v1307, 0
    %1311 = vmatprep.subr.bf16.mxu0 %v1065
    %1312 = vmatpush1.bf16.msra.mxu0 %v1064
    %1313 = vmatprep.subr.bf16.mxu0 %v1069
    %1314 = vmatpush1.bf16.msra.mxu0 %v1068
    %1315 = vmatprep.subr.bf16.mxu0 0
    %1316 = vmatpush1.bf16.msra.mxu0 0
    %1317 = vmatprep.subr.bf16.mxu0 0
    %1318 = vmatpush1.bf16.msra.mxu0 0
    %1319 = vmatprep.subr.bf16.mxu0 0
    %1320 = vmatpush1.bf16.msra.mxu0 0
    %1321 = vmatprep.subr.bf16.mxu0 0
    %1322 = vmatpush1.bf16.msra.mxu0 0
    %1323 = vmatprep.subr.bf16.mxu0 0
    %1324 = vmatpush1.bf16.msra.mxu0 0
    %1325 = vmatprep.subr.bf16.mxu0 0
    %1326 = vmatpush1.bf16.msra.mxu0 0
    %1327 = vmatprep.subr.bf16.mxu0 0
    %1328 = vmatpush1.bf16.msra.mxu0 0
    %1329 = vmatprep.subr.bf16.mxu0 0
    %1330 = vmatpush1.bf16.msra.mxu0 0
    %1331 = vmatprep.subr.bf16.mxu0 0
    %1332 = vmatpush1.bf16.msra.mxu0 0
    %1333 = vmatprep.subr.bf16.mxu0 0
    %1334 = vmatpush1.bf16.msra.mxu0 0
    %1335 = vmatprep.subr.bf16.mxu0 0
    %1336 = vmatpush1.bf16.msra.mxu0 0
    %1337 = vmatprep.subr.bf16.mxu0 0
    %1338 = vmatpush1.bf16.msra.mxu0 0
    %1339 = vmatprep.subr.bf16.mxu0 0
    %1340 = vmatpush1.bf16.msra.mxu0 0
    %1341 = vmatprep.subr.bf16.mxu0 0
    %1342 = vmatpush1.bf16.msra.mxu0 0
    %1343 = vmatprep.mubr.bf16.mxu0 0
    %1344 = vmatmul.mubr.bf16.gmra.mrb[0].mxu0 %v1309
    %v1345 = vpop.f32.mrb[0].mxu0
    %v1346 = vadd.f32 0.0, %v1345
    %v1347 = vpop.f32.mrb[0].mxu0
    %v1348 = vadd.f32 0.0, %v1347
    %v1349 = vpop.f32.mrb[0].mxu0
    %v1350 = vadd.f32 0.0, %v1349
    %v1351 = vpop.f32.mrb[0].mxu0
    %v1352 = vadd.f32 0.0, %v1351
    %1353 = vdwg.mxu0
    %1354 = vmatprep.subr.bf16.mxu0 %v1067
    %1355 = vmatpush1.bf16.msra.mxu0 %v1066
    %1356 = vmatprep.subr.bf16.mxu0 %v1071
    %1357 = vmatpush1.bf16.msra.mxu0 %v1070
    %1358 = vmatprep.subr.bf16.mxu0 0
    %1359 = vmatpush1.bf16.msra.mxu0 0
    %1360 = vmatprep.subr.bf16.mxu0 0
    %1361 = vmatpush1.bf16.msra.mxu0 0
    %1362 = vmatprep.subr.bf16.mxu0 0
    %1363 = vmatpush1.bf16.msra.mxu0 0
    %1364 = vmatprep.subr.bf16.mxu0 0
    %1365 = vmatpush1.bf16.msra.mxu0 0
    %1366 = vmatprep.subr.bf16.mxu0 0
    %1367 = vmatpush1.bf16.msra.mxu0 0
    %1368 = vmatprep.subr.bf16.mxu0 0
    %1369 = vmatpush1.bf16.msra.mxu0 0
    %1370 = vmatprep.subr.bf16.mxu0 0
    %1371 = vmatpush1.bf16.msra.mxu0 0
    %1372 = vmatprep.subr.bf16.mxu0 0
    %1373 = vmatpush1.bf16.msra.mxu0 0
    %1374 = vmatprep.subr.bf16.mxu0 0
    %1375 = vmatpush1.bf16.msra.mxu0 0
    %1376 = vmatprep.subr.bf16.mxu0 0
    %1377 = vmatpush1.bf16.msra.mxu0 0
    %1378 = vmatprep.subr.bf16.mxu0 0
    %1379 = vmatpush1.bf16.msra.mxu0 0
    %1380 = vmatprep.subr.bf16.mxu0 0
    %1381 = vmatpush1.bf16.msra.mxu0 0
    %1382 = vmatprep.subr.bf16.mxu0 0
    %1383 = vmatpush1.bf16.msra.mxu0 0
    %1384 = vmatprep.subr.bf16.mxu0 0
    %1385 = vmatpush1.bf16.msra.mxu0 0
    %1386 = vmatprep.mubr.bf16.mxu0 0
    %1387 = vmatmul.mubr.bf16.gmra.mrb[0].mxu0 %v1309
    %v1388 = vpop.f32.mrb[0].mxu0
    %v1389 = vadd.f32 0.0, %v1388
    %v1390 = vpop.f32.mrb[0].mxu0
    %v1391 = vadd.f32 0.0, %v1390
    %v1392 = vpop.f32.mrb[0].mxu0
    %v1393 = vadd.f32 0.0, %v1392
    %v1394 = vpop.f32.mrb[0].mxu0
    %v1395 = vadd.f32 0.0, %v1394
    %1396 = vdwg.mxu0
    %v1397 = vpack.c.bf16 %v1350, %v1346
    %v1398 = vpack.c.bf16 %v1352, %v1348
    %v1399 = vpack.c.bf16 %v1393, %v1389
    %v1400 = vpack.c.bf16 %v1395, %v1391
    %s1401 = scalar_lea.vmem [#allocation9], 1024
    %v1402 = vld [vmem:[%s1401] sm:$0xff]
    %v1403 = vld [vmem:[%s1401 + $0x8] sm:$0xff]
    %v1404 = vld [vmem:[%s1401 + $0x10] sm:$0xff]
    %v1405 = vld [vmem:[%s1401 + $0x18] sm:$0xff]
    %v1406 = vld [vmem:[%s1401 + $0x20] sm:$0xff]
    %v1407 = vld [vmem:[%s1401 + $0x28] sm:$0xff]
    %v1408 = vld [vmem:[%s1401 + $0x30] sm:$0xff]
    %v1409 = vld [vmem:[%s1401 + $0x38] sm:$0xff]
    %v1410 = vld [vmem:[%s1401 + $0x40] sm:$0xff]
    %v1411 = vld [vmem:[%s1401 + $0x48] sm:$0xff]
    %v1412 = vld [vmem:[%s1401 + $0x50] sm:$0xff]
    %v1413 = vld [vmem:[%s1401 + $0x58] sm:$0xff]
    %v1414 = vld [vmem:[%s1401 + $0x60] sm:$0xff]
    %v1415 = vld [vmem:[%s1401 + $0x68] sm:$0xff]
    %v1416 = vld [vmem:[%s1401 + $0x70] sm:$0xff]
    %v1417 = vld [vmem:[%s1401 + $0x78] sm:$0xff]
    %v1418 = vld [vmem:[%s1401 + $0x80] sm:$0xff]
    %v1419 = vld [vmem:[%s1401 + $0x88] sm:$0xff]
    %v1420 = vld [vmem:[%s1401 + $0x90] sm:$0xff]
    %v1421 = vld [vmem:[%s1401 + $0x98] sm:$0xff]
    %v1422 = vld [vmem:[%s1401 + $0xa0] sm:$0xff]
    %v1423 = vld [vmem:[%s1401 + $0xa8] sm:$0xff]
    %v1424 = vld [vmem:[%s1401 + $0xb0] sm:$0xff]
    %v1425 = vld [vmem:[%s1401 + $0xb8] sm:$0xff]
    %v1426 = vld [vmem:[%s1401 + $0xc0] sm:$0xff]
    %v1427 = vld [vmem:[%s1401 + $0xc8] sm:$0xff]
    %v1428 = vld [vmem:[%s1401 + $0xd0] sm:$0xff]
    %v1429 = vld [vmem:[%s1401 + $0xd8] sm:$0xff]
    %v1430 = vld [vmem:[%s1401 + $0xe0] sm:$0xff]
    %v1431 = vld [vmem:[%s1401 + $0xe8] sm:$0xff]
    %v1432 = vld [vmem:[%s1401 + $0xf0] sm:$0xff]
    %v1433 = vld [vmem:[%s1401 + $0xf8] sm:$0xff]
    %v1434 = vld [vmem:[%s1401 + $0x100] sm:$0xff]
    %v1435 = vld [vmem:[%s1401 + $0x108] sm:$0xff]
    %v1436 = vld [vmem:[%s1401 + $0x110] sm:$0xff]
    %v1437 = vld [vmem:[%s1401 + $0x118] sm:$0xff]
    %v1438 = vld [vmem:[%s1401 + $0x120] sm:$0xff]
    %v1439 = vld [vmem:[%s1401 + $0x128] sm:$0xff]
    %v1440 = vld [vmem:[%s1401 + $0x130] sm:$0xff]
    %v1441 = vld [vmem:[%s1401 + $0x138] sm:$0xff]
    %v1442 = vld [vmem:[%s1401 + $0x140] sm:$0xff]
    %v1443 = vld [vmem:[%s1401 + $0x148] sm:$0xff]
    %v1444 = vld [vmem:[%s1401 + $0x150] sm:$0xff]
    %v1445 = vld [vmem:[%s1401 + $0x158] sm:$0xff]
    %v1446 = vld [vmem:[%s1401 + $0x160] sm:$0xff]
    %v1447 = vld [vmem:[%s1401 + $0x168] sm:$0xff]
    %v1448 = vld [vmem:[%s1401 + $0x170] sm:$0xff]
    %v1449 = vld [vmem:[%s1401 + $0x178] sm:$0xff]
    %v1450 = vld [vmem:[%s1401 + $0x180] sm:$0xff]
    %v1451 = vld [vmem:[%s1401 + $0x188] sm:$0xff]
    %v1452 = vld [vmem:[%s1401 + $0x190] sm:$0xff]
    %v1453 = vld [vmem:[%s1401 + $0x198] sm:$0xff]
    %v1454 = vld [vmem:[%s1401 + $0x1a0] sm:$0xff]
    %v1455 = vld [vmem:[%s1401 + $0x1a8] sm:$0xff]
    %v1456 = vld [vmem:[%s1401 + $0x1b0] sm:$0xff]
    %v1457 = vld [vmem:[%s1401 + $0x1b8] sm:$0xff]
    %v1458 = vld [vmem:[%s1401 + $0x1c0] sm:$0xff]
    %v1459 = vld [vmem:[%s1401 + $0x1c8] sm:$0xff]
    %v1460 = vld [vmem:[%s1401 + $0x1d0] sm:$0xff]
    %v1461 = vld [vmem:[%s1401 + $0x1d8] sm:$0xff]
    %v1462 = vld [vmem:[%s1401 + $0x1e0] sm:$0xff]
    %v1463 = vld [vmem:[%s1401 + $0x1e8] sm:$0xff]
    %v1464 = vld [vmem:[%s1401 + $0x1f0] sm:$0xff]
    %v1465 = vld [vmem:[%s1401 + $0x1f8] sm:$0xff]
    %v1466 = vld [vmem:[%s1401 + $0x200] sm:$0xff]
    %v1467 = vld [vmem:[%s1401 + $0x208] sm:$0xff]
    %v1468 = vld [vmem:[%s1401 + $0x210] sm:$0xff]
    %v1469 = vld [vmem:[%s1401 + $0x218] sm:$0xff]
    %v1470 = vld [vmem:[%s1401 + $0x220] sm:$0xff]
    %v1471 = vld [vmem:[%s1401 + $0x228] sm:$0xff]
    %v1472 = vld [vmem:[%s1401 + $0x230] sm:$0xff]
    %v1473 = vld [vmem:[%s1401 + $0x238] sm:$0xff]
    %v1474 = vld [vmem:[%s1401 + $0x240] sm:$0xff]
    %v1475 = vld [vmem:[%s1401 + $0x248] sm:$0xff]
    %v1476 = vld [vmem:[%s1401 + $0x250] sm:$0xff]
    %v1477 = vld [vmem:[%s1401 + $0x258] sm:$0xff]
    %v1478 = vld [vmem:[%s1401 + $0x260] sm:$0xff]
    %v1479 = vld [vmem:[%s1401 + $0x268] sm:$0xff]
    %v1480 = vld [vmem:[%s1401 + $0x270] sm:$0xff]
    %v1481 = vld [vmem:[%s1401 + $0x278] sm:$0xff]
    %v1482 = vld [vmem:[%s1401 + $0x280] sm:$0xff]
    %v1483 = vld [vmem:[%s1401 + $0x288] sm:$0xff]
    %v1484 = vld [vmem:[%s1401 + $0x290] sm:$0xff]
    %v1485 = vld [vmem:[%s1401 + $0x298] sm:$0xff]
    %v1486 = vld [vmem:[%s1401 + $0x2a0] sm:$0xff]
    %v1487 = vld [vmem:[%s1401 + $0x2a8] sm:$0xff]
    %v1488 = vld [vmem:[%s1401 + $0x2b0] sm:$0xff]
    %v1489 = vld [vmem:[%s1401 + $0x2b8] sm:$0xff]
    %v1490 = vld [vmem:[%s1401 + $0x2c0] sm:$0xff]
    %v1491 = vld [vmem:[%s1401 + $0x2c8] sm:$0xff]
    %v1492 = vld [vmem:[%s1401 + $0x2d0] sm:$0xff]
    %v1493 = vld [vmem:[%s1401 + $0x2d8] sm:$0xff]
    %v1494 = vld [vmem:[%s1401 + $0x2e0] sm:$0xff]
    %v1495 = vld [vmem:[%s1401 + $0x2e8] sm:$0xff]
    %v1496 = vld [vmem:[%s1401 + $0x2f0] sm:$0xff]
    %v1497 = vld [vmem:[%s1401 + $0x2f8] sm:$0xff]
    %v1498 = vld [vmem:[%s1401 + $0x300] sm:$0xff]
    %v1499 = vld [vmem:[%s1401 + $0x308] sm:$0xff]
    %v1500 = vld [vmem:[%s1401 + $0x310] sm:$0xff]
    %v1501 = vld [vmem:[%s1401 + $0x318] sm:$0xff]
    %v1502 = vld [vmem:[%s1401 + $0x320] sm:$0xff]
    %v1503 = vld [vmem:[%s1401 + $0x328] sm:$0xff]
    %v1504 = vld [vmem:[%s1401 + $0x330] sm:$0xff]
    %v1505 = vld [vmem:[%s1401 + $0x338] sm:$0xff]
    %v1506 = vld [vmem:[%s1401 + $0x340] sm:$0xff]
    %v1507 = vld [vmem:[%s1401 + $0x348] sm:$0xff]
    %v1508 = vld [vmem:[%s1401 + $0x350] sm:$0xff]
    %v1509 = vld [vmem:[%s1401 + $0x358] sm:$0xff]
    %v1510 = vld [vmem:[%s1401 + $0x360] sm:$0xff]
    %v1511 = vld [vmem:[%s1401 + $0x368] sm:$0xff]
    %v1512 = vld [vmem:[%s1401 + $0x370] sm:$0xff]
    %v1513 = vld [vmem:[%s1401 + $0x378] sm:$0xff]
    %v1514 = vld [vmem:[%s1401 + $0x380] sm:$0xff]
    %v1515 = vld [vmem:[%s1401 + $0x388] sm:$0xff]
    %v1516 = vld [vmem:[%s1401 + $0x390] sm:$0xff]
    %v1517 = vld [vmem:[%s1401 + $0x398] sm:$0xff]
    %v1518 = vld [vmem:[%s1401 + $0x3a0] sm:$0xff]
    %v1519 = vld [vmem:[%s1401 + $0x3a8] sm:$0xff]
    %v1520 = vld [vmem:[%s1401 + $0x3b0] sm:$0xff]
    %v1521 = vld [vmem:[%s1401 + $0x3b8] sm:$0xff]
    %v1522 = vld [vmem:[%s1401 + $0x3c0] sm:$0xff]
    %v1523 = vld [vmem:[%s1401 + $0x3c8] sm:$0xff]
    %v1524 = vld [vmem:[%s1401 + $0x3d0] sm:$0xff]
    %v1525 = vld [vmem:[%s1401 + $0x3d8] sm:$0xff]
    %v1526 = vld [vmem:[%s1401 + $0x3e0] sm:$0xff]
    %v1527 = vld [vmem:[%s1401 + $0x3e8] sm:$0xff]
    %v1528 = vld [vmem:[%s1401 + $0x3f0] sm:$0xff]
    %v1529 = vld [vmem:[%s1401 + $0x3f8] sm:$0xff]
    %v1658 = vunpack.c.l.b16 %v1402
    %v1659 = vunpack.c.h.b16 %v1402
    %v1660 = vunpack.c.l.b16 %v1403
    %v1661 = vunpack.c.h.b16 %v1403
    %v1662 = vunpack.c.l.b16 %v1404
    %v1663 = vunpack.c.h.b16 %v1404
    %v1664 = vunpack.c.l.b16 %v1405
    %v1665 = vunpack.c.h.b16 %v1405
    %v1666 = vunpack.c.l.b16 %v1406
    %v1667 = vunpack.c.h.b16 %v1406
    %v1668 = vunpack.c.l.b16 %v1407
    %v1669 = vunpack.c.h.b16 %v1407
    %v1670 = vunpack.c.l.b16 %v1408
    %v1671 = vunpack.c.h.b16 %v1408
    %v1672 = vunpack.c.l.b16 %v1409
    %v1673 = vunpack.c.h.b16 %v1409
    %v1674 = vunpack.c.l.b16 %v1410
    %v1675 = vunpack.c.h.b16 %v1410
    %v1676 = vunpack.c.l.b16 %v1411
    %v1677 = vunpack.c.h.b16 %v1411
    %v1678 = vunpack.c.l.b16 %v1412
    %v1679 = vunpack.c.h.b16 %v1412
    %v1680 = vunpack.c.l.b16 %v1413
    %v1681 = vunpack.c.h.b16 %v1413
    %v1682 = vunpack.c.l.b16 %v1414
    %v1683 = vunpack.c.h.b16 %v1414
    %v1684 = vunpack.c.l.b16 %v1415
    %v1685 = vunpack.c.h.b16 %v1415
    %v1686 = vunpack.c.l.b16 %v1416
    %v1687 = vunpack.c.h.b16 %v1416
    %v1688 = vunpack.c.l.b16 %v1417
    %v1689 = vunpack.c.h.b16 %v1417
    %v1690 = vunpack.c.l.b16 %v1418
    %v1691 = vunpack.c.h.b16 %v1418
    %v1692 = vunpack.c.l.b16 %v1419
    %v1693 = vunpack.c.h.b16 %v1419
    %v1694 = vunpack.c.l.b16 %v1420
    %v1695 = vunpack.c.h.b16 %v1420
    %v1696 = vunpack.c.l.b16 %v1421
    %v1697 = vunpack.c.h.b16 %v1421
    %v1698 = vunpack.c.l.b16 %v1422
    %v1699 = vunpack.c.h.b16 %v1422
    %v1700 = vunpack.c.l.b16 %v1423
    %v1701 = vunpack.c.h.b16 %v1423
    %v1702 = vunpack.c.l.b16 %v1424
    %v1703 = vunpack.c.h.b16 %v1424
    %v1704 = vunpack.c.l.b16 %v1425
    %v1705 = vunpack.c.h.b16 %v1425
    %v1706 = vunpack.c.l.b16 %v1426
    %v1707 = vunpack.c.h.b16 %v1426
    %v1708 = vunpack.c.l.b16 %v1427
    %v1709 = vunpack.c.h.b16 %v1427
    %v1710 = vunpack.c.l.b16 %v1428
    %v1711 = vunpack.c.h.b16 %v1428
    %v1712 = vunpack.c.l.b16 %v1429
    %v1713 = vunpack.c.h.b16 %v1429
    %v1714 = vunpack.c.l.b16 %v1430
    %v1715 = vunpack.c.h.b16 %v1430
    %v1716 = vunpack.c.l.b16 %v1431
    %v1717 = vunpack.c.h.b16 %v1431
    %v1718 = vunpack.c.l.b16 %v1432
    %v1719 = vunpack.c.h.b16 %v1432
    %v1720 = vunpack.c.l.b16 %v1433
    %v1721 = vunpack.c.h.b16 %v1433
    %v1722 = vunpack.c.l.b16 %v1434
    %v1723 = vunpack.c.h.b16 %v1434
    %v1724 = vunpack.c.l.b16 %v1435
    %v1725 = vunpack.c.h.b16 %v1435
    %v1726 = vunpack.c.l.b16 %v1436
    %v1727 = vunpack.c.h.b16 %v1436
    %v1728 = vunpack.c.l.b16 %v1437
    %v1729 = vunpack.c.h.b16 %v1437
    %v1730 = vunpack.c.l.b16 %v1438
    %v1731 = vunpack.c.h.b16 %v1438
    %v1732 = vunpack.c.l.b16 %v1439
    %v1733 = vunpack.c.h.b16 %v1439
    %v1734 = vunpack.c.l.b16 %v1440
    %v1735 = vunpack.c.h.b16 %v1440
    %v1736 = vunpack.c.l.b16 %v1441
    %v1737 = vunpack.c.h.b16 %v1441
    %v1738 = vunpack.c.l.b16 %v1442
    %v1739 = vunpack.c.h.b16 %v1442
    %v1740 = vunpack.c.l.b16 %v1443
    %v1741 = vunpack.c.h.b16 %v1443
    %v1742 = vunpack.c.l.b16 %v1444
    %v1743 = vunpack.c.h.b16 %v1444
    %v1744 = vunpack.c.l.b16 %v1445
    %v1745 = vunpack.c.h.b16 %v1445
    %v1746 = vunpack.c.l.b16 %v1446
    %v1747 = vunpack.c.h.b16 %v1446
    %v1748 = vunpack.c.l.b16 %v1447
    %v1749 = vunpack.c.h.b16 %v1447
    %v1750 = vunpack.c.l.b16 %v1448
    %v1751 = vunpack.c.h.b16 %v1448
    %v1752 = vunpack.c.l.b16 %v1449
    %v1753 = vunpack.c.h.b16 %v1449
    %v1754 = vunpack.c.l.b16 %v1450
    %v1755 = vunpack.c.h.b16 %v1450
    %v1756 = vunpack.c.l.b16 %v1451
    %v1757 = vunpack.c.h.b16 %v1451
    %v1758 = vunpack.c.l.b16 %v1452
    %v1759 = vunpack.c.h.b16 %v1452
    %v1760 = vunpack.c.l.b16 %v1453
    %v1761 = vunpack.c.h.b16 %v1453
    %v1762 = vunpack.c.l.b16 %v1454
    %v1763 = vunpack.c.h.b16 %v1454
    %v1764 = vunpack.c.l.b16 %v1455
    %v1765 = vunpack.c.h.b16 %v1455
    %v1766 = vunpack.c.l.b16 %v1456
    %v1767 = vunpack.c.h.b16 %v1456
    %v1768 = vunpack.c.l.b16 %v1457
    %v1769 = vunpack.c.h.b16 %v1457
    %v1770 = vunpack.c.l.b16 %v1458
    %v1771 = vunpack.c.h.b16 %v1458
    %v1772 = vunpack.c.l.b16 %v1459
    %v1773 = vunpack.c.h.b16 %v1459
    %v1774 = vunpack.c.l.b16 %v1460
    %v1775 = vunpack.c.h.b16 %v1460
    %v1776 = vunpack.c.l.b16 %v1461
    %v1777 = vunpack.c.h.b16 %v1461
    %v1778 = vunpack.c.l.b16 %v1462
    %v1779 = vunpack.c.h.b16 %v1462
    %v1780 = vunpack.c.l.b16 %v1463
    %v1781 = vunpack.c.h.b16 %v1463
    %v1782 = vunpack.c.l.b16 %v1464
    %v1783 = vunpack.c.h.b16 %v1464
    %v1784 = vunpack.c.l.b16 %v1465
    %v1785 = vunpack.c.h.b16 %v1465
    %v1786 = vunpack.c.l.b16 %v1466
    %v1787 = vunpack.c.h.b16 %v1466
    %v1788 = vunpack.c.l.b16 %v1467
    %v1789 = vunpack.c.h.b16 %v1467
    %v1790 = vunpack.c.l.b16 %v1468
    %v1791 = vunpack.c.h.b16 %v1468
    %v1792 = vunpack.c.l.b16 %v1469
    %v1793 = vunpack.c.h.b16 %v1469
    %v1794 = vunpack.c.l.b16 %v1470
    %v1795 = vunpack.c.h.b16 %v1470
    %v1796 = vunpack.c.l.b16 %v1471
    %v1797 = vunpack.c.h.b16 %v1471
    %v1798 = vunpack.c.l.b16 %v1472
    %v1799 = vunpack.c.h.b16 %v1472
    %v1800 = vunpack.c.l.b16 %v1473
    %v1801 = vunpack.c.h.b16 %v1473
    %v1802 = vunpack.c.l.b16 %v1474
    %v1803 = vunpack.c.h.b16 %v1474
    %v1804 = vunpack.c.l.b16 %v1475
    %v1805 = vunpack.c.h.b16 %v1475
    %v1806 = vunpack.c.l.b16 %v1476
    %v1807 = vunpack.c.h.b16 %v1476
    %v1808 = vunpack.c.l.b16 %v1477
    %v1809 = vunpack.c.h.b16 %v1477
    %v1810 = vunpack.c.l.b16 %v1478
    %v1811 = vunpack.c.h.b16 %v1478
    %v1812 = vunpack.c.l.b16 %v1479
    %v1813 = vunpack.c.h.b16 %v1479
    %v1814 = vunpack.c.l.b16 %v1480
    %v1815 = vunpack.c.h.b16 %v1480
    %v1816 = vunpack.c.l.b16 %v1481
    %v1817 = vunpack.c.h.b16 %v1481
    %v1818 = vunpack.c.l.b16 %v1482
    %v1819 = vunpack.c.h.b16 %v1482
    %v1820 = vunpack.c.l.b16 %v1483
    %v1821 = vunpack.c.h.b16 %v1483
    %v1822 = vunpack.c.l.b16 %v1484
    %v1823 = vunpack.c.h.b16 %v1484
    %v1824 = vunpack.c.l.b16 %v1485
    %v1825 = vunpack.c.h.b16 %v1485
    %v1826 = vunpack.c.l.b16 %v1486
    %v1827 = vunpack.c.h.b16 %v1486
    %v1828 = vunpack.c.l.b16 %v1487
    %v1829 = vunpack.c.h.b16 %v1487
    %v1830 = vunpack.c.l.b16 %v1488
    %v1831 = vunpack.c.h.b16 %v1488
    %v1832 = vunpack.c.l.b16 %v1489
    %v1833 = vunpack.c.h.b16 %v1489
    %v1834 = vunpack.c.l.b16 %v1490
    %v1835 = vunpack.c.h.b16 %v1490
    %v1836 = vunpack.c.l.b16 %v1491
    %v1837 = vunpack.c.h.b16 %v1491
    %v1838 = vunpack.c.l.b16 %v1492
    %v1839 = vunpack.c.h.b16 %v1492
    %v1840 = vunpack.c.l.b16 %v1493
    %v1841 = vunpack.c.h.b16 %v1493
    %v1842 = vunpack.c.l.b16 %v1494
    %v1843 = vunpack.c.h.b16 %v1494
    %v1844 = vunpack.c.l.b16 %v1495
    %v1845 = vunpack.c.h.b16 %v1495
    %v1846 = vunpack.c.l.b16 %v1496
    %v1847 = vunpack.c.h.b16 %v1496
    %v1848 = vunpack.c.l.b16 %v1497
    %v1849 = vunpack.c.h.b16 %v1497
    %v1850 = vunpack.c.l.b16 %v1498
    %v1851 = vunpack.c.h.b16 %v1498
    %v1852 = vunpack.c.l.b16 %v1499
    %v1853 = vunpack.c.h.b16 %v1499
    %v1854 = vunpack.c.l.b16 %v1500
    %v1855 = vunpack.c.h.b16 %v1500
    %v1856 = vunpack.c.l.b16 %v1501
    %v1857 = vunpack.c.h.b16 %v1501
    %v1858 = vunpack.c.l.b16 %v1502
    %v1859 = vunpack.c.h.b16 %v1502
    %v1860 = vunpack.c.l.b16 %v1503
    %v1861 = vunpack.c.h.b16 %v1503
    %v1862 = vunpack.c.l.b16 %v1504
    %v1863 = vunpack.c.h.b16 %v1504
    %v1864 = vunpack.c.l.b16 %v1505
    %v1865 = vunpack.c.h.b16 %v1505
    %v1866 = vunpack.c.l.b16 %v1506
    %v1867 = vunpack.c.h.b16 %v1506
    %v1868 = vunpack.c.l.b16 %v1507
    %v1869 = vunpack.c.h.b16 %v1507
    %v1870 = vunpack.c.l.b16 %v1508
    %v1871 = vunpack.c.h.b16 %v1508
    %v1872 = vunpack.c.l.b16 %v1509
    %v1873 = vunpack.c.h.b16 %v1509
    %v1874 = vunpack.c.l.b16 %v1510
    %v1875 = vunpack.c.h.b16 %v1510
    %v1876 = vunpack.c.l.b16 %v1511
    %v1877 = vunpack.c.h.b16 %v1511
    %v1878 = vunpack.c.l.b16 %v1512
    %v1879 = vunpack.c.h.b16 %v1512
    %v1880 = vunpack.c.l.b16 %v1513
    %v1881 = vunpack.c.h.b16 %v1513
    %v1882 = vunpack.c.l.b16 %v1514
    %v1883 = vunpack.c.h.b16 %v1514
    %v1884 = vunpack.c.l.b16 %v1515
    %v1885 = vunpack.c.h.b16 %v1515
    %v1886 = vunpack.c.l.b16 %v1516
    %v1887 = vunpack.c.h.b16 %v1516
    %v1888 = vunpack.c.l.b16 %v1517
    %v1889 = vunpack.c.h.b16 %v1517
    %v1890 = vunpack.c.l.b16 %v1518
    %v1891 = vunpack.c.h.b16 %v1518
    %v1892 = vunpack.c.l.b16 %v1519
    %v1893 = vunpack.c.h.b16 %v1519
    %v1894 = vunpack.c.l.b16 %v1520
    %v1895 = vunpack.c.h.b16 %v1520
    %v1896 = vunpack.c.l.b16 %v1521
    %v1897 = vunpack.c.h.b16 %v1521
    %v1898 = vunpack.c.l.b16 %v1522
    %v1899 = vunpack.c.h.b16 %v1522
    %v1900 = vunpack.c.l.b16 %v1523
    %v1901 = vunpack.c.h.b16 %v1523
    %v1902 = vunpack.c.l.b16 %v1524
    %v1903 = vunpack.c.h.b16 %v1524
    %v1904 = vunpack.c.l.b16 %v1525
    %v1905 = vunpack.c.h.b16 %v1525
    %v1906 = vunpack.c.l.b16 %v1526
    %v1907 = vunpack.c.h.b16 %v1526
    %v1908 = vunpack.c.l.b16 %v1527
    %v1909 = vunpack.c.h.b16 %v1527
    %v1910 = vunpack.c.l.b16 %v1528
    %v1911 = vunpack.c.h.b16 %v1528
    %v1912 = vunpack.c.l.b16 %v1529
    %v1913 = vunpack.c.h.b16 %v1529
    %v1914 = vpack.c.b16 %v1662, %v1658
    %v1915 = vpack.c.b16 %v1663, %v1659
    %v1916 = vpack.c.b16 %v1664, %v1660
    %v1917 = vpack.c.b16 %v1665, %v1661
    %v1918 = vpack.c.b16 %v1670, %v1666
    %v1919 = vpack.c.b16 %v1671, %v1667
    %v1920 = vpack.c.b16 %v1672, %v1668
    %v1921 = vpack.c.b16 %v1673, %v1669
    %v1922 = vpack.c.b16 %v1678, %v1674
    %v1923 = vpack.c.b16 %v1679, %v1675
    %v1924 = vpack.c.b16 %v1680, %v1676
    %v1925 = vpack.c.b16 %v1681, %v1677
    %v1926 = vpack.c.b16 %v1686, %v1682
    %v1927 = vpack.c.b16 %v1687, %v1683
    %v1928 = vpack.c.b16 %v1688, %v1684
    %v1929 = vpack.c.b16 %v1689, %v1685
    %v1930 = vpack.c.b16 %v1694, %v1690
    %v1931 = vpack.c.b16 %v1695, %v1691
    %v1932 = vpack.c.b16 %v1696, %v1692
    %v1933 = vpack.c.b16 %v1697, %v1693
    %v1934 = vpack.c.b16 %v1702, %v1698
    %v1935 = vpack.c.b16 %v1703, %v1699
    %v1936 = vpack.c.b16 %v1704, %v1700
    %v1937 = vpack.c.b16 %v1705, %v1701
    %v1938 = vpack.c.b16 %v1710, %v1706
    %v1939 = vpack.c.b16 %v1711, %v1707
    %v1940 = vpack.c.b16 %v1712, %v1708
    %v1941 = vpack.c.b16 %v1713, %v1709
    %v1942 = vpack.c.b16 %v1718, %v1714
    %v1943 = vpack.c.b16 %v1719, %v1715
    %v1944 = vpack.c.b16 %v1720, %v1716
    %v1945 = vpack.c.b16 %v1721, %v1717
    %v1946 = vpack.c.b16 %v1726, %v1722
    %v1947 = vpack.c.b16 %v1727, %v1723
    %v1948 = vpack.c.b16 %v1728, %v1724
    %v1949 = vpack.c.b16 %v1729, %v1725
    %v1950 = vpack.c.b16 %v1734, %v1730
    %v1951 = vpack.c.b16 %v1735, %v1731
    %v1952 = vpack.c.b16 %v1736, %v1732
    %v1953 = vpack.c.b16 %v1737, %v1733
    %v1954 = vpack.c.b16 %v1742, %v1738
    %v1955 = vpack.c.b16 %v1743, %v1739
    %v1956 = vpack.c.b16 %v1744, %v1740
    %v1957 = vpack.c.b16 %v1745, %v1741
    %v1958 = vpack.c.b16 %v1750, %v1746
    %v1959 = vpack.c.b16 %v1751, %v1747
    %v1960 = vpack.c.b16 %v1752, %v1748
    %v1961 = vpack.c.b16 %v1753, %v1749
    %v1962 = vpack.c.b16 %v1758, %v1754
    %v1963 = vpack.c.b16 %v1759, %v1755
    %v1964 = vpack.c.b16 %v1760, %v1756
    %v1965 = vpack.c.b16 %v1761, %v1757
    %v1966 = vpack.c.b16 %v1766, %v1762
    %v1967 = vpack.c.b16 %v1767, %v1763
    %v1968 = vpack.c.b16 %v1768, %v1764
    %v1969 = vpack.c.b16 %v1769, %v1765
    %v1970 = vpack.c.b16 %v1774, %v1770
    %v1971 = vpack.c.b16 %v1775, %v1771
    %v1972 = vpack.c.b16 %v1776, %v1772
    %v1973 = vpack.c.b16 %v1777, %v1773
    %v1974 = vpack.c.b16 %v1782, %v1778
    %v1975 = vpack.c.b16 %v1783, %v1779
    %v1976 = vpack.c.b16 %v1784, %v1780
    %v1977 = vpack.c.b16 %v1785, %v1781
    %v1978 = vpack.c.b16 %v1790, %v1786
    %v1979 = vpack.c.b16 %v1791, %v1787
    %v1980 = vpack.c.b16 %v1792, %v1788
    %v1981 = vpack.c.b16 %v1793, %v1789
    %v1982 = vpack.c.b16 %v1798, %v1794
    %v1983 = vpack.c.b16 %v1799, %v1795
    %v1984 = vpack.c.b16 %v1800, %v1796
    %v1985 = vpack.c.b16 %v1801, %v1797
    %v1986 = vpack.c.b16 %v1806, %v1802
    %v1987 = vpack.c.b16 %v1807, %v1803
    %v1988 = vpack.c.b16 %v1808, %v1804
    %v1989 = vpack.c.b16 %v1809, %v1805
    %v1990 = vpack.c.b16 %v1814, %v1810
    %v1991 = vpack.c.b16 %v1815, %v1811
    %v1992 = vpack.c.b16 %v1816, %v1812
    %v1993 = vpack.c.b16 %v1817, %v1813
    %v1994 = vpack.c.b16 %v1822, %v1818
    %v1995 = vpack.c.b16 %v1823, %v1819
    %v1996 = vpack.c.b16 %v1824, %v1820
    %v1997 = vpack.c.b16 %v1825, %v1821
    %v1998 = vpack.c.b16 %v1830, %v1826
    %v1999 = vpack.c.b16 %v1831, %v1827
    %v2000 = vpack.c.b16 %v1832, %v1828
    %v2001 = vpack.c.b16 %v1833, %v1829
    %v2002 = vpack.c.b16 %v1838, %v1834
    %v2003 = vpack.c.b16 %v1839, %v1835
    %v2004 = vpack.c.b16 %v1840, %v1836
    %v2005 = vpack.c.b16 %v1841, %v1837
    %v2006 = vpack.c.b16 %v1846, %v1842
    %v2007 = vpack.c.b16 %v1847, %v1843
    %v2008 = vpack.c.b16 %v1848, %v1844
    %v2009 = vpack.c.b16 %v1849, %v1845
    %v2010 = vpack.c.b16 %v1854, %v1850
    %v2011 = vpack.c.b16 %v1855, %v1851
    %v2012 = vpack.c.b16 %v1856, %v1852
    %v2013 = vpack.c.b16 %v1857, %v1853
    %v2014 = vpack.c.b16 %v1862, %v1858
    %v2015 = vpack.c.b16 %v1863, %v1859
    %v2016 = vpack.c.b16 %v1864, %v1860
    %v2017 = vpack.c.b16 %v1865, %v1861
    %v2018 = vpack.c.b16 %v1870, %v1866
    %v2019 = vpack.c.b16 %v1871, %v1867
    %v2020 = vpack.c.b16 %v1872, %v1868
    %v2021 = vpack.c.b16 %v1873, %v1869
    %v2022 = vpack.c.b16 %v1878, %v1874
    %v2023 = vpack.c.b16 %v1879, %v1875
    %v2024 = vpack.c.b16 %v1880, %v1876
    %v2025 = vpack.c.b16 %v1881, %v1877
    %v2026 = vpack.c.b16 %v1886, %v1882
    %v2027 = vpack.c.b16 %v1887, %v1883
    %v2028 = vpack.c.b16 %v1888, %v1884
    %v2029 = vpack.c.b16 %v1889, %v1885
    %v2030 = vpack.c.b16 %v1894, %v1890
    %v2031 = vpack.c.b16 %v1895, %v1891
    %v2032 = vpack.c.b16 %v1896, %v1892
    %v2033 = vpack.c.b16 %v1897, %v1893
    %v2034 = vpack.c.b16 %v1902, %v1898
    %v2035 = vpack.c.b16 %v1903, %v1899
    %v2036 = vpack.c.b16 %v1904, %v1900
    %v2037 = vpack.c.b16 %v1905, %v1901
    %v2038 = vpack.c.b16 %v1910, %v1906
    %v2039 = vpack.c.b16 %v1911, %v1907
    %v2040 = vpack.c.b16 %v1912, %v1908
    %v2041 = vpack.c.b16 %v1913, %v1909
    %2170 = vmatprep.subr.bf16.mxu0 %v1915
    %2171 = vmatpush1.bf16.msra.mxu0 %v1914
    %2172 = vmatprep.subr.bf16.mxu0 %v1919
    %2173 = vmatpush1.bf16.msra.mxu0 %v1918
    %2174 = vmatprep.subr.bf16.mxu0 %v1923
    %2175 = vmatpush1.bf16.msra.mxu0 %v1922
    %2176 = vmatprep.subr.bf16.mxu0 %v1927
    %2177 = vmatpush1.bf16.msra.mxu0 %v1926
    %2178 = vmatprep.subr.bf16.mxu0 %v1931
    %2179 = vmatpush1.bf16.msra.mxu0 %v1930
    %2180 = vmatprep.subr.bf16.mxu0 %v1935
    %2181 = vmatpush1.bf16.msra.mxu0 %v1934
    %2182 = vmatprep.subr.bf16.mxu0 %v1939
    %2183 = vmatpush1.bf16.msra.mxu0 %v1938
    %2184 = vmatprep.subr.bf16.mxu0 %v1943
    %2185 = vmatpush1.bf16.msra.mxu0 %v1942
    %2186 = vmatprep.subr.bf16.mxu0 %v1947
    %2187 = vmatpush1.bf16.msra.mxu0 %v1946
    %2188 = vmatprep.subr.bf16.mxu0 %v1951
    %2189 = vmatpush1.bf16.msra.mxu0 %v1950
    %2190 = vmatprep.subr.bf16.mxu0 %v1955
    %2191 = vmatpush1.bf16.msra.mxu0 %v1954
    %2192 = vmatprep.subr.bf16.mxu0 %v1959
    %2193 = vmatpush1.bf16.msra.mxu0 %v1958
    %2194 = vmatprep.subr.bf16.mxu0 %v1963
    %2195 = vmatpush1.bf16.msra.mxu0 %v1962
    %2196 = vmatprep.subr.bf16.mxu0 %v1967
    %2197 = vmatpush1.bf16.msra.mxu0 %v1966
    %2198 = vmatprep.subr.bf16.mxu0 %v1971
    %2199 = vmatpush1.bf16.msra.mxu0 %v1970
    %2200 = vmatprep.subr.bf16.mxu0 %v1975
    %2201 = vmatpush1.bf16.msra.mxu0 %v1974
    %2202 = vmatprep.mubr.bf16.mxu0 %v1398
    %2203 = vmatmul.mubr.bf16.gmra.mrb[0].mxu0 %v1397
    %v2204 = vpop.f32.mrb[0].mxu0
    %v2205 = vadd.f32 0.0, %v2204
    %v2206 = vpop.f32.mrb[0].mxu0
    %v2207 = vadd.f32 0.0, %v2206
    %v2208 = vpop.f32.mrb[0].mxu0
    %v2209 = vadd.f32 0.0, %v2208
    %v2210 = vpop.f32.mrb[0].mxu0
    %v2211 = vadd.f32 0.0, %v2210
    %2212 = vdwg.mxu0
    %2213 = vmatprep.subr.bf16.mxu0 %v1979
    %2214 = vmatpush1.bf16.msra.mxu0 %v1978
    %2215 = vmatprep.subr.bf16.mxu0 %v1983
    %2216 = vmatpush1.bf16.msra.mxu0 %v1982
    %2217 = vmatprep.subr.bf16.mxu0 %v1987
    %2218 = vmatpush1.bf16.msra.mxu0 %v1986
    %2219 = vmatprep.subr.bf16.mxu0 %v1991
    %2220 = vmatpush1.bf16.msra.mxu0 %v1990
    %2221 = vmatprep.subr.bf16.mxu0 %v1995
    %2222 = vmatpush1.bf16.msra.mxu0 %v1994
    %2223 = vmatprep.subr.bf16.mxu0 %v1999
    %2224 = vmatpush1.bf16.msra.mxu0 %v1998
    %2225 = vmatprep.subr.bf16.mxu0 %v2003
    %2226 = vmatpush1.bf16.msra.mxu0 %v2002
    %2227 = vmatprep.subr.bf16.mxu0 %v2007
    %2228 = vmatpush1.bf16.msra.mxu0 %v2006
    %2229 = vmatprep.subr.bf16.mxu0 %v2011
    %2230 = vmatpush1.bf16.msra.mxu0 %v2010
    %2231 = vmatprep.subr.bf16.mxu0 %v2015
    %2232 = vmatpush1.bf16.msra.mxu0 %v2014
    %2233 = vmatprep.subr.bf16.mxu0 %v2019
    %2234 = vmatpush1.bf16.msra.mxu0 %v2018
    %2235 = vmatprep.subr.bf16.mxu0 %v2023
    %2236 = vmatpush1.bf16.msra.mxu0 %v2022
    %2237 = vmatprep.subr.bf16.mxu0 %v2027
    %2238 = vmatpush1.bf16.msra.mxu0 %v2026
    %2239 = vmatprep.subr.bf16.mxu0 %v2031
    %2240 = vmatpush1.bf16.msra.mxu0 %v2030
    %2241 = vmatprep.subr.bf16.mxu0 %v2035
    %2242 = vmatpush1.bf16.msra.mxu0 %v2034
    %2243 = vmatprep.subr.bf16.mxu0 %v2039
    %2244 = vmatpush1.bf16.msra.mxu0 %v2038
    %2245 = vmatprep.mubr.bf16.mxu0 %v1400
    %2246 = vmatmul.mubr.bf16.gmra.mrb[0].mxu0 %v1399
    %v2247 = vpop.f32.mrb[0].mxu0
    %v2248 = vadd.f32 %v2205, %v2247
    %v2249 = vpop.f32.mrb[0].mxu0
    %v2250 = vadd.f32 %v2207, %v2249
    %v2251 = vpop.f32.mrb[0].mxu0
    %v2252 = vadd.f32 %v2209, %v2251
    %v2253 = vpop.f32.mrb[0].mxu0
    %v2254 = vadd.f32 %v2211, %v2253
    %2255 = vdwg.mxu0
    %2256 = vmatprep.subr.bf16.mxu0 %v1917
    %2257 = vmatpush1.bf16.msra.mxu0 %v1916
    %2258 = vmatprep.subr.bf16.mxu0 %v1921
    %2259 = vmatpush1.bf16.msra.mxu0 %v1920
    %2260 = vmatprep.subr.bf16.mxu0 %v1925
    %2261 = vmatpush1.bf16.msra.mxu0 %v1924
    %2262 = vmatprep.subr.bf16.mxu0 %v1929
    %2263 = vmatpush1.bf16.msra.mxu0 %v1928
    %2264 = vmatprep.subr.bf16.mxu0 %v1933
    %2265 = vmatpush1.bf16.msra.mxu0 %v1932
    %2266 = vmatprep.subr.bf16.mxu0 %v1937
    %2267 = vmatpush1.bf16.msra.mxu0 %v1936
    %2268 = vmatprep.subr.bf16.mxu0 %v1941
    %2269 = vmatpush1.bf16.msra.mxu0 %v1940
    %2270 = vmatprep.subr.bf16.mxu0 %v1945
    %2271 = vmatpush1.bf16.msra.mxu0 %v1944
    %2272 = vmatprep.subr.bf16.mxu0 %v1949
    %2273 = vmatpush1.bf16.msra.mxu0 %v1948
    %2274 = vmatprep.subr.bf16.mxu0 %v1953
    %2275 = vmatpush1.bf16.msra.mxu0 %v1952
    %2276 = vmatprep.subr.bf16.mxu0 %v1957
    %2277 = vmatpush1.bf16.msra.mxu0 %v1956
    %2278 = vmatprep.subr.bf16.mxu0 %v1961
    %2279 = vmatpush1.bf16.msra.mxu0 %v1960
    %2280 = vmatprep.subr.bf16.mxu0 %v1965
    %2281 = vmatpush1.bf16.msra.mxu0 %v1964
    %2282 = vmatprep.subr.bf16.mxu0 %v1969
    %2283 = vmatpush1.bf16.msra.mxu0 %v1968
    %2284 = vmatprep.subr.bf16.mxu0 %v1973
    %2285 = vmatpush1.bf16.msra.mxu0 %v1972
    %2286 = vmatprep.subr.bf16.mxu0 %v1977
    %2287 = vmatpush1.bf16.msra.mxu0 %v1976
    %2288 = vmatprep.mubr.bf16.mxu0 %v1398
    %2289 = vmatmul.mubr.bf16.gmra.mrb[0].mxu0 %v1397
    %v2290 = vpop.f32.mrb[0].mxu0
    %v2291 = vadd.f32 0.0, %v2290
    %v2292 = vpop.f32.mrb[0].mxu0
    %v2293 = vadd.f32 0.0, %v2292
    %v2294 = vpop.f32.mrb[0].mxu0
    %v2295 = vadd.f32 0.0, %v2294
    %v2296 = vpop.f32.mrb[0].mxu0
    %v2297 = vadd.f32 0.0, %v2296
    %2298 = vdwg.mxu0
    %2299 = vmatprep.subr.bf16.mxu0 %v1981
    %2300 = vmatpush1.bf16.msra.mxu0 %v1980
    %2301 = vmatprep.subr.bf16.mxu0 %v1985
    %2302 = vmatpush1.bf16.msra.mxu0 %v1984
    %2303 = vmatprep.subr.bf16.mxu0 %v1989
    %2304 = vmatpush1.bf16.msra.mxu0 %v1988
    %2305 = vmatprep.subr.bf16.mxu0 %v1993
    %2306 = vmatpush1.bf16.msra.mxu0 %v1992
    %2307 = vmatprep.subr.bf16.mxu0 %v1997
    %2308 = vmatpush1.bf16.msra.mxu0 %v1996
    %2309 = vmatprep.subr.bf16.mxu0 %v2001
    %2310 = vmatpush1.bf16.msra.mxu0 %v2000
    %2311 = vmatprep.subr.bf16.mxu0 %v2005
    %2312 = vmatpush1.bf16.msra.mxu0 %v2004
    %2313 = vmatprep.subr.bf16.mxu0 %v2009
    %2314 = vmatpush1.bf16.msra.mxu0 %v2008
    %2315 = vmatprep.subr.bf16.mxu0 %v2013
    %2316 = vmatpush1.bf16.msra.mxu0 %v2012
    %2317 = vmatprep.subr.bf16.mxu0 %v2017
    %2318 = vmatpush1.bf16.msra.mxu0 %v2016
    %2319 = vmatprep.subr.bf16.mxu0 %v2021
    %2320 = vmatpush1.bf16.msra.mxu0 %v2020
    %2321 = vmatprep.subr.bf16.mxu0 %v2025
    %2322 = vmatpush1.bf16.msra.mxu0 %v2024
    %2323 = vmatprep.subr.bf16.mxu0 %v2029
    %2324 = vmatpush1.bf16.msra.mxu0 %v2028
    %2325 = vmatprep.subr.bf16.mxu0 %v2033
    %2326 = vmatpush1.bf16.msra.mxu0 %v2032
    %2327 = vmatprep.subr.bf16.mxu0 %v2037
    %2328 = vmatpush1.bf16.msra.mxu0 %v2036
    %2329 = vmatprep.subr.bf16.mxu0 %v2041
    %2330 = vmatpush1.bf16.msra.mxu0 %v2040
    %2331 = vmatprep.mubr.bf16.mxu0 %v1400
    %2332 = vmatmul.mubr.bf16.gmra.mrb[0].mxu0 %v1399
    %v2333 = vpop.f32.mrb[0].mxu0
    %v2334 = vadd.f32 %v2291, %v2333
    %v2335 = vpop.f32.mrb[0].mxu0
    %v2336 = vadd.f32 %v2293, %v2335
    %v2337 = vpop.f32.mrb[0].mxu0
    %v2338 = vadd.f32 %v2295, %v2337
    %v2339 = vpop.f32.mrb[0].mxu0
    %v2340 = vadd.f32 %v2297, %v2339
    %2341 = vdwg.mxu0
    %v2470 = vunpack.c.l.b16 %v1172
    %v2471 = vunpack.c.h.b16 %v1172
    %v2472 = vunpack.c.l.b16 %v1173
    %v2473 = vunpack.c.h.b16 %v1173
    %v2474 = vunpack.c.l.b16 %v1174
    %v2475 = vunpack.c.h.b16 %v1174
    %v2476 = vunpack.c.l.b16 %v1175
    %v2477 = vunpack.c.h.b16 %v1175
    %v2478 = vunpack.c.l.b16 %v1176
    %v2479 = vunpack.c.h.b16 %v1176
    %v2480 = vunpack.c.l.b16 %v1177
    %v2481 = vunpack.c.h.b16 %v1177
    %v2482 = vunpack.c.l.b16 %v1178
    %v2483 = vunpack.c.h.b16 %v1178
    %v2484 = vunpack.c.l.b16 %v1179
    %v2485 = vunpack.c.h.b16 %v1179
    %v2486 = vunpack.c.l.b16 %v1180
    %v2487 = vunpack.c.h.b16 %v1180
    %v2488 = vunpack.c.l.b16 %v1181
    %v2489 = vunpack.c.h.b16 %v1181
    %v2490 = vunpack.c.l.b16 %v1182
    %v2491 = vunpack.c.h.b16 %v1182
    %v2492 = vunpack.c.l.b16 %v1183
    %v2493 = vunpack.c.h.b16 %v1183
    %v2494 = vunpack.c.l.b16 %v1184
    %v2495 = vunpack.c.h.b16 %v1184
    %v2496 = vunpack.c.l.b16 %v1185
    %v2497 = vunpack.c.h.b16 %v1185
    %v2498 = vunpack.c.l.b16 %v1186
    %v2499 = vunpack.c.h.b16 %v1186
    %v2500 = vunpack.c.l.b16 %v1187
    %v2501 = vunpack.c.h.b16 %v1187
    %v2502 = vunpack.c.l.b16 %v1188
    %v2503 = vunpack.c.h.b16 %v1188
    %v2504 = vunpack.c.l.b16 %v1189
    %v2505 = vunpack.c.h.b16 %v1189
    %v2506 = vunpack.c.l.b16 %v1190
    %v2507 = vunpack.c.h.b16 %v1190
    %v2508 = vunpack.c.l.b16 %v1191
    %v2509 = vunpack.c.h.b16 %v1191
    %v2510 = vunpack.c.l.b16 %v1192
    %v2511 = vunpack.c.h.b16 %v1192
    %v2512 = vunpack.c.l.b16 %v1193
    %v2513 = vunpack.c.h.b16 %v1193
    %v2514 = vunpack.c.l.b16 %v1194
    %v2515 = vunpack.c.h.b16 %v1194
    %v2516 = vunpack.c.l.b16 %v1195
    %v2517 = vunpack.c.h.b16 %v1195
    %v2518 = vunpack.c.l.b16 %v1196
    %v2519 = vunpack.c.h.b16 %v1196
    %v2520 = vunpack.c.l.b16 %v1197
    %v2521 = vunpack.c.h.b16 %v1197
    %v2522 = vunpack.c.l.b16 %v1198
    %v2523 = vunpack.c.h.b16 %v1198
    %v2524 = vunpack.c.l.b16 %v1199
    %v2525 = vunpack.c.h.b16 %v1199
    %v2526 = vunpack.c.l.b16 %v1200
    %v2527 = vunpack.c.h.b16 %v1200
    %v2528 = vunpack.c.l.b16 %v1201
    %v2529 = vunpack.c.h.b16 %v1201
    %v2530 = vunpack.c.l.b16 %v1202
    %v2531 = vunpack.c.h.b16 %v1202
    %v2532 = vunpack.c.l.b16 %v1203
    %v2533 = vunpack.c.h.b16 %v1203
    %v2534 = vunpack.c.l.b16 %v1204
    %v2535 = vunpack.c.h.b16 %v1204
    %v2536 = vunpack.c.l.b16 %v1205
    %v2537 = vunpack.c.h.b16 %v1205
    %v2538 = vunpack.c.l.b16 %v1206
    %v2539 = vunpack.c.h.b16 %v1206
    %v2540 = vunpack.c.l.b16 %v1207
    %v2541 = vunpack.c.h.b16 %v1207
    %v2542 = vunpack.c.l.b16 %v1208
    %v2543 = vunpack.c.h.b16 %v1208
    %v2544 = vunpack.c.l.b16 %v1209
    %v2545 = vunpack.c.h.b16 %v1209
    %v2546 = vunpack.c.l.b16 %v1210
    %v2547 = vunpack.c.h.b16 %v1210
    %v2548 = vunpack.c.l.b16 %v1211
    %v2549 = vunpack.c.h.b16 %v1211
    %v2550 = vunpack.c.l.b16 %v1212
    %v2551 = vunpack.c.h.b16 %v1212
    %v2552 = vunpack.c.l.b16 %v1213
    %v2553 = vunpack.c.h.b16 %v1213
    %v2554 = vunpack.c.l.b16 %v1214
    %v2555 = vunpack.c.h.b16 %v1214
    %v2556 = vunpack.c.l.b16 %v1215
    %v2557 = vunpack.c.h.b16 %v1215
    %v2558 = vunpack.c.l.b16 %v1216
    %v2559 = vunpack.c.h.b16 %v1216
    %v2560 = vunpack.c.l.b16 %v1217
    %v2561 = vunpack.c.h.b16 %v1217
    %v2562 = vunpack.c.l.b16 %v1218
    %v2563 = vunpack.c.h.b16 %v1218
    %v2564 = vunpack.c.l.b16 %v1219
    %v2565 = vunpack.c.h.b16 %v1219
    %v2566 = vunpack.c.l.b16 %v1220
    %v2567 = vunpack.c.h.b16 %v1220
    %v2568 = vunpack.c.l.b16 %v1221
    %v2569 = vunpack.c.h.b16 %v1221
    %v2570 = vunpack.c.l.b16 %v1222
    %v2571 = vunpack.c.h.b16 %v1222
    %v2572 = vunpack.c.l.b16 %v1223
    %v2573 = vunpack.c.h.b16 %v1223
    %v2574 = vunpack.c.l.b16 %v1224
    %v2575 = vunpack.c.h.b16 %v1224
    %v2576 = vunpack.c.l.b16 %v1225
    %v2577 = vunpack.c.h.b16 %v1225
    %v2578 = vunpack.c.l.b16 %v1226
    %v2579 = vunpack.c.h.b16 %v1226
    %v2580 = vunpack.c.l.b16 %v1227
    %v2581 = vunpack.c.h.b16 %v1227
    %v2582 = vunpack.c.l.b16 %v1228
    %v2583 = vunpack.c.h.b16 %v1228
    %v2584 = vunpack.c.l.b16 %v1229
    %v2585 = vunpack.c.h.b16 %v1229
    %v2586 = vunpack.c.l.b16 %v1230
    %v2587 = vunpack.c.h.b16 %v1230
    %v2588 = vunpack.c.l.b16 %v1231
    %v2589 = vunpack.c.h.b16 %v1231
    %v2590 = vunpack.c.l.b16 %v1232
    %v2591 = vunpack.c.h.b16 %v1232
    %v2592 = vunpack.c.l.b16 %v1233
    %v2593 = vunpack.c.h.b16 %v1233
    %v2594 = vunpack.c.l.b16 %v1234
    %v2595 = vunpack.c.h.b16 %v1234
    %v2596 = vunpack.c.l.b16 %v1235
    %v2597 = vunpack.c.h.b16 %v1235
    %v2598 = vunpack.c.l.b16 %v1236
    %v2599 = vunpack.c.h.b16 %v1236
    %v2600 = vunpack.c.l.b16 %v1237
    %v2601 = vunpack.c.h.b16 %v1237
    %v2602 = vunpack.c.l.b16 %v1238
    %v2603 = vunpack.c.h.b16 %v1238
    %v2604 = vunpack.c.l.b16 %v1239
    %v2605 = vunpack.c.h.b16 %v1239
    %v2606 = vunpack.c.l.b16 %v1240
    %v2607 = vunpack.c.h.b16 %v1240
    %v2608 = vunpack.c.l.b16 %v1241
    %v2609 = vunpack.c.h.b16 %v1241
    %v2610 = vunpack.c.l.b16 %v1242
    %v2611 = vunpack.c.h.b16 %v1242
    %v2612 = vunpack.c.l.b16 %v1243
    %v2613 = vunpack.c.h.b16 %v1243
    %v2614 = vunpack.c.l.b16 %v1244
    %v2615 = vunpack.c.h.b16 %v1244
    %v2616 = vunpack.c.l.b16 %v1245
    %v2617 = vunpack.c.h.b16 %v1245
    %v2618 = vunpack.c.l.b16 %v1246
    %v2619 = vunpack.c.h.b16 %v1246
    %v2620 = vunpack.c.l.b16 %v1247
    %v2621 = vunpack.c.h.b16 %v1247
    %v2622 = vunpack.c.l.b16 %v1248
    %v2623 = vunpack.c.h.b16 %v1248
    %v2624 = vunpack.c.l.b16 %v1249
    %v2625 = vunpack.c.h.b16 %v1249
    %v2626 = vunpack.c.l.b16 %v1250
    %v2627 = vunpack.c.h.b16 %v1250
    %v2628 = vunpack.c.l.b16 %v1251
    %v2629 = vunpack.c.h.b16 %v1251
    %v2630 = vunpack.c.l.b16 %v1252
    %v2631 = vunpack.c.h.b16 %v1252
    %v2632 = vunpack.c.l.b16 %v1253
    %v2633 = vunpack.c.h.b16 %v1253
    %v2634 = vunpack.c.l.b16 %v1254
    %v2635 = vunpack.c.h.b16 %v1254
    %v2636 = vunpack.c.l.b16 %v1255
    %v2637 = vunpack.c.h.b16 %v1255
    %v2638 = vunpack.c.l.b16 %v1256
    %v2639 = vunpack.c.h.b16 %v1256
    %v2640 = vunpack.c.l.b16 %v1257
    %v2641 = vunpack.c.h.b16 %v1257
    %v2642 = vunpack.c.l.b16 %v1258
    %v2643 = vunpack.c.h.b16 %v1258
    %v2644 = vunpack.c.l.b16 %v1259
    %v2645 = vunpack.c.h.b16 %v1259
    %v2646 = vunpack.c.l.b16 %v1260
    %v2647 = vunpack.c.h.b16 %v1260
    %v2648 = vunpack.c.l.b16 %v1261
    %v2649 = vunpack.c.h.b16 %v1261
    %v2650 = vunpack.c.l.b16 %v1262
    %v2651 = vunpack.c.h.b16 %v1262
    %v2652 = vunpack.c.l.b16 %v1263
    %v2653 = vunpack.c.h.b16 %v1263
    %v2654 = vunpack.c.l.b16 %v1264
    %v2655 = vunpack.c.h.b16 %v1264
    %v2656 = vunpack.c.l.b16 %v1265
    %v2657 = vunpack.c.h.b16 %v1265
    %v2658 = vunpack.c.l.b16 %v1266
    %v2659 = vunpack.c.h.b16 %v1266
    %v2660 = vunpack.c.l.b16 %v1267
    %v2661 = vunpack.c.h.b16 %v1267
    %v2662 = vunpack.c.l.b16 %v1268
    %v2663 = vunpack.c.h.b16 %v1268
    %v2664 = vunpack.c.l.b16 %v1269
    %v2665 = vunpack.c.h.b16 %v1269
    %v2666 = vunpack.c.l.b16 %v1270
    %v2667 = vunpack.c.h.b16 %v1270
    %v2668 = vunpack.c.l.b16 %v1271
    %v2669 = vunpack.c.h.b16 %v1271
    %v2670 = vunpack.c.l.b16 %v1272
    %v2671 = vunpack.c.h.b16 %v1272
    %v2672 = vunpack.c.l.b16 %v1273
    %v2673 = vunpack.c.h.b16 %v1273
    %v2674 = vunpack.c.l.b16 %v1274
    %v2675 = vunpack.c.h.b16 %v1274
    %v2676 = vunpack.c.l.b16 %v1275
    %v2677 = vunpack.c.h.b16 %v1275
    %v2678 = vunpack.c.l.b16 %v1276
    %v2679 = vunpack.c.h.b16 %v1276
    %v2680 = vunpack.c.l.b16 %v1277
    %v2681 = vunpack.c.h.b16 %v1277
    %v2682 = vunpack.c.l.b16 %v1278
    %v2683 = vunpack.c.h.b16 %v1278
    %v2684 = vunpack.c.l.b16 %v1279
    %v2685 = vunpack.c.h.b16 %v1279
    %v2686 = vunpack.c.l.b16 %v1280
    %v2687 = vunpack.c.h.b16 %v1280
    %v2688 = vunpack.c.l.b16 %v1281
    %v2689 = vunpack.c.h.b16 %v1281
    %v2690 = vunpack.c.l.b16 %v1282
    %v2691 = vunpack.c.h.b16 %v1282
    %v2692 = vunpack.c.l.b16 %v1283
    %v2693 = vunpack.c.h.b16 %v1283
    %v2694 = vunpack.c.l.b16 %v1284
    %v2695 = vunpack.c.h.b16 %v1284
    %v2696 = vunpack.c.l.b16 %v1285
    %v2697 = vunpack.c.h.b16 %v1285
    %v2698 = vunpack.c.l.b16 %v1286
    %v2699 = vunpack.c.h.b16 %v1286
    %v2700 = vunpack.c.l.b16 %v1287
    %v2701 = vunpack.c.h.b16 %v1287
    %v2702 = vunpack.c.l.b16 %v1288
    %v2703 = vunpack.c.h.b16 %v1288
    %v2704 = vunpack.c.l.b16 %v1289
    %v2705 = vunpack.c.h.b16 %v1289
    %v2706 = vunpack.c.l.b16 %v1290
    %v2707 = vunpack.c.h.b16 %v1290
    %v2708 = vunpack.c.l.b16 %v1291
    %v2709 = vunpack.c.h.b16 %v1291
    %v2710 = vunpack.c.l.b16 %v1292
    %v2711 = vunpack.c.h.b16 %v1292
    %v2712 = vunpack.c.l.b16 %v1293
    %v2713 = vunpack.c.h.b16 %v1293
    %v2714 = vunpack.c.l.b16 %v1294
    %v2715 = vunpack.c.h.b16 %v1294
    %v2716 = vunpack.c.l.b16 %v1295
    %v2717 = vunpack.c.h.b16 %v1295
    %v2718 = vunpack.c.l.b16 %v1296
    %v2719 = vunpack.c.h.b16 %v1296
    %v2720 = vunpack.c.l.b16 %v1297
    %v2721 = vunpack.c.h.b16 %v1297
    %v2722 = vunpack.c.l.b16 %v1298
    %v2723 = vunpack.c.h.b16 %v1298
    %v2724 = vunpack.c.l.b16 %v1299
    %v2725 = vunpack.c.h.b16 %v1299
    %v2726 = vpack.c.b16 %v2474, %v2470
    %v2727 = vpack.c.b16 %v2475, %v2471
    %v2728 = vpack.c.b16 %v2476, %v2472
    %v2729 = vpack.c.b16 %v2477, %v2473
    %v2730 = vpack.c.b16 %v2482, %v2478
    %v2731 = vpack.c.b16 %v2483, %v2479
    %v2732 = vpack.c.b16 %v2484, %v2480
    %v2733 = vpack.c.b16 %v2485, %v2481
    %v2734 = vpack.c.b16 %v2490, %v2486
    %v2735 = vpack.c.b16 %v2491, %v2487
    %v2736 = vpack.c.b16 %v2492, %v2488
    %v2737 = vpack.c.b16 %v2493, %v2489
    %v2738 = vpack.c.b16 %v2498, %v2494
    %v2739 = vpack.c.b16 %v2499, %v2495
    %v2740 = vpack.c.b16 %v2500, %v2496
    %v2741 = vpack.c.b16 %v2501, %v2497
    %v2742 = vpack.c.b16 %v2506, %v2502
    %v2743 = vpack.c.b16 %v2507, %v2503
    %v2744 = vpack.c.b16 %v2508, %v2504
    %v2745 = vpack.c.b16 %v2509, %v2505
    %v2746 = vpack.c.b16 %v2514, %v2510
    %v2747 = vpack.c.b16 %v2515, %v2511
    %v2748 = vpack.c.b16 %v2516, %v2512
    %v2749 = vpack.c.b16 %v2517, %v2513
    %v2750 = vpack.c.b16 %v2522, %v2518
    %v2751 = vpack.c.b16 %v2523, %v2519
    %v2752 = vpack.c.b16 %v2524, %v2520
    %v2753 = vpack.c.b16 %v2525, %v2521
    %v2754 = vpack.c.b16 %v2530, %v2526
    %v2755 = vpack.c.b16 %v2531, %v2527
    %v2756 = vpack.c.b16 %v2532, %v2528
    %v2757 = vpack.c.b16 %v2533, %v2529
    %v2758 = vpack.c.b16 %v2538, %v2534
    %v2759 = vpack.c.b16 %v2539, %v2535
    %v2760 = vpack.c.b16 %v2540, %v2536
    %v2761 = vpack.c.b16 %v2541, %v2537
    %v2762 = vpack.c.b16 %v2546, %v2542
    %v2763 = vpack.c.b16 %v2547, %v2543
    %v2764 = vpack.c.b16 %v2548, %v2544
    %v2765 = vpack.c.b16 %v2549, %v2545
    %v2766 = vpack.c.b16 %v2554, %v2550
    %v2767 = vpack.c.b16 %v2555, %v2551
    %v2768 = vpack.c.b16 %v2556, %v2552
    %v2769 = vpack.c.b16 %v2557, %v2553
    %v2770 = vpack.c.b16 %v2562, %v2558
    %v2771 = vpack.c.b16 %v2563, %v2559
    %v2772 = vpack.c.b16 %v2564, %v2560
    %v2773 = vpack.c.b16 %v2565, %v2561
    %v2774 = vpack.c.b16 %v2570, %v2566
    %v2775 = vpack.c.b16 %v2571, %v2567
    %v2776 = vpack.c.b16 %v2572, %v2568
    %v2777 = vpack.c.b16 %v2573, %v2569
    %v2778 = vpack.c.b16 %v2578, %v2574
    %v2779 = vpack.c.b16 %v2579, %v2575
    %v2780 = vpack.c.b16 %v2580, %v2576
    %v2781 = vpack.c.b16 %v2581, %v2577
    %v2782 = vpack.c.b16 %v2586, %v2582
    %v2783 = vpack.c.b16 %v2587, %v2583
    %v2784 = vpack.c.b16 %v2588, %v2584
    %v2785 = vpack.c.b16 %v2589, %v2585
    %v2786 = vpack.c.b16 %v2594, %v2590
    %v2787 = vpack.c.b16 %v2595, %v2591
    %v2788 = vpack.c.b16 %v2596, %v2592
    %v2789 = vpack.c.b16 %v2597, %v2593
    %v2790 = vpack.c.b16 %v2602, %v2598
    %v2791 = vpack.c.b16 %v2603, %v2599
    %v2792 = vpack.c.b16 %v2604, %v2600
    %v2793 = vpack.c.b16 %v2605, %v2601
    %v2794 = vpack.c.b16 %v2610, %v2606
    %v2795 = vpack.c.b16 %v2611, %v2607
    %v2796 = vpack.c.b16 %v2612, %v2608
    %v2797 = vpack.c.b16 %v2613, %v2609
    %v2798 = vpack.c.b16 %v2618, %v2614
    %v2799 = vpack.c.b16 %v2619, %v2615
    %v2800 = vpack.c.b16 %v2620, %v2616
    %v2801 = vpack.c.b16 %v2621, %v2617
    %v2802 = vpack.c.b16 %v2626, %v2622
    %v2803 = vpack.c.b16 %v2627, %v2623
    %v2804 = vpack.c.b16 %v2628, %v2624
    %v2805 = vpack.c.b16 %v2629, %v2625
    %v2806 = vpack.c.b16 %v2634, %v2630
    %v2807 = vpack.c.b16 %v2635, %v2631
    %v2808 = vpack.c.b16 %v2636, %v2632
    %v2809 = vpack.c.b16 %v2637, %v2633
    %v2810 = vpack.c.b16 %v2642, %v2638
    %v2811 = vpack.c.b16 %v2643, %v2639
    %v2812 = vpack.c.b16 %v2644, %v2640
    %v2813 = vpack.c.b16 %v2645, %v2641
    %v2814 = vpack.c.b16 %v2650, %v2646
    %v2815 = vpack.c.b16 %v2651, %v2647
    %v2816 = vpack.c.b16 %v2652, %v2648
    %v2817 = vpack.c.b16 %v2653, %v2649
    %v2818 = vpack.c.b16 %v2658, %v2654
    %v2819 = vpack.c.b16 %v2659, %v2655
    %v2820 = vpack.c.b16 %v2660, %v2656
    %v2821 = vpack.c.b16 %v2661, %v2657
    %v2822 = vpack.c.b16 %v2666, %v2662
    %v2823 = vpack.c.b16 %v2667, %v2663
    %v2824 = vpack.c.b16 %v2668, %v2664
    %v2825 = vpack.c.b16 %v2669, %v2665
    %v2826 = vpack.c.b16 %v2674, %v2670
    %v2827 = vpack.c.b16 %v2675, %v2671
    %v2828 = vpack.c.b16 %v2676, %v2672
    %v2829 = vpack.c.b16 %v2677, %v2673
    %v2830 = vpack.c.b16 %v2682, %v2678
    %v2831 = vpack.c.b16 %v2683, %v2679
    %v2832 = vpack.c.b16 %v2684, %v2680
    %v2833 = vpack.c.b16 %v2685, %v2681
    %v2834 = vpack.c.b16 %v2690, %v2686
    %v2835 = vpack.c.b16 %v2691, %v2687
    %v2836 = vpack.c.b16 %v2692, %v2688
    %v2837 = vpack.c.b16 %v2693, %v2689
    %v2838 = vpack.c.b16 %v2698, %v2694
    %v2839 = vpack.c.b16 %v2699, %v2695
    %v2840 = vpack.c.b16 %v2700, %v2696
    %v2841 = vpack.c.b16 %v2701, %v2697
    %v2842 = vpack.c.b16 %v2706, %v2702
    %v2843 = vpack.c.b16 %v2707, %v2703
    %v2844 = vpack.c.b16 %v2708, %v2704
    %v2845 = vpack.c.b16 %v2709, %v2705
    %v2846 = vpack.c.b16 %v2714, %v2710
    %v2847 = vpack.c.b16 %v2715, %v2711
    %v2848 = vpack.c.b16 %v2716, %v2712
    %v2849 = vpack.c.b16 %v2717, %v2713
    %v2850 = vpack.c.b16 %v2722, %v2718
    %v2851 = vpack.c.b16 %v2723, %v2719
    %v2852 = vpack.c.b16 %v2724, %v2720
    %v2853 = vpack.c.b16 %v2725, %v2721
    %2982 = vmatprep.subr.bf16.mxu0 %v2727
    %2983 = vmatpush1.bf16.msra.mxu0 %v2726
    %2984 = vmatprep.subr.bf16.mxu0 %v2731
    %2985 = vmatpush1.bf16.msra.mxu0 %v2730
    %2986 = vmatprep.subr.bf16.mxu0 %v2735
    %2987 = vmatpush1.bf16.msra.mxu0 %v2734
    %2988 = vmatprep.subr.bf16.mxu0 %v2739
    %2989 = vmatpush1.bf16.msra.mxu0 %v2738
    %2990 = vmatprep.subr.bf16.mxu0 %v2743
    %2991 = vmatpush1.bf16.msra.mxu0 %v2742
    %2992 = vmatprep.subr.bf16.mxu0 %v2747
    %2993 = vmatpush1.bf16.msra.mxu0 %v2746
    %2994 = vmatprep.subr.bf16.mxu0 %v2751
    %2995 = vmatpush1.bf16.msra.mxu0 %v2750
    %2996 = vmatprep.subr.bf16.mxu0 %v2755
    %2997 = vmatpush1.bf16.msra.mxu0 %v2754
    %2998 = vmatprep.subr.bf16.mxu0 %v2759
    %2999 = vmatpush1.bf16.msra.mxu0 %v2758
    %3000 = vmatprep.subr.bf16.mxu0 %v2763
    %3001 = vmatpush1.bf16.msra.mxu0 %v2762
    %3002 = vmatprep.subr.bf16.mxu0 %v2767
    %3003 = vmatpush1.bf16.msra.mxu0 %v2766
    %3004 = vmatprep.subr.bf16.mxu0 %v2771
    %3005 = vmatpush1.bf16.msra.mxu0 %v2770
    %3006 = vmatprep.subr.bf16.mxu0 %v2775
    %3007 = vmatpush1.bf16.msra.mxu0 %v2774
    %3008 = vmatprep.subr.bf16.mxu0 %v2779
    %3009 = vmatpush1.bf16.msra.mxu0 %v2778
    %3010 = vmatprep.subr.bf16.mxu0 %v2783
    %3011 = vmatpush1.bf16.msra.mxu0 %v2782
    %3012 = vmatprep.subr.bf16.mxu0 %v2787
    %3013 = vmatpush1.bf16.msra.mxu0 %v2786
    %3014 = vmatprep.mubr.bf16.mxu0 %v1169
    %3015 = vmatmul.mubr.bf16.gmra.mrb[0].mxu0 %v1168
    %v3016 = vpop.f32.mrb[0].mxu0
    %v3017 = vadd.f32 %v2248, %v3016
    %v3018 = vpop.f32.mrb[0].mxu0
    %v3019 = vadd.f32 %v2250, %v3018
    %v3020 = vpop.f32.mrb[0].mxu0
    %v3021 = vadd.f32 %v2252, %v3020
    %v3022 = vpop.f32.mrb[0].mxu0
    %v3023 = vadd.f32 %v2254, %v3022
    %3024 = vdwg.mxu0
    %3025 = vmatprep.subr.bf16.mxu0 %v2791
    %3026 = vmatpush1.bf16.msra.mxu0 %v2790
    %3027 = vmatprep.subr.bf16.mxu0 %v2795
    %3028 = vmatpush1.bf16.msra.mxu0 %v2794
    %3029 = vmatprep.subr.bf16.mxu0 %v2799
    %3030 = vmatpush1.bf16.msra.mxu0 %v2798
    %3031 = vmatprep.subr.bf16.mxu0 %v2803
    %3032 = vmatpush1.bf16.msra.mxu0 %v2802
    %3033 = vmatprep.subr.bf16.mxu0 %v2807
    %3034 = vmatpush1.bf16.msra.mxu0 %v2806
    %3035 = vmatprep.subr.bf16.mxu0 %v2811
    %3036 = vmatpush1.bf16.msra.mxu0 %v2810
    %3037 = vmatprep.subr.bf16.mxu0 %v2815
    %3038 = vmatpush1.bf16.msra.mxu0 %v2814
    %3039 = vmatprep.subr.bf16.mxu0 %v2819
    %3040 = vmatpush1.bf16.msra.mxu0 %v2818
    %3041 = vmatprep.subr.bf16.mxu0 %v2823
    %3042 = vmatpush1.bf16.msra.mxu0 %v2822
    %3043 = vmatprep.subr.bf16.mxu0 %v2827
    %3044 = vmatpush1.bf16.msra.mxu0 %v2826
    %3045 = vmatprep.subr.bf16.mxu0 %v2831
    %3046 = vmatpush1.bf16.msra.mxu0 %v2830
    %3047 = vmatprep.subr.bf16.mxu0 %v2835
    %3048 = vmatpush1.bf16.msra.mxu0 %v2834
    %3049 = vmatprep.subr.bf16.mxu0 %v2839
    %3050 = vmatpush1.bf16.msra.mxu0 %v2838
    %3051 = vmatprep.subr.bf16.mxu0 %v2843
    %3052 = vmatpush1.bf16.msra.mxu0 %v2842
    %3053 = vmatprep.subr.bf16.mxu0 %v2847
    %3054 = vmatpush1.bf16.msra.mxu0 %v2846
    %3055 = vmatprep.subr.bf16.mxu0 %v2851
    %3056 = vmatpush1.bf16.msra.mxu0 %v2850
    %3057 = vmatprep.mubr.bf16.mxu0 %v1171
    %3058 = vmatmul.mubr.bf16.gmra.mrb[0].mxu0 %v1170
    %v3059 = vpop.f32.mrb[0].mxu0
    %v3060 = vadd.f32 %v3017, %v3059
    %v3061 = vpop.f32.mrb[0].mxu0
    %v3062 = vadd.f32 %v3019, %v3061
    %v3063 = vpop.f32.mrb[0].mxu0
    %v3064 = vadd.f32 %v3021, %v3063
    %v3065 = vpop.f32.mrb[0].mxu0
    %v3066 = vadd.f32 %v3023, %v3065
    %3067 = vdwg.mxu0
    %3068 = vmatprep.subr.bf16.mxu0 %v2729
    %3069 = vmatpush1.bf16.msra.mxu0 %v2728
    %3070 = vmatprep.subr.bf16.mxu0 %v2733
    %3071 = vmatpush1.bf16.msra.mxu0 %v2732
    %3072 = vmatprep.subr.bf16.mxu0 %v2737
    %3073 = vmatpush1.bf16.msra.mxu0 %v2736
    %3074 = vmatprep.subr.bf16.mxu0 %v2741
    %3075 = vmatpush1.bf16.msra.mxu0 %v2740
    %3076 = vmatprep.subr.bf16.mxu0 %v2745
    %3077 = vmatpush1.bf16.msra.mxu0 %v2744
    %3078 = vmatprep.subr.bf16.mxu0 %v2749
    %3079 = vmatpush1.bf16.msra.mxu0 %v2748
    %3080 = vmatprep.subr.bf16.mxu0 %v2753
    %3081 = vmatpush1.bf16.msra.mxu0 %v2752
    %3082 = vmatprep.subr.bf16.mxu0 %v2757
    %3083 = vmatpush1.bf16.msra.mxu0 %v2756
    %3084 = vmatprep.subr.bf16.mxu0 %v2761
    %3085 = vmatpush1.bf16.msra.mxu0 %v2760
    %3086 = vmatprep.subr.bf16.mxu0 %v2765
    %3087 = vmatpush1.bf16.msra.mxu0 %v2764
    %3088 = vmatprep.subr.bf16.mxu0 %v2769
    %3089 = vmatpush1.bf16.msra.mxu0 %v2768
    %3090 = vmatprep.subr.bf16.mxu0 %v2773
    %3091 = vmatpush1.bf16.msra.mxu0 %v2772
    %3092 = vmatprep.subr.bf16.mxu0 %v2777
    %3093 = vmatpush1.bf16.msra.mxu0 %v2776
    %3094 = vmatprep.subr.bf16.mxu0 %v2781
    %3095 = vmatpush1.bf16.msra.mxu0 %v2780
    %3096 = vmatprep.subr.bf16.mxu0 %v2785
    %3097 = vmatpush1.bf16.msra.mxu0 %v2784
    %3098 = vmatprep.subr.bf16.mxu0 %v2789
    %3099 = vmatpush1.bf16.msra.mxu0 %v2788
    %3100 = vmatprep.mubr.bf16.mxu0 %v1169
    %3101 = vmatmul.mubr.bf16.gmra.mrb[0].mxu0 %v1168
    %v3102 = vpop.f32.mrb[0].mxu0
    %v3103 = vadd.f32 %v2334, %v3102
    %v3104 = vpop.f32.mrb[0].mxu0
    %v3105 = vadd.f32 %v2336, %v3104
    %v3106 = vpop.f32.mrb[0].mxu0
    %v3107 = vadd.f32 %v2338, %v3106
    %v3108 = vpop.f32.mrb[0].mxu0
    %v3109 = vadd.f32 %v2340, %v3108
    %3110 = vdwg.mxu0
    %3111 = vmatprep.subr.bf16.mxu0 %v2793
    %3112 = vmatpush1.bf16.msra.mxu0 %v2792
    %3113 = vmatprep.subr.bf16.mxu0 %v2797
    %3114 = vmatpush1.bf16.msra.mxu0 %v2796
    %3115 = vmatprep.subr.bf16.mxu0 %v2801
    %3116 = vmatpush1.bf16.msra.mxu0 %v2800
    %3117 = vmatprep.subr.bf16.mxu0 %v2805
    %3118 = vmatpush1.bf16.msra.mxu0 %v2804
    %3119 = vmatprep.subr.bf16.mxu0 %v2809
    %3120 = vmatpush1.bf16.msra.mxu0 %v2808
    %3121 = vmatprep.subr.bf16.mxu0 %v2813
    %3122 = vmatpush1.bf16.msra.mxu0 %v2812
    %3123 = vmatprep.subr.bf16.mxu0 %v2817
    %3124 = vmatpush1.bf16.msra.mxu0 %v2816
    %3125 = vmatprep.subr.bf16.mxu0 %v2821
    %3126 = vmatpush1.bf16.msra.mxu0 %v2820
    %3127 = vmatprep.subr.bf16.mxu0 %v2825
    %3128 = vmatpush1.bf16.msra.mxu0 %v2824
    %3129 = vmatprep.subr.bf16.mxu0 %v2829
    %3130 = vmatpush1.bf16.msra.mxu0 %v2828
    %3131 = vmatprep.subr.bf16.mxu0 %v2833
    %3132 = vmatpush1.bf16.msra.mxu0 %v2832
    %3133 = vmatprep.subr.bf16.mxu0 %v2837
    %3134 = vmatpush1.bf16.msra.mxu0 %v2836
    %3135 = vmatprep.subr.bf16.mxu0 %v2841
    %3136 = vmatpush1.bf16.msra.mxu0 %v2840
    %3137 = vmatprep.subr.bf16.mxu0 %v2845
    %3138 = vmatpush1.bf16.msra.mxu0 %v2844
    %3139 = vmatprep.subr.bf16.mxu0 %v2849
    %3140 = vmatpush1.bf16.msra.mxu0 %v2848
    %3141 = vmatprep.subr.bf16.mxu0 %v2853
    %3142 = vmatpush1.bf16.msra.mxu0 %v2852
    %3143 = vmatprep.mubr.bf16.mxu0 %v1171
    %3144 = vmatmul.mubr.bf16.gmra.mrb[0].mxu0 %v1170
    %v3145 = vpop.f32.mrb[0].mxu0
    %v3146 = vadd.f32 %v3103, %v3145
    %v3147 = vpop.f32.mrb[0].mxu0
    %v3148 = vadd.f32 %v3105, %v3147
    %v3149 = vpop.f32.mrb[0].mxu0
    %v3150 = vadd.f32 %v3107, %v3149
    %v3151 = vpop.f32.mrb[0].mxu0
    %v3152 = vadd.f32 %v3109, %v3151
    %3153 = vdwg.mxu0
    %s3154 = scalar_lea.vmem [#allocation7], 16
    %v3155 = vld [vmem:[%s3154] sm:$0xf]
    %v3156 = vld [vmem:[%s3154 + $0x4] sm:$0xf]
    %v3159 = vunpack.c.l.b16 %v3155
    %v3160 = vunpack.c.l.b16 %v3156
    %v3161 = vpack.c.b16 %v3160, %v3159
    %v3163 = vsel %vm464, %v3161, 0
    %3165 = vmatprep.subr.bf16.mxu0 %v1065
    %3166 = vmatpush1.bf16.msra.mxu0 %v1064
    %3167 = vmatprep.subr.bf16.mxu0 %v1069
    %3168 = vmatpush1.bf16.msra.mxu0 %v1068
    %3169 = vmatprep.subr.bf16.mxu0 0
    %3170 = vmatpush1.bf16.msra.mxu0 0
    %3171 = vmatprep.subr.bf16.mxu0 0
    %3172 = vmatpush1.bf16.msra.mxu0 0
    %3173 = vmatprep.subr.bf16.mxu0 0
    %3174 = vmatpush1.bf16.msra.mxu0 0
    %3175 = vmatprep.subr.bf16.mxu0 0
    %3176 = vmatpush1.bf16.msra.mxu0 0
    %3177 = vmatprep.subr.bf16.mxu0 0
    %3178 = vmatpush1.bf16.msra.mxu0 0
    %3179 = vmatprep.subr.bf16.mxu0 0
    %3180 = vmatpush1.bf16.msra.mxu0 0
    %3181 = vmatprep.subr.bf16.mxu0 0
    %3182 = vmatpush1.bf16.msra.mxu0 0
    %3183 = vmatprep.subr.bf16.mxu0 0
    %3184 = vmatpush1.bf16.msra.mxu0 0
    %3185 = vmatprep.subr.bf16.mxu0 0
    %3186 = vmatpush1.bf16.msra.mxu0 0
    %3187 = vmatprep.subr.bf16.mxu0 0
    %3188 = vmatpush1.bf16.msra.mxu0 0
    %3189 = vmatprep.subr.bf16.mxu0 0
    %3190 = vmatpush1.bf16.msra.mxu0 0
    %3191 = vmatprep.subr.bf16.mxu0 0
    %3192 = vmatpush1.bf16.msra.mxu0 0
    %3193 = vmatprep.subr.bf16.mxu0 0
    %3194 = vmatpush1.bf16.msra.mxu0 0
    %3195 = vmatprep.subr.bf16.mxu0 0
    %3196 = vmatpush1.bf16.msra.mxu0 0
    %3197 = vmatprep.mubr.bf16.mxu0 0
    %3198 = vmatmul.mubr.bf16.gmra.mrb[0].mxu0 %v3163
    %v3199 = vpop.f32.mrb[0].mxu0
    %v3200 = vadd.f32 0.0, %v3199
    %v3201 = vpop.f32.mrb[0].mxu0
    %v3202 = vadd.f32 0.0, %v3201
    %v3203 = vpop.f32.mrb[0].mxu0
    %v3204 = vadd.f32 0.0, %v3203
    %v3205 = vpop.f32.mrb[0].mxu0
    %v3206 = vadd.f32 0.0, %v3205
    %3207 = vdwg.mxu0
    %3208 = vmatprep.subr.bf16.mxu0 %v1067
    %3209 = vmatpush1.bf16.msra.mxu0 %v1066
    %3210 = vmatprep.subr.bf16.mxu0 %v1071
    %3211 = vmatpush1.bf16.msra.mxu0 %v1070
    %3212 = vmatprep.subr.bf16.mxu0 0
    %3213 = vmatpush1.bf16.msra.mxu0 0
    %3214 = vmatprep.subr.bf16.mxu0 0
    %3215 = vmatpush1.bf16.msra.mxu0 0
    %3216 = vmatprep.subr.bf16.mxu0 0
    %3217 = vmatpush1.bf16.msra.mxu0 0
    %3218 = vmatprep.subr.bf16.mxu0 0
    %3219 = vmatpush1.bf16.msra.mxu0 0
    %3220 = vmatprep.subr.bf16.mxu0 0
    %3221 = vmatpush1.bf16.msra.mxu0 0
    %3222 = vmatprep.subr.bf16.mxu0 0
    %3223 = vmatpush1.bf16.msra.mxu0 0
    %3224 = vmatprep.subr.bf16.mxu0 0
    %3225 = vmatpush1.bf16.msra.mxu0 0
    %3226 = vmatprep.subr.bf16.mxu0 0
    %3227 = vmatpush1.bf16.msra.mxu0 0
    %3228 = vmatprep.subr.bf16.mxu0 0
    %3229 = vmatpush1.bf16.msra.mxu0 0
    %3230 = vmatprep.subr.bf16.mxu0 0
    %3231 = vmatpush1.bf16.msra.mxu0 0
    %3232 = vmatprep.subr.bf16.mxu0 0
    %3233 = vmatpush1.bf16.msra.mxu0 0
    %3234 = vmatprep.subr.bf16.mxu0 0
    %3235 = vmatpush1.bf16.msra.mxu0 0
    %3236 = vmatprep.subr.bf16.mxu0 0
    %3237 = vmatpush1.bf16.msra.mxu0 0
    %3238 = vmatprep.subr.bf16.mxu0 0
    %3239 = vmatpush1.bf16.msra.mxu0 0
    %3240 = vmatprep.mubr.bf16.mxu0 0
    %3241 = vmatmul.mubr.bf16.gmra.mrb[0].mxu0 %v3163
    %v3242 = vpop.f32.mrb[0].mxu0
    %v3243 = vadd.f32 0.0, %v3242
    %v3244 = vpop.f32.mrb[0].mxu0
    %v3245 = vadd.f32 0.0, %v3244
    %v3246 = vpop.f32.mrb[0].mxu0
    %v3247 = vadd.f32 0.0, %v3246
    %v3248 = vpop.f32.mrb[0].mxu0
    %v3249 = vadd.f32 0.0, %v3248
    %3250 = vdwg.mxu0
    %v3251 = vpack.c.bf16 %v3204, %v3200
    %v3252 = vpack.c.bf16 %v3206, %v3202
    %v3253 = vpack.c.bf16 %v3247, %v3243
    %v3254 = vpack.c.bf16 %v3249, %v3245
    %s3255 = scalar_lea.vmem [#allocation9], 2048
    %v3256 = vld [vmem:[%s3255] sm:$0xff]
    %v3257 = vld [vmem:[%s3255 + $0x8] sm:$0xff]
    %v3258 = vld [vmem:[%s3255 + $0x10] sm:$0xff]
    %v3259 = vld [vmem:[%s3255 + $0x18] sm:$0xff]
    %v3260 = vld [vmem:[%s3255 + $0x20] sm:$0xff]
    %v3261 = vld [vmem:[%s3255 + $0x28] sm:$0xff]
    %v3262 = vld [vmem:[%s3255 + $0x30] sm:$0xff]
    %v3263 = vld [vmem:[%s3255 + $0x38] sm:$0xff]
    %v3264 = vld [vmem:[%s3255 + $0x40] sm:$0xff]
    %v3265 = vld [vmem:[%s3255 + $0x48] sm:$0xff]
    %v3266 = vld [vmem:[%s3255 + $0x50] sm:$0xff]
    %v3267 = vld [vmem:[%s3255 + $0x58] sm:$0xff]
    %v3268 = vld [vmem:[%s3255 + $0x60] sm:$0xff]
    %v3269 = vld [vmem:[%s3255 + $0x68] sm:$0xff]
    %v3270 = vld [vmem:[%s3255 + $0x70] sm:$0xff]
    %v3271 = vld [vmem:[%s3255 + $0x78] sm:$0xff]
    %v3272 = vld [vmem:[%s3255 + $0x80] sm:$0xff]
    %v3273 = vld [vmem:[%s3255 + $0x88] sm:$0xff]
    %v3274 = vld [vmem:[%s3255 + $0x90] sm:$0xff]
    %v3275 = vld [vmem:[%s3255 + $0x98] sm:$0xff]
    %v3276 = vld [vmem:[%s3255 + $0xa0] sm:$0xff]
    %v3277 = vld [vmem:[%s3255 + $0xa8] sm:$0xff]
    %v3278 = vld [vmem:[%s3255 + $0xb0] sm:$0xff]
    %v3279 = vld [vmem:[%s3255 + $0xb8] sm:$0xff]
    %v3280 = vld [vmem:[%s3255 + $0xc0] sm:$0xff]
    %v3281 = vld [vmem:[%s3255 + $0xc8] sm:$0xff]
    %v3282 = vld [vmem:[%s3255 + $0xd0] sm:$0xff]
    %v3283 = vld [vmem:[%s3255 + $0xd8] sm:$0xff]
    %v3284 = vld [vmem:[%s3255 + $0xe0] sm:$0xff]
    %v3285 = vld [vmem:[%s3255 + $0xe8] sm:$0xff]
    %v3286 = vld [vmem:[%s3255 + $0xf0] sm:$0xff]
    %v3287 = vld [vmem:[%s3255 + $0xf8] sm:$0xff]
    %v3288 = vld [vmem:[%s3255 + $0x100] sm:$0xff]
    %v3289 = vld [vmem:[%s3255 + $0x108] sm:$0xff]
    %v3290 = vld [vmem:[%s3255 + $0x110] sm:$0xff]
    %v3291 = vld [vmem:[%s3255 + $0x118] sm:$0xff]
    %v3292 = vld [vmem:[%s3255 + $0x120] sm:$0xff]
    %v3293 = vld [vmem:[%s3255 + $0x128] sm:$0xff]
    %v3294 = vld [vmem:[%s3255 + $0x130] sm:$0xff]
    %v3295 = vld [vmem:[%s3255 + $0x138] sm:$0xff]
    %v3296 = vld [vmem:[%s3255 + $0x140] sm:$0xff]
    %v3297 = vld [vmem:[%s3255 + $0x148] sm:$0xff]
    %v3298 = vld [vmem:[%s3255 + $0x150] sm:$0xff]
    %v3299 = vld [vmem:[%s3255 + $0x158] sm:$0xff]
    %v3300 = vld [vmem:[%s3255 + $0x160] sm:$0xff]
    %v3301 = vld [vmem:[%s3255 + $0x168] sm:$0xff]
    %v3302 = vld [vmem:[%s3255 + $0x170] sm:$0xff]
    %v3303 = vld [vmem:[%s3255 + $0x178] sm:$0xff]
    %v3304 = vld [vmem:[%s3255 + $0x180] sm:$0xff]
    %v3305 = vld [vmem:[%s3255 + $0x188] sm:$0xff]
    %v3306 = vld [vmem:[%s3255 + $0x190] sm:$0xff]
    %v3307 = vld [vmem:[%s3255 + $0x198] sm:$0xff]
    %v3308 = vld [vmem:[%s3255 + $0x1a0] sm:$0xff]
    %v3309 = vld [vmem:[%s3255 + $0x1a8] sm:$0xff]
    %v3310 = vld [vmem:[%s3255 + $0x1b0] sm:$0xff]
    %v3311 = vld [vmem:[%s3255 + $0x1b8] sm:$0xff]
    %v3312 = vld [vmem:[%s3255 + $0x1c0] sm:$0xff]
    %v3313 = vld [vmem:[%s3255 + $0x1c8] sm:$0xff]
    %v3314 = vld [vmem:[%s3255 + $0x1d0] sm:$0xff]
    %v3315 = vld [vmem:[%s3255 + $0x1d8] sm:$0xff]
    %v3316 = vld [vmem:[%s3255 + $0x1e0] sm:$0xff]
    %v3317 = vld [vmem:[%s3255 + $0x1e8] sm:$0xff]
    %v3318 = vld [vmem:[%s3255 + $0x1f0] sm:$0xff]
    %v3319 = vld [vmem:[%s3255 + $0x1f8] sm:$0xff]
    %v3320 = vld [vmem:[%s3255 + $0x200] sm:$0xff]
    %v3321 = vld [vmem:[%s3255 + $0x208] sm:$0xff]
    %v3322 = vld [vmem:[%s3255 + $0x210] sm:$0xff]
    %v3323 = vld [vmem:[%s3255 + $0x218] sm:$0xff]
    %v3324 = vld [vmem:[%s3255 + $0x220] sm:$0xff]
    %v3325 = vld [vmem:[%s3255 + $0x228] sm:$0xff]
    %v3326 = vld [vmem:[%s3255 + $0x230] sm:$0xff]
    %v3327 = vld [vmem:[%s3255 + $0x238] sm:$0xff]
    %v3328 = vld [vmem:[%s3255 + $0x240] sm:$0xff]
    %v3329 = vld [vmem:[%s3255 + $0x248] sm:$0xff]
    %v3330 = vld [vmem:[%s3255 + $0x250] sm:$0xff]
    %v3331 = vld [vmem:[%s3255 + $0x258] sm:$0xff]
    %v3332 = vld [vmem:[%s3255 + $0x260] sm:$0xff]
    %v3333 = vld [vmem:[%s3255 + $0x268] sm:$0xff]
    %v3334 = vld [vmem:[%s3255 + $0x270] sm:$0xff]
    %v3335 = vld [vmem:[%s3255 + $0x278] sm:$0xff]
    %v3336 = vld [vmem:[%s3255 + $0x280] sm:$0xff]
    %v3337 = vld [vmem:[%s3255 + $0x288] sm:$0xff]
    %v3338 = vld [vmem:[%s3255 + $0x290] sm:$0xff]
    %v3339 = vld [vmem:[%s3255 + $0x298] sm:$0xff]
    %v3340 = vld [vmem:[%s3255 + $0x2a0] sm:$0xff]
    %v3341 = vld [vmem:[%s3255 + $0x2a8] sm:$0xff]
    %v3342 = vld [vmem:[%s3255 + $0x2b0] sm:$0xff]
    %v3343 = vld [vmem:[%s3255 + $0x2b8] sm:$0xff]
    %v3344 = vld [vmem:[%s3255 + $0x2c0] sm:$0xff]
    %v3345 = vld [vmem:[%s3255 + $0x2c8] sm:$0xff]
    %v3346 = vld [vmem:[%s3255 + $0x2d0] sm:$0xff]
    %v3347 = vld [vmem:[%s3255 + $0x2d8] sm:$0xff]
    %v3348 = vld [vmem:[%s3255 + $0x2e0] sm:$0xff]
    %v3349 = vld [vmem:[%s3255 + $0x2e8] sm:$0xff]
    %v3350 = vld [vmem:[%s3255 + $0x2f0] sm:$0xff]
    %v3351 = vld [vmem:[%s3255 + $0x2f8] sm:$0xff]
    %v3352 = vld [vmem:[%s3255 + $0x300] sm:$0xff]
    %v3353 = vld [vmem:[%s3255 + $0x308] sm:$0xff]
    %v3354 = vld [vmem:[%s3255 + $0x310] sm:$0xff]
    %v3355 = vld [vmem:[%s3255 + $0x318] sm:$0xff]
    %v3356 = vld [vmem:[%s3255 + $0x320] sm:$0xff]
    %v3357 = vld [vmem:[%s3255 + $0x328] sm:$0xff]
    %v3358 = vld [vmem:[%s3255 + $0x330] sm:$0xff]
    %v3359 = vld [vmem:[%s3255 + $0x338] sm:$0xff]
    %v3360 = vld [vmem:[%s3255 + $0x340] sm:$0xff]
    %v3361 = vld [vmem:[%s3255 + $0x348] sm:$0xff]
    %v3362 = vld [vmem:[%s3255 + $0x350] sm:$0xff]
    %v3363 = vld [vmem:[%s3255 + $0x358] sm:$0xff]
    %v3364 = vld [vmem:[%s3255 + $0x360] sm:$0xff]
    %v3365 = vld [vmem:[%s3255 + $0x368] sm:$0xff]
    %v3366 = vld [vmem:[%s3255 + $0x370] sm:$0xff]
    %v3367 = vld [vmem:[%s3255 + $0x378] sm:$0xff]
    %v3368 = vld [vmem:[%s3255 + $0x380] sm:$0xff]
    %v3369 = vld [vmem:[%s3255 + $0x388] sm:$0xff]
    %v3370 = vld [vmem:[%s3255 + $0x390] sm:$0xff]
    %v3371 = vld [vmem:[%s3255 + $0x398] sm:$0xff]
    %v3372 = vld [vmem:[%s3255 + $0x3a0] sm:$0xff]
    %v3373 = vld [vmem:[%s3255 + $0x3a8] sm:$0xff]
    %v3374 = vld [vmem:[%s3255 + $0x3b0] sm:$0xff]
    %v3375 = vld [vmem:[%s3255 + $0x3b8] sm:$0xff]
    %v3376 = vld [vmem:[%s3255 + $0x3c0] sm:$0xff]
    %v3377 = vld [vmem:[%s3255 + $0x3c8] sm:$0xff]
    %v3378 = vld [vmem:[%s3255 + $0x3d0] sm:$0xff]
    %v3379 = vld [vmem:[%s3255 + $0x3d8] sm:$0xff]
    %v3380 = vld [vmem:[%s3255 + $0x3e0] sm:$0xff]
    %v3381 = vld [vmem:[%s3255 + $0x3e8] sm:$0xff]
    %v3382 = vld [vmem:[%s3255 + $0x3f0] sm:$0xff]
    %v3383 = vld [vmem:[%s3255 + $0x3f8] sm:$0xff]
    %v3512 = vunpack.c.l.b16 %v3256
    %v3513 = vunpack.c.h.b16 %v3256
    %v3514 = vunpack.c.l.b16 %v3257
    %v3515 = vunpack.c.h.b16 %v3257
    %v3516 = vunpack.c.l.b16 %v3258
    %v3517 = vunpack.c.h.b16 %v3258
    %v3518 = vunpack.c.l.b16 %v3259
    %v3519 = vunpack.c.h.b16 %v3259
    %v3520 = vunpack.c.l.b16 %v3260
    %v3521 = vunpack.c.h.b16 %v3260
    %v3522 = vunpack.c.l.b16 %v3261
    %v3523 = vunpack.c.h.b16 %v3261
    %v3524 = vunpack.c.l.b16 %v3262
    %v3525 = vunpack.c.h.b16 %v3262
    %v3526 = vunpack.c.l.b16 %v3263
    %v3527 = vunpack.c.h.b16 %v3263
    %v3528 = vunpack.c.l.b16 %v3264
    %v3529 = vunpack.c.h.b16 %v3264
    %v3530 = vunpack.c.l.b16 %v3265
    %v3531 = vunpack.c.h.b16 %v3265
    %v3532 = vunpack.c.l.b16 %v3266
    %v3533 = vunpack.c.h.b16 %v3266
    %v3534 = vunpack.c.l.b16 %v3267
    %v3535 = vunpack.c.h.b16 %v3267
    %v3536 = vunpack.c.l.b16 %v3268
    %v3537 = vunpack.c.h.b16 %v3268
    %v3538 = vunpack.c.l.b16 %v3269
    %v3539 = vunpack.c.h.b16 %v3269
    %v3540 = vunpack.c.l.b16 %v3270
    %v3541 = vunpack.c.h.b16 %v3270
    %v3542 = vunpack.c.l.b16 %v3271
    %v3543 = vunpack.c.h.b16 %v3271
    %v3544 = vunpack.c.l.b16 %v3272
    %v3545 = vunpack.c.h.b16 %v3272
    %v3546 = vunpack.c.l.b16 %v3273
    %v3547 = vunpack.c.h.b16 %v3273
    %v3548 = vunpack.c.l.b16 %v3274
    %v3549 = vunpack.c.h.b16 %v3274
    %v3550 = vunpack.c.l.b16 %v3275
    %v3551 = vunpack.c.h.b16 %v3275
    %v3552 = vunpack.c.l.b16 %v3276
    %v3553 = vunpack.c.h.b16 %v3276
    %v3554 = vunpack.c.l.b16 %v3277
    %v3555 = vunpack.c.h.b16 %v3277
    %v3556 = vunpack.c.l.b16 %v3278
    %v3557 = vunpack.c.h.b16 %v3278
    %v3558 = vunpack.c.l.b16 %v3279
    %v3559 = vunpack.c.h.b16 %v3279
    %v3560 = vunpack.c.l.b16 %v3280
    %v3561 = vunpack.c.h.b16 %v3280
    %v3562 = vunpack.c.l.b16 %v3281
    %v3563 = vunpack.c.h.b16 %v3281
    %v3564 = vunpack.c.l.b16 %v3282
    %v3565 = vunpack.c.h.b16 %v3282
    %v3566 = vunpack.c.l.b16 %v3283
    %v3567 = vunpack.c.h.b16 %v3283
    %v3568 = vunpack.c.l.b16 %v3284
    %v3569 = vunpack.c.h.b16 %v3284
    %v3570 = vunpack.c.l.b16 %v3285
    %v3571 = vunpack.c.h.b16 %v3285
    %v3572 = vunpack.c.l.b16 %v3286
    %v3573 = vunpack.c.h.b16 %v3286
    %v3574 = vunpack.c.l.b16 %v3287
    %v3575 = vunpack.c.h.b16 %v3287
    %v3576 = vunpack.c.l.b16 %v3288
    %v3577 = vunpack.c.h.b16 %v3288
    %v3578 = vunpack.c.l.b16 %v3289
    %v3579 = vunpack.c.h.b16 %v3289
    %v3580 = vunpack.c.l.b16 %v3290
    %v3581 = vunpack.c.h.b16 %v3290
    %v3582 = vunpack.c.l.b16 %v3291
    %v3583 = vunpack.c.h.b16 %v3291
    %v3584 = vunpack.c.l.b16 %v3292
    %v3585 = vunpack.c.h.b16 %v3292
    %v3586 = vunpack.c.l.b16 %v3293
    %v3587 = vunpack.c.h.b16 %v3293
    %v3588 = vunpack.c.l.b16 %v3294
    %v3589 = vunpack.c.h.b16 %v3294
    %v3590 = vunpack.c.l.b16 %v3295
    %v3591 = vunpack.c.h.b16 %v3295
    %v3592 = vunpack.c.l.b16 %v3296
    %v3593 = vunpack.c.h.b16 %v3296
    %v3594 = vunpack.c.l.b16 %v3297
    %v3595 = vunpack.c.h.b16 %v3297
    %v3596 = vunpack.c.l.b16 %v3298
    %v3597 = vunpack.c.h.b16 %v3298
    %v3598 = vunpack.c.l.b16 %v3299
    %v3599 = vunpack.c.h.b16 %v3299
    %v3600 = vunpack.c.l.b16 %v3300
    %v3601 = vunpack.c.h.b16 %v3300
    %v3602 = vunpack.c.l.b16 %v3301
    %v3603 = vunpack.c.h.b16 %v3301
    %v3604 = vunpack.c.l.b16 %v3302
    %v3605 = vunpack.c.h.b16 %v3302
    %v3606 = vunpack.c.l.b16 %v3303
    %v3607 = vunpack.c.h.b16 %v3303
    %v3608 = vunpack.c.l.b16 %v3304
    %v3609 = vunpack.c.h.b16 %v3304
    %v3610 = vunpack.c.l.b16 %v3305
    %v3611 = vunpack.c.h.b16 %v3305
    %v3612 = vunpack.c.l.b16 %v3306
    %v3613 = vunpack.c.h.b16 %v3306
    %v3614 = vunpack.c.l.b16 %v3307
    %v3615 = vunpack.c.h.b16 %v3307
    %v3616 = vunpack.c.l.b16 %v3308
    %v3617 = vunpack.c.h.b16 %v3308
    %v3618 = vunpack.c.l.b16 %v3309
    %v3619 = vunpack.c.h.b16 %v3309
    %v3620 = vunpack.c.l.b16 %v3310
    %v3621 = vunpack.c.h.b16 %v3310
    %v3622 = vunpack.c.l.b16 %v3311
    %v3623 = vunpack.c.h.b16 %v3311
    %v3624 = vunpack.c.l.b16 %v3312
    %v3625 = vunpack.c.h.b16 %v3312
    %v3626 = vunpack.c.l.b16 %v3313
    %v3627 = vunpack.c.h.b16 %v3313
    %v3628 = vunpack.c.l.b16 %v3314
    %v3629 = vunpack.c.h.b16 %v3314
    %v3630 = vunpack.c.l.b16 %v3315
    %v3631 = vunpack.c.h.b16 %v3315
    %v3632 = vunpack.c.l.b16 %v3316
    %v3633 = vunpack.c.h.b16 %v3316
    %v3634 = vunpack.c.l.b16 %v3317
    %v3635 = vunpack.c.h.b16 %v3317
    %v3636 = vunpack.c.l.b16 %v3318
    %v3637 = vunpack.c.h.b16 %v3318
    %v3638 = vunpack.c.l.b16 %v3319
    %v3639 = vunpack.c.h.b16 %v3319
    %v3640 = vunpack.c.l.b16 %v3320
    %v3641 = vunpack.c.h.b16 %v3320
    %v3642 = vunpack.c.l.b16 %v3321
    %v3643 = vunpack.c.h.b16 %v3321
    %v3644 = vunpack.c.l.b16 %v3322
    %v3645 = vunpack.c.h.b16 %v3322
    %v3646 = vunpack.c.l.b16 %v3323
    %v3647 = vunpack.c.h.b16 %v3323
    %v3648 = vunpack.c.l.b16 %v3324
    %v3649 = vunpack.c.h.b16 %v3324
    %v3650 = vunpack.c.l.b16 %v3325
    %v3651 = vunpack.c.h.b16 %v3325
    %v3652 = vunpack.c.l.b16 %v3326
    %v3653 = vunpack.c.h.b16 %v3326
    %v3654 = vunpack.c.l.b16 %v3327
    %v3655 = vunpack.c.h.b16 %v3327
    %v3656 = vunpack.c.l.b16 %v3328
    %v3657 = vunpack.c.h.b16 %v3328
    %v3658 = vunpack.c.l.b16 %v3329
    %v3659 = vunpack.c.h.b16 %v3329
    %v3660 = vunpack.c.l.b16 %v3330
    %v3661 = vunpack.c.h.b16 %v3330
    %v3662 = vunpack.c.l.b16 %v3331
    %v3663 = vunpack.c.h.b16 %v3331
    %v3664 = vunpack.c.l.b16 %v3332
    %v3665 = vunpack.c.h.b16 %v3332
    %v3666 = vunpack.c.l.b16 %v3333
    %v3667 = vunpack.c.h.b16 %v3333
    %v3668 = vunpack.c.l.b16 %v3334
    %v3669 = vunpack.c.h.b16 %v3334
    %v3670 = vunpack.c.l.b16 %v3335
    %v3671 = vunpack.c.h.b16 %v3335
    %v3672 = vunpack.c.l.b16 %v3336
    %v3673 = vunpack.c.h.b16 %v3336
    %v3674 = vunpack.c.l.b16 %v3337
    %v3675 = vunpack.c.h.b16 %v3337
    %v3676 = vunpack.c.l.b16 %v3338
    %v3677 = vunpack.c.h.b16 %v3338
    %v3678 = vunpack.c.l.b16 %v3339
    %v3679 = vunpack.c.h.b16 %v3339
    %v3680 = vunpack.c.l.b16 %v3340
    %v3681 = vunpack.c.h.b16 %v3340
    %v3682 = vunpack.c.l.b16 %v3341
    %v3683 = vunpack.c.h.b16 %v3341
    %v3684 = vunpack.c.l.b16 %v3342
    %v3685 = vunpack.c.h.b16 %v3342
    %v3686 = vunpack.c.l.b16 %v3343
    %v3687 = vunpack.c.h.b16 %v3343
    %v3688 = vunpack.c.l.b16 %v3344
    %v3689 = vunpack.c.h.b16 %v3344
    %v3690 = vunpack.c.l.b16 %v3345
    %v3691 = vunpack.c.h.b16 %v3345
    %v3692 = vunpack.c.l.b16 %v3346
    %v3693 = vunpack.c.h.b16 %v3346
    %v3694 = vunpack.c.l.b16 %v3347
    %v3695 = vunpack.c.h.b16 %v3347
    %v3696 = vunpack.c.l.b16 %v3348
    %v3697 = vunpack.c.h.b16 %v3348
    %v3698 = vunpack.c.l.b16 %v3349
    %v3699 = vunpack.c.h.b16 %v3349
    %v3700 = vunpack.c.l.b16 %v3350
    %v3701 = vunpack.c.h.b16 %v3350
    %v3702 = vunpack.c.l.b16 %v3351
    %v3703 = vunpack.c.h.b16 %v3351
    %v3704 = vunpack.c.l.b16 %v3352
    %v3705 = vunpack.c.h.b16 %v3352
    %v3706 = vunpack.c.l.b16 %v3353
    %v3707 = vunpack.c.h.b16 %v3353
    %v3708 = vunpack.c.l.b16 %v3354
    %v3709 = vunpack.c.h.b16 %v3354
    %v3710 = vunpack.c.l.b16 %v3355
    %v3711 = vunpack.c.h.b16 %v3355
    %v3712 = vunpack.c.l.b16 %v3356
    %v3713 = vunpack.c.h.b16 %v3356
    %v3714 = vunpack.c.l.b16 %v3357
    %v3715 = vunpack.c.h.b16 %v3357
    %v3716 = vunpack.c.l.b16 %v3358
    %v3717 = vunpack.c.h.b16 %v3358
    %v3718 = vunpack.c.l.b16 %v3359
    %v3719 = vunpack.c.h.b16 %v3359
    %v3720 = vunpack.c.l.b16 %v3360
    %v3721 = vunpack.c.h.b16 %v3360
    %v3722 = vunpack.c.l.b16 %v3361
    %v3723 = vunpack.c.h.b16 %v3361
    %v3724 = vunpack.c.l.b16 %v3362
    %v3725 = vunpack.c.h.b16 %v3362
    %v3726 = vunpack.c.l.b16 %v3363
    %v3727 = vunpack.c.h.b16 %v3363
    %v3728 = vunpack.c.l.b16 %v3364
    %v3729 = vunpack.c.h.b16 %v3364
    %v3730 = vunpack.c.l.b16 %v3365
    %v3731 = vunpack.c.h.b16 %v3365
    %v3732 = vunpack.c.l.b16 %v3366
    %v3733 = vunpack.c.h.b16 %v3366
    %v3734 = vunpack.c.l.b16 %v3367
    %v3735 = vunpack.c.h.b16 %v3367
    %v3736 = vunpack.c.l.b16 %v3368
    %v3737 = vunpack.c.h.b16 %v3368
    %v3738 = vunpack.c.l.b16 %v3369
    %v3739 = vunpack.c.h.b16 %v3369
    %v3740 = vunpack.c.l.b16 %v3370
    %v3741 = vunpack.c.h.b16 %v3370
    %v3742 = vunpack.c.l.b16 %v3371
    %v3743 = vunpack.c.h.b16 %v3371
    %v3744 = vunpack.c.l.b16 %v3372
    %v3745 = vunpack.c.h.b16 %v3372
    %v3746 = vunpack.c.l.b16 %v3373
    %v3747 = vunpack.c.h.b16 %v3373
    %v3748 = vunpack.c.l.b16 %v3374
    %v3749 = vunpack.c.h.b16 %v3374
    %v3750 = vunpack.c.l.b16 %v3375
    %v3751 = vunpack.c.h.b16 %v3375
    %v3752 = vunpack.c.l.b16 %v3376
    %v3753 = vunpack.c.h.b16 %v3376
    %v3754 = vunpack.c.l.b16 %v3377
    %v3755 = vunpack.c.h.b16 %v3377
    %v3756 = vunpack.c.l.b16 %v3378
    %v3757 = vunpack.c.h.b16 %v3378
    %v3758 = vunpack.c.l.b16 %v3379
    %v3759 = vunpack.c.h.b16 %v3379
    %v3760 = vunpack.c.l.b16 %v3380
    %v3761 = vunpack.c.h.b16 %v3380
    %v3762 = vunpack.c.l.b16 %v3381
    %v3763 = vunpack.c.h.b16 %v3381
    %v3764 = vunpack.c.l.b16 %v3382
    %v3765 = vunpack.c.h.b16 %v3382
    %v3766 = vunpack.c.l.b16 %v3383
    %v3767 = vunpack.c.h.b16 %v3383
    %v3768 = vpack.c.b16 %v3516, %v3512
    %v3769 = vpack.c.b16 %v3517, %v3513
    %v3770 = vpack.c.b16 %v3518, %v3514
    %v3771 = vpack.c.b16 %v3519, %v3515
    %v3772 = vpack.c.b16 %v3524, %v3520
    %v3773 = vpack.c.b16 %v3525, %v3521
    %v3774 = vpack.c.b16 %v3526, %v3522
    %v3775 = vpack.c.b16 %v3527, %v3523
    %v3776 = vpack.c.b16 %v3532, %v3528
    %v3777 = vpack.c.b16 %v3533, %v3529
    %v3778 = vpack.c.b16 %v3534, %v3530
    %v3779 = vpack.c.b16 %v3535, %v3531
    %v3780 = vpack.c.b16 %v3540, %v3536
    %v3781 = vpack.c.b16 %v3541, %v3537
    %v3782 = vpack.c.b16 %v3542, %v3538
    %v3783 = vpack.c.b16 %v3543, %v3539
    %v3784 = vpack.c.b16 %v3548, %v3544
    %v3785 = vpack.c.b16 %v3549, %v3545
    %v3786 = vpack.c.b16 %v3550, %v3546
    %v3787 = vpack.c.b16 %v3551, %v3547
    %v3788 = vpack.c.b16 %v3556, %v3552
    %v3789 = vpack.c.b16 %v3557, %v3553
    %v3790 = vpack.c.b16 %v3558, %v3554
    %v3791 = vpack.c.b16 %v3559, %v3555
    %v3792 = vpack.c.b16 %v3564, %v3560
    %v3793 = vpack.c.b16 %v3565, %v3561
    %v3794 = vpack.c.b16 %v3566, %v3562
    %v3795 = vpack.c.b16 %v3567, %v3563
    %v3796 = vpack.c.b16 %v3572, %v3568
    %v3797 = vpack.c.b16 %v3573, %v3569
    %v3798 = vpack.c.b16 %v3574, %v3570
    %v3799 = vpack.c.b16 %v3575, %v3571
    %v3800 = vpack.c.b16 %v3580, %v3576
    %v3801 = vpack.c.b16 %v3581, %v3577
    %v3802 = vpack.c.b16 %v3582, %v3578
    %v3803 = vpack.c.b16 %v3583, %v3579
    %v3804 = vpack.c.b16 %v3588, %v3584
    %v3805 = vpack.c.b16 %v3589, %v3585
    %v3806 = vpack.c.b16 %v3590, %v3586
    %v3807 = vpack.c.b16 %v3591, %v3587
    %v3808 = vpack.c.b16 %v3596, %v3592
    %v3809 = vpack.c.b16 %v3597, %v3593
    %v3810 = vpack.c.b16 %v3598, %v3594
    %v3811 = vpack.c.b16 %v3599, %v3595
    %v3812 = vpack.c.b16 %v3604, %v3600
    %v3813 = vpack.c.b16 %v3605, %v3601
    %v3814 = vpack.c.b16 %v3606, %v3602
    %v3815 = vpack.c.b16 %v3607, %v3603
    %v3816 = vpack.c.b16 %v3612, %v3608
    %v3817 = vpack.c.b16 %v3613, %v3609
    %v3818 = vpack.c.b16 %v3614, %v3610
    %v3819 = vpack.c.b16 %v3615, %v3611
    %v3820 = vpack.c.b16 %v3620, %v3616
    %v3821 = vpack.c.b16 %v3621, %v3617
    %v3822 = vpack.c.b16 %v3622, %v3618
    %v3823 = vpack.c.b16 %v3623, %v3619
    %v3824 = vpack.c.b16 %v3628, %v3624
    %v3825 = vpack.c.b16 %v3629, %v3625
    %v3826 = vpack.c.b16 %v3630, %v3626
    %v3827 = vpack.c.b16 %v3631, %v3627
    %v3828 = vpack.c.b16 %v3636, %v3632
    %v3829 = vpack.c.b16 %v3637, %v3633
    %v3830 = vpack.c.b16 %v3638, %v3634
    %v3831 = vpack.c.b16 %v3639, %v3635
    %v3832 = vpack.c.b16 %v3644, %v3640
    %v3833 = vpack.c.b16 %v3645, %v3641
    %v3834 = vpack.c.b16 %v3646, %v3642
    %v3835 = vpack.c.b16 %v3647, %v3643
    %v3836 = vpack.c.b16 %v3652, %v3648
    %v3837 = vpack.c.b16 %v3653, %v3649
    %v3838 = vpack.c.b16 %v3654, %v3650
    %v3839 = vpack.c.b16 %v3655, %v3651
    %v3840 = vpack.c.b16 %v3660, %v3656
    %v3841 = vpack.c.b16 %v3661, %v3657
    %v3842 = vpack.c.b16 %v3662, %v3658
    %v3843 = vpack.c.b16 %v3663, %v3659
    %v3844 = vpack.c.b16 %v3668, %v3664
    %v3845 = vpack.c.b16 %v3669, %v3665
    %v3846 = vpack.c.b16 %v3670, %v3666
    %v3847 = vpack.c.b16 %v3671, %v3667
    %v3848 = vpack.c.b16 %v3676, %v3672
    %v3849 = vpack.c.b16 %v3677, %v3673
    %v3850 = vpack.c.b16 %v3678, %v3674
    %v3851 = vpack.c.b16 %v3679, %v3675
    %v3852 = vpack.c.b16 %v3684, %v3680
    %v3853 = vpack.c.b16 %v3685, %v3681
    %v3854 = vpack.c.b16 %v3686, %v3682
    %v3855 = vpack.c.b16 %v3687, %v3683
    %v3856 = vpack.c.b16 %v3692, %v3688
    %v3857 = vpack.c.b16 %v3693, %v3689
    %v3858 = vpack.c.b16 %v3694, %v3690
    %v3859 = vpack.c.b16 %v3695, %v3691
    %v3860 = vpack.c.b16 %v3700, %v3696
    %v3861 = vpack.c.b16 %v3701, %v3697
    %v3862 = vpack.c.b16 %v3702, %v3698
    %v3863 = vpack.c.b16 %v3703, %v3699
    %v3864 = vpack.c.b16 %v3708, %v3704
    %v3865 = vpack.c.b16 %v3709, %v3705
    %v3866 = vpack.c.b16 %v3710, %v3706
    %v3867 = vpack.c.b16 %v3711, %v3707
    %v3868 = vpack.c.b16 %v3716, %v3712
    %v3869 = vpack.c.b16 %v3717, %v3713
    %v3870 = vpack.c.b16 %v3718, %v3714
    %v3871 = vpack.c.b16 %v3719, %v3715
    %v3872 = vpack.c.b16 %v3724, %v3720
    %v3873 = vpack.c.b16 %v3725, %v3721
    %v3874 = vpack.c.b16 %v3726, %v3722
    %v3875 = vpack.c.b16 %v3727, %v3723
    %v3876 = vpack.c.b16 %v3732, %v3728
    %v3877 = vpack.c.b16 %v3733, %v3729
    %v3878 = vpack.c.b16 %v3734, %v3730
    %v3879 = vpack.c.b16 %v3735, %v3731
    %v3880 = vpack.c.b16 %v3740, %v3736
    %v3881 = vpack.c.b16 %v3741, %v3737
    %v3882 = vpack.c.b16 %v3742, %v3738
    %v3883 = vpack.c.b16 %v3743, %v3739
    %v3884 = vpack.c.b16 %v3748, %v3744
    %v3885 = vpack.c.b16 %v3749, %v3745
    %v3886 = vpack.c.b16 %v3750, %v3746
    %v3887 = vpack.c.b16 %v3751, %v3747
    %v3888 = vpack.c.b16 %v3756, %v3752
    %v3889 = vpack.c.b16 %v3757, %v3753
    %v3890 = vpack.c.b16 %v3758, %v3754
    %v3891 = vpack.c.b16 %v3759, %v3755
    %v3892 = vpack.c.b16 %v3764, %v3760
    %v3893 = vpack.c.b16 %v3765, %v3761
    %v3894 = vpack.c.b16 %v3766, %v3762
    %v3895 = vpack.c.b16 %v3767, %v3763
    %4024 = vmatprep.subr.bf16.mxu0 %v3769
    %4025 = vmatpush1.bf16.msra.mxu0 %v3768
    %4026 = vmatprep.subr.bf16.mxu0 %v3773
    %4027 = vmatpush1.bf16.msra.mxu0 %v3772
    %4028 = vmatprep.subr.bf16.mxu0 %v3777
    %4029 = vmatpush1.bf16.msra.mxu0 %v3776
    %4030 = vmatprep.subr.bf16.mxu0 %v3781
    %4031 = vmatpush1.bf16.msra.mxu0 %v3780
    %4032 = vmatprep.subr.bf16.mxu0 %v3785
    %4033 = vmatpush1.bf16.msra.mxu0 %v3784
    %4034 = vmatprep.subr.bf16.mxu0 %v3789
    %4035 = vmatpush1.bf16.msra.mxu0 %v3788
    %4036 = vmatprep.subr.bf16.mxu0 %v3793
    %4037 = vmatpush1.bf16.msra.mxu0 %v3792
    %4038 = vmatprep.subr.bf16.mxu0 %v3797
    %4039 = vmatpush1.bf16.msra.mxu0 %v3796
    %4040 = vmatprep.subr.bf16.mxu0 %v3801
    %4041 = vmatpush1.bf16.msra.mxu0 %v3800
    %4042 = vmatprep.subr.bf16.mxu0 %v3805
    %4043 = vmatpush1.bf16.msra.mxu0 %v3804
    %4044 = vmatprep.subr.bf16.mxu0 %v3809
    %4045 = vmatpush1.bf16.msra.mxu0 %v3808
    %4046 = vmatprep.subr.bf16.mxu0 %v3813
    %4047 = vmatpush1.bf16.msra.mxu0 %v3812
    %4048 = vmatprep.subr.bf16.mxu0 %v3817
    %4049 = vmatpush1.bf16.msra.mxu0 %v3816
    %4050 = vmatprep.subr.bf16.mxu0 %v3821
    %4051 = vmatpush1.bf16.msra.mxu0 %v3820
    %4052 = vmatprep.subr.bf16.mxu0 %v3825
    %4053 = vmatpush1.bf16.msra.mxu0 %v3824
    %4054 = vmatprep.subr.bf16.mxu0 %v3829
    %4055 = vmatpush1.bf16.msra.mxu0 %v3828
    %4056 = vmatprep.mubr.bf16.mxu0 %v3252
    %4057 = vmatmul.mubr.bf16.gmra.mrb[0].mxu0 %v3251
    %v4058 = vpop.f32.mrb[0].mxu0
    %v4059 = vadd.f32 0.0, %v4058
    %v4060 = vpop.f32.mrb[0].mxu0
    %v4061 = vadd.f32 0.0, %v4060
    %v4062 = vpop.f32.mrb[0].mxu0
    %v4063 = vadd.f32 0.0, %v4062
    %v4064 = vpop.f32.mrb[0].mxu0
    %v4065 = vadd.f32 0.0, %v4064
    %4066 = vdwg.mxu0
    %4067 = vmatprep.subr.bf16.mxu0 %v3833
    %4068 = vmatpush1.bf16.msra.mxu0 %v3832
    %4069 = vmatprep.subr.bf16.mxu0 %v3837
    %4070 = vmatpush1.bf16.msra.mxu0 %v3836
    %4071 = vmatprep.subr.bf16.mxu0 %v3841
    %4072 = vmatpush1.bf16.msra.mxu0 %v3840
    %4073 = vmatprep.subr.bf16.mxu0 %v3845
    %4074 = vmatpush1.bf16.msra.mxu0 %v3844
    %4075 = vmatprep.subr.bf16.mxu0 %v3849
    %4076 = vmatpush1.bf16.msra.mxu0 %v3848
    %4077 = vmatprep.subr.bf16.mxu0 %v3853
    %4078 = vmatpush1.bf16.msra.mxu0 %v3852
    %4079 = vmatprep.subr.bf16.mxu0 %v3857
    %4080 = vmatpush1.bf16.msra.mxu0 %v3856
    %4081 = vmatprep.subr.bf16.mxu0 %v3861
    %4082 = vmatpush1.bf16.msra.mxu0 %v3860
    %4083 = vmatprep.subr.bf16.mxu0 %v3865
    %4084 = vmatpush1.bf16.msra.mxu0 %v3864
    %4085 = vmatprep.subr.bf16.mxu0 %v3869
    %4086 = vmatpush1.bf16.msra.mxu0 %v3868
    %4087 = vmatprep.subr.bf16.mxu0 %v3873
    %4088 = vmatpush1.bf16.msra.mxu0 %v3872
    %4089 = vmatprep.subr.bf16.mxu0 %v3877
    %4090 = vmatpush1.bf16.msra.mxu0 %v3876
    %4091 = vmatprep.subr.bf16.mxu0 %v3881
    %4092 = vmatpush1.bf16.msra.mxu0 %v3880
    %4093 = vmatprep.subr.bf16.mxu0 %v3885
    %4094 = vmatpush1.bf16.msra.mxu0 %v3884
    %4095 = vmatprep.subr.bf16.mxu0 %v3889
    %4096 = vmatpush1.bf16.msra.mxu0 %v3888
    %4097 = vmatprep.subr.bf16.mxu0 %v3893
    %4098 = vmatpush1.bf16.msra.mxu0 %v3892
    %4099 = vmatprep.mubr.bf16.mxu0 %v3254
    %4100 = vmatmul.mubr.bf16.gmra.mrb[0].mxu0 %v3253
    %v4101 = vpop.f32.mrb[0].mxu0
    %v4102 = vadd.f32 %v4059, %v4101
    %v4103 = vpop.f32.mrb[0].mxu0
    %v4104 = vadd.f32 %v4061, %v4103
    %v4105 = vpop.f32.mrb[0].mxu0
    %v4106 = vadd.f32 %v4063, %v4105
    %v4107 = vpop.f32.mrb[0].mxu0
    %v4108 = vadd.f32 %v4065, %v4107
    %4109 = vdwg.mxu0
    %4110 = vmatprep.subr.bf16.mxu0 %v3771
    %4111 = vmatpush1.bf16.msra.mxu0 %v3770
    %4112 = vmatprep.subr.bf16.mxu0 %v3775
    %4113 = vmatpush1.bf16.msra.mxu0 %v3774
    %4114 = vmatprep.subr.bf16.mxu0 %v3779
    %4115 = vmatpush1.bf16.msra.mxu0 %v3778
    %4116 = vmatprep.subr.bf16.mxu0 %v3783
    %4117 = vmatpush1.bf16.msra.mxu0 %v3782
    %4118 = vmatprep.subr.bf16.mxu0 %v3787
    %4119 = vmatpush1.bf16.msra.mxu0 %v3786
    %4120 = vmatprep.subr.bf16.mxu0 %v3791
    %4121 = vmatpush1.bf16.msra.mxu0 %v3790
    %4122 = vmatprep.subr.bf16.mxu0 %v3795
    %4123 = vmatpush1.bf16.msra.mxu0 %v3794
    %4124 = vmatprep.subr.bf16.mxu0 %v3799
    %4125 = vmatpush1.bf16.msra.mxu0 %v3798
    %4126 = vmatprep.subr.bf16.mxu0 %v3803
    %4127 = vmatpush1.bf16.msra.mxu0 %v3802
    %4128 = vmatprep.subr.bf16.mxu0 %v3807
    %4129 = vmatpush1.bf16.msra.mxu0 %v3806
    %4130 = vmatprep.subr.bf16.mxu0 %v3811
    %4131 = vmatpush1.bf16.msra.mxu0 %v3810
    %4132 = vmatprep.subr.bf16.mxu0 %v3815
    %4133 = vmatpush1.bf16.msra.mxu0 %v3814
    %4134 = vmatprep.subr.bf16.mxu0 %v3819
    %4135 = vmatpush1.bf16.msra.mxu0 %v3818
    %4136 = vmatprep.subr.bf16.mxu0 %v3823
    %4137 = vmatpush1.bf16.msra.mxu0 %v3822
    %4138 = vmatprep.subr.bf16.mxu0 %v3827
    %4139 = vmatpush1.bf16.msra.mxu0 %v3826
    %4140 = vmatprep.subr.bf16.mxu0 %v3831
    %4141 = vmatpush1.bf16.msra.mxu0 %v3830
    %4142 = vmatprep.mubr.bf16.mxu0 %v3252
    %4143 = vmatmul.mubr.bf16.gmra.mrb[0].mxu0 %v3251
    %v4144 = vpop.f32.mrb[0].mxu0
    %v4145 = vadd.f32 0.0, %v4144
    %v4146 = vpop.f32.mrb[0].mxu0
    %v4147 = vadd.f32 0.0, %v4146
    %v4148 = vpop.f32.mrb[0].mxu0
    %v4149 = vadd.f32 0.0, %v4148
    %v4150 = vpop.f32.mrb[0].mxu0
    %v4151 = vadd.f32 0.0, %v4150
    %4152 = vdwg.mxu0
    %4153 = vmatprep.subr.bf16.mxu0 %v3835
    %4154 = vmatpush1.bf16.msra.mxu0 %v3834
    %4155 = vmatprep.subr.bf16.mxu0 %v3839
    %4156 = vmatpush1.bf16.msra.mxu0 %v3838
    %4157 = vmatprep.subr.bf16.mxu0 %v3843
    %4158 = vmatpush1.bf16.msra.mxu0 %v3842
    %4159 = vmatprep.subr.bf16.mxu0 %v3847
    %4160 = vmatpush1.bf16.msra.mxu0 %v3846
    %4161 = vmatprep.subr.bf16.mxu0 %v3851
    %4162 = vmatpush1.bf16.msra.mxu0 %v3850
    %4163 = vmatprep.subr.bf16.mxu0 %v3855
    %4164 = vmatpush1.bf16.msra.mxu0 %v3854
    %4165 = vmatprep.subr.bf16.mxu0 %v3859
    %4166 = vmatpush1.bf16.msra.mxu0 %v3858
    %4167 = vmatprep.subr.bf16.mxu0 %v3863
    %4168 = vmatpush1.bf16.msra.mxu0 %v3862
    %4169 = vmatprep.subr.bf16.mxu0 %v3867
    %4170 = vmatpush1.bf16.msra.mxu0 %v3866
    %4171 = vmatprep.subr.bf16.mxu0 %v3871
    %4172 = vmatpush1.bf16.msra.mxu0 %v3870
    %4173 = vmatprep.subr.bf16.mxu0 %v3875
    %4174 = vmatpush1.bf16.msra.mxu0 %v3874
    %4175 = vmatprep.subr.bf16.mxu0 %v3879
    %4176 = vmatpush1.bf16.msra.mxu0 %v3878
    %4177 = vmatprep.subr.bf16.mxu0 %v3883
    %4178 = vmatpush1.bf16.msra.mxu0 %v3882
    %4179 = vmatprep.subr.bf16.mxu0 %v3887
    %4180 = vmatpush1.bf16.msra.mxu0 %v3886
    %4181 = vmatprep.subr.bf16.mxu0 %v3891
    %4182 = vmatpush1.bf16.msra.mxu0 %v3890
    %4183 = vmatprep.subr.bf16.mxu0 %v3895
    %4184 = vmatpush1.bf16.msra.mxu0 %v3894
    %4185 = vmatprep.mubr.bf16.mxu0 %v3254
    %4186 = vmatmul.mubr.bf16.gmra.mrb[0].mxu0 %v3253
    %v4187 = vpop.f32.mrb[0].mxu0
    %v4188 = vadd.f32 %v4145, %v4187
    %v4189 = vpop.f32.mrb[0].mxu0
    %v4190 = vadd.f32 %v4147, %v4189
    %v4191 = vpop.f32.mrb[0].mxu0
    %v4192 = vadd.f32 %v4149, %v4191
    %v4193 = vpop.f32.mrb[0].mxu0
    %v4194 = vadd.f32 %v4151, %v4193
    %4195 = vdwg.mxu0
    %v4196 = vadd.f32 %v3060, %v4102
    %v4197 = vadd.f32 %v3062, %v4104
    %v4198 = vadd.f32 %v3146, %v4188
    %v4199 = vadd.f32 %v3148, %v4190
    %v4200 = vadd.f32 %v3064, %v4106
    %v4201 = vadd.f32 %v3066, %v4108
    %v4202 = vadd.f32 %v3150, %v4192
    %v4203 = vadd.f32 %v3152, %v4194
    %v4204 = vld [vmem:[#allocation10] sm:$0xf]
    %v4206 = vlaneseq
    %v4207 = vshrl.u32 %v4206, 7
    %v4208 = vsub.s32 0, %v4207
    %v4209 = vrot.slane %v4204, %v4208
    %v4210 = vlaneseq
    %v4211 = vshrl.u32 %v4210, 7
    %v4212 = vsub.s32 1, %v4211
    %v4213 = vrot.slane %v4204, %v4212
    %v4214 = vlaneseq
    %v4215 = vshrl.u32 %v4214, 7
    %v4216 = vsub.s32 2, %v4215
    %v4217 = vrot.slane %v4204, %v4216
    %v4218 = vlaneseq
    %v4219 = vshrl.u32 %v4218, 7
    %v4220 = vsub.s32 3, %v4219
    %v4221 = vrot.slane %v4204, %v4220
    %v4226 = vadd.f32 %v4196, %v4209
    %v4227 = vadd.f32 %v4197, %v4213
    %v4228 = vadd.f32 %v4198, %v4217
    %v4229 = vadd.f32 %v4199, %v4221
    %v4230 = vadd.f32 %v4200, %v4209
    %v4231 = vadd.f32 %v4201, %v4213
    %v4232 = vadd.f32 %v4202, %v4217
    %v4233 = vadd.f32 %v4203, %v4221
    %vm4234 = vcmp.gt.f32.partialorder %v4226, 0.0
    %vm4235 = vcmp.gt.f32.partialorder %v4227, 0.0
    %vm4236 = vcmp.gt.f32.partialorder %v4228, 0.0
    %vm4237 = vcmp.gt.f32.partialorder %v4229, 0.0
    %vm4238 = vcmp.gt.f32.partialorder %v4230, 0.0
    %vm4239 = vcmp.gt.f32.partialorder %v4231, 0.0
    %vm4240 = vcmp.gt.f32.partialorder %v4232, 0.0
    %vm4241 = vcmp.gt.f32.partialorder %v4233, 0.0
    %v4242 = vmul.f32 %v4226, 0.01
    %v4243 = vmul.f32 %v4227, 0.01
    %v4244 = vmul.f32 %v4228, 0.01
    %v4245 = vmul.f32 %v4229, 0.01
    %v4246 = vmul.f32 %v4230, 0.01
    %v4247 = vmul.f32 %v4231, 0.01
    %v4248 = vmul.f32 %v4232, 0.01
    %v4249 = vmul.f32 %v4233, 0.01
    %v4250 = vsel %vm4234, %v4226, %v4242
    %v4251 = vsel %vm4235, %v4227, %v4243
    %v4252 = vsel %vm4236, %v4228, %v4244
    %v4253 = vsel %vm4237, %v4229, %v4245
    %v4254 = vsel %vm4238, %v4230, %v4246
    %v4255 = vsel %vm4239, %v4231, %v4247
    %v4256 = vsel %vm4240, %v4232, %v4248
    %v4257 = vsel %vm4241, %v4233, %v4249
    %v4258 = vpack.c.bf16 %v4254, %v4250
    %v4259 = vpack.c.bf16 %v4255, %v4251
    %v4260 = vpack.c.bf16 %v4256, %v4252
    %v4261 = vpack.c.bf16 %v4257, %v4253
    %v4262 = vld [vmem:[#allocation12] sm:$0xf]
    %vm4263 = vcmask 130048
    %v4265 = vsel %vm4263, %v4262, 0
    %4267 = vmatprep.subr.bf16.mxu0 %v4259
    %4268 = vmatpush1.bf16.msra.mxu0 %v4258
    %4269 = vmatprep.subr.bf16.mxu0 0
    %4270 = vmatpush1.bf16.msra.mxu0 0
    %4271 = vmatprep.subr.bf16.mxu0 0
    %4272 = vmatpush1.bf16.msra.mxu0 0
    %4273 = vmatprep.subr.bf16.mxu0 0
    %4274 = vmatpush1.bf16.msra.mxu0 0
    %4275 = vmatprep.subr.bf16.mxu0 0
    %4276 = vmatpush1.bf16.msra.mxu0 0
    %4277 = vmatprep.subr.bf16.mxu0 0
    %4278 = vmatpush1.bf16.msra.mxu0 0
    %4279 = vmatprep.subr.bf16.mxu0 0
    %4280 = vmatpush1.bf16.msra.mxu0 0
    %4281 = vmatprep.subr.bf16.mxu0 0
    %4282 = vmatpush1.bf16.msra.mxu0 0
    %4283 = vmatprep.subr.bf16.mxu0 0
    %4284 = vmatpush1.bf16.msra.mxu0 0
    %4285 = vmatprep.subr.bf16.mxu0 0
    %4286 = vmatpush1.bf16.msra.mxu0 0
    %4287 = vmatprep.subr.bf16.mxu0 0
    %4288 = vmatpush1.bf16.msra.mxu0 0
    %4289 = vmatprep.subr.bf16.mxu0 0
    %4290 = vmatpush1.bf16.msra.mxu0 0
    %4291 = vmatprep.subr.bf16.mxu0 0
    %4292 = vmatpush1.bf16.msra.mxu0 0
    %4293 = vmatprep.subr.bf16.mxu0 0
    %4294 = vmatpush1.bf16.msra.mxu0 0
    %4295 = vmatprep.subr.bf16.mxu0 0
    %4296 = vmatpush1.bf16.msra.mxu0 0
    %4297 = vmatprep.subr.bf16.mxu0 0
    %4298 = vmatpush1.bf16.msra.mxu0 0
    %4299 = vmatprep.mubr.bf16.mxu0 0
    %4300 = vmatmul.mubr.bf16.gmra.mrb[0].mxu0 %v4265
    %v4301 = vpop.f32.mrb[0].mxu0
    %v4302 = vadd.f32 0.0, %v4301
    %v4303 = vpop.f32.mrb[0].mxu0
    %v4304 = vadd.f32 0.0, %v4303
    %v4305 = vpop.f32.mrb[0].mxu0
    %v4306 = vpop.f32.mrb[0].mxu0
    %4307 = vdwg.mxu0
    %4308 = vmatprep.subr.bf16.mxu0 %v4261
    %4309 = vmatpush1.bf16.msra.mxu0 %v4260
    %4310 = vmatprep.subr.bf16.mxu0 0
    %4311 = vmatpush1.bf16.msra.mxu0 0
    %4312 = vmatprep.subr.bf16.mxu0 0
    %4313 = vmatpush1.bf16.msra.mxu0 0
    %4314 = vmatprep.subr.bf16.mxu0 0
    %4315 = vmatpush1.bf16.msra.mxu0 0
    %4316 = vmatprep.subr.bf16.mxu0 0
    %4317 = vmatpush1.bf16.msra.mxu0 0
    %4318 = vmatprep.subr.bf16.mxu0 0
    %4319 = vmatpush1.bf16.msra.mxu0 0
    %4320 = vmatprep.subr.bf16.mxu0 0
    %4321 = vmatpush1.bf16.msra.mxu0 0
    %4322 = vmatprep.subr.bf16.mxu0 0
    %4323 = vmatpush1.bf16.msra.mxu0 0
    %4324 = vmatprep.subr.bf16.mxu0 0
    %4325 = vmatpush1.bf16.msra.mxu0 0
    %4326 = vmatprep.subr.bf16.mxu0 0
    %4327 = vmatpush1.bf16.msra.mxu0 0
    %4328 = vmatprep.subr.bf16.mxu0 0
    %4329 = vmatpush1.bf16.msra.mxu0 0
    %4330 = vmatprep.subr.bf16.mxu0 0
    %4331 = vmatpush1.bf16.msra.mxu0 0
    %4332 = vmatprep.subr.bf16.mxu0 0
    %4333 = vmatpush1.bf16.msra.mxu0 0
    %4334 = vmatprep.subr.bf16.mxu0 0
    %4335 = vmatpush1.bf16.msra.mxu0 0
    %4336 = vmatprep.subr.bf16.mxu0 0
    %4337 = vmatpush1.bf16.msra.mxu0 0
    %4338 = vmatprep.subr.bf16.mxu0 0
    %4339 = vmatpush1.bf16.msra.mxu0 0
    %4340 = vmatprep.mubr.bf16.mxu0 0
    %4341 = vmatmul.mubr.bf16.gmra.mrb[0].mxu0 %v4265
    %v4342 = vpop.f32.mrb[0].mxu0
    %v4343 = vadd.f32 0.0, %v4342
    %v4344 = vpop.f32.mrb[0].mxu0
    %v4345 = vadd.f32 0.0, %v4344
    %v4346 = vpop.f32.mrb[0].mxu0
    %v4347 = vpop.f32.mrb[0].mxu0
    %4348 = vdwg.mxu0
    %v4349 = vpack.c.bf16 %v4302, %v4302
    %v4350 = vpack.c.bf16 %v4304, %v4304
    %v4351 = vpack.c.bf16 %v4343, %v4343
    %v4352 = vpack.c.bf16 %v4345, %v4345
    %v4353 = vld [vmem:[#allocation13] sm:$0xff]
    %v4354 = vld [vmem:[#allocation13 + $0x8] sm:$0xff]
    %v4355 = vld [vmem:[#allocation13 + $0x10] sm:$0xff]
    %v4356 = vld [vmem:[#allocation13 + $0x18] sm:$0xff]
    %v4357 = vld [vmem:[#allocation13 + $0x20] sm:$0xff]
    %v4358 = vld [vmem:[#allocation13 + $0x28] sm:$0xff]
    %v4359 = vld [vmem:[#allocation13 + $0x30] sm:$0xff]
    %v4360 = vld [vmem:[#allocation13 + $0x38] sm:$0xff]
    %v4361 = vld [vmem:[#allocation13 + $0x40] sm:$0xff]
    %v4362 = vld [vmem:[#allocation13 + $0x48] sm:$0xff]
    %v4363 = vld [vmem:[#allocation13 + $0x50] sm:$0xff]
    %v4364 = vld [vmem:[#allocation13 + $0x58] sm:$0xff]
    %v4365 = vld [vmem:[#allocation13 + $0x60] sm:$0xff]
    %v4366 = vld [vmem:[#allocation13 + $0x68] sm:$0xff]
    %v4367 = vld [vmem:[#allocation13 + $0x70] sm:$0xff]
    %v4368 = vld [vmem:[#allocation13 + $0x78] sm:$0xff]
    %v4369 = vld [vmem:[#allocation13 + $0x80] sm:$0xff]
    %v4370 = vld [vmem:[#allocation13 + $0x88] sm:$0xff]
    %v4371 = vld [vmem:[#allocation13 + $0x90] sm:$0xff]
    %v4372 = vld [vmem:[#allocation13 + $0x98] sm:$0xff]
    %v4373 = vld [vmem:[#allocation13 + $0xa0] sm:$0xff]
    %v4374 = vld [vmem:[#allocation13 + $0xa8] sm:$0xff]
    %v4375 = vld [vmem:[#allocation13 + $0xb0] sm:$0xff]
    %v4376 = vld [vmem:[#allocation13 + $0xb8] sm:$0xff]
    %v4377 = vld [vmem:[#allocation13 + $0xc0] sm:$0xff]
    %v4378 = vld [vmem:[#allocation13 + $0xc8] sm:$0xff]
    %v4379 = vld [vmem:[#allocation13 + $0xd0] sm:$0xff]
    %v4380 = vld [vmem:[#allocation13 + $0xd8] sm:$0xff]
    %v4381 = vld [vmem:[#allocation13 + $0xe0] sm:$0xff]
    %v4382 = vld [vmem:[#allocation13 + $0xe8] sm:$0xff]
    %v4383 = vld [vmem:[#allocation13 + $0xf0] sm:$0xff]
    %v4384 = vld [vmem:[#allocation13 + $0xf8] sm:$0xff]
    %v4385 = vld [vmem:[#allocation13 + $0x100] sm:$0xff]
    %v4386 = vld [vmem:[#allocation13 + $0x108] sm:$0xff]
    %v4387 = vld [vmem:[#allocation13 + $0x110] sm:$0xff]
    %v4388 = vld [vmem:[#allocation13 + $0x118] sm:$0xff]
    %v4389 = vld [vmem:[#allocation13 + $0x120] sm:$0xff]
    %v4390 = vld [vmem:[#allocation13 + $0x128] sm:$0xff]
    %v4391 = vld [vmem:[#allocation13 + $0x130] sm:$0xff]
    %v4392 = vld [vmem:[#allocation13 + $0x138] sm:$0xff]
    %v4393 = vld [vmem:[#allocation13 + $0x140] sm:$0xff]
    %v4394 = vld [vmem:[#allocation13 + $0x148] sm:$0xff]
    %v4395 = vld [vmem:[#allocation13 + $0x150] sm:$0xff]
    %v4396 = vld [vmem:[#allocation13 + $0x158] sm:$0xff]
    %v4397 = vld [vmem:[#allocation13 + $0x160] sm:$0xff]
    %v4398 = vld [vmem:[#allocation13 + $0x168] sm:$0xff]
    %v4399 = vld [vmem:[#allocation13 + $0x170] sm:$0xff]
    %v4400 = vld [vmem:[#allocation13 + $0x178] sm:$0xff]
    %v4401 = vld [vmem:[#allocation13 + $0x180] sm:$0xff]
    %v4402 = vld [vmem:[#allocation13 + $0x188] sm:$0xff]
    %v4403 = vld [vmem:[#allocation13 + $0x190] sm:$0xff]
    %v4404 = vld [vmem:[#allocation13 + $0x198] sm:$0xff]
    %v4405 = vld [vmem:[#allocation13 + $0x1a0] sm:$0xff]
    %v4406 = vld [vmem:[#allocation13 + $0x1a8] sm:$0xff]
    %v4407 = vld [vmem:[#allocation13 + $0x1b0] sm:$0xff]
    %v4408 = vld [vmem:[#allocation13 + $0x1b8] sm:$0xff]
    %v4409 = vld [vmem:[#allocation13 + $0x1c0] sm:$0xff]
    %v4410 = vld [vmem:[#allocation13 + $0x1c8] sm:$0xff]
    %v4411 = vld [vmem:[#allocation13 + $0x1d0] sm:$0xff]
    %v4412 = vld [vmem:[#allocation13 + $0x1d8] sm:$0xff]
    %v4413 = vld [vmem:[#allocation13 + $0x1e0] sm:$0xff]
    %v4414 = vld [vmem:[#allocation13 + $0x1e8] sm:$0xff]
    %v4415 = vld [vmem:[#allocation13 + $0x1f0] sm:$0xff]
    %v4416 = vld [vmem:[#allocation13 + $0x1f8] sm:$0xff]
    %s4417 = scalar_lea.vmem [#allocation12], 4
    %v4418 = vld [vmem:[%s4417] sm:$0xf]
    %v4420 = vsel %vm4263, %v4418, 0
    %4422 = vmatprep.subr.bf16.mxu0 %v4259
    %4423 = vmatpush1.bf16.msra.mxu0 %v4258
    %4424 = vmatprep.subr.bf16.mxu0 0
    %4425 = vmatpush1.bf16.msra.mxu0 0
    %4426 = vmatprep.subr.bf16.mxu0 0
    %4427 = vmatpush1.bf16.msra.mxu0 0
    %4428 = vmatprep.subr.bf16.mxu0 0
    %4429 = vmatpush1.bf16.msra.mxu0 0
    %4430 = vmatprep.subr.bf16.mxu0 0
    %4431 = vmatpush1.bf16.msra.mxu0 0
    %4432 = vmatprep.subr.bf16.mxu0 0
    %4433 = vmatpush1.bf16.msra.mxu0 0
    %4434 = vmatprep.subr.bf16.mxu0 0
    %4435 = vmatpush1.bf16.msra.mxu0 0
    %4436 = vmatprep.subr.bf16.mxu0 0
    %4437 = vmatpush1.bf16.msra.mxu0 0
    %4438 = vmatprep.subr.bf16.mxu0 0
    %4439 = vmatpush1.bf16.msra.mxu0 0
    %4440 = vmatprep.subr.bf16.mxu0 0
    %4441 = vmatpush1.bf16.msra.mxu0 0
    %4442 = vmatprep.subr.bf16.mxu0 0
    %4443 = vmatpush1.bf16.msra.mxu0 0
    %4444 = vmatprep.subr.bf16.mxu0 0
    %4445 = vmatpush1.bf16.msra.mxu0 0
    %4446 = vmatprep.subr.bf16.mxu0 0
    %4447 = vmatpush1.bf16.msra.mxu0 0
    %4448 = vmatprep.subr.bf16.mxu0 0
    %4449 = vmatpush1.bf16.msra.mxu0 0
    %4450 = vmatprep.subr.bf16.mxu0 0
    %4451 = vmatpush1.bf16.msra.mxu0 0
    %4452 = vmatprep.subr.bf16.mxu0 0
    %4453 = vmatpush1.bf16.msra.mxu0 0
    %4454 = vmatprep.mubr.bf16.mxu0 0
    %4455 = vmatmul.mubr.bf16.gmra.mrb[0].mxu0 %v4420
    %v4456 = vpop.f32.mrb[0].mxu0
    %v4457 = vadd.f32 0.0, %v4456
    %v4458 = vpop.f32.mrb[0].mxu0
    %v4459 = vadd.f32 0.0, %v4458
    %v4460 = vpop.f32.mrb[0].mxu0
    %v4461 = vpop.f32.mrb[0].mxu0
    %4462 = vdwg.mxu0
    %4463 = vmatprep.subr.bf16.mxu0 %v4261
    %4464 = vmatpush1.bf16.msra.mxu0 %v4260
    %4465 = vmatprep.subr.bf16.mxu0 0
    %4466 = vmatpush1.bf16.msra.mxu0 0
    %4467 = vmatprep.subr.bf16.mxu0 0
    %4468 = vmatpush1.bf16.msra.mxu0 0
    %4469 = vmatprep.subr.bf16.mxu0 0
    %4470 = vmatpush1.bf16.msra.mxu0 0
    %4471 = vmatprep.subr.bf16.mxu0 0
    %4472 = vmatpush1.bf16.msra.mxu0 0
    %4473 = vmatprep.subr.bf16.mxu0 0
    %4474 = vmatpush1.bf16.msra.mxu0 0
    %4475 = vmatprep.subr.bf16.mxu0 0
    %4476 = vmatpush1.bf16.msra.mxu0 0
    %4477 = vmatprep.subr.bf16.mxu0 0
    %4478 = vmatpush1.bf16.msra.mxu0 0
    %4479 = vmatprep.subr.bf16.mxu0 0
    %4480 = vmatpush1.bf16.msra.mxu0 0
    %4481 = vmatprep.subr.bf16.mxu0 0
    %4482 = vmatpush1.bf16.msra.mxu0 0
    %4483 = vmatprep.subr.bf16.mxu0 0
    %4484 = vmatpush1.bf16.msra.mxu0 0
    %4485 = vmatprep.subr.bf16.mxu0 0
    %4486 = vmatpush1.bf16.msra.mxu0 0
    %4487 = vmatprep.subr.bf16.mxu0 0
    %4488 = vmatpush1.bf16.msra.mxu0 0
    %4489 = vmatprep.subr.bf16.mxu0 0
    %4490 = vmatpush1.bf16.msra.mxu0 0
    %4491 = vmatprep.subr.bf16.mxu0 0
    %4492 = vmatpush1.bf16.msra.mxu0 0
    %4493 = vmatprep.subr.bf16.mxu0 0
    %4494 = vmatpush1.bf16.msra.mxu0 0
    %4495 = vmatprep.mubr.bf16.mxu0 0
    %4496 = vmatmul.mubr.bf16.gmra.mrb[0].mxu0 %v4420
    %v4497 = vpop.f32.mrb[0].mxu0
    %v4498 = vadd.f32 0.0, %v4497
    %v4499 = vpop.f32.mrb[0].mxu0
    %v4500 = vadd.f32 0.0, %v4499
    %v4501 = vpop.f32.mrb[0].mxu0
    %v4502 = vpop.f32.mrb[0].mxu0
    %4503 = vdwg.mxu0
    %v4504 = vpack.c.bf16 %v4457, %v4457
    %v4505 = vpack.c.bf16 %v4459, %v4459
    %v4506 = vpack.c.bf16 %v4498, %v4498
    %v4507 = vpack.c.bf16 %v4500, %v4500
    %s4508 = scalar_lea.vmem [#allocation13], 512
    %v4509 = vld [vmem:[%s4508] sm:$0xff]
    %v4510 = vld [vmem:[%s4508 + $0x8] sm:$0xff]
    %v4511 = vld [vmem:[%s4508 + $0x10] sm:$0xff]
    %v4512 = vld [vmem:[%s4508 + $0x18] sm:$0xff]
    %v4513 = vld [vmem:[%s4508 + $0x20] sm:$0xff]
    %v4514 = vld [vmem:[%s4508 + $0x28] sm:$0xff]
    %v4515 = vld [vmem:[%s4508 + $0x30] sm:$0xff]
    %v4516 = vld [vmem:[%s4508 + $0x38] sm:$0xff]
    %v4517 = vld [vmem:[%s4508 + $0x40] sm:$0xff]
    %v4518 = vld [vmem:[%s4508 + $0x48] sm:$0xff]
    %v4519 = vld [vmem:[%s4508 + $0x50] sm:$0xff]
    %v4520 = vld [vmem:[%s4508 + $0x58] sm:$0xff]
    %v4521 = vld [vmem:[%s4508 + $0x60] sm:$0xff]
    %v4522 = vld [vmem:[%s4508 + $0x68] sm:$0xff]
    %v4523 = vld [vmem:[%s4508 + $0x70] sm:$0xff]
    %v4524 = vld [vmem:[%s4508 + $0x78] sm:$0xff]
    %v4525 = vld [vmem:[%s4508 + $0x80] sm:$0xff]
    %v4526 = vld [vmem:[%s4508 + $0x88] sm:$0xff]
    %v4527 = vld [vmem:[%s4508 + $0x90] sm:$0xff]
    %v4528 = vld [vmem:[%s4508 + $0x98] sm:$0xff]
    %v4529 = vld [vmem:[%s4508 + $0xa0] sm:$0xff]
    %v4530 = vld [vmem:[%s4508 + $0xa8] sm:$0xff]
    %v4531 = vld [vmem:[%s4508 + $0xb0] sm:$0xff]
    %v4532 = vld [vmem:[%s4508 + $0xb8] sm:$0xff]
    %v4533 = vld [vmem:[%s4508 + $0xc0] sm:$0xff]
    %v4534 = vld [vmem:[%s4508 + $0xc8] sm:$0xff]
    %v4535 = vld [vmem:[%s4508 + $0xd0] sm:$0xff]
    %v4536 = vld [vmem:[%s4508 + $0xd8] sm:$0xff]
    %v4537 = vld [vmem:[%s4508 + $0xe0] sm:$0xff]
    %v4538 = vld [vmem:[%s4508 + $0xe8] sm:$0xff]
    %v4539 = vld [vmem:[%s4508 + $0xf0] sm:$0xff]
    %v4540 = vld [vmem:[%s4508 + $0xf8] sm:$0xff]
    %v4541 = vld [vmem:[%s4508 + $0x100] sm:$0xff]
    %v4542 = vld [vmem:[%s4508 + $0x108] sm:$0xff]
    %v4543 = vld [vmem:[%s4508 + $0x110] sm:$0xff]
    %v4544 = vld [vmem:[%s4508 + $0x118] sm:$0xff]
    %v4545 = vld [vmem:[%s4508 + $0x120] sm:$0xff]
    %v4546 = vld [vmem:[%s4508 + $0x128] sm:$0xff]
    %v4547 = vld [vmem:[%s4508 + $0x130] sm:$0xff]
    %v4548 = vld [vmem:[%s4508 + $0x138] sm:$0xff]
    %v4549 = vld [vmem:[%s4508 + $0x140] sm:$0xff]
    %v4550 = vld [vmem:[%s4508 + $0x148] sm:$0xff]
    %v4551 = vld [vmem:[%s4508 + $0x150] sm:$0xff]
    %v4552 = vld [vmem:[%s4508 + $0x158] sm:$0xff]
    %v4553 = vld [vmem:[%s4508 + $0x160] sm:$0xff]
    %v4554 = vld [vmem:[%s4508 + $0x168] sm:$0xff]
    %v4555 = vld [vmem:[%s4508 + $0x170] sm:$0xff]
    %v4556 = vld [vmem:[%s4508 + $0x178] sm:$0xff]
    %v4557 = vld [vmem:[%s4508 + $0x180] sm:$0xff]
    %v4558 = vld [vmem:[%s4508 + $0x188] sm:$0xff]
    %v4559 = vld [vmem:[%s4508 + $0x190] sm:$0xff]
    %v4560 = vld [vmem:[%s4508 + $0x198] sm:$0xff]
    %v4561 = vld [vmem:[%s4508 + $0x1a0] sm:$0xff]
    %v4562 = vld [vmem:[%s4508 + $0x1a8] sm:$0xff]
    %v4563 = vld [vmem:[%s4508 + $0x1b0] sm:$0xff]
    %v4564 = vld [vmem:[%s4508 + $0x1b8] sm:$0xff]
    %v4565 = vld [vmem:[%s4508 + $0x1c0] sm:$0xff]
    %v4566 = vld [vmem:[%s4508 + $0x1c8] sm:$0xff]
    %v4567 = vld [vmem:[%s4508 + $0x1d0] sm:$0xff]
    %v4568 = vld [vmem:[%s4508 + $0x1d8] sm:$0xff]
    %v4569 = vld [vmem:[%s4508 + $0x1e0] sm:$0xff]
    %v4570 = vld [vmem:[%s4508 + $0x1e8] sm:$0xff]
    %v4571 = vld [vmem:[%s4508 + $0x1f0] sm:$0xff]
    %v4572 = vld [vmem:[%s4508 + $0x1f8] sm:$0xff]
    %v4637 = vunpack.c.l.b16 %v4509
    %v4638 = vunpack.c.h.b16 %v4509
    %v4639 = vunpack.c.l.b16 %v4510
    %v4640 = vunpack.c.h.b16 %v4510
    %v4641 = vunpack.c.l.b16 %v4511
    %v4642 = vunpack.c.h.b16 %v4511
    %v4643 = vunpack.c.l.b16 %v4512
    %v4644 = vunpack.c.h.b16 %v4512
    %v4645 = vunpack.c.l.b16 %v4513
    %v4646 = vunpack.c.h.b16 %v4513
    %v4647 = vunpack.c.l.b16 %v4514
    %v4648 = vunpack.c.h.b16 %v4514
    %v4649 = vunpack.c.l.b16 %v4515
    %v4650 = vunpack.c.h.b16 %v4515
    %v4651 = vunpack.c.l.b16 %v4516
    %v4652 = vunpack.c.h.b16 %v4516
    %v4653 = vunpack.c.l.b16 %v4517
    %v4654 = vunpack.c.h.b16 %v4517
    %v4655 = vunpack.c.l.b16 %v4518
    %v4656 = vunpack.c.h.b16 %v4518
    %v4657 = vunpack.c.l.b16 %v4519
    %v4658 = vunpack.c.h.b16 %v4519
    %v4659 = vunpack.c.l.b16 %v4520
    %v4660 = vunpack.c.h.b16 %v4520
    %v4661 = vunpack.c.l.b16 %v4521
    %v4662 = vunpack.c.h.b16 %v4521
    %v4663 = vunpack.c.l.b16 %v4522
    %v4664 = vunpack.c.h.b16 %v4522
    %v4665 = vunpack.c.l.b16 %v4523
    %v4666 = vunpack.c.h.b16 %v4523
    %v4667 = vunpack.c.l.b16 %v4524
    %v4668 = vunpack.c.h.b16 %v4524
    %v4669 = vunpack.c.l.b16 %v4525
    %v4670 = vunpack.c.h.b16 %v4525
    %v4671 = vunpack.c.l.b16 %v4526
    %v4672 = vunpack.c.h.b16 %v4526
    %v4673 = vunpack.c.l.b16 %v4527
    %v4674 = vunpack.c.h.b16 %v4527
    %v4675 = vunpack.c.l.b16 %v4528
    %v4676 = vunpack.c.h.b16 %v4528
    %v4677 = vunpack.c.l.b16 %v4529
    %v4678 = vunpack.c.h.b16 %v4529
    %v4679 = vunpack.c.l.b16 %v4530
    %v4680 = vunpack.c.h.b16 %v4530
    %v4681 = vunpack.c.l.b16 %v4531
    %v4682 = vunpack.c.h.b16 %v4531
    %v4683 = vunpack.c.l.b16 %v4532
    %v4684 = vunpack.c.h.b16 %v4532
    %v4685 = vunpack.c.l.b16 %v4533
    %v4686 = vunpack.c.h.b16 %v4533
    %v4687 = vunpack.c.l.b16 %v4534
    %v4688 = vunpack.c.h.b16 %v4534
    %v4689 = vunpack.c.l.b16 %v4535
    %v4690 = vunpack.c.h.b16 %v4535
    %v4691 = vunpack.c.l.b16 %v4536
    %v4692 = vunpack.c.h.b16 %v4536
    %v4693 = vunpack.c.l.b16 %v4537
    %v4694 = vunpack.c.h.b16 %v4537
    %v4695 = vunpack.c.l.b16 %v4538
    %v4696 = vunpack.c.h.b16 %v4538
    %v4697 = vunpack.c.l.b16 %v4539
    %v4698 = vunpack.c.h.b16 %v4539
    %v4699 = vunpack.c.l.b16 %v4540
    %v4700 = vunpack.c.h.b16 %v4540
    %v4701 = vunpack.c.l.b16 %v4541
    %v4702 = vunpack.c.h.b16 %v4541
    %v4703 = vunpack.c.l.b16 %v4542
    %v4704 = vunpack.c.h.b16 %v4542
    %v4705 = vunpack.c.l.b16 %v4543
    %v4706 = vunpack.c.h.b16 %v4543
    %v4707 = vunpack.c.l.b16 %v4544
    %v4708 = vunpack.c.h.b16 %v4544
    %v4709 = vunpack.c.l.b16 %v4545
    %v4710 = vunpack.c.h.b16 %v4545
    %v4711 = vunpack.c.l.b16 %v4546
    %v4712 = vunpack.c.h.b16 %v4546
    %v4713 = vunpack.c.l.b16 %v4547
    %v4714 = vunpack.c.h.b16 %v4547
    %v4715 = vunpack.c.l.b16 %v4548
    %v4716 = vunpack.c.h.b16 %v4548
    %v4717 = vunpack.c.l.b16 %v4549
    %v4718 = vunpack.c.h.b16 %v4549
    %v4719 = vunpack.c.l.b16 %v4550
    %v4720 = vunpack.c.h.b16 %v4550
    %v4721 = vunpack.c.l.b16 %v4551
    %v4722 = vunpack.c.h.b16 %v4551
    %v4723 = vunpack.c.l.b16 %v4552
    %v4724 = vunpack.c.h.b16 %v4552
    %v4725 = vunpack.c.l.b16 %v4553
    %v4726 = vunpack.c.h.b16 %v4553
    %v4727 = vunpack.c.l.b16 %v4554
    %v4728 = vunpack.c.h.b16 %v4554
    %v4729 = vunpack.c.l.b16 %v4555
    %v4730 = vunpack.c.h.b16 %v4555
    %v4731 = vunpack.c.l.b16 %v4556
    %v4732 = vunpack.c.h.b16 %v4556
    %v4733 = vunpack.c.l.b16 %v4557
    %v4734 = vunpack.c.h.b16 %v4557
    %v4735 = vunpack.c.l.b16 %v4558
    %v4736 = vunpack.c.h.b16 %v4558
    %v4737 = vunpack.c.l.b16 %v4559
    %v4738 = vunpack.c.h.b16 %v4559
    %v4739 = vunpack.c.l.b16 %v4560
    %v4740 = vunpack.c.h.b16 %v4560
    %v4741 = vunpack.c.l.b16 %v4561
    %v4742 = vunpack.c.h.b16 %v4561
    %v4743 = vunpack.c.l.b16 %v4562
    %v4744 = vunpack.c.h.b16 %v4562
    %v4745 = vunpack.c.l.b16 %v4563
    %v4746 = vunpack.c.h.b16 %v4563
    %v4747 = vunpack.c.l.b16 %v4564
    %v4748 = vunpack.c.h.b16 %v4564
    %v4749 = vunpack.c.l.b16 %v4565
    %v4750 = vunpack.c.h.b16 %v4565
    %v4751 = vunpack.c.l.b16 %v4566
    %v4752 = vunpack.c.h.b16 %v4566
    %v4753 = vunpack.c.l.b16 %v4567
    %v4754 = vunpack.c.h.b16 %v4567
    %v4755 = vunpack.c.l.b16 %v4568
    %v4756 = vunpack.c.h.b16 %v4568
    %v4757 = vunpack.c.l.b16 %v4569
    %v4758 = vunpack.c.h.b16 %v4569
    %v4759 = vunpack.c.l.b16 %v4570
    %v4760 = vunpack.c.h.b16 %v4570
    %v4761 = vunpack.c.l.b16 %v4571
    %v4762 = vunpack.c.h.b16 %v4571
    %v4763 = vunpack.c.l.b16 %v4572
    %v4764 = vunpack.c.h.b16 %v4572
    %v4765 = vpack.c.b16 %v4639, %v4637
    %v4766 = vpack.c.b16 %v4640, %v4638
    %v4767 = vpack.c.b16 %v4643, %v4641
    %v4768 = vpack.c.b16 %v4644, %v4642
    %v4769 = vpack.c.b16 %v4647, %v4645
    %v4770 = vpack.c.b16 %v4648, %v4646
    %v4771 = vpack.c.b16 %v4651, %v4649
    %v4772 = vpack.c.b16 %v4652, %v4650
    %v4773 = vpack.c.b16 %v4655, %v4653
    %v4774 = vpack.c.b16 %v4656, %v4654
    %v4775 = vpack.c.b16 %v4659, %v4657
    %v4776 = vpack.c.b16 %v4660, %v4658
    %v4777 = vpack.c.b16 %v4663, %v4661
    %v4778 = vpack.c.b16 %v4664, %v4662
    %v4779 = vpack.c.b16 %v4667, %v4665
    %v4780 = vpack.c.b16 %v4668, %v4666
    %v4781 = vpack.c.b16 %v4671, %v4669
    %v4782 = vpack.c.b16 %v4672, %v4670
    %v4783 = vpack.c.b16 %v4675, %v4673
    %v4784 = vpack.c.b16 %v4676, %v4674
    %v4785 = vpack.c.b16 %v4679, %v4677
    %v4786 = vpack.c.b16 %v4680, %v4678
    %v4787 = vpack.c.b16 %v4683, %v4681
    %v4788 = vpack.c.b16 %v4684, %v4682
    %v4789 = vpack.c.b16 %v4687, %v4685
    %v4790 = vpack.c.b16 %v4688, %v4686
    %v4791 = vpack.c.b16 %v4691, %v4689
    %v4792 = vpack.c.b16 %v4692, %v4690
    %v4793 = vpack.c.b16 %v4695, %v4693
    %v4794 = vpack.c.b16 %v4696, %v4694
    %v4795 = vpack.c.b16 %v4699, %v4697
    %v4796 = vpack.c.b16 %v4700, %v4698
    %v4797 = vpack.c.b16 %v4703, %v4701
    %v4798 = vpack.c.b16 %v4704, %v4702
    %v4799 = vpack.c.b16 %v4707, %v4705
    %v4800 = vpack.c.b16 %v4708, %v4706
    %v4801 = vpack.c.b16 %v4711, %v4709
    %v4802 = vpack.c.b16 %v4712, %v4710
    %v4803 = vpack.c.b16 %v4715, %v4713
    %v4804 = vpack.c.b16 %v4716, %v4714
    %v4805 = vpack.c.b16 %v4719, %v4717
    %v4806 = vpack.c.b16 %v4720, %v4718
    %v4807 = vpack.c.b16 %v4723, %v4721
    %v4808 = vpack.c.b16 %v4724, %v4722
    %v4809 = vpack.c.b16 %v4727, %v4725
    %v4810 = vpack.c.b16 %v4728, %v4726
    %v4811 = vpack.c.b16 %v4731, %v4729
    %v4812 = vpack.c.b16 %v4732, %v4730
    %v4813 = vpack.c.b16 %v4735, %v4733
    %v4814 = vpack.c.b16 %v4736, %v4734
    %v4815 = vpack.c.b16 %v4739, %v4737
    %v4816 = vpack.c.b16 %v4740, %v4738
    %v4817 = vpack.c.b16 %v4743, %v4741
    %v4818 = vpack.c.b16 %v4744, %v4742
    %v4819 = vpack.c.b16 %v4747, %v4745
    %v4820 = vpack.c.b16 %v4748, %v4746
    %v4821 = vpack.c.b16 %v4751, %v4749
    %v4822 = vpack.c.b16 %v4752, %v4750
    %v4823 = vpack.c.b16 %v4755, %v4753
    %v4824 = vpack.c.b16 %v4756, %v4754
    %v4825 = vpack.c.b16 %v4759, %v4757
    %v4826 = vpack.c.b16 %v4760, %v4758
    %v4827 = vpack.c.b16 %v4763, %v4761
    %v4828 = vpack.c.b16 %v4764, %v4762
    %4893 = vmatprep.subr.bf16.mxu0 %v4766
    %4894 = vmatpush1.bf16.msra.mxu0 %v4765
    %4895 = vmatprep.subr.bf16.mxu0 %v4768
    %4896 = vmatpush1.bf16.msra.mxu0 %v4767
    %4897 = vmatprep.subr.bf16.mxu0 %v4770
    %4898 = vmatpush1.bf16.msra.mxu0 %v4769
    %4899 = vmatprep.subr.bf16.mxu0 %v4772
    %4900 = vmatpush1.bf16.msra.mxu0 %v4771
    %4901 = vmatprep.subr.bf16.mxu0 %v4774
    %4902 = vmatpush1.bf16.msra.mxu0 %v4773
    %4903 = vmatprep.subr.bf16.mxu0 %v4776
    %4904 = vmatpush1.bf16.msra.mxu0 %v4775
    %4905 = vmatprep.subr.bf16.mxu0 %v4778
    %4906 = vmatpush1.bf16.msra.mxu0 %v4777
    %4907 = vmatprep.subr.bf16.mxu0 %v4780
    %4908 = vmatpush1.bf16.msra.mxu0 %v4779
    %4909 = vmatprep.subr.bf16.mxu0 %v4782
    %4910 = vmatpush1.bf16.msra.mxu0 %v4781
    %4911 = vmatprep.subr.bf16.mxu0 %v4784
    %4912 = vmatpush1.bf16.msra.mxu0 %v4783
    %4913 = vmatprep.subr.bf16.mxu0 %v4786
    %4914 = vmatpush1.bf16.msra.mxu0 %v4785
    %4915 = vmatprep.subr.bf16.mxu0 %v4788
    %4916 = vmatpush1.bf16.msra.mxu0 %v4787
    %4917 = vmatprep.subr.bf16.mxu0 %v4790
    %4918 = vmatpush1.bf16.msra.mxu0 %v4789
    %4919 = vmatprep.subr.bf16.mxu0 %v4792
    %4920 = vmatpush1.bf16.msra.mxu0 %v4791
    %4921 = vmatprep.subr.bf16.mxu0 %v4794
    %4922 = vmatpush1.bf16.msra.mxu0 %v4793
    %4923 = vmatprep.subr.bf16.mxu0 %v4796
    %4924 = vmatpush1.bf16.msra.mxu0 %v4795
    %4925 = vmatprep.mubr.bf16.mxu0 %v4505
    %4926 = vmatmul.mubr.bf16.gmra.mrb[0].mxu0 %v4504
    %v4927 = vpop.f32.mrb[0].mxu0
    %v4928 = vadd.f32 0.0, %v4927
    %v4929 = vpop.f32.mrb[0].mxu0
    %v4930 = vadd.f32 0.0, %v4929
    %v4931 = vpop.f32.mrb[0].mxu0
    %v4932 = vpop.f32.mrb[0].mxu0
    %4933 = vdwg.mxu0
    %4934 = vmatprep.subr.bf16.mxu0 %v4798
    %4935 = vmatpush1.bf16.msra.mxu0 %v4797
    %4936 = vmatprep.subr.bf16.mxu0 %v4800
    %4937 = vmatpush1.bf16.msra.mxu0 %v4799
    %4938 = vmatprep.subr.bf16.mxu0 %v4802
    %4939 = vmatpush1.bf16.msra.mxu0 %v4801
    %4940 = vmatprep.subr.bf16.mxu0 %v4804
    %4941 = vmatpush1.bf16.msra.mxu0 %v4803
    %4942 = vmatprep.subr.bf16.mxu0 %v4806
    %4943 = vmatpush1.bf16.msra.mxu0 %v4805
    %4944 = vmatprep.subr.bf16.mxu0 %v4808
    %4945 = vmatpush1.bf16.msra.mxu0 %v4807
    %4946 = vmatprep.subr.bf16.mxu0 %v4810
    %4947 = vmatpush1.bf16.msra.mxu0 %v4809
    %4948 = vmatprep.subr.bf16.mxu0 %v4812
    %4949 = vmatpush1.bf16.msra.mxu0 %v4811
    %4950 = vmatprep.subr.bf16.mxu0 %v4814
    %4951 = vmatpush1.bf16.msra.mxu0 %v4813
    %4952 = vmatprep.subr.bf16.mxu0 %v4816
    %4953 = vmatpush1.bf16.msra.mxu0 %v4815
    %4954 = vmatprep.subr.bf16.mxu0 %v4818
    %4955 = vmatpush1.bf16.msra.mxu0 %v4817
    %4956 = vmatprep.subr.bf16.mxu0 %v4820
    %4957 = vmatpush1.bf16.msra.mxu0 %v4819
    %4958 = vmatprep.subr.bf16.mxu0 %v4822
    %4959 = vmatpush1.bf16.msra.mxu0 %v4821
    %4960 = vmatprep.subr.bf16.mxu0 %v4824
    %4961 = vmatpush1.bf16.msra.mxu0 %v4823
    %4962 = vmatprep.subr.bf16.mxu0 %v4826
    %4963 = vmatpush1.bf16.msra.mxu0 %v4825
    %4964 = vmatprep.subr.bf16.mxu0 %v4828
    %4965 = vmatpush1.bf16.msra.mxu0 %v4827
    %4966 = vmatprep.mubr.bf16.mxu0 %v4507
    %4967 = vmatmul.mubr.bf16.gmra.mrb[0].mxu0 %v4506
    %v4968 = vpop.f32.mrb[0].mxu0
    %v4969 = vadd.f32 %v4928, %v4968
    %v4970 = vpop.f32.mrb[0].mxu0
    %v4971 = vadd.f32 %v4930, %v4970
    %v4972 = vpop.f32.mrb[0].mxu0
    %v4973 = vpop.f32.mrb[0].mxu0
    %4974 = vdwg.mxu0
    %v5039 = vunpack.c.l.b16 %v4353
    %v5040 = vunpack.c.h.b16 %v4353
    %v5041 = vunpack.c.l.b16 %v4354
    %v5042 = vunpack.c.h.b16 %v4354
    %v5043 = vunpack.c.l.b16 %v4355
    %v5044 = vunpack.c.h.b16 %v4355
    %v5045 = vunpack.c.l.b16 %v4356
    %v5046 = vunpack.c.h.b16 %v4356
    %v5047 = vunpack.c.l.b16 %v4357
    %v5048 = vunpack.c.h.b16 %v4357
    %v5049 = vunpack.c.l.b16 %v4358
    %v5050 = vunpack.c.h.b16 %v4358
    %v5051 = vunpack.c.l.b16 %v4359
    %v5052 = vunpack.c.h.b16 %v4359
    %v5053 = vunpack.c.l.b16 %v4360
    %v5054 = vunpack.c.h.b16 %v4360
    %v5055 = vunpack.c.l.b16 %v4361
    %v5056 = vunpack.c.h.b16 %v4361
    %v5057 = vunpack.c.l.b16 %v4362
    %v5058 = vunpack.c.h.b16 %v4362
    %v5059 = vunpack.c.l.b16 %v4363
    %v5060 = vunpack.c.h.b16 %v4363
    %v5061 = vunpack.c.l.b16 %v4364
    %v5062 = vunpack.c.h.b16 %v4364
    %v5063 = vunpack.c.l.b16 %v4365
    %v5064 = vunpack.c.h.b16 %v4365
    %v5065 = vunpack.c.l.b16 %v4366
    %v5066 = vunpack.c.h.b16 %v4366
    %v5067 = vunpack.c.l.b16 %v4367
    %v5068 = vunpack.c.h.b16 %v4367
    %v5069 = vunpack.c.l.b16 %v4368
    %v5070 = vunpack.c.h.b16 %v4368
    %v5071 = vunpack.c.l.b16 %v4369
    %v5072 = vunpack.c.h.b16 %v4369
    %v5073 = vunpack.c.l.b16 %v4370
    %v5074 = vunpack.c.h.b16 %v4370
    %v5075 = vunpack.c.l.b16 %v4371
    %v5076 = vunpack.c.h.b16 %v4371
    %v5077 = vunpack.c.l.b16 %v4372
    %v5078 = vunpack.c.h.b16 %v4372
    %v5079 = vunpack.c.l.b16 %v4373
    %v5080 = vunpack.c.h.b16 %v4373
    %v5081 = vunpack.c.l.b16 %v4374
    %v5082 = vunpack.c.h.b16 %v4374
    %v5083 = vunpack.c.l.b16 %v4375
    %v5084 = vunpack.c.h.b16 %v4375
    %v5085 = vunpack.c.l.b16 %v4376
    %v5086 = vunpack.c.h.b16 %v4376
    %v5087 = vunpack.c.l.b16 %v4377
    %v5088 = vunpack.c.h.b16 %v4377
    %v5089 = vunpack.c.l.b16 %v4378
    %v5090 = vunpack.c.h.b16 %v4378
    %v5091 = vunpack.c.l.b16 %v4379
    %v5092 = vunpack.c.h.b16 %v4379
    %v5093 = vunpack.c.l.b16 %v4380
    %v5094 = vunpack.c.h.b16 %v4380
    %v5095 = vunpack.c.l.b16 %v4381
    %v5096 = vunpack.c.h.b16 %v4381
    %v5097 = vunpack.c.l.b16 %v4382
    %v5098 = vunpack.c.h.b16 %v4382
    %v5099 = vunpack.c.l.b16 %v4383
    %v5100 = vunpack.c.h.b16 %v4383
    %v5101 = vunpack.c.l.b16 %v4384
    %v5102 = vunpack.c.h.b16 %v4384
    %v5103 = vunpack.c.l.b16 %v4385
    %v5104 = vunpack.c.h.b16 %v4385
    %v5105 = vunpack.c.l.b16 %v4386
    %v5106 = vunpack.c.h.b16 %v4386
    %v5107 = vunpack.c.l.b16 %v4387
    %v5108 = vunpack.c.h.b16 %v4387
    %v5109 = vunpack.c.l.b16 %v4388
    %v5110 = vunpack.c.h.b16 %v4388
    %v5111 = vunpack.c.l.b16 %v4389
    %v5112 = vunpack.c.h.b16 %v4389
    %v5113 = vunpack.c.l.b16 %v4390
    %v5114 = vunpack.c.h.b16 %v4390
    %v5115 = vunpack.c.l.b16 %v4391
    %v5116 = vunpack.c.h.b16 %v4391
    %v5117 = vunpack.c.l.b16 %v4392
    %v5118 = vunpack.c.h.b16 %v4392
    %v5119 = vunpack.c.l.b16 %v4393
    %v5120 = vunpack.c.h.b16 %v4393
    %v5121 = vunpack.c.l.b16 %v4394
    %v5122 = vunpack.c.h.b16 %v4394
    %v5123 = vunpack.c.l.b16 %v4395
    %v5124 = vunpack.c.h.b16 %v4395
    %v5125 = vunpack.c.l.b16 %v4396
    %v5126 = vunpack.c.h.b16 %v4396
    %v5127 = vunpack.c.l.b16 %v4397
    %v5128 = vunpack.c.h.b16 %v4397
    %v5129 = vunpack.c.l.b16 %v4398
    %v5130 = vunpack.c.h.b16 %v4398
    %v5131 = vunpack.c.l.b16 %v4399
    %v5132 = vunpack.c.h.b16 %v4399
    %v5133 = vunpack.c.l.b16 %v4400
    %v5134 = vunpack.c.h.b16 %v4400
    %v5135 = vunpack.c.l.b16 %v4401
    %v5136 = vunpack.c.h.b16 %v4401
    %v5137 = vunpack.c.l.b16 %v4402
    %v5138 = vunpack.c.h.b16 %v4402
    %v5139 = vunpack.c.l.b16 %v4403
    %v5140 = vunpack.c.h.b16 %v4403
    %v5141 = vunpack.c.l.b16 %v4404
    %v5142 = vunpack.c.h.b16 %v4404
    %v5143 = vunpack.c.l.b16 %v4405
    %v5144 = vunpack.c.h.b16 %v4405
    %v5145 = vunpack.c.l.b16 %v4406
    %v5146 = vunpack.c.h.b16 %v4406
    %v5147 = vunpack.c.l.b16 %v4407
    %v5148 = vunpack.c.h.b16 %v4407
    %v5149 = vunpack.c.l.b16 %v4408
    %v5150 = vunpack.c.h.b16 %v4408
    %v5151 = vunpack.c.l.b16 %v4409
    %v5152 = vunpack.c.h.b16 %v4409
    %v5153 = vunpack.c.l.b16 %v4410
    %v5154 = vunpack.c.h.b16 %v4410
    %v5155 = vunpack.c.l.b16 %v4411
    %v5156 = vunpack.c.h.b16 %v4411
    %v5157 = vunpack.c.l.b16 %v4412
    %v5158 = vunpack.c.h.b16 %v4412
    %v5159 = vunpack.c.l.b16 %v4413
    %v5160 = vunpack.c.h.b16 %v4413
    %v5161 = vunpack.c.l.b16 %v4414
    %v5162 = vunpack.c.h.b16 %v4414
    %v5163 = vunpack.c.l.b16 %v4415
    %v5164 = vunpack.c.h.b16 %v4415
    %v5165 = vunpack.c.l.b16 %v4416
    %v5166 = vunpack.c.h.b16 %v4416
    %v5167 = vpack.c.b16 %v5041, %v5039
    %v5168 = vpack.c.b16 %v5042, %v5040
    %v5169 = vpack.c.b16 %v5045, %v5043
    %v5170 = vpack.c.b16 %v5046, %v5044
    %v5171 = vpack.c.b16 %v5049, %v5047
    %v5172 = vpack.c.b16 %v5050, %v5048
    %v5173 = vpack.c.b16 %v5053, %v5051
    %v5174 = vpack.c.b16 %v5054, %v5052
    %v5175 = vpack.c.b16 %v5057, %v5055
    %v5176 = vpack.c.b16 %v5058, %v5056
    %v5177 = vpack.c.b16 %v5061, %v5059
    %v5178 = vpack.c.b16 %v5062, %v5060
    %v5179 = vpack.c.b16 %v5065, %v5063
    %v5180 = vpack.c.b16 %v5066, %v5064
    %v5181 = vpack.c.b16 %v5069, %v5067
    %v5182 = vpack.c.b16 %v5070, %v5068
    %v5183 = vpack.c.b16 %v5073, %v5071
    %v5184 = vpack.c.b16 %v5074, %v5072
    %v5185 = vpack.c.b16 %v5077, %v5075
    %v5186 = vpack.c.b16 %v5078, %v5076
    %v5187 = vpack.c.b16 %v5081, %v5079
    %v5188 = vpack.c.b16 %v5082, %v5080
    %v5189 = vpack.c.b16 %v5085, %v5083
    %v5190 = vpack.c.b16 %v5086, %v5084
    %v5191 = vpack.c.b16 %v5089, %v5087
    %v5192 = vpack.c.b16 %v5090, %v5088
    %v5193 = vpack.c.b16 %v5093, %v5091
    %v5194 = vpack.c.b16 %v5094, %v5092
    %v5195 = vpack.c.b16 %v5097, %v5095
    %v5196 = vpack.c.b16 %v5098, %v5096
    %v5197 = vpack.c.b16 %v5101, %v5099
    %v5198 = vpack.c.b16 %v5102, %v5100
    %v5199 = vpack.c.b16 %v5105, %v5103
    %v5200 = vpack.c.b16 %v5106, %v5104
    %v5201 = vpack.c.b16 %v5109, %v5107
    %v5202 = vpack.c.b16 %v5110, %v5108
    %v5203 = vpack.c.b16 %v5113, %v5111
    %v5204 = vpack.c.b16 %v5114, %v5112
    %v5205 = vpack.c.b16 %v5117, %v5115
    %v5206 = vpack.c.b16 %v5118, %v5116
    %v5207 = vpack.c.b16 %v5121, %v5119
    %v5208 = vpack.c.b16 %v5122, %v5120
    %v5209 = vpack.c.b16 %v5125, %v5123
    %v5210 = vpack.c.b16 %v5126, %v5124
    %v5211 = vpack.c.b16 %v5129, %v5127
    %v5212 = vpack.c.b16 %v5130, %v5128
    %v5213 = vpack.c.b16 %v5133, %v5131
    %v5214 = vpack.c.b16 %v5134, %v5132
    %v5215 = vpack.c.b16 %v5137, %v5135
    %v5216 = vpack.c.b16 %v5138, %v5136
    %v5217 = vpack.c.b16 %v5141, %v5139
    %v5218 = vpack.c.b16 %v5142, %v5140
    %v5219 = vpack.c.b16 %v5145, %v5143
    %v5220 = vpack.c.b16 %v5146, %v5144
    %v5221 = vpack.c.b16 %v5149, %v5147
    %v5222 = vpack.c.b16 %v5150, %v5148
    %v5223 = vpack.c.b16 %v5153, %v5151
    %v5224 = vpack.c.b16 %v5154, %v5152
    %v5225 = vpack.c.b16 %v5157, %v5155
    %v5226 = vpack.c.b16 %v5158, %v5156
    %v5227 = vpack.c.b16 %v5161, %v5159
    %v5228 = vpack.c.b16 %v5162, %v5160
    %v5229 = vpack.c.b16 %v5165, %v5163
    %v5230 = vpack.c.b16 %v5166, %v5164
    %5295 = vmatprep.subr.bf16.mxu0 %v5168
    %5296 = vmatpush1.bf16.msra.mxu0 %v5167
    %5297 = vmatprep.subr.bf16.mxu0 %v5170
    %5298 = vmatpush1.bf16.msra.mxu0 %v5169
    %5299 = vmatprep.subr.bf16.mxu0 %v5172
    %5300 = vmatpush1.bf16.msra.mxu0 %v5171
    %5301 = vmatprep.subr.bf16.mxu0 %v5174
    %5302 = vmatpush1.bf16.msra.mxu0 %v5173
    %5303 = vmatprep.subr.bf16.mxu0 %v5176
    %5304 = vmatpush1.bf16.msra.mxu0 %v5175
    %5305 = vmatprep.subr.bf16.mxu0 %v5178
    %5306 = vmatpush1.bf16.msra.mxu0 %v5177
    %5307 = vmatprep.subr.bf16.mxu0 %v5180
    %5308 = vmatpush1.bf16.msra.mxu0 %v5179
    %5309 = vmatprep.subr.bf16.mxu0 %v5182
    %5310 = vmatpush1.bf16.msra.mxu0 %v5181
    %5311 = vmatprep.subr.bf16.mxu0 %v5184
    %5312 = vmatpush1.bf16.msra.mxu0 %v5183
    %5313 = vmatprep.subr.bf16.mxu0 %v5186
    %5314 = vmatpush1.bf16.msra.mxu0 %v5185
    %5315 = vmatprep.subr.bf16.mxu0 %v5188
    %5316 = vmatpush1.bf16.msra.mxu0 %v5187
    %5317 = vmatprep.subr.bf16.mxu0 %v5190
    %5318 = vmatpush1.bf16.msra.mxu0 %v5189
    %5319 = vmatprep.subr.bf16.mxu0 %v5192
    %5320 = vmatpush1.bf16.msra.mxu0 %v5191
    %5321 = vmatprep.subr.bf16.mxu0 %v5194
    %5322 = vmatpush1.bf16.msra.mxu0 %v5193
    %5323 = vmatprep.subr.bf16.mxu0 %v5196
    %5324 = vmatpush1.bf16.msra.mxu0 %v5195
    %5325 = vmatprep.subr.bf16.mxu0 %v5198
    %5326 = vmatpush1.bf16.msra.mxu0 %v5197
    %5327 = vmatprep.mubr.bf16.mxu0 %v4350
    %5328 = vmatmul.mubr.bf16.gmra.mrb[0].mxu0 %v4349
    %v5329 = vpop.f32.mrb[0].mxu0
    %v5330 = vadd.f32 %v4969, %v5329
    %v5331 = vpop.f32.mrb[0].mxu0
    %v5332 = vadd.f32 %v4971, %v5331
    %v5333 = vpop.f32.mrb[0].mxu0
    %v5334 = vpop.f32.mrb[0].mxu0
    %5335 = vdwg.mxu0
    %5336 = vmatprep.subr.bf16.mxu0 %v5200
    %5337 = vmatpush1.bf16.msra.mxu0 %v5199
    %5338 = vmatprep.subr.bf16.mxu0 %v5202
    %5339 = vmatpush1.bf16.msra.mxu0 %v5201
    %5340 = vmatprep.subr.bf16.mxu0 %v5204
    %5341 = vmatpush1.bf16.msra.mxu0 %v5203
    %5342 = vmatprep.subr.bf16.mxu0 %v5206
    %5343 = vmatpush1.bf16.msra.mxu0 %v5205
    %5344 = vmatprep.subr.bf16.mxu0 %v5208
    %5345 = vmatpush1.bf16.msra.mxu0 %v5207
    %5346 = vmatprep.subr.bf16.mxu0 %v5210
    %5347 = vmatpush1.bf16.msra.mxu0 %v5209
    %5348 = vmatprep.subr.bf16.mxu0 %v5212
    %5349 = vmatpush1.bf16.msra.mxu0 %v5211
    %5350 = vmatprep.subr.bf16.mxu0 %v5214
    %5351 = vmatpush1.bf16.msra.mxu0 %v5213
    %5352 = vmatprep.subr.bf16.mxu0 %v5216
    %5353 = vmatpush1.bf16.msra.mxu0 %v5215
    %5354 = vmatprep.subr.bf16.mxu0 %v5218
    %5355 = vmatpush1.bf16.msra.mxu0 %v5217
    %5356 = vmatprep.subr.bf16.mxu0 %v5220
    %5357 = vmatpush1.bf16.msra.mxu0 %v5219
    %5358 = vmatprep.subr.bf16.mxu0 %v5222
    %5359 = vmatpush1.bf16.msra.mxu0 %v5221
    %5360 = vmatprep.subr.bf16.mxu0 %v5224
    %5361 = vmatpush1.bf16.msra.mxu0 %v5223
    %5362 = vmatprep.subr.bf16.mxu0 %v5226
    %5363 = vmatpush1.bf16.msra.mxu0 %v5225
    %5364 = vmatprep.subr.bf16.mxu0 %v5228
    %5365 = vmatpush1.bf16.msra.mxu0 %v5227
    %5366 = vmatprep.subr.bf16.mxu0 %v5230
    %5367 = vmatpush1.bf16.msra.mxu0 %v5229
    %5368 = vmatprep.mubr.bf16.mxu0 %v4352
    %5369 = vmatmul.mubr.bf16.gmra.mrb[0].mxu0 %v4351
    %v5370 = vpop.f32.mrb[0].mxu0
    %v5371 = vadd.f32 %v5330, %v5370
    %v5372 = vpop.f32.mrb[0].mxu0
    %v5373 = vadd.f32 %v5332, %v5372
    %v5374 = vpop.f32.mrb[0].mxu0
    %v5375 = vpop.f32.mrb[0].mxu0
    %5376 = vdwg.mxu0
    %s5377 = scalar_lea.vmem [#allocation12], 8
    %v5378 = vld [vmem:[%s5377] sm:$0xf]
    %v5380 = vsel %vm4263, %v5378, 0
    %5382 = vmatprep.subr.bf16.mxu0 %v4259
    %5383 = vmatpush1.bf16.msra.mxu0 %v4258
    %5384 = vmatprep.subr.bf16.mxu0 0
    %5385 = vmatpush1.bf16.msra.mxu0 0
    %5386 = vmatprep.subr.bf16.mxu0 0
    %5387 = vmatpush1.bf16.msra.mxu0 0
    %5388 = vmatprep.subr.bf16.mxu0 0
    %5389 = vmatpush1.bf16.msra.mxu0 0
    %5390 = vmatprep.subr.bf16.mxu0 0
    %5391 = vmatpush1.bf16.msra.mxu0 0
    %5392 = vmatprep.subr.bf16.mxu0 0
    %5393 = vmatpush1.bf16.msra.mxu0 0
    %5394 = vmatprep.subr.bf16.mxu0 0
    %5395 = vmatpush1.bf16.msra.mxu0 0
    %5396 = vmatprep.subr.bf16.mxu0 0
    %5397 = vmatpush1.bf16.msra.mxu0 0
    %5398 = vmatprep.subr.bf16.mxu0 0
    %5399 = vmatpush1.bf16.msra.mxu0 0
    %5400 = vmatprep.subr.bf16.mxu0 0
    %5401 = vmatpush1.bf16.msra.mxu0 0
    %5402 = vmatprep.subr.bf16.mxu0 0
    %5403 = vmatpush1.bf16.msra.mxu0 0
    %5404 = vmatprep.subr.bf16.mxu0 0
    %5405 = vmatpush1.bf16.msra.mxu0 0
    %5406 = vmatprep.subr.bf16.mxu0 0
    %5407 = vmatpush1.bf16.msra.mxu0 0
    %5408 = vmatprep.subr.bf16.mxu0 0
    %5409 = vmatpush1.bf16.msra.mxu0 0
    %5410 = vmatprep.subr.bf16.mxu0 0
    %5411 = vmatpush1.bf16.msra.mxu0 0
    %5412 = vmatprep.subr.bf16.mxu0 0
    %5413 = vmatpush1.bf16.msra.mxu0 0
    %5414 = vmatprep.mubr.bf16.mxu0 0
    %5415 = vmatmul.mubr.bf16.gmra.mrb[0].mxu0 %v5380
    %v5416 = vpop.f32.mrb[0].mxu0
    %v5417 = vadd.f32 0.0, %v5416
    %v5418 = vpop.f32.mrb[0].mxu0
    %v5419 = vadd.f32 0.0, %v5418
    %v5420 = vpop.f32.mrb[0].mxu0
    %v5421 = vpop.f32.mrb[0].mxu0
    %5422 = vdwg.mxu0
    %5423 = vmatprep.subr.bf16.mxu0 %v4261
    %5424 = vmatpush1.bf16.msra.mxu0 %v4260
    %5425 = vmatprep.subr.bf16.mxu0 0
    %5426 = vmatpush1.bf16.msra.mxu0 0
    %5427 = vmatprep.subr.bf16.mxu0 0
    %5428 = vmatpush1.bf16.msra.mxu0 0
    %5429 = vmatprep.subr.bf16.mxu0 0
    %5430 = vmatpush1.bf16.msra.mxu0 0
    %5431 = vmatprep.subr.bf16.mxu0 0
    %5432 = vmatpush1.bf16.msra.mxu0 0
    %5433 = vmatprep.subr.bf16.mxu0 0
    %5434 = vmatpush1.bf16.msra.mxu0 0
    %5435 = vmatprep.subr.bf16.mxu0 0
    %5436 = vmatpush1.bf16.msra.mxu0 0
    %5437 = vmatprep.subr.bf16.mxu0 0
    %5438 = vmatpush1.bf16.msra.mxu0 0
    %5439 = vmatprep.subr.bf16.mxu0 0
    %5440 = vmatpush1.bf16.msra.mxu0 0
    %5441 = vmatprep.subr.bf16.mxu0 0
    %5442 = vmatpush1.bf16.msra.mxu0 0
    %5443 = vmatprep.subr.bf16.mxu0 0
    %5444 = vmatpush1.bf16.msra.mxu0 0
    %5445 = vmatprep.subr.bf16.mxu0 0
    %5446 = vmatpush1.bf16.msra.mxu0 0
    %5447 = vmatprep.subr.bf16.mxu0 0
    %5448 = vmatpush1.bf16.msra.mxu0 0
    %5449 = vmatprep.subr.bf16.mxu0 0
    %5450 = vmatpush1.bf16.msra.mxu0 0
    %5451 = vmatprep.subr.bf16.mxu0 0
    %5452 = vmatpush1.bf16.msra.mxu0 0
    %5453 = vmatprep.subr.bf16.mxu0 0
    %5454 = vmatpush1.bf16.msra.mxu0 0
    %5455 = vmatprep.mubr.bf16.mxu0 0
    %5456 = vmatmul.mubr.bf16.gmra.mrb[0].mxu0 %v5380
    %v5457 = vpop.f32.mrb[0].mxu0
    %v5458 = vadd.f32 0.0, %v5457
    %v5459 = vpop.f32.mrb[0].mxu0
    %v5460 = vadd.f32 0.0, %v5459
    %v5461 = vpop.f32.mrb[0].mxu0
    %v5462 = vpop.f32.mrb[0].mxu0
    %5463 = vdwg.mxu0
    %v5464 = vpack.c.bf16 %v5417, %v5417
    %v5465 = vpack.c.bf16 %v5419, %v5419
    %v5466 = vpack.c.bf16 %v5458, %v5458
    %v5467 = vpack.c.bf16 %v5460, %v5460
    %s5468 = scalar_lea.vmem [#allocation13], 1024
    %v5469 = vld [vmem:[%s5468] sm:$0xff]
    %v5470 = vld [vmem:[%s5468 + $0x8] sm:$0xff]
    %v5471 = vld [vmem:[%s5468 + $0x10] sm:$0xff]
    %v5472 = vld [vmem:[%s5468 + $0x18] sm:$0xff]
    %v5473 = vld [vmem:[%s5468 + $0x20] sm:$0xff]
    %v5474 = vld [vmem:[%s5468 + $0x28] sm:$0xff]
    %v5475 = vld [vmem:[%s5468 + $0x30] sm:$0xff]
    %v5476 = vld [vmem:[%s5468 + $0x38] sm:$0xff]
    %v5477 = vld [vmem:[%s5468 + $0x40] sm:$0xff]
    %v5478 = vld [vmem:[%s5468 + $0x48] sm:$0xff]
    %v5479 = vld [vmem:[%s5468 + $0x50] sm:$0xff]
    %v5480 = vld [vmem:[%s5468 + $0x58] sm:$0xff]
    %v5481 = vld [vmem:[%s5468 + $0x60] sm:$0xff]
    %v5482 = vld [vmem:[%s5468 + $0x68] sm:$0xff]
    %v5483 = vld [vmem:[%s5468 + $0x70] sm:$0xff]
    %v5484 = vld [vmem:[%s5468 + $0x78] sm:$0xff]
    %v5485 = vld [vmem:[%s5468 + $0x80] sm:$0xff]
    %v5486 = vld [vmem:[%s5468 + $0x88] sm:$0xff]
    %v5487 = vld [vmem:[%s5468 + $0x90] sm:$0xff]
    %v5488 = vld [vmem:[%s5468 + $0x98] sm:$0xff]
    %v5489 = vld [vmem:[%s5468 + $0xa0] sm:$0xff]
    %v5490 = vld [vmem:[%s5468 + $0xa8] sm:$0xff]
    %v5491 = vld [vmem:[%s5468 + $0xb0] sm:$0xff]
    %v5492 = vld [vmem:[%s5468 + $0xb8] sm:$0xff]
    %v5493 = vld [vmem:[%s5468 + $0xc0] sm:$0xff]
    %v5494 = vld [vmem:[%s5468 + $0xc8] sm:$0xff]
    %v5495 = vld [vmem:[%s5468 + $0xd0] sm:$0xff]
    %v5496 = vld [vmem:[%s5468 + $0xd8] sm:$0xff]
    %v5497 = vld [vmem:[%s5468 + $0xe0] sm:$0xff]
    %v5498 = vld [vmem:[%s5468 + $0xe8] sm:$0xff]
    %v5499 = vld [vmem:[%s5468 + $0xf0] sm:$0xff]
    %v5500 = vld [vmem:[%s5468 + $0xf8] sm:$0xff]
    %v5501 = vld [vmem:[%s5468 + $0x100] sm:$0xff]
    %v5502 = vld [vmem:[%s5468 + $0x108] sm:$0xff]
    %v5503 = vld [vmem:[%s5468 + $0x110] sm:$0xff]
    %v5504 = vld [vmem:[%s5468 + $0x118] sm:$0xff]
    %v5505 = vld [vmem:[%s5468 + $0x120] sm:$0xff]
    %v5506 = vld [vmem:[%s5468 + $0x128] sm:$0xff]
    %v5507 = vld [vmem:[%s5468 + $0x130] sm:$0xff]
    %v5508 = vld [vmem:[%s5468 + $0x138] sm:$0xff]
    %v5509 = vld [vmem:[%s5468 + $0x140] sm:$0xff]
    %v5510 = vld [vmem:[%s5468 + $0x148] sm:$0xff]
    %v5511 = vld [vmem:[%s5468 + $0x150] sm:$0xff]
    %v5512 = vld [vmem:[%s5468 + $0x158] sm:$0xff]
    %v5513 = vld [vmem:[%s5468 + $0x160] sm:$0xff]
    %v5514 = vld [vmem:[%s5468 + $0x168] sm:$0xff]
    %v5515 = vld [vmem:[%s5468 + $0x170] sm:$0xff]
    %v5516 = vld [vmem:[%s5468 + $0x178] sm:$0xff]
    %v5517 = vld [vmem:[%s5468 + $0x180] sm:$0xff]
    %v5518 = vld [vmem:[%s5468 + $0x188] sm:$0xff]
    %v5519 = vld [vmem:[%s5468 + $0x190] sm:$0xff]
    %v5520 = vld [vmem:[%s5468 + $0x198] sm:$0xff]
    %v5521 = vld [vmem:[%s5468 + $0x1a0] sm:$0xff]
    %v5522 = vld [vmem:[%s5468 + $0x1a8] sm:$0xff]
    %v5523 = vld [vmem:[%s5468 + $0x1b0] sm:$0xff]
    %v5524 = vld [vmem:[%s5468 + $0x1b8] sm:$0xff]
    %v5525 = vld [vmem:[%s5468 + $0x1c0] sm:$0xff]
    %v5526 = vld [vmem:[%s5468 + $0x1c8] sm:$0xff]
    %v5527 = vld [vmem:[%s5468 + $0x1d0] sm:$0xff]
    %v5528 = vld [vmem:[%s5468 + $0x1d8] sm:$0xff]
    %v5529 = vld [vmem:[%s5468 + $0x1e0] sm:$0xff]
    %v5530 = vld [vmem:[%s5468 + $0x1e8] sm:$0xff]
    %v5531 = vld [vmem:[%s5468 + $0x1f0] sm:$0xff]
    %v5532 = vld [vmem:[%s5468 + $0x1f8] sm:$0xff]
    %v5597 = vunpack.c.l.b16 %v5469
    %v5598 = vunpack.c.h.b16 %v5469
    %v5599 = vunpack.c.l.b16 %v5470
    %v5600 = vunpack.c.h.b16 %v5470
    %v5601 = vunpack.c.l.b16 %v5471
    %v5602 = vunpack.c.h.b16 %v5471
    %v5603 = vunpack.c.l.b16 %v5472
    %v5604 = vunpack.c.h.b16 %v5472
    %v5605 = vunpack.c.l.b16 %v5473
    %v5606 = vunpack.c.h.b16 %v5473
    %v5607 = vunpack.c.l.b16 %v5474
    %v5608 = vunpack.c.h.b16 %v5474
    %v5609 = vunpack.c.l.b16 %v5475
    %v5610 = vunpack.c.h.b16 %v5475
    %v5611 = vunpack.c.l.b16 %v5476
    %v5612 = vunpack.c.h.b16 %v5476
    %v5613 = vunpack.c.l.b16 %v5477
    %v5614 = vunpack.c.h.b16 %v5477
    %v5615 = vunpack.c.l.b16 %v5478
    %v5616 = vunpack.c.h.b16 %v5478
    %v5617 = vunpack.c.l.b16 %v5479
    %v5618 = vunpack.c.h.b16 %v5479
    %v5619 = vunpack.c.l.b16 %v5480
    %v5620 = vunpack.c.h.b16 %v5480
    %v5621 = vunpack.c.l.b16 %v5481
    %v5622 = vunpack.c.h.b16 %v5481
    %v5623 = vunpack.c.l.b16 %v5482
    %v5624 = vunpack.c.h.b16 %v5482
    %v5625 = vunpack.c.l.b16 %v5483
    %v5626 = vunpack.c.h.b16 %v5483
    %v5627 = vunpack.c.l.b16 %v5484
    %v5628 = vunpack.c.h.b16 %v5484
    %v5629 = vunpack.c.l.b16 %v5485
    %v5630 = vunpack.c.h.b16 %v5485
    %v5631 = vunpack.c.l.b16 %v5486
    %v5632 = vunpack.c.h.b16 %v5486
    %v5633 = vunpack.c.l.b16 %v5487
    %v5634 = vunpack.c.h.b16 %v5487
    %v5635 = vunpack.c.l.b16 %v5488
    %v5636 = vunpack.c.h.b16 %v5488
    %v5637 = vunpack.c.l.b16 %v5489
    %v5638 = vunpack.c.h.b16 %v5489
    %v5639 = vunpack.c.l.b16 %v5490
    %v5640 = vunpack.c.h.b16 %v5490
    %v5641 = vunpack.c.l.b16 %v5491
    %v5642 = vunpack.c.h.b16 %v5491
    %v5643 = vunpack.c.l.b16 %v5492
    %v5644 = vunpack.c.h.b16 %v5492
    %v5645 = vunpack.c.l.b16 %v5493
    %v5646 = vunpack.c.h.b16 %v5493
    %v5647 = vunpack.c.l.b16 %v5494
    %v5648 = vunpack.c.h.b16 %v5494
    %v5649 = vunpack.c.l.b16 %v5495
    %v5650 = vunpack.c.h.b16 %v5495
    %v5651 = vunpack.c.l.b16 %v5496
    %v5652 = vunpack.c.h.b16 %v5496
    %v5653 = vunpack.c.l.b16 %v5497
    %v5654 = vunpack.c.h.b16 %v5497
    %v5655 = vunpack.c.l.b16 %v5498
    %v5656 = vunpack.c.h.b16 %v5498
    %v5657 = vunpack.c.l.b16 %v5499
    %v5658 = vunpack.c.h.b16 %v5499
    %v5659 = vunpack.c.l.b16 %v5500
    %v5660 = vunpack.c.h.b16 %v5500
    %v5661 = vunpack.c.l.b16 %v5501
    %v5662 = vunpack.c.h.b16 %v5501
    %v5663 = vunpack.c.l.b16 %v5502
    %v5664 = vunpack.c.h.b16 %v5502
    %v5665 = vunpack.c.l.b16 %v5503
    %v5666 = vunpack.c.h.b16 %v5503
    %v5667 = vunpack.c.l.b16 %v5504
    %v5668 = vunpack.c.h.b16 %v5504
    %v5669 = vunpack.c.l.b16 %v5505
    %v5670 = vunpack.c.h.b16 %v5505
    %v5671 = vunpack.c.l.b16 %v5506
    %v5672 = vunpack.c.h.b16 %v5506
    %v5673 = vunpack.c.l.b16 %v5507
    %v5674 = vunpack.c.h.b16 %v5507
    %v5675 = vunpack.c.l.b16 %v5508
    %v5676 = vunpack.c.h.b16 %v5508
    %v5677 = vunpack.c.l.b16 %v5509
    %v5678 = vunpack.c.h.b16 %v5509
    %v5679 = vunpack.c.l.b16 %v5510
    %v5680 = vunpack.c.h.b16 %v5510
    %v5681 = vunpack.c.l.b16 %v5511
    %v5682 = vunpack.c.h.b16 %v5511
    %v5683 = vunpack.c.l.b16 %v5512
    %v5684 = vunpack.c.h.b16 %v5512
    %v5685 = vunpack.c.l.b16 %v5513
    %v5686 = vunpack.c.h.b16 %v5513
    %v5687 = vunpack.c.l.b16 %v5514
    %v5688 = vunpack.c.h.b16 %v5514
    %v5689 = vunpack.c.l.b16 %v5515
    %v5690 = vunpack.c.h.b16 %v5515
    %v5691 = vunpack.c.l.b16 %v5516
    %v5692 = vunpack.c.h.b16 %v5516
    %v5693 = vunpack.c.l.b16 %v5517
    %v5694 = vunpack.c.h.b16 %v5517
    %v5695 = vunpack.c.l.b16 %v5518
    %v5696 = vunpack.c.h.b16 %v5518
    %v5697 = vunpack.c.l.b16 %v5519
    %v5698 = vunpack.c.h.b16 %v5519
    %v5699 = vunpack.c.l.b16 %v5520
    %v5700 = vunpack.c.h.b16 %v5520
    %v5701 = vunpack.c.l.b16 %v5521
    %v5702 = vunpack.c.h.b16 %v5521
    %v5703 = vunpack.c.l.b16 %v5522
    %v5704 = vunpack.c.h.b16 %v5522
    %v5705 = vunpack.c.l.b16 %v5523
    %v5706 = vunpack.c.h.b16 %v5523
    %v5707 = vunpack.c.l.b16 %v5524
    %v5708 = vunpack.c.h.b16 %v5524
    %v5709 = vunpack.c.l.b16 %v5525
    %v5710 = vunpack.c.h.b16 %v5525
    %v5711 = vunpack.c.l.b16 %v5526
    %v5712 = vunpack.c.h.b16 %v5526
    %v5713 = vunpack.c.l.b16 %v5527
    %v5714 = vunpack.c.h.b16 %v5527
    %v5715 = vunpack.c.l.b16 %v5528
    %v5716 = vunpack.c.h.b16 %v5528
    %v5717 = vunpack.c.l.b16 %v5529
    %v5718 = vunpack.c.h.b16 %v5529
    %v5719 = vunpack.c.l.b16 %v5530
    %v5720 = vunpack.c.h.b16 %v5530
    %v5721 = vunpack.c.l.b16 %v5531
    %v5722 = vunpack.c.h.b16 %v5531
    %v5723 = vunpack.c.l.b16 %v5532
    %v5724 = vunpack.c.h.b16 %v5532
    %v5725 = vpack.c.b16 %v5599, %v5597
    %v5726 = vpack.c.b16 %v5600, %v5598
    %v5727 = vpack.c.b16 %v5603, %v5601
    %v5728 = vpack.c.b16 %v5604, %v5602
    %v5729 = vpack.c.b16 %v5607, %v5605
    %v5730 = vpack.c.b16 %v5608, %v5606
    %v5731 = vpack.c.b16 %v5611, %v5609
    %v5732 = vpack.c.b16 %v5612, %v5610
    %v5733 = vpack.c.b16 %v5615, %v5613
    %v5734 = vpack.c.b16 %v5616, %v5614
    %v5735 = vpack.c.b16 %v5619, %v5617
    %v5736 = vpack.c.b16 %v5620, %v5618
    %v5737 = vpack.c.b16 %v5623, %v5621
    %v5738 = vpack.c.b16 %v5624, %v5622
    %v5739 = vpack.c.b16 %v5627, %v5625
    %v5740 = vpack.c.b16 %v5628, %v5626
    %v5741 = vpack.c.b16 %v5631, %v5629
    %v5742 = vpack.c.b16 %v5632, %v5630
    %v5743 = vpack.c.b16 %v5635, %v5633
    %v5744 = vpack.c.b16 %v5636, %v5634
    %v5745 = vpack.c.b16 %v5639, %v5637
    %v5746 = vpack.c.b16 %v5640, %v5638
    %v5747 = vpack.c.b16 %v5643, %v5641
    %v5748 = vpack.c.b16 %v5644, %v5642
    %v5749 = vpack.c.b16 %v5647, %v5645
    %v5750 = vpack.c.b16 %v5648, %v5646
    %v5751 = vpack.c.b16 %v5651, %v5649
    %v5752 = vpack.c.b16 %v5652, %v5650
    %v5753 = vpack.c.b16 %v5655, %v5653
    %v5754 = vpack.c.b16 %v5656, %v5654
    %v5755 = vpack.c.b16 %v5659, %v5657
    %v5756 = vpack.c.b16 %v5660, %v5658
    %v5757 = vpack.c.b16 %v5663, %v5661
    %v5758 = vpack.c.b16 %v5664, %v5662
    %v5759 = vpack.c.b16 %v5667, %v5665
    %v5760 = vpack.c.b16 %v5668, %v5666
    %v5761 = vpack.c.b16 %v5671, %v5669
    %v5762 = vpack.c.b16 %v5672, %v5670
    %v5763 = vpack.c.b16 %v5675, %v5673
    %v5764 = vpack.c.b16 %v5676, %v5674
    %v5765 = vpack.c.b16 %v5679, %v5677
    %v5766 = vpack.c.b16 %v5680, %v5678
    %v5767 = vpack.c.b16 %v5683, %v5681
    %v5768 = vpack.c.b16 %v5684, %v5682
    %v5769 = vpack.c.b16 %v5687, %v5685
    %v5770 = vpack.c.b16 %v5688, %v5686
    %v5771 = vpack.c.b16 %v5691, %v5689
    %v5772 = vpack.c.b16 %v5692, %v5690
    %v5773 = vpack.c.b16 %v5695, %v5693
    %v5774 = vpack.c.b16 %v5696, %v5694
    %v5775 = vpack.c.b16 %v5699, %v5697
    %v5776 = vpack.c.b16 %v5700, %v5698
    %v5777 = vpack.c.b16 %v5703, %v5701
    %v5778 = vpack.c.b16 %v5704, %v5702
    %v5779 = vpack.c.b16 %v5707, %v5705
    %v5780 = vpack.c.b16 %v5708, %v5706
    %v5781 = vpack.c.b16 %v5711, %v5709
    %v5782 = vpack.c.b16 %v5712, %v5710
    %v5783 = vpack.c.b16 %v5715, %v5713
    %v5784 = vpack.c.b16 %v5716, %v5714
    %v5785 = vpack.c.b16 %v5719, %v5717
    %v5786 = vpack.c.b16 %v5720, %v5718
    %v5787 = vpack.c.b16 %v5723, %v5721
    %v5788 = vpack.c.b16 %v5724, %v5722
    %5853 = vmatprep.subr.bf16.mxu0 %v5726
    %5854 = vmatpush1.bf16.msra.mxu0 %v5725
    %5855 = vmatprep.subr.bf16.mxu0 %v5728
    %5856 = vmatpush1.bf16.msra.mxu0 %v5727
    %5857 = vmatprep.subr.bf16.mxu0 %v5730
    %5858 = vmatpush1.bf16.msra.mxu0 %v5729
    %5859 = vmatprep.subr.bf16.mxu0 %v5732
    %5860 = vmatpush1.bf16.msra.mxu0 %v5731
    %5861 = vmatprep.subr.bf16.mxu0 %v5734
    %5862 = vmatpush1.bf16.msra.mxu0 %v5733
    %5863 = vmatprep.subr.bf16.mxu0 %v5736
    %5864 = vmatpush1.bf16.msra.mxu0 %v5735
    %5865 = vmatprep.subr.bf16.mxu0 %v5738
    %5866 = vmatpush1.bf16.msra.mxu0 %v5737
    %5867 = vmatprep.subr.bf16.mxu0 %v5740
    %5868 = vmatpush1.bf16.msra.mxu0 %v5739
    %5869 = vmatprep.subr.bf16.mxu0 %v5742
    %5870 = vmatpush1.bf16.msra.mxu0 %v5741
    %5871 = vmatprep.subr.bf16.mxu0 %v5744
    %5872 = vmatpush1.bf16.msra.mxu0 %v5743
    %5873 = vmatprep.subr.bf16.mxu0 %v5746
    %5874 = vmatpush1.bf16.msra.mxu0 %v5745
    %5875 = vmatprep.subr.bf16.mxu0 %v5748
    %5876 = vmatpush1.bf16.msra.mxu0 %v5747
    %5877 = vmatprep.subr.bf16.mxu0 %v5750
    %5878 = vmatpush1.bf16.msra.mxu0 %v5749
    %5879 = vmatprep.subr.bf16.mxu0 %v5752
    %5880 = vmatpush1.bf16.msra.mxu0 %v5751
    %5881 = vmatprep.subr.bf16.mxu0 %v5754
    %5882 = vmatpush1.bf16.msra.mxu0 %v5753
    %5883 = vmatprep.subr.bf16.mxu0 %v5756
    %5884 = vmatpush1.bf16.msra.mxu0 %v5755
    %5885 = vmatprep.mubr.bf16.mxu0 %v5465
    %5886 = vmatmul.mubr.bf16.gmra.mrb[0].mxu0 %v5464
    %v5887 = vpop.f32.mrb[0].mxu0
    %v5888 = vadd.f32 0.0, %v5887
    %v5889 = vpop.f32.mrb[0].mxu0
    %v5890 = vadd.f32 0.0, %v5889
    %v5891 = vpop.f32.mrb[0].mxu0
    %v5892 = vpop.f32.mrb[0].mxu0
    %5893 = vdwg.mxu0
    %5894 = vmatprep.subr.bf16.mxu0 %v5758
    %5895 = vmatpush1.bf16.msra.mxu0 %v5757
    %5896 = vmatprep.subr.bf16.mxu0 %v5760
    %5897 = vmatpush1.bf16.msra.mxu0 %v5759
    %5898 = vmatprep.subr.bf16.mxu0 %v5762
    %5899 = vmatpush1.bf16.msra.mxu0 %v5761
    %5900 = vmatprep.subr.bf16.mxu0 %v5764
    %5901 = vmatpush1.bf16.msra.mxu0 %v5763
    %5902 = vmatprep.subr.bf16.mxu0 %v5766
    %5903 = vmatpush1.bf16.msra.mxu0 %v5765
    %5904 = vmatprep.subr.bf16.mxu0 %v5768
    %5905 = vmatpush1.bf16.msra.mxu0 %v5767
    %5906 = vmatprep.subr.bf16.mxu0 %v5770
    %5907 = vmatpush1.bf16.msra.mxu0 %v5769
    %5908 = vmatprep.subr.bf16.mxu0 %v5772
    %5909 = vmatpush1.bf16.msra.mxu0 %v5771
    %5910 = vmatprep.subr.bf16.mxu0 %v5774
    %5911 = vmatpush1.bf16.msra.mxu0 %v5773
    %5912 = vmatprep.subr.bf16.mxu0 %v5776
    %5913 = vmatpush1.bf16.msra.mxu0 %v5775
    %5914 = vmatprep.subr.bf16.mxu0 %v5778
    %5915 = vmatpush1.bf16.msra.mxu0 %v5777
    %5916 = vmatprep.subr.bf16.mxu0 %v5780
    %5917 = vmatpush1.bf16.msra.mxu0 %v5779
    %5918 = vmatprep.subr.bf16.mxu0 %v5782
    %5919 = vmatpush1.bf16.msra.mxu0 %v5781
    %5920 = vmatprep.subr.bf16.mxu0 %v5784
    %5921 = vmatpush1.bf16.msra.mxu0 %v5783
    %5922 = vmatprep.subr.bf16.mxu0 %v5786
    %5923 = vmatpush1.bf16.msra.mxu0 %v5785
    %5924 = vmatprep.subr.bf16.mxu0 %v5788
    %5925 = vmatpush1.bf16.msra.mxu0 %v5787
    %5926 = vmatprep.mubr.bf16.mxu0 %v5467
    %5927 = vmatmul.mubr.bf16.gmra.mrb[0].mxu0 %v5466
    %v5928 = vpop.f32.mrb[0].mxu0
    %v5929 = vadd.f32 %v5888, %v5928
    %v5930 = vpop.f32.mrb[0].mxu0
    %v5931 = vadd.f32 %v5890, %v5930
    %v5932 = vpop.f32.mrb[0].mxu0
    %v5933 = vpop.f32.mrb[0].mxu0
    %5934 = vdwg.mxu0
    %v5935 = vadd.f32 %v5371, %v5929
    %v5936 = vadd.f32 %v5373, %v5931
    %v5937 = vld [vmem:[#allocation15] sm:$0x3]
    %v5939 = vlaneseq
    %v5940 = vshrl.u32 %v5939, 7
    %v5941 = vsub.s32 0, %v5940
    %v5942 = vrot.slane %v5937, %v5941
    %v5943 = vlaneseq
    %v5944 = vshrl.u32 %v5943, 7
    %v5945 = vsub.s32 1, %v5944
    %v5946 = vrot.slane %v5937, %v5945
    %v5949 = vadd.f32 %v5935, %v5942
    %v5950 = vadd.f32 %v5936, %v5946
    %vm5951 = vcmp.gt.f32.partialorder %v5949, 0.0
    %vm5952 = vcmp.gt.f32.partialorder %v5950, 0.0
    %v5953 = vmul.f32 %v5949, 0.01
    %v5954 = vmul.f32 %v5950, 0.01
    %v5955 = vsel %vm5951, %v5949, %v5953
    %v5956 = vsel %vm5952, %v5950, %v5954
    %v5957 = vpack.c.bf16 %v5955, %v5955
    %v5958 = vpack.c.bf16 %v5956, %v5956
    %v5959 = vld [vmem:[#allocation16] sm:$0x3]
    %vm5960 = vcmask 64512
    %v5962 = vsel %vm5960, %v5959, 0
    %vm5964 = vcmask 1043456
    %v5966 = vsel %vm5964, %v5957, 0
    %v5969 = vsel %vm5964, %v5958, 0
    %5971 = vmatprep.subr.bf16.mxu0 %v5969
    %5972 = vmatpush1.bf16.msra.mxu0 %v5966
    %5973 = vmatprep.subr.bf16.mxu0 0
    %5974 = vmatpush1.bf16.msra.mxu0 0
    %5975 = vmatprep.subr.bf16.mxu0 0
    %5976 = vmatpush1.bf16.msra.mxu0 0
    %5977 = vmatprep.subr.bf16.mxu0 0
    %5978 = vmatpush1.bf16.msra.mxu0 0
    %5979 = vmatprep.subr.bf16.mxu0 0
    %5980 = vmatpush1.bf16.msra.mxu0 0
    %5981 = vmatprep.subr.bf16.mxu0 0
    %5982 = vmatpush1.bf16.msra.mxu0 0
    %5983 = vmatprep.subr.bf16.mxu0 0
    %5984 = vmatpush1.bf16.msra.mxu0 0
    %5985 = vmatprep.subr.bf16.mxu0 0
    %5986 = vmatpush1.bf16.msra.mxu0 0
    %5987 = vmatprep.subr.bf16.mxu0 0
    %5988 = vmatpush1.bf16.msra.mxu0 0
    %5989 = vmatprep.subr.bf16.mxu0 0
    %5990 = vmatpush1.bf16.msra.mxu0 0
    %5991 = vmatprep.subr.bf16.mxu0 0
    %5992 = vmatpush1.bf16.msra.mxu0 0
    %5993 = vmatprep.subr.bf16.mxu0 0
    %5994 = vmatpush1.bf16.msra.mxu0 0
    %5995 = vmatprep.subr.bf16.mxu0 0
    %5996 = vmatpush1.bf16.msra.mxu0 0
    %5997 = vmatprep.subr.bf16.mxu0 0
    %5998 = vmatpush1.bf16.msra.mxu0 0
    %5999 = vmatprep.subr.bf16.mxu0 0
    %6000 = vmatpush1.bf16.msra.mxu0 0
    %6001 = vmatprep.subr.bf16.mxu0 0
    %6002 = vmatpush1.bf16.msra.mxu0 0
    %6003 = vmatprep.mubr.bf16.mxu0 0
    %6004 = vmatmul.mubr.bf16.gmra.mrb[0].mxu0 %v5962
    %v6005 = vpop.f32.mrb[0].mxu0
    %v6006 = vadd.f32 0.0, %v6005
    %v6007 = vpop.f32.mrb[0].mxu0
    %v6008 = vadd.f32 0.0, %v6007
    %v6009 = vpop.f32.mrb[0].mxu0
    %v6010 = vpop.f32.mrb[0].mxu0
    %6011 = vdwg.mxu0
    %v6012 = vpack.c.bf16 %v6006, %v6006
    %v6013 = vpack.c.bf16 %v6008, %v6008
    %v6014 = vld [vmem:[#allocation18] sm:$0xf]
    %v6015 = vld [vmem:[#allocation18 + $0x4] sm:$0xf]
    %v6016 = vld [vmem:[#allocation18 + $0x8] sm:$0xf]
    %v6017 = vld [vmem:[#allocation18 + $0xc] sm:$0xf]
    %v6018 = vld [vmem:[#allocation18 + $0x10] sm:$0xf]
    %v6019 = vld [vmem:[#allocation18 + $0x14] sm:$0xf]
    %v6020 = vld [vmem:[#allocation18 + $0x18] sm:$0xf]
    %v6021 = vld [vmem:[#allocation18 + $0x1c] sm:$0xf]
    %v6022 = vld [vmem:[#allocation18 + $0x20] sm:$0xf]
    %v6023 = vld [vmem:[#allocation18 + $0x24] sm:$0xf]
    %v6024 = vld [vmem:[#allocation18 + $0x28] sm:$0xf]
    %v6025 = vld [vmem:[#allocation18 + $0x2c] sm:$0xf]
    %v6026 = vld [vmem:[#allocation18 + $0x30] sm:$0xf]
    %v6027 = vld [vmem:[#allocation18 + $0x34] sm:$0xf]
    %v6028 = vld [vmem:[#allocation18 + $0x38] sm:$0xf]
    %v6029 = vld [vmem:[#allocation18 + $0x3c] sm:$0xf]
    %v6030 = vld [vmem:[#allocation18 + $0x40] sm:$0xf]
    %v6031 = vld [vmem:[#allocation18 + $0x44] sm:$0xf]
    %v6032 = vld [vmem:[#allocation18 + $0x48] sm:$0xf]
    %v6033 = vld [vmem:[#allocation18 + $0x4c] sm:$0xf]
    %v6034 = vld [vmem:[#allocation18 + $0x50] sm:$0xf]
    %v6035 = vld [vmem:[#allocation18 + $0x54] sm:$0xf]
    %v6036 = vld [vmem:[#allocation18 + $0x58] sm:$0xf]
    %v6037 = vld [vmem:[#allocation18 + $0x5c] sm:$0xf]
    %v6038 = vld [vmem:[#allocation18 + $0x60] sm:$0xf]
    %v6039 = vld [vmem:[#allocation18 + $0x64] sm:$0xf]
    %v6040 = vld [vmem:[#allocation18 + $0x68] sm:$0xf]
    %v6041 = vld [vmem:[#allocation18 + $0x6c] sm:$0xf]
    %v6042 = vld [vmem:[#allocation18 + $0x70] sm:$0xf]
    %v6043 = vld [vmem:[#allocation18 + $0x74] sm:$0xf]
    %v6044 = vld [vmem:[#allocation18 + $0x78] sm:$0xf]
    %v6045 = vld [vmem:[#allocation18 + $0x7c] sm:$0xf]
    %s6046 = scalar_lea.vmem [#allocation16], 2
    %v6047 = vld [vmem:[%s6046] sm:$0x3]
    %v6049 = vsel %vm5960, %v6047, 0
    %6051 = vmatprep.subr.bf16.mxu0 %v5969
    %6052 = vmatpush1.bf16.msra.mxu0 %v5966
    %6053 = vmatprep.subr.bf16.mxu0 0
    %6054 = vmatpush1.bf16.msra.mxu0 0
    %6055 = vmatprep.subr.bf16.mxu0 0
    %6056 = vmatpush1.bf16.msra.mxu0 0
    %6057 = vmatprep.subr.bf16.mxu0 0
    %6058 = vmatpush1.bf16.msra.mxu0 0
    %6059 = vmatprep.subr.bf16.mxu0 0
    %6060 = vmatpush1.bf16.msra.mxu0 0
    %6061 = vmatprep.subr.bf16.mxu0 0
    %6062 = vmatpush1.bf16.msra.mxu0 0
    %6063 = vmatprep.subr.bf16.mxu0 0
    %6064 = vmatpush1.bf16.msra.mxu0 0
    %6065 = vmatprep.subr.bf16.mxu0 0
    %6066 = vmatpush1.bf16.msra.mxu0 0
    %6067 = vmatprep.subr.bf16.mxu0 0
    %6068 = vmatpush1.bf16.msra.mxu0 0
    %6069 = vmatprep.subr.bf16.mxu0 0
    %6070 = vmatpush1.bf16.msra.mxu0 0
    %6071 = vmatprep.subr.bf16.mxu0 0
    %6072 = vmatpush1.bf16.msra.mxu0 0
    %6073 = vmatprep.subr.bf16.mxu0 0
    %6074 = vmatpush1.bf16.msra.mxu0 0
    %6075 = vmatprep.subr.bf16.mxu0 0
    %6076 = vmatpush1.bf16.msra.mxu0 0
    %6077 = vmatprep.subr.bf16.mxu0 0
    %6078 = vmatpush1.bf16.msra.mxu0 0
    %6079 = vmatprep.subr.bf16.mxu0 0
    %6080 = vmatpush1.bf16.msra.mxu0 0
    %6081 = vmatprep.subr.bf16.mxu0 0
    %6082 = vmatpush1.bf16.msra.mxu0 0
    %6083 = vmatprep.mubr.bf16.mxu0 0
    %6084 = vmatmul.mubr.bf16.gmra.mrb[0].mxu0 %v6049
    %v6085 = vpop.f32.mrb[0].mxu0
    %v6086 = vadd.f32 0.0, %v6085
    %v6087 = vpop.f32.mrb[0].mxu0
    %v6088 = vadd.f32 0.0, %v6087
    %v6089 = vpop.f32.mrb[0].mxu0
    %v6090 = vpop.f32.mrb[0].mxu0
    %6091 = vdwg.mxu0
    %v6092 = vpack.c.bf16 %v6086, %v6086
    %v6093 = vpack.c.bf16 %v6088, %v6088
    %s6094 = scalar_lea.vmem [#allocation18], 128
    %v6095 = vld [vmem:[%s6094] sm:$0xf]
    %v6096 = vld [vmem:[%s6094 + $0x4] sm:$0xf]
    %v6097 = vld [vmem:[%s6094 + $0x8] sm:$0xf]
    %v6098 = vld [vmem:[%s6094 + $0xc] sm:$0xf]
    %v6099 = vld [vmem:[%s6094 + $0x10] sm:$0xf]
    %v6100 = vld [vmem:[%s6094 + $0x14] sm:$0xf]
    %v6101 = vld [vmem:[%s6094 + $0x18] sm:$0xf]
    %v6102 = vld [vmem:[%s6094 + $0x1c] sm:$0xf]
    %v6103 = vld [vmem:[%s6094 + $0x20] sm:$0xf]
    %v6104 = vld [vmem:[%s6094 + $0x24] sm:$0xf]
    %v6105 = vld [vmem:[%s6094 + $0x28] sm:$0xf]
    %v6106 = vld [vmem:[%s6094 + $0x2c] sm:$0xf]
    %v6107 = vld [vmem:[%s6094 + $0x30] sm:$0xf]
    %v6108 = vld [vmem:[%s6094 + $0x34] sm:$0xf]
    %v6109 = vld [vmem:[%s6094 + $0x38] sm:$0xf]
    %v6110 = vld [vmem:[%s6094 + $0x3c] sm:$0xf]
    %v6111 = vld [vmem:[%s6094 + $0x40] sm:$0xf]
    %v6112 = vld [vmem:[%s6094 + $0x44] sm:$0xf]
    %v6113 = vld [vmem:[%s6094 + $0x48] sm:$0xf]
    %v6114 = vld [vmem:[%s6094 + $0x4c] sm:$0xf]
    %v6115 = vld [vmem:[%s6094 + $0x50] sm:$0xf]
    %v6116 = vld [vmem:[%s6094 + $0x54] sm:$0xf]
    %v6117 = vld [vmem:[%s6094 + $0x58] sm:$0xf]
    %v6118 = vld [vmem:[%s6094 + $0x5c] sm:$0xf]
    %v6119 = vld [vmem:[%s6094 + $0x60] sm:$0xf]
    %v6120 = vld [vmem:[%s6094 + $0x64] sm:$0xf]
    %v6121 = vld [vmem:[%s6094 + $0x68] sm:$0xf]
    %v6122 = vld [vmem:[%s6094 + $0x6c] sm:$0xf]
    %v6123 = vld [vmem:[%s6094 + $0x70] sm:$0xf]
    %v6124 = vld [vmem:[%s6094 + $0x74] sm:$0xf]
    %v6125 = vld [vmem:[%s6094 + $0x78] sm:$0xf]
    %v6126 = vld [vmem:[%s6094 + $0x7c] sm:$0xf]
    %v6159 = vunpack.c.l.b16 %v6095
    %v6160 = vunpack.c.l.b16 %v6096
    %v6161 = vunpack.c.l.b16 %v6097
    %v6162 = vunpack.c.l.b16 %v6098
    %v6163 = vunpack.c.l.b16 %v6099
    %v6164 = vunpack.c.l.b16 %v6100
    %v6165 = vunpack.c.l.b16 %v6101
    %v6166 = vunpack.c.l.b16 %v6102
    %v6167 = vunpack.c.l.b16 %v6103
    %v6168 = vunpack.c.l.b16 %v6104
    %v6169 = vunpack.c.l.b16 %v6105
    %v6170 = vunpack.c.l.b16 %v6106
    %v6171 = vunpack.c.l.b16 %v6107
    %v6172 = vunpack.c.l.b16 %v6108
    %v6173 = vunpack.c.l.b16 %v6109
    %v6174 = vunpack.c.l.b16 %v6110
    %v6175 = vunpack.c.l.b16 %v6111
    %v6176 = vunpack.c.l.b16 %v6112
    %v6177 = vunpack.c.l.b16 %v6113
    %v6178 = vunpack.c.l.b16 %v6114
    %v6179 = vunpack.c.l.b16 %v6115
    %v6180 = vunpack.c.l.b16 %v6116
    %v6181 = vunpack.c.l.b16 %v6117
    %v6182 = vunpack.c.l.b16 %v6118
    %v6183 = vunpack.c.l.b16 %v6119
    %v6184 = vunpack.c.l.b16 %v6120
    %v6185 = vunpack.c.l.b16 %v6121
    %v6186 = vunpack.c.l.b16 %v6122
    %v6187 = vunpack.c.l.b16 %v6123
    %v6188 = vunpack.c.l.b16 %v6124
    %v6189 = vunpack.c.l.b16 %v6125
    %v6190 = vunpack.c.l.b16 %v6126
    %v6191 = vpack.c.b16 %v6160, %v6159
    %v6192 = vpack.c.b16 %v6162, %v6161
    %v6193 = vpack.c.b16 %v6164, %v6163
    %v6194 = vpack.c.b16 %v6166, %v6165
    %v6195 = vpack.c.b16 %v6168, %v6167
    %v6196 = vpack.c.b16 %v6170, %v6169
    %v6197 = vpack.c.b16 %v6172, %v6171
    %v6198 = vpack.c.b16 %v6174, %v6173
    %v6199 = vpack.c.b16 %v6176, %v6175
    %v6200 = vpack.c.b16 %v6178, %v6177
    %v6201 = vpack.c.b16 %v6180, %v6179
    %v6202 = vpack.c.b16 %v6182, %v6181
    %v6203 = vpack.c.b16 %v6184, %v6183
    %v6204 = vpack.c.b16 %v6186, %v6185
    %v6205 = vpack.c.b16 %v6188, %v6187
    %v6206 = vpack.c.b16 %v6190, %v6189
    %6223 = vmatprep.subr.bf16.mxu0 0
    %6224 = vmatpush1.bf16.msra.mxu0 %v6191
    %6225 = vmatprep.subr.bf16.mxu0 0
    %6226 = vmatpush1.bf16.msra.mxu0 %v6192
    %6227 = vmatprep.subr.bf16.mxu0 0
    %6228 = vmatpush1.bf16.msra.mxu0 %v6193
    %6229 = vmatprep.subr.bf16.mxu0 0
    %6230 = vmatpush1.bf16.msra.mxu0 %v6194
    %6231 = vmatprep.subr.bf16.mxu0 0
    %6232 = vmatpush1.bf16.msra.mxu0 %v6195
    %6233 = vmatprep.subr.bf16.mxu0 0
    %6234 = vmatpush1.bf16.msra.mxu0 %v6196
    %6235 = vmatprep.subr.bf16.mxu0 0
    %6236 = vmatpush1.bf16.msra.mxu0 %v6197
    %6237 = vmatprep.subr.bf16.mxu0 0
    %6238 = vmatpush1.bf16.msra.mxu0 %v6198
    %6239 = vmatprep.subr.bf16.mxu0 0
    %6240 = vmatpush1.bf16.msra.mxu0 %v6199
    %6241 = vmatprep.subr.bf16.mxu0 0
    %6242 = vmatpush1.bf16.msra.mxu0 %v6200
    %6243 = vmatprep.subr.bf16.mxu0 0
    %6244 = vmatpush1.bf16.msra.mxu0 %v6201
    %6245 = vmatprep.subr.bf16.mxu0 0
    %6246 = vmatpush1.bf16.msra.mxu0 %v6202
    %6247 = vmatprep.subr.bf16.mxu0 0
    %6248 = vmatpush1.bf16.msra.mxu0 %v6203
    %6249 = vmatprep.subr.bf16.mxu0 0
    %6250 = vmatpush1.bf16.msra.mxu0 %v6204
    %6251 = vmatprep.subr.bf16.mxu0 0
    %6252 = vmatpush1.bf16.msra.mxu0 %v6205
    %6253 = vmatprep.subr.bf16.mxu0 0
    %6254 = vmatpush1.bf16.msra.mxu0 %v6206
    %6255 = vmatprep.mubr.bf16.mxu0 %v6093
    %6256 = vmatmul.mubr.bf16.gmra.mrb[0].mxu0 %v6092
    %v6257 = vpop.f32.mrb[0].mxu0
    %v6258 = vadd.f32 0.0, %v6257
    %v6259 = vpop.f32.mrb[0].mxu0
    %v6260 = vpop.f32.mrb[0].mxu0
    %v6261 = vpop.f32.mrb[0].mxu0
    %6262 = vdwg.mxu0
    %v6295 = vunpack.c.l.b16 %v6014
    %v6296 = vunpack.c.l.b16 %v6015
    %v6297 = vunpack.c.l.b16 %v6016
    %v6298 = vunpack.c.l.b16 %v6017
    %v6299 = vunpack.c.l.b16 %v6018
    %v6300 = vunpack.c.l.b16 %v6019
    %v6301 = vunpack.c.l.b16 %v6020
    %v6302 = vunpack.c.l.b16 %v6021
    %v6303 = vunpack.c.l.b16 %v6022
    %v6304 = vunpack.c.l.b16 %v6023
    %v6305 = vunpack.c.l.b16 %v6024
    %v6306 = vunpack.c.l.b16 %v6025
    %v6307 = vunpack.c.l.b16 %v6026
    %v6308 = vunpack.c.l.b16 %v6027
    %v6309 = vunpack.c.l.b16 %v6028
    %v6310 = vunpack.c.l.b16 %v6029
    %v6311 = vunpack.c.l.b16 %v6030
    %v6312 = vunpack.c.l.b16 %v6031
    %v6313 = vunpack.c.l.b16 %v6032
    %v6314 = vunpack.c.l.b16 %v6033
    %v6315 = vunpack.c.l.b16 %v6034
    %v6316 = vunpack.c.l.b16 %v6035
    %v6317 = vunpack.c.l.b16 %v6036
    %v6318 = vunpack.c.l.b16 %v6037
    %v6319 = vunpack.c.l.b16 %v6038
    %v6320 = vunpack.c.l.b16 %v6039
    %v6321 = vunpack.c.l.b16 %v6040
    %v6322 = vunpack.c.l.b16 %v6041
    %v6323 = vunpack.c.l.b16 %v6042
    %v6324 = vunpack.c.l.b16 %v6043
    %v6325 = vunpack.c.l.b16 %v6044
    %v6326 = vunpack.c.l.b16 %v6045
    %v6327 = vpack.c.b16 %v6296, %v6295
    %v6328 = vpack.c.b16 %v6298, %v6297
    %v6329 = vpack.c.b16 %v6300, %v6299
    %v6330 = vpack.c.b16 %v6302, %v6301
    %v6331 = vpack.c.b16 %v6304, %v6303
    %v6332 = vpack.c.b16 %v6306, %v6305
    %v6333 = vpack.c.b16 %v6308, %v6307
    %v6334 = vpack.c.b16 %v6310, %v6309
    %v6335 = vpack.c.b16 %v6312, %v6311
    %v6336 = vpack.c.b16 %v6314, %v6313
    %v6337 = vpack.c.b16 %v6316, %v6315
    %v6338 = vpack.c.b16 %v6318, %v6317
    %v6339 = vpack.c.b16 %v6320, %v6319
    %v6340 = vpack.c.b16 %v6322, %v6321
    %v6341 = vpack.c.b16 %v6324, %v6323
    %v6342 = vpack.c.b16 %v6326, %v6325
    %6359 = vmatprep.subr.bf16.mxu0 0
    %6360 = vmatpush1.bf16.msra.mxu0 %v6327
    %6361 = vmatprep.subr.bf16.mxu0 0
    %6362 = vmatpush1.bf16.msra.mxu0 %v6328
    %6363 = vmatprep.subr.bf16.mxu0 0
    %6364 = vmatpush1.bf16.msra.mxu0 %v6329
    %6365 = vmatprep.subr.bf16.mxu0 0
    %6366 = vmatpush1.bf16.msra.mxu0 %v6330
    %6367 = vmatprep.subr.bf16.mxu0 0
    %6368 = vmatpush1.bf16.msra.mxu0 %v6331
    %6369 = vmatprep.subr.bf16.mxu0 0
    %6370 = vmatpush1.bf16.msra.mxu0 %v6332
    %6371 = vmatprep.subr.bf16.mxu0 0
    %6372 = vmatpush1.bf16.msra.mxu0 %v6333
    %6373 = vmatprep.subr.bf16.mxu0 0
    %6374 = vmatpush1.bf16.msra.mxu0 %v6334
    %6375 = vmatprep.subr.bf16.mxu0 0
    %6376 = vmatpush1.bf16.msra.mxu0 %v6335
    %6377 = vmatprep.subr.bf16.mxu0 0
    %6378 = vmatpush1.bf16.msra.mxu0 %v6336
    %6379 = vmatprep.subr.bf16.mxu0 0
    %6380 = vmatpush1.bf16.msra.mxu0 %v6337
    %6381 = vmatprep.subr.bf16.mxu0 0
    %6382 = vmatpush1.bf16.msra.mxu0 %v6338
    %6383 = vmatprep.subr.bf16.mxu0 0
    %6384 = vmatpush1.bf16.msra.mxu0 %v6339
    %6385 = vmatprep.subr.bf16.mxu0 0
    %6386 = vmatpush1.bf16.msra.mxu0 %v6340
    %6387 = vmatprep.subr.bf16.mxu0 0
    %6388 = vmatpush1.bf16.msra.mxu0 %v6341
    %6389 = vmatprep.subr.bf16.mxu0 0
    %6390 = vmatpush1.bf16.msra.mxu0 %v6342
    %6391 = vmatprep.mubr.bf16.mxu0 %v6013
    %6392 = vmatmul.mubr.bf16.gmra.mrb[0].mxu0 %v6012
    %v6393 = vpop.f32.mrb[0].mxu0
    %v6394 = vadd.f32 %v6258, %v6393
    %v6395 = vpop.f32.mrb[0].mxu0
    %v6396 = vpop.f32.mrb[0].mxu0
    %v6397 = vpop.f32.mrb[0].mxu0
    %6398 = vdwg.mxu0
    %s6399 = scalar_lea.vmem [#allocation16], 4
    %v6400 = vld [vmem:[%s6399] sm:$0x3]
    %v6402 = vsel %vm5960, %v6400, 0
    %6404 = vmatprep.subr.bf16.mxu0 %v5969
    %6405 = vmatpush1.bf16.msra.mxu0 %v5966
    %6406 = vmatprep.subr.bf16.mxu0 0
    %6407 = vmatpush1.bf16.msra.mxu0 0
    %6408 = vmatprep.subr.bf16.mxu0 0
    %6409 = vmatpush1.bf16.msra.mxu0 0
    %6410 = vmatprep.subr.bf16.mxu0 0
    %6411 = vmatpush1.bf16.msra.mxu0 0
    %6412 = vmatprep.subr.bf16.mxu0 0
    %6413 = vmatpush1.bf16.msra.mxu0 0
    %6414 = vmatprep.subr.bf16.mxu0 0
    %6415 = vmatpush1.bf16.msra.mxu0 0
    %6416 = vmatprep.subr.bf16.mxu0 0
    %6417 = vmatpush1.bf16.msra.mxu0 0
    %6418 = vmatprep.subr.bf16.mxu0 0
    %6419 = vmatpush1.bf16.msra.mxu0 0
    %6420 = vmatprep.subr.bf16.mxu0 0
    %6421 = vmatpush1.bf16.msra.mxu0 0
    %6422 = vmatprep.subr.bf16.mxu0 0
    %6423 = vmatpush1.bf16.msra.mxu0 0
    %6424 = vmatprep.subr.bf16.mxu0 0
    %6425 = vmatpush1.bf16.msra.mxu0 0
    %6426 = vmatprep.subr.bf16.mxu0 0
    %6427 = vmatpush1.bf16.msra.mxu0 0
    %6428 = vmatprep.subr.bf16.mxu0 0
    %6429 = vmatpush1.bf16.msra.mxu0 0
    %6430 = vmatprep.subr.bf16.mxu0 0
    %6431 = vmatpush1.bf16.msra.mxu0 0
    %6432 = vmatprep.subr.bf16.mxu0 0
    %6433 = vmatpush1.bf16.msra.mxu0 0
    %6434 = vmatprep.subr.bf16.mxu0 0
    %6435 = vmatpush1.bf16.msra.mxu0 0
    %6436 = vmatprep.mubr.bf16.mxu0 0
    %6437 = vmatmul.mubr.bf16.gmra.mrb[0].mxu0 %v6402
    %v6438 = vpop.f32.mrb[0].mxu0
    %v6439 = vadd.f32 0.0, %v6438
    %v6440 = vpop.f32.mrb[0].mxu0
    %v6441 = vadd.f32 0.0, %v6440
    %v6442 = vpop.f32.mrb[0].mxu0
    %v6443 = vpop.f32.mrb[0].mxu0
    %6444 = vdwg.mxu0
    %v6445 = vpack.c.bf16 %v6439, %v6439
    %v6446 = vpack.c.bf16 %v6441, %v6441
    %s6447 = scalar_lea.vmem [#allocation18], 256
    %v6448 = vld [vmem:[%s6447] sm:$0xf]
    %v6449 = vld [vmem:[%s6447 + $0x4] sm:$0xf]
    %v6450 = vld [vmem:[%s6447 + $0x8] sm:$0xf]
    %v6451 = vld [vmem:[%s6447 + $0xc] sm:$0xf]
    %v6452 = vld [vmem:[%s6447 + $0x10] sm:$0xf]
    %v6453 = vld [vmem:[%s6447 + $0x14] sm:$0xf]
    %v6454 = vld [vmem:[%s6447 + $0x18] sm:$0xf]
    %v6455 = vld [vmem:[%s6447 + $0x1c] sm:$0xf]
    %v6456 = vld [vmem:[%s6447 + $0x20] sm:$0xf]
    %v6457 = vld [vmem:[%s6447 + $0x24] sm:$0xf]
    %v6458 = vld [vmem:[%s6447 + $0x28] sm:$0xf]
    %v6459 = vld [vmem:[%s6447 + $0x2c] sm:$0xf]
    %v6460 = vld [vmem:[%s6447 + $0x30] sm:$0xf]
    %v6461 = vld [vmem:[%s6447 + $0x34] sm:$0xf]
    %v6462 = vld [vmem:[%s6447 + $0x38] sm:$0xf]
    %v6463 = vld [vmem:[%s6447 + $0x3c] sm:$0xf]
    %v6464 = vld [vmem:[%s6447 + $0x40] sm:$0xf]
    %v6465 = vld [vmem:[%s6447 + $0x44] sm:$0xf]
    %v6466 = vld [vmem:[%s6447 + $0x48] sm:$0xf]
    %v6467 = vld [vmem:[%s6447 + $0x4c] sm:$0xf]
    %v6468 = vld [vmem:[%s6447 + $0x50] sm:$0xf]
    %v6469 = vld [vmem:[%s6447 + $0x54] sm:$0xf]
    %v6470 = vld [vmem:[%s6447 + $0x58] sm:$0xf]
    %v6471 = vld [vmem:[%s6447 + $0x5c] sm:$0xf]
    %v6472 = vld [vmem:[%s6447 + $0x60] sm:$0xf]
    %v6473 = vld [vmem:[%s6447 + $0x64] sm:$0xf]
    %v6474 = vld [vmem:[%s6447 + $0x68] sm:$0xf]
    %v6475 = vld [vmem:[%s6447 + $0x6c] sm:$0xf]
    %v6476 = vld [vmem:[%s6447 + $0x70] sm:$0xf]
    %v6477 = vld [vmem:[%s6447 + $0x74] sm:$0xf]
    %v6478 = vld [vmem:[%s6447 + $0x78] sm:$0xf]
    %v6479 = vld [vmem:[%s6447 + $0x7c] sm:$0xf]
    %v6512 = vunpack.c.l.b16 %v6448
    %v6513 = vunpack.c.l.b16 %v6449
    %v6514 = vunpack.c.l.b16 %v6450
    %v6515 = vunpack.c.l.b16 %v6451
    %v6516 = vunpack.c.l.b16 %v6452
    %v6517 = vunpack.c.l.b16 %v6453
    %v6518 = vunpack.c.l.b16 %v6454
    %v6519 = vunpack.c.l.b16 %v6455
    %v6520 = vunpack.c.l.b16 %v6456
    %v6521 = vunpack.c.l.b16 %v6457
    %v6522 = vunpack.c.l.b16 %v6458
    %v6523 = vunpack.c.l.b16 %v6459
    %v6524 = vunpack.c.l.b16 %v6460
    %v6525 = vunpack.c.l.b16 %v6461
    %v6526 = vunpack.c.l.b16 %v6462
    %v6527 = vunpack.c.l.b16 %v6463
    %v6528 = vunpack.c.l.b16 %v6464
    %v6529 = vunpack.c.l.b16 %v6465
    %v6530 = vunpack.c.l.b16 %v6466
    %v6531 = vunpack.c.l.b16 %v6467
    %v6532 = vunpack.c.l.b16 %v6468
    %v6533 = vunpack.c.l.b16 %v6469
    %v6534 = vunpack.c.l.b16 %v6470
    %v6535 = vunpack.c.l.b16 %v6471
    %v6536 = vunpack.c.l.b16 %v6472
    %v6537 = vunpack.c.l.b16 %v6473
    %v6538 = vunpack.c.l.b16 %v6474
    %v6539 = vunpack.c.l.b16 %v6475
    %v6540 = vunpack.c.l.b16 %v6476
    %v6541 = vunpack.c.l.b16 %v6477
    %v6542 = vunpack.c.l.b16 %v6478
    %v6543 = vunpack.c.l.b16 %v6479
    %v6544 = vpack.c.b16 %v6513, %v6512
    %v6545 = vpack.c.b16 %v6515, %v6514
    %v6546 = vpack.c.b16 %v6517, %v6516
    %v6547 = vpack.c.b16 %v6519, %v6518
    %v6548 = vpack.c.b16 %v6521, %v6520
    %v6549 = vpack.c.b16 %v6523, %v6522
    %v6550 = vpack.c.b16 %v6525, %v6524
    %v6551 = vpack.c.b16 %v6527, %v6526
    %v6552 = vpack.c.b16 %v6529, %v6528
    %v6553 = vpack.c.b16 %v6531, %v6530
    %v6554 = vpack.c.b16 %v6533, %v6532
    %v6555 = vpack.c.b16 %v6535, %v6534
    %v6556 = vpack.c.b16 %v6537, %v6536
    %v6557 = vpack.c.b16 %v6539, %v6538
    %v6558 = vpack.c.b16 %v6541, %v6540
    %v6559 = vpack.c.b16 %v6543, %v6542
    %6576 = vmatprep.subr.bf16.mxu0 0
    %6577 = vmatpush1.bf16.msra.mxu0 %v6544
    %6578 = vmatprep.subr.bf16.mxu0 0
    %6579 = vmatpush1.bf16.msra.mxu0 %v6545
    %6580 = vmatprep.subr.bf16.mxu0 0
    %6581 = vmatpush1.bf16.msra.mxu0 %v6546
    %6582 = vmatprep.subr.bf16.mxu0 0
    %6583 = vmatpush1.bf16.msra.mxu0 %v6547
    %6584 = vmatprep.subr.bf16.mxu0 0
    %6585 = vmatpush1.bf16.msra.mxu0 %v6548
    %6586 = vmatprep.subr.bf16.mxu0 0
    %6587 = vmatpush1.bf16.msra.mxu0 %v6549
    %6588 = vmatprep.subr.bf16.mxu0 0
    %6589 = vmatpush1.bf16.msra.mxu0 %v6550
    %6590 = vmatprep.subr.bf16.mxu0 0
    %6591 = vmatpush1.bf16.msra.mxu0 %v6551
    %6592 = vmatprep.subr.bf16.mxu0 0
    %6593 = vmatpush1.bf16.msra.mxu0 %v6552
    %6594 = vmatprep.subr.bf16.mxu0 0
    %6595 = vmatpush1.bf16.msra.mxu0 %v6553
    %6596 = vmatprep.subr.bf16.mxu0 0
    %6597 = vmatpush1.bf16.msra.mxu0 %v6554
    %6598 = vmatprep.subr.bf16.mxu0 0
    %6599 = vmatpush1.bf16.msra.mxu0 %v6555
    %6600 = vmatprep.subr.bf16.mxu0 0
    %6601 = vmatpush1.bf16.msra.mxu0 %v6556
    %6602 = vmatprep.subr.bf16.mxu0 0
    %6603 = vmatpush1.bf16.msra.mxu0 %v6557
    %6604 = vmatprep.subr.bf16.mxu0 0
    %6605 = vmatpush1.bf16.msra.mxu0 %v6558
    %6606 = vmatprep.subr.bf16.mxu0 0
    %6607 = vmatpush1.bf16.msra.mxu0 %v6559
    %6608 = vmatprep.mubr.bf16.mxu0 %v6446
    %6609 = vmatmul.mubr.bf16.gmra.mrb[0].mxu0 %v6445
    %v6610 = vpop.f32.mrb[0].mxu0
    %v6611 = vadd.f32 0.0, %v6610
    %v6612 = vpop.f32.mrb[0].mxu0
    %v6613 = vpop.f32.mrb[0].mxu0
    %v6614 = vpop.f32.mrb[0].mxu0
    %6615 = vdwg.mxu0
    %v6616 = vadd.f32 %v6394, %v6611
    %v6617 = vld [vmem:[#allocation19] sm:$0x1]
    %v6619 = vlaneseq
    %v6620 = vshrl.u32 %v6619, 7
    %v6621 = vsub.s32 0, %v6620
    %v6622 = vrot.slane %v6617, %v6621
    %v6624 = vadd.f32 %v6616, %v6622
    %vm6625 = vcmp.gt.f32.partialorder %v6624, 0.0
    %v6626 = vmul.f32 %v6624, 0.01
    %v6627 = vsel %vm6625, %v6624, %v6626
    %v6628 = vpack.c.bf16 %v6627, %v6627
    %v6629 = vld [vmem:[#allocation21] sm:$0xff]
    %v6630 = vld [vmem:[#allocation21 + $0x8] sm:$0xff]
    %v6631 = vld [vmem:[#allocation21 + $0x10] sm:$0xff]
    %v6632 = vld [vmem:[#allocation21 + $0x18] sm:$0xff]
    %v6633 = vld [vmem:[#allocation21 + $0x20] sm:$0xff]
    %v6634 = vld [vmem:[#allocation21 + $0x28] sm:$0xff]
    %v6635 = vld [vmem:[#allocation21 + $0x30] sm:$0xff]
    %v6636 = vld [vmem:[#allocation21 + $0x38] sm:$0xff]
    %v6637 = vld [vmem:[#allocation21 + $0x40] sm:$0xff]
    %v6638 = vld [vmem:[#allocation21 + $0x48] sm:$0xff]
    %v6639 = vld [vmem:[#allocation21 + $0x50] sm:$0xff]
    %v6640 = vld [vmem:[#allocation21 + $0x58] sm:$0xff]
    %v6641 = vld [vmem:[#allocation21 + $0x60] sm:$0xff]
    %v6642 = vld [vmem:[#allocation21 + $0x68] sm:$0xff]
    %v6643 = vld [vmem:[#allocation21 + $0x70] sm:$0xff]
    %v6644 = vld [vmem:[#allocation21 + $0x78] sm:$0xff]
    %v6645 = vld [vmem:[#allocation21 + $0x80] sm:$0xff]
    %v6646 = vld [vmem:[#allocation21 + $0x88] sm:$0xff]
    %v6647 = vld [vmem:[#allocation21 + $0x90] sm:$0xff]
    %v6648 = vld [vmem:[#allocation21 + $0x98] sm:$0xff]
    %v6649 = vld [vmem:[#allocation21 + $0xa0] sm:$0xff]
    %v6650 = vld [vmem:[#allocation21 + $0xa8] sm:$0xff]
    %v6651 = vld [vmem:[#allocation21 + $0xb0] sm:$0xff]
    %v6652 = vld [vmem:[#allocation21 + $0xb8] sm:$0xff]
    %v6653 = vld [vmem:[#allocation21 + $0xc0] sm:$0xff]
    %v6654 = vld [vmem:[#allocation21 + $0xc8] sm:$0xff]
    %v6655 = vld [vmem:[#allocation21 + $0xd0] sm:$0xff]
    %v6656 = vld [vmem:[#allocation21 + $0xd8] sm:$0xff]
    %v6657 = vld [vmem:[#allocation21 + $0xe0] sm:$0xff]
    %v6658 = vld [vmem:[#allocation21 + $0xe8] sm:$0xff]
    %v6659 = vld [vmem:[#allocation21 + $0xf0] sm:$0xff]
    %v6660 = vld [vmem:[#allocation21 + $0xf8] sm:$0xff]
    %s6661 = scalar_lea.vmem [#allocation21], 256
    %v6662 = vld [vmem:[%s6661] sm:$0xff]
    %v6663 = vld [vmem:[%s6661 + $0x8] sm:$0xff]
    %v6664 = vld [vmem:[%s6661 + $0x10] sm:$0xff]
    %v6665 = vld [vmem:[%s6661 + $0x18] sm:$0xff]
    %v6666 = vld [vmem:[%s6661 + $0x20] sm:$0xff]
    %v6667 = vld [vmem:[%s6661 + $0x28] sm:$0xff]
    %v6668 = vld [vmem:[%s6661 + $0x30] sm:$0xff]
    %v6669 = vld [vmem:[%s6661 + $0x38] sm:$0xff]
    %v6670 = vld [vmem:[%s6661 + $0x40] sm:$0xff]
    %v6671 = vld [vmem:[%s6661 + $0x48] sm:$0xff]
    %v6672 = vld [vmem:[%s6661 + $0x50] sm:$0xff]
    %v6673 = vld [vmem:[%s6661 + $0x58] sm:$0xff]
    %v6674 = vld [vmem:[%s6661 + $0x60] sm:$0xff]
    %v6675 = vld [vmem:[%s6661 + $0x68] sm:$0xff]
    %v6676 = vld [vmem:[%s6661 + $0x70] sm:$0xff]
    %v6677 = vld [vmem:[%s6661 + $0x78] sm:$0xff]
    %v6678 = vld [vmem:[%s6661 + $0x80] sm:$0xff]
    %v6679 = vld [vmem:[%s6661 + $0x88] sm:$0xff]
    %v6680 = vld [vmem:[%s6661 + $0x90] sm:$0xff]
    %v6681 = vld [vmem:[%s6661 + $0x98] sm:$0xff]
    %v6682 = vld [vmem:[%s6661 + $0xa0] sm:$0xff]
    %v6683 = vld [vmem:[%s6661 + $0xa8] sm:$0xff]
    %v6684 = vld [vmem:[%s6661 + $0xb0] sm:$0xff]
    %v6685 = vld [vmem:[%s6661 + $0xb8] sm:$0xff]
    %v6686 = vld [vmem:[%s6661 + $0xc0] sm:$0xff]
    %v6687 = vld [vmem:[%s6661 + $0xc8] sm:$0xff]
    %v6688 = vld [vmem:[%s6661 + $0xd0] sm:$0xff]
    %v6689 = vld [vmem:[%s6661 + $0xd8] sm:$0xff]
    %v6690 = vld [vmem:[%s6661 + $0xe0] sm:$0xff]
    %v6691 = vld [vmem:[%s6661 + $0xe8] sm:$0xff]
    %v6692 = vld [vmem:[%s6661 + $0xf0] sm:$0xff]
    %v6693 = vld [vmem:[%s6661 + $0xf8] sm:$0xff]
    %v6695 = vrot.slane %v6628, 1
    %v6729 = vunpack.c.l.b16 %v6662
    %v6730 = vunpack.c.h.b16 %v6662
    %v6731 = vunpack.c.l.b16 %v6663
    %v6732 = vunpack.c.h.b16 %v6663
    %v6733 = vunpack.c.l.b16 %v6664
    %v6734 = vunpack.c.h.b16 %v6664
    %v6735 = vunpack.c.l.b16 %v6665
    %v6736 = vunpack.c.h.b16 %v6665
    %v6737 = vunpack.c.l.b16 %v6666
    %v6738 = vunpack.c.h.b16 %v6666
    %v6739 = vunpack.c.l.b16 %v6667
    %v6740 = vunpack.c.h.b16 %v6667
    %v6741 = vunpack.c.l.b16 %v6668
    %v6742 = vunpack.c.h.b16 %v6668
    %v6743 = vunpack.c.l.b16 %v6669
    %v6744 = vunpack.c.h.b16 %v6669
    %v6745 = vunpack.c.l.b16 %v6670
    %v6746 = vunpack.c.h.b16 %v6670
    %v6747 = vunpack.c.l.b16 %v6671
    %v6748 = vunpack.c.h.b16 %v6671
    %v6749 = vunpack.c.l.b16 %v6672
    %v6750 = vunpack.c.h.b16 %v6672
    %v6751 = vunpack.c.l.b16 %v6673
    %v6752 = vunpack.c.h.b16 %v6673
    %v6753 = vunpack.c.l.b16 %v6674
    %v6754 = vunpack.c.h.b16 %v6674
    %v6755 = vunpack.c.l.b16 %v6675
    %v6756 = vunpack.c.h.b16 %v6675
    %v6757 = vunpack.c.l.b16 %v6676
    %v6758 = vunpack.c.h.b16 %v6676
    %v6759 = vunpack.c.l.b16 %v6677
    %v6760 = vunpack.c.h.b16 %v6677
    %v6761 = vunpack.c.l.b16 %v6678
    %v6762 = vunpack.c.h.b16 %v6678
    %v6763 = vunpack.c.l.b16 %v6679
    %v6764 = vunpack.c.h.b16 %v6679
    %v6765 = vunpack.c.l.b16 %v6680
    %v6766 = vunpack.c.h.b16 %v6680
    %v6767 = vunpack.c.l.b16 %v6681
    %v6768 = vunpack.c.h.b16 %v6681
    %v6769 = vunpack.c.l.b16 %v6682
    %v6770 = vunpack.c.h.b16 %v6682
    %v6771 = vunpack.c.l.b16 %v6683
    %v6772 = vunpack.c.h.b16 %v6683
    %v6773 = vunpack.c.l.b16 %v6684
    %v6774 = vunpack.c.h.b16 %v6684
    %v6775 = vunpack.c.l.b16 %v6685
    %v6776 = vunpack.c.h.b16 %v6685
    %v6777 = vunpack.c.l.b16 %v6686
    %v6778 = vunpack.c.h.b16 %v6686
    %v6779 = vunpack.c.l.b16 %v6687
    %v6780 = vunpack.c.h.b16 %v6687
    %v6781 = vunpack.c.l.b16 %v6688
    %v6782 = vunpack.c.h.b16 %v6688
    %v6783 = vunpack.c.l.b16 %v6689
    %v6784 = vunpack.c.h.b16 %v6689
    %v6785 = vunpack.c.l.b16 %v6690
    %v6786 = vunpack.c.h.b16 %v6690
    %v6787 = vunpack.c.l.b16 %v6691
    %v6788 = vunpack.c.h.b16 %v6691
    %v6789 = vunpack.c.l.b16 %v6692
    %v6790 = vunpack.c.h.b16 %v6692
    %v6791 = vunpack.c.l.b16 %v6693
    %v6792 = vunpack.c.h.b16 %v6693
    %v6793 = vpack.c.b16 %v6733, %v6729
    %v6794 = vpack.c.b16 %v6734, %v6730
    %v6795 = vpack.c.b16 %v6735, %v6731
    %v6796 = vpack.c.b16 %v6736, %v6732
    %v6797 = vpack.c.b16 %v6741, %v6737
    %v6798 = vpack.c.b16 %v6742, %v6738
    %v6799 = vpack.c.b16 %v6743, %v6739
    %v6800 = vpack.c.b16 %v6744, %v6740
    %v6801 = vpack.c.b16 %v6749, %v6745
    %v6802 = vpack.c.b16 %v6750, %v6746
    %v6803 = vpack.c.b16 %v6751, %v6747
    %v6804 = vpack.c.b16 %v6752, %v6748
    %v6805 = vpack.c.b16 %v6757, %v6753
    %v6806 = vpack.c.b16 %v6758, %v6754
    %v6807 = vpack.c.b16 %v6759, %v6755
    %v6808 = vpack.c.b16 %v6760, %v6756
    %v6809 = vpack.c.b16 %v6765, %v6761
    %v6810 = vpack.c.b16 %v6766, %v6762
    %v6811 = vpack.c.b16 %v6767, %v6763
    %v6812 = vpack.c.b16 %v6768, %v6764
    %v6813 = vpack.c.b16 %v6773, %v6769
    %v6814 = vpack.c.b16 %v6774, %v6770
    %v6815 = vpack.c.b16 %v6775, %v6771
    %v6816 = vpack.c.b16 %v6776, %v6772
    %v6817 = vpack.c.b16 %v6781, %v6777
    %v6818 = vpack.c.b16 %v6782, %v6778
    %v6819 = vpack.c.b16 %v6783, %v6779
    %v6820 = vpack.c.b16 %v6784, %v6780
    %v6821 = vpack.c.b16 %v6789, %v6785
    %v6822 = vpack.c.b16 %v6790, %v6786
    %v6823 = vpack.c.b16 %v6791, %v6787
    %v6824 = vpack.c.b16 %v6792, %v6788
    %6857 = vmatprep.subr.bf16.mxu0 %v6794
    %6858 = vmatpush1.bf16.msra.mxu0 %v6793
    %6859 = vmatprep.subr.bf16.mxu0 %v6798
    %6860 = vmatpush1.bf16.msra.mxu0 %v6797
    %6861 = vmatprep.subr.bf16.mxu0 %v6802
    %6862 = vmatpush1.bf16.msra.mxu0 %v6801
    %6863 = vmatprep.subr.bf16.mxu0 %v6806
    %6864 = vmatpush1.bf16.msra.mxu0 %v6805
    %6865 = vmatprep.subr.bf16.mxu0 %v6810
    %6866 = vmatpush1.bf16.msra.mxu0 %v6809
    %6867 = vmatprep.subr.bf16.mxu0 %v6814
    %6868 = vmatpush1.bf16.msra.mxu0 %v6813
    %6869 = vmatprep.subr.bf16.mxu0 %v6818
    %6870 = vmatpush1.bf16.msra.mxu0 %v6817
    %6871 = vmatprep.subr.bf16.mxu0 %v6822
    %6872 = vmatpush1.bf16.msra.mxu0 %v6821
    %6873 = vmatprep.subr.bf16.mxu0 0
    %6874 = vmatpush1.bf16.msra.mxu0 0
    %6875 = vmatprep.subr.bf16.mxu0 0
    %6876 = vmatpush1.bf16.msra.mxu0 0
    %6877 = vmatprep.subr.bf16.mxu0 0
    %6878 = vmatpush1.bf16.msra.mxu0 0
    %6879 = vmatprep.subr.bf16.mxu0 0
    %6880 = vmatpush1.bf16.msra.mxu0 0
    %6881 = vmatprep.subr.bf16.mxu0 0
    %6882 = vmatpush1.bf16.msra.mxu0 0
    %6883 = vmatprep.subr.bf16.mxu0 0
    %6884 = vmatpush1.bf16.msra.mxu0 0
    %6885 = vmatprep.subr.bf16.mxu0 0
    %6886 = vmatpush1.bf16.msra.mxu0 0
    %6887 = vmatprep.subr.bf16.mxu0 0
    %6888 = vmatpush1.bf16.msra.mxu0 0
    %6889 = vmatprep.mubr.bf16.mxu0 0
    %6890 = vmatmul.mubr.bf16.gmra.mrb[0].mxu0 %v6695
    %v6891 = vpop.f32.mrb[0].mxu0
    %v6892 = vadd.f32 0.0, %v6891
    %v6893 = vpop.f32.mrb[0].mxu0
    %v6894 = vadd.f32 0.0, %v6893
    %v6895 = vpop.f32.mrb[0].mxu0
    %v6896 = vpop.f32.mrb[0].mxu0
    %6897 = vdwg.mxu0
    %6898 = vmatprep.subr.bf16.mxu0 %v6796
    %6899 = vmatpush1.bf16.msra.mxu0 %v6795
    %6900 = vmatprep.subr.bf16.mxu0 %v6800
    %6901 = vmatpush1.bf16.msra.mxu0 %v6799
    %6902 = vmatprep.subr.bf16.mxu0 %v6804
    %6903 = vmatpush1.bf16.msra.mxu0 %v6803
    %6904 = vmatprep.subr.bf16.mxu0 %v6808
    %6905 = vmatpush1.bf16.msra.mxu0 %v6807
    %6906 = vmatprep.subr.bf16.mxu0 %v6812
    %6907 = vmatpush1.bf16.msra.mxu0 %v6811
    %6908 = vmatprep.subr.bf16.mxu0 %v6816
    %6909 = vmatpush1.bf16.msra.mxu0 %v6815
    %6910 = vmatprep.subr.bf16.mxu0 %v6820
    %6911 = vmatpush1.bf16.msra.mxu0 %v6819
    %6912 = vmatprep.subr.bf16.mxu0 %v6824
    %6913 = vmatpush1.bf16.msra.mxu0 %v6823
    %6914 = vmatprep.subr.bf16.mxu0 0
    %6915 = vmatpush1.bf16.msra.mxu0 0
    %6916 = vmatprep.subr.bf16.mxu0 0
    %6917 = vmatpush1.bf16.msra.mxu0 0
    %6918 = vmatprep.subr.bf16.mxu0 0
    %6919 = vmatpush1.bf16.msra.mxu0 0
    %6920 = vmatprep.subr.bf16.mxu0 0
    %6921 = vmatpush1.bf16.msra.mxu0 0
    %6922 = vmatprep.subr.bf16.mxu0 0
    %6923 = vmatpush1.bf16.msra.mxu0 0
    %6924 = vmatprep.subr.bf16.mxu0 0
    %6925 = vmatpush1.bf16.msra.mxu0 0
    %6926 = vmatprep.subr.bf16.mxu0 0
    %6927 = vmatpush1.bf16.msra.mxu0 0
    %6928 = vmatprep.subr.bf16.mxu0 0
    %6929 = vmatpush1.bf16.msra.mxu0 0
    %6930 = vmatprep.mubr.bf16.mxu0 0
    %6931 = vmatmul.mubr.bf16.gmra.mrb[0].mxu0 %v6695
    %v6932 = vpop.f32.mrb[0].mxu0
    %v6933 = vadd.f32 0.0, %v6932
    %v6934 = vpop.f32.mrb[0].mxu0
    %v6935 = vadd.f32 0.0, %v6934
    %v6936 = vpop.f32.mrb[0].mxu0
    %v6937 = vpop.f32.mrb[0].mxu0
    %6938 = vdwg.mxu0
    %v6971 = vunpack.c.l.b16 %v6629
    %v6972 = vunpack.c.h.b16 %v6629
    %v6973 = vunpack.c.l.b16 %v6630
    %v6974 = vunpack.c.h.b16 %v6630
    %v6975 = vunpack.c.l.b16 %v6631
    %v6976 = vunpack.c.h.b16 %v6631
    %v6977 = vunpack.c.l.b16 %v6632
    %v6978 = vunpack.c.h.b16 %v6632
    %v6979 = vunpack.c.l.b16 %v6633
    %v6980 = vunpack.c.h.b16 %v6633
    %v6981 = vunpack.c.l.b16 %v6634
    %v6982 = vunpack.c.h.b16 %v6634
    %v6983 = vunpack.c.l.b16 %v6635
    %v6984 = vunpack.c.h.b16 %v6635
    %v6985 = vunpack.c.l.b16 %v6636
    %v6986 = vunpack.c.h.b16 %v6636
    %v6987 = vunpack.c.l.b16 %v6637
    %v6988 = vunpack.c.h.b16 %v6637
    %v6989 = vunpack.c.l.b16 %v6638
    %v6990 = vunpack.c.h.b16 %v6638
    %v6991 = vunpack.c.l.b16 %v6639
    %v6992 = vunpack.c.h.b16 %v6639
    %v6993 = vunpack.c.l.b16 %v6640
    %v6994 = vunpack.c.h.b16 %v6640
    %v6995 = vunpack.c.l.b16 %v6641
    %v6996 = vunpack.c.h.b16 %v6641
    %v6997 = vunpack.c.l.b16 %v6642
    %v6998 = vunpack.c.h.b16 %v6642
    %v6999 = vunpack.c.l.b16 %v6643
    %v7000 = vunpack.c.h.b16 %v6643
    %v7001 = vunpack.c.l.b16 %v6644
    %v7002 = vunpack.c.h.b16 %v6644
    %v7003 = vunpack.c.l.b16 %v6645
    %v7004 = vunpack.c.h.b16 %v6645
    %v7005 = vunpack.c.l.b16 %v6646
    %v7006 = vunpack.c.h.b16 %v6646
    %v7007 = vunpack.c.l.b16 %v6647
    %v7008 = vunpack.c.h.b16 %v6647
    %v7009 = vunpack.c.l.b16 %v6648
    %v7010 = vunpack.c.h.b16 %v6648
    %v7011 = vunpack.c.l.b16 %v6649
    %v7012 = vunpack.c.h.b16 %v6649
    %v7013 = vunpack.c.l.b16 %v6650
    %v7014 = vunpack.c.h.b16 %v6650
    %v7015 = vunpack.c.l.b16 %v6651
    %v7016 = vunpack.c.h.b16 %v6651
    %v7017 = vunpack.c.l.b16 %v6652
    %v7018 = vunpack.c.h.b16 %v6652
    %v7019 = vunpack.c.l.b16 %v6653
    %v7020 = vunpack.c.h.b16 %v6653
    %v7021 = vunpack.c.l.b16 %v6654
    %v7022 = vunpack.c.h.b16 %v6654
    %v7023 = vunpack.c.l.b16 %v6655
    %v7024 = vunpack.c.h.b16 %v6655
    %v7025 = vunpack.c.l.b16 %v6656
    %v7026 = vunpack.c.h.b16 %v6656
    %v7027 = vunpack.c.l.b16 %v6657
    %v7028 = vunpack.c.h.b16 %v6657
    %v7029 = vunpack.c.l.b16 %v6658
    %v7030 = vunpack.c.h.b16 %v6658
    %v7031 = vunpack.c.l.b16 %v6659
    %v7032 = vunpack.c.h.b16 %v6659
    %v7033 = vunpack.c.l.b16 %v6660
    %v7034 = vunpack.c.h.b16 %v6660
    %v7035 = vpack.c.b16 %v6975, %v6971
    %v7036 = vpack.c.b16 %v6976, %v6972
    %v7037 = vpack.c.b16 %v6977, %v6973
    %v7038 = vpack.c.b16 %v6978, %v6974
    %v7039 = vpack.c.b16 %v6983, %v6979
    %v7040 = vpack.c.b16 %v6984, %v6980
    %v7041 = vpack.c.b16 %v6985, %v6981
    %v7042 = vpack.c.b16 %v6986, %v6982
    %v7043 = vpack.c.b16 %v6991, %v6987
    %v7044 = vpack.c.b16 %v6992, %v6988
    %v7045 = vpack.c.b16 %v6993, %v6989
    %v7046 = vpack.c.b16 %v6994, %v6990
    %v7047 = vpack.c.b16 %v6999, %v6995
    %v7048 = vpack.c.b16 %v7000, %v6996
    %v7049 = vpack.c.b16 %v7001, %v6997
    %v7050 = vpack.c.b16 %v7002, %v6998
    %v7051 = vpack.c.b16 %v7007, %v7003
    %v7052 = vpack.c.b16 %v7008, %v7004
    %v7053 = vpack.c.b16 %v7009, %v7005
    %v7054 = vpack.c.b16 %v7010, %v7006
    %v7055 = vpack.c.b16 %v7015, %v7011
    %v7056 = vpack.c.b16 %v7016, %v7012
    %v7057 = vpack.c.b16 %v7017, %v7013
    %v7058 = vpack.c.b16 %v7018, %v7014
    %v7059 = vpack.c.b16 %v7023, %v7019
    %v7060 = vpack.c.b16 %v7024, %v7020
    %v7061 = vpack.c.b16 %v7025, %v7021
    %v7062 = vpack.c.b16 %v7026, %v7022
    %v7063 = vpack.c.b16 %v7031, %v7027
    %v7064 = vpack.c.b16 %v7032, %v7028
    %v7065 = vpack.c.b16 %v7033, %v7029
    %v7066 = vpack.c.b16 %v7034, %v7030
    %7099 = vmatprep.subr.bf16.mxu0 %v7036
    %7100 = vmatpush1.bf16.msra.mxu0 %v7035
    %7101 = vmatprep.subr.bf16.mxu0 %v7040
    %7102 = vmatpush1.bf16.msra.mxu0 %v7039
    %7103 = vmatprep.subr.bf16.mxu0 %v7044
    %7104 = vmatpush1.bf16.msra.mxu0 %v7043
    %7105 = vmatprep.subr.bf16.mxu0 %v7048
    %7106 = vmatpush1.bf16.msra.mxu0 %v7047
    %7107 = vmatprep.subr.bf16.mxu0 %v7052
    %7108 = vmatpush1.bf16.msra.mxu0 %v7051
    %7109 = vmatprep.subr.bf16.mxu0 %v7056
    %7110 = vmatpush1.bf16.msra.mxu0 %v7055
    %7111 = vmatprep.subr.bf16.mxu0 %v7060
    %7112 = vmatpush1.bf16.msra.mxu0 %v7059
    %7113 = vmatprep.subr.bf16.mxu0 %v7064
    %7114 = vmatpush1.bf16.msra.mxu0 %v7063
    %7115 = vmatprep.subr.bf16.mxu0 0
    %7116 = vmatpush1.bf16.msra.mxu0 0
    %7117 = vmatprep.subr.bf16.mxu0 0
    %7118 = vmatpush1.bf16.msra.mxu0 0
    %7119 = vmatprep.subr.bf16.mxu0 0
    %7120 = vmatpush1.bf16.msra.mxu0 0
    %7121 = vmatprep.subr.bf16.mxu0 0
    %7122 = vmatpush1.bf16.msra.mxu0 0
    %7123 = vmatprep.subr.bf16.mxu0 0
    %7124 = vmatpush1.bf16.msra.mxu0 0
    %7125 = vmatprep.subr.bf16.mxu0 0
    %7126 = vmatpush1.bf16.msra.mxu0 0
    %7127 = vmatprep.subr.bf16.mxu0 0
    %7128 = vmatpush1.bf16.msra.mxu0 0
    %7129 = vmatprep.subr.bf16.mxu0 0
    %7130 = vmatpush1.bf16.msra.mxu0 0
    %7131 = vmatprep.mubr.bf16.mxu0 0
    %7132 = vmatmul.mubr.bf16.gmra.mrb[0].mxu0 %v6628
    %v7133 = vpop.f32.mrb[0].mxu0
    %v7134 = vadd.f32 %v6892, %v7133
    %v7135 = vpop.f32.mrb[0].mxu0
    %v7136 = vadd.f32 %v6894, %v7135
    %v7137 = vpop.f32.mrb[0].mxu0
    %v7138 = vpop.f32.mrb[0].mxu0
    %7139 = vdwg.mxu0
    %7140 = vmatprep.subr.bf16.mxu0 %v7038
    %7141 = vmatpush1.bf16.msra.mxu0 %v7037
    %7142 = vmatprep.subr.bf16.mxu0 %v7042
    %7143 = vmatpush1.bf16.msra.mxu0 %v7041
    %7144 = vmatprep.subr.bf16.mxu0 %v7046
    %7145 = vmatpush1.bf16.msra.mxu0 %v7045
    %7146 = vmatprep.subr.bf16.mxu0 %v7050
    %7147 = vmatpush1.bf16.msra.mxu0 %v7049
    %7148 = vmatprep.subr.bf16.mxu0 %v7054
    %7149 = vmatpush1.bf16.msra.mxu0 %v7053
    %7150 = vmatprep.subr.bf16.mxu0 %v7058
    %7151 = vmatpush1.bf16.msra.mxu0 %v7057
    %7152 = vmatprep.subr.bf16.mxu0 %v7062
    %7153 = vmatpush1.bf16.msra.mxu0 %v7061
    %7154 = vmatprep.subr.bf16.mxu0 %v7066
    %7155 = vmatpush1.bf16.msra.mxu0 %v7065
    %7156 = vmatprep.subr.bf16.mxu0 0
    %7157 = vmatpush1.bf16.msra.mxu0 0
    %7158 = vmatprep.subr.bf16.mxu0 0
    %7159 = vmatpush1.bf16.msra.mxu0 0
    %7160 = vmatprep.subr.bf16.mxu0 0
    %7161 = vmatpush1.bf16.msra.mxu0 0
    %7162 = vmatprep.subr.bf16.mxu0 0
    %7163 = vmatpush1.bf16.msra.mxu0 0
    %7164 = vmatprep.subr.bf16.mxu0 0
    %7165 = vmatpush1.bf16.msra.mxu0 0
    %7166 = vmatprep.subr.bf16.mxu0 0
    %7167 = vmatpush1.bf16.msra.mxu0 0
    %7168 = vmatprep.subr.bf16.mxu0 0
    %7169 = vmatpush1.bf16.msra.mxu0 0
    %7170 = vmatprep.subr.bf16.mxu0 0
    %7171 = vmatpush1.bf16.msra.mxu0 0
    %7172 = vmatprep.mubr.bf16.mxu0 0
    %7173 = vmatmul.mubr.bf16.gmra.mrb[0].mxu0 %v6628
    %v7174 = vpop.f32.mrb[0].mxu0
    %v7175 = vadd.f32 %v6933, %v7174
    %v7176 = vpop.f32.mrb[0].mxu0
    %v7177 = vadd.f32 %v6935, %v7176
    %v7178 = vpop.f32.mrb[0].mxu0
    %v7179 = vpop.f32.mrb[0].mxu0
    %7180 = vdwg.mxu0
    %v7181 = vld [vmem:[#allocation22] sm:$0xf]
    %v7183 = vlaneseq
    %v7184 = vshrl.u32 %v7183, 7
    %v7185 = vsub.s32 0, %v7184
    %v7186 = vrot.slane %v7181, %v7185
    %v7187 = vlaneseq
    %v7188 = vshrl.u32 %v7187, 7
    %v7189 = vsub.s32 1, %v7188
    %v7190 = vrot.slane %v7181, %v7189
    %v7191 = vlaneseq
    %v7192 = vshrl.u32 %v7191, 7
    %v7193 = vsub.s32 2, %v7192
    %v7194 = vrot.slane %v7181, %v7193
    %v7195 = vlaneseq
    %v7196 = vshrl.u32 %v7195, 7
    %v7197 = vsub.s32 3, %v7196
    %v7198 = vrot.slane %v7181, %v7197
    %v7203 = vadd.f32 %v7134, %v7186
    %v7204 = vadd.f32 %v7136, %v7190
    %v7205 = vadd.f32 %v7175, %v7194
    %v7206 = vadd.f32 %v7177, %v7198
    %v7211 = vcombine.low %v7203, %v7204
    %v7212 = vcombine.low %v7205, %v7206
    %v7214 = vunpack.c.l.s4 1983009808
    %v7215 = vunpack.c.0.s8 %v7214
    %v7216 = vlaneseq
    %v7217 = vshrl.u32 %v7216, 7
    %v7218 = vsub.s32 %v7215, %v7217
    %v7219 = vrot.slane %v7211, %v7218
    %v7221 = vunpack.c.l.s4 1983009808
    %v7222 = vunpack.c.0.s8 %v7221
    %v7223 = vlaneseq
    %v7224 = vshrl.u32 %v7223, 7
    %v7225 = vsub.s32 %v7222, %v7224
    %v7226 = vrot.slane %v7212, %v7225
    %v7227 = vcombine.low %v7219, %v7226
    %7229 = vst [vmem:[%s15] sm:$0xff] %v7227
    // Predicated region
    $region118: #{encoder_forward.1} parent=1 // pred_check
      _
    $region119: #{encoder_forward.1} parent=1 // pred_check_branch
      %7231 = sbr.rel (0) target = $region121
    $region120: #{encoder_forward.1} parent=1 // pred_region
      _
    $region121: #{encoder_forward.1} parent=1 // pred_fallthru
      _
    // Predicated region
    $region122: #{encoder_forward.1} parent=1 // pred_check
      _
    $region123: #{encoder_forward.1} parent=1 // pred_check_branch
      %7233 = sbr.rel (0) target = $region125
    $region124: #{encoder_forward.1} parent=1 // pred_region
      _
    $region125: #{encoder_forward.1} parent=1 // pred_fallthru
      _
    %7234 = vsyncpa [#allocation3], 1
    %7235 = vsyncpa [#allocation5], 1
    %7236 = vsyncpa [#allocation8], 1
    %7237 = vsyncpa [#allocation11], 1
    %7238 = vsyncpa [#allocation14], 1
    %7239 = vsyncpa [#allocation17], 1
    %7240 = vsyncpa [#allocation20], 1
    %7241 = vsyncpa [#allocation23], 1

</llo_original>
